<compile_context>
chip_gen: v5e
topology: v5e:2x2
jax: 0.10.0
libtpu: 0.0.40
codegen_flags: <defaults>
</compile_context>

<pallas_src>
import jax
import jax.numpy as jnp
from jax import lax
from jax.experimental import pallas as pl
from jax.experimental.pallas import tpu as pltpu


# Batch tile: ~19 MiB of VMEM per tile at 128 (incl. double buffering), which
# fits v7x's 64 MiB; on v5e/v6e (128 MiB) it can be raised to 256-512 together
# with vmem_limit_bytes.  Batches >= 2*TILE_N give >=2 grid steps so v7x's
# second TensorCore also gets work.
TILE_N = 128


# ---------------------------------------------------------------------------
# Pallas kernels
# ---------------------------------------------------------------------------
def _conv1_pool_relu_kernel(p_ref, w_ref, b_ref, o_ref):
    """conv1 + maxpool(2) + relu for one batch tile.

    p_ref: (4, T, 144, 32) bf16  im2col patches; dim0 = the 4 maxpool
                                 candidates, rows within a candidate are
                                 (sample, pooled position), K padded 25->32.
    w_ref: (32, 10) bf16         conv1 weight matrix (rows = kh,kw; zero-padded)
    b_ref: (1, 10)  f32
    o_ref: (T*144, 10) bf16      h1, rows = (sample, pooled position)
    """
    t = p_ref.shape[1]
    m = t * 144
    p2d = p_ref[...].reshape(4 * m, 32)
    # One MXU call covering all 4 pool candidates (stacked along M).
    z = jnp.dot(p2d, w_ref[...], preferred_element_type=jnp.float32)
    h = jnp.maximum(jnp.maximum(z[0:m], z[m:2 * m]),
                    jnp.maximum(z[2 * m:3 * m], z[3 * m:4 * m]))
    h = jnp.maximum(h + b_ref[...], 0.0)
    o_ref[...] = h.astype(o_ref.dtype)


def _conv2_head_kernel(p_ref, w2_ref, b2_ref, wf1_ref, bf1_ref, wf2_ref,
                       bf2_ref, o_ref):
    """conv2 + maxpool(2) + relu + fc1 + relu + fc2 + log_softmax for one tile.

    p_ref : (4, 16, T, 250) bf16  conv2 im2col patches; dims = (pool candidate,
                                  pooled position, sample, kh*kw*cin)
    w2_ref: (250, 20) bf16        conv2 weight matrix (rows ordered kh,kw,cin)
    b2_ref: (1, 20)  f32
    wf1_ref: (16, 20, 50) bf16    fc1 weight, split per pooled position
    bf1_ref: (1, 50) f32
    wf2_ref: (50, 10) bf16
    bf2_ref: (1, 10) f32
    o_ref : (T, 10) f32           log-probabilities
    """
    t = p_ref.shape[2]
    m = 16 * t
    p2d = p_ref[...].reshape(4 * m, 250)
    # One MXU call for the whole conv2 stage of the tile.
    z = jnp.dot(p2d, w2_ref[...], preferred_element_type=jnp.float32)
    h2 = jnp.maximum(jnp.maximum(z[0:m], z[m:2 * m]),
                     jnp.maximum(z[2 * m:3 * m], z[3 * m:4 * m]))  # (16T, 20)
    h2 = jnp.maximum(h2 + b2_ref[...], 0.0).astype(jnp.bfloat16)

    # fc1: contraction over (position, channel).  Rows of h2 are position-major
    # / sample-minor, so each term is an aligned contiguous 2-D slice and the
    # contraction is 16 accumulated (T,20)@(20,50) MXU calls.
    acc = jnp.dot(h2[0:t], wf1_ref[0], preferred_element_type=jnp.float32)
    for p in range(1, 16):
        acc = acc + jnp.dot(h2[p * t:(p + 1) * t], wf1_ref[p],
                            preferred_element_type=jnp.float32)
    h3 = jnp.maximum(acc + bf1_ref[...], 0.0)
    # TODO(synk): F.dropout is identity here (eval semantics).
    logits = jnp.dot(h3.astype(jnp.bfloat16), wf2_ref[...],
                     preferred_element_type=jnp.float32) + bf2_ref[...]
    mx = jnp.max(logits, axis=-1, keepdims=True)       # stable log_softmax
    s = logits - mx
    lse = jnp.log(jnp.sum(jnp.exp(s), axis=-1, keepdims=True))
    o_ref[...] = s - lse


# ---------------------------------------------------------------------------
# pallas_call wrappers
# ---------------------------------------------------------------------------
def _conv1_stage(p1, w1m, b1, tile):
    n_pad = p1.shape[1]
    return pl.pallas_call(
        _conv1_pool_relu_kernel,
        out_shape=jax.ShapeDtypeStruct((n_pad * 144, 10), jnp.bfloat16),
        grid=(n_pad // tile,),
        in_specs=[
            pl.BlockSpec((4, tile, 144, 32), lambda i: (0, i, 0, 0)),
            pl.BlockSpec((32, 10), lambda i: (0, 0)),
            pl.BlockSpec((1, 10), lambda i: (0, 0)),
        ],
        out_specs=pl.BlockSpec((tile * 144, 10), lambda i: (i, 0)),
        compiler_params=pltpu.CompilerParams(
            dimension_semantics=("parallel",),
            vmem_limit_bytes=48 * 1024 * 1024),
    )(p1, w1m, b1)


def _conv2_head_stage(p2, w2m, b2, wf1, bf1, wf2, bf2, tile):
    n_pad = p2.shape[2]
    return pl.pallas_call(
        _conv2_head_kernel,
        out_shape=jax.ShapeDtypeStruct((n_pad, 10), jnp.float32),
        grid=(n_pad // tile,),
        in_specs=[
            pl.BlockSpec((4, 16, tile, 250), lambda i: (0, 0, i, 0)),
            pl.BlockSpec((250, 20), lambda i: (0, 0)),
            pl.BlockSpec((1, 20), lambda i: (0, 0)),
            pl.BlockSpec((16, 20, 50), lambda i: (0, 0, 0)),
            pl.BlockSpec((1, 50), lambda i: (0, 0)),
            pl.BlockSpec((50, 10), lambda i: (0, 0)),
            pl.BlockSpec((1, 10), lambda i: (0, 0)),
        ],
        out_specs=pl.BlockSpec((tile, 10), lambda i: (i, 0)),
        compiler_params=pltpu.CompilerParams(
            dimension_semantics=("parallel",),
            vmem_limit_bytes=48 * 1024 * 1024),
    )(p2, w2m, b2, wf1, bf1, wf2, bf2)


# ---------------------------------------------------------------------------
# Glue (pure data rearrangement, no arithmetic)
# ---------------------------------------------------------------------------
def _round_up(v, m):
    return ((v + m - 1) // m) * m


def _im2col_5x5(x):
    """(N, H, W, C) -> (N, H-4, W-4, 25*C); feature order = (kh, kw, cin)."""
    n, h, w, c = x.shape
    oh, ow = h - 4, w - 4
    sl = [x[:, kh:kh + oh, kw:kw + ow, :] for kh in range(5) for kw in range(5)]
    return jnp.stack(sl, axis=3).reshape(n, oh, ow, 25 * c)


def quant_lenet_forward(x_nchw, params):
    n = x_nchw.shape[0]
    # Pad the batch to a multiple of 16 so in-kernel row collapses / slices are
    # (bf16) tile aligned, then tile it.
    tile = max(16, min(TILE_N, _round_up(n, 16)))
    n_pad = _round_up(n, tile)
    x = jnp.pad(x_nchw.astype(jnp.float32),
                ((0, n_pad - n), (0, 0), (0, 0), (0, 0)))
    x = jnp.transpose(x, (0, 2, 3, 1))                       # NHWC (Np,28,28,1)

    # ---- stage 1: conv1 + maxpool(2) + relu (fused, batch-tiled kernel) -----
    p1 = _im2col_5x5(x)                                      # (Np,24,24,25)
    # group the 4 pool candidates: (cand, sample, pooled position, feature)
    p1 = p1.reshape(n_pad, 12, 2, 12, 2, 25)
    p1 = p1.transpose(2, 4, 0, 1, 3, 5).reshape(4, n_pad, 144, 25)
    p1 = jnp.pad(p1, ((0, 0), (0, 0), (0, 0), (0, 7))).astype(jnp.bfloat16)
    w1m = jnp.transpose(params["conv1_w"], (2, 3, 1, 0)).reshape(25, 10)
    w1m = jnp.pad(w1m, ((0, 7), (0, 0))).astype(jnp.bfloat16)      # K 25->32
    b1 = params["conv1_b"].reshape(1, 10).astype(jnp.float32)
    h1 = _conv1_stage(p1, w1m, b1, tile)                     # (Np*144, 10) bf16
    h1 = h1.reshape(n_pad, 12, 12, 10)

    # ---- stage 2: conv2 + pool + relu + fc1 + relu + fc2 + log_softmax ------
    p2 = _im2col_5x5(h1)                                     # (Np,8,8,250)
    # group pool candidates, position-major / sample-minor rows for the kernel
    p2 = p2.reshape(n_pad, 4, 2, 4, 2, 250)
    p2 = p2.transpose(2, 4, 1, 3, 0, 5).reshape(4, 16, n_pad, 250)
    w2m = jnp.transpose(params["conv2_w"], (2, 3, 1, 0)).reshape(250, 20)
    w2m = w2m.astype(jnp.bfloat16)
    b2 = params["conv2_b"].reshape(1, 20).astype(jnp.float32)
    # fc1 weight columns: PyTorch flattens (c, h, w); our features are
    # (h, w, c) per position -> split per pooled position: (16, 20, 50)
    wf1 = jnp.transpose(params["fc1_w"].reshape(50, 20, 4, 4),
                        (2, 3, 1, 0)).reshape(16, 20, 50).astype(jnp.bfloat16)
    bf1 = params["fc1_b"].reshape(1, 50).astype(jnp.float32)
    wf2 = params["fc2_w"].T.astype(jnp.bfloat16)             # (50, 10)
    bf2 = params["fc2_b"].reshape(1, 10).astype(jnp.float32)
    out = _conv2_head_stage(p2, w2m, b2, wf1, bf1, wf2, bf2, tile)
    return out[:n]


# ---------------------------------------------------------------------------
# Reference (pure JAX, PyTorch semantics) for verification
# ---------------------------------------------------------------------------
def reference_forward(x, params):
    def conv(inp, w, b):
        out = lax.conv_general_dilated(inp, w, (1, 1), "VALID",
                                       dimension_numbers=("NCHW", "OIHW", "NCHW"))
        return out + b[None, :, None, None]

    def pool(t):
        return lax.reduce_window(t, -jnp.inf, lax.max,
                                 (1, 1, 2, 2), (1, 1, 2, 2), "VALID")

    h = jax.nn.relu(pool(conv(x, params["conv1_w"], params["conv1_b"])))
    h = jax.nn.relu(pool(conv(h, params["conv2_w"], params["conv2_b"])))
    h = h.reshape(-1, 320)
    h = jax.nn.relu(h @ params["fc1_w"].T + params["fc1_b"])
    logits = h @ params["fc2_w"].T + params["fc2_b"]
    return jax.nn.log_softmax(logits, axis=1)


# ---------------------------------------------------------------------------
def init_params(key):
    ks = jax.random.split(key, 8)
    scale = 0.1
    return {
        "conv1_w": scale * jax.random.normal(ks[0], (10, 1, 5, 5), jnp.float32),
        "conv1_b": scale * jax.random.normal(ks[1], (10,), jnp.float32),
        "conv2_w": scale * jax.random.normal(ks[2], (20, 10, 5, 5), jnp.float32),
        "conv2_b": scale * jax.random.normal(ks[3], (20,), jnp.float32),
        "fc1_w": scale * jax.random.normal(ks[4], (50, 320), jnp.float32),
        "fc1_b": scale * jax.random.normal(ks[5], (50,), jnp.float32),
        "fc2_w": scale * jax.random.normal(ks[6], (10, 50), jnp.float32),
        "fc2_b": scale * jax.random.normal(ks[7], (10,), jnp.float32),
    }


if __name__ == "__main__":
    key = jax.random.PRNGKey(0)
    pkey, xkey = jax.random.split(key)
    params = init_params(pkey)
    # LeNet forward implies 28x28 single-channel input (flattens to 320 feats)
    x = jax.random.normal(xkey, (2, 1, 28, 28), jnp.float32)

    fwd = jax.jit(quant_lenet_forward)
    out = jax.block_until_ready(fwd(x, params))
    assert out.shape == (2, 10), out.shape

    ref = jax.block_until_ready(reference_forward(x, params))
    max_diff = float(jnp.max(jnp.abs(out - ref)))
    # bf16 matmul operands (f32 accumulation) vs. f32 reference
    assert jnp.allclose(out, ref, atol=2e-2, rtol=2e-2), \
        f"max abs diff {max_diff}"

    print("KERNEL_OK")
</pallas_src>

<mosaic_0001>
module attributes {stable_mosaic.version = 11 : i64} {
  func.func @_conv1_pool_relu_kernel(%arg0: i32, %arg1: memref<4x16x144x32xbf16, #tpu.memory_space<vmem>>, %arg2: memref<32x10xbf16, #tpu.memory_space<vmem>>, %arg3: memref<1x10xf32, #tpu.memory_space<vmem>>, %arg4: memref<2304x10xbf16, #tpu.memory_space<vmem>>) attributes {dimension_semantics = [#tpu.dimension_semantics<parallel>], iteration_bounds = array<i64: 1>, scalar_prefetch = 0 : i64, scratch_operands = 0 : i64, tpu.core_type = #tpu.core_type<tc>, window_params = [{transform_indices = @transform_0, window_bounds = array<i64: 4, 16, 144, 32>}, {pipeline_mode = #tpu.pipeline_mode<synchronous>, transform_indices = @transform_1, window_bounds = array<i64: 32, 10>}, {pipeline_mode = #tpu.pipeline_mode<synchronous>, transform_indices = @transform_2, window_bounds = array<i64: 1, 10>}, {transform_indices = @transform_3, window_bounds = array<i64: 2304, 10>}]} {
    %c0 = arith.constant 0 : index
    %c0_0 = arith.constant 0 : index
    %c0_1 = arith.constant 0 : index
    %c0_2 = arith.constant 0 : index
    %0 = vector.load %arg1[%c0, %c0_0, %c0_1, %c0_2] : memref<4x16x144x32xbf16, #tpu.memory_space<vmem>>, vector<4x16x144x32xbf16>
    %1 = vector.shape_cast %0 : vector<4x16x144x32xbf16> to vector<9216x32xbf16>
    %c0_3 = arith.constant 0 : index
    %c0_4 = arith.constant 0 : index
    %2 = vector.load %arg2[%c0_3, %c0_4] : memref<32x10xbf16, #tpu.memory_space<vmem>>, vector<32x10xbf16>
    %cst = arith.constant dense<0.000000e+00> : vector<9216x10xf32>
    %3 = tpu.matmul %1, %2, %cst {dimension_numbers = #tpu.dot_dimension_numbers<[1], [0], [0], [1], [0, 0, 1, 1], [], []>} : vector<9216x32xbf16>, vector<32x10xbf16>, vector<9216x10xf32> -> vector<9216x10xf32>
    %4 = vector.extract_strided_slice %3 {offsets = [0, 0], sizes = [2304, 10], strides = [1, 1]} : vector<9216x10xf32> to vector<2304x10xf32>
    %5 = vector.extract_strided_slice %3 {offsets = [2304, 0], sizes = [2304, 10], strides = [1, 1]} : vector<9216x10xf32> to vector<2304x10xf32>
    %6 = arith.maximumf %4, %5 : vector<2304x10xf32>
    %7 = vector.extract_strided_slice %3 {offsets = [4608, 0], sizes = [2304, 10], strides = [1, 1]} : vector<9216x10xf32> to vector<2304x10xf32>
    %8 = vector.extract_strided_slice %3 {offsets = [6912, 0], sizes = [2304, 10], strides = [1, 1]} : vector<9216x10xf32> to vector<2304x10xf32>
    %9 = arith.maximumf %7, %8 : vector<2304x10xf32>
    %10 = arith.maximumf %6, %9 : vector<2304x10xf32>
    %c0_5 = arith.constant 0 : index
    %c0_6 = arith.constant 0 : index
    %11 = vector.load %arg3[%c0_5, %c0_6] : memref<1x10xf32, #tpu.memory_space<vmem>>, vector<1x10xf32>
    %12 = vector.broadcast %11 : vector<1x10xf32> to vector<2304x10xf32>
    %13 = arith.addf %10, %12 : vector<2304x10xf32>
    %cst_7 = arith.constant 0.000000e+00 : f32
    %14 = vector.broadcast %cst_7 : f32 to vector<2304x10xf32>
    %15 = arith.maximumf %13, %14 : vector<2304x10xf32>
    %16 = arith.truncf %15 : vector<2304x10xf32> to vector<2304x10xbf16>
    %c0_8 = arith.constant 0 : index
    %c0_9 = arith.constant 0 : index
    %17 = vector.load %arg4[%c0_8, %c0_9] : memref<2304x10xbf16, #tpu.memory_space<vmem>>, vector<2304x10xbf16>
    tpu.vector_store %arg4[%c0_8, %c0_9], %16 {strides = array<i32>} : memref<2304x10xbf16, #tpu.memory_space<vmem>>, vector<2304x10xbf16>,
    return
  }
  func.func @transform_0(%arg0: i32) -> (i32, i32, i32, i32) {
    %c0_i32 = arith.constant 0 : i32
    %c0_i32_0 = arith.constant 0 : i32
    %c0_i32_1 = arith.constant 0 : i32
    %c0_i32_2 = arith.constant 0 : i32
    return %c0_i32, %arg0, %c0_i32_0, %c0_i32_1 : i32, i32, i32, i32
  }
  func.func @transform_1(%arg0: i32) -> (i32, i32) {
    %c0_i32 = arith.constant 0 : i32
    %c0_i32_0 = arith.constant 0 : i32
    %c0_i32_1 = arith.constant 0 : i32
    return %c0_i32, %c0_i32_0 : i32, i32
  }
  func.func @transform_2(%arg0: i32) -> (i32, i32) {
    %c0_i32 = arith.constant 0 : i32
    %c0_i32_0 = arith.constant 0 : i32
    %c0_i32_1 = arith.constant 0 : i32
    return %c0_i32, %c0_i32_0 : i32, i32
  }
  func.func @transform_3(%arg0: i32) -> (i32, i32) {
    %c0_i32 = arith.constant 0 : i32
    %c0_i32_0 = arith.constant 0 : i32
    return %arg0, %c0_i32 : i32, i32
  }
}

module attributes {stable_mosaic.version = 11 : i64} {
  func.func @_conv2_head_kernel(%arg0: i32, %arg1: memref<4x16x16x250xbf16, #tpu.memory_space<vmem>>, %arg2: memref<250x20xbf16, #tpu.memory_space<vmem>>, %arg3: memref<1x20xf32, #tpu.memory_space<vmem>>, %arg4: memref<16x20x50xbf16, #tpu.memory_space<vmem>>, %arg5: memref<1x50xf32, #tpu.memory_space<vmem>>, %arg6: memref<50x10xbf16, #tpu.memory_space<vmem>>, %arg7: memref<1x10xf32, #tpu.memory_space<vmem>>, %arg8: memref<16x10xf32, #tpu.memory_space<vmem>>) attributes {dimension_semantics = [#tpu.dimension_semantics<parallel>], iteration_bounds = array<i64: 1>, scalar_prefetch = 0 : i64, scratch_operands = 0 : i64, tpu.core_type = #tpu.core_type<tc>, window_params = [{transform_indices = @transform_0, window_bounds = array<i64: 4, 16, 16, 250>}, {pipeline_mode = #tpu.pipeline_mode<synchronous>, transform_indices = @transform_1, window_bounds = array<i64: 250, 20>}, {pipeline_mode = #tpu.pipeline_mode<synchronous>, transform_indices = @transform_2, window_bounds = array<i64: 1, 20>}, {pipeline_mode = #tpu.pipeline_mode<synchronous>, transform_indices = @transform_3, window_bounds = array<i64: 16, 20, 50>}, {pipeline_mode = #tpu.pipeline_mode<synchronous>, transform_indices = @transform_4, window_bounds = array<i64: 1, 50>}, {pipeline_mode = #tpu.pipeline_mode<synchronous>, transform_indices = @transform_5, window_bounds = array<i64: 50, 10>}, {pipeline_mode = #tpu.pipeline_mode<synchronous>, transform_indices = @transform_6, window_bounds = array<i64: 1, 10>}, {transform_indices = @transform_7, window_bounds = array<i64: 16, 10>}]} {
    %c0 = arith.constant 0 : index
    %c0_0 = arith.constant 0 : index
    %c0_1 = arith.constant 0 : index
    %c0_2 = arith.constant 0 : index
    %0 = vector.load %arg1[%c0, %c0_0, %c0_1, %c0_2] : memref<4x16x16x250xbf16, #tpu.memory_space<vmem>>, vector<4x16x16x250xbf16>
    %1 = vector.shape_cast %0 : vector<4x16x16x250xbf16> to vector<1024x250xbf16>
    %c0_3 = arith.constant 0 : index
    %c0_4 = arith.constant 0 : index
    %2 = vector.load %arg2[%c0_3, %c0_4] : memref<250x20xbf16, #tpu.memory_space<vmem>>, vector<250x20xbf16>
    %cst = arith.constant dense<0.000000e+00> : vector<1024x20xf32>
    %3 = tpu.matmul %1, %2, %cst {dimension_numbers = #tpu.dot_dimension_numbers<[1], [0], [0], [1], [0, 0, 1, 1], [], []>} : vector<1024x250xbf16>, vector<250x20xbf16>, vector<1024x20xf32> -> vector<1024x20xf32>
    %4 = vector.extract_strided_slice %3 {offsets = [0, 0], sizes = [256, 20], strides = [1, 1]} : vector<1024x20xf32> to vector<256x20xf32>
    %5 = vector.extract_strided_slice %3 {offsets = [256, 0], sizes = [256, 20], strides = [1, 1]} : vector<1024x20xf32> to vector<256x20xf32>
    %6 = arith.maximumf %4, %5 : vector<256x20xf32>
    %7 = vector.extract_strided_slice %3 {offsets = [512, 0], sizes = [256, 20], strides = [1, 1]} : vector<1024x20xf32> to vector<256x20xf32>
    %8 = vector.extract_strided_slice %3 {offsets = [768, 0], sizes = [256, 20], strides = [1, 1]} : vector<1024x20xf32> to vector<256x20xf32>
    %9 = arith.maximumf %7, %8 : vector<256x20xf32>
    %10 = arith.maximumf %6, %9 : vector<256x20xf32>
    %c0_5 = arith.constant 0 : index
    %c0_6 = arith.constant 0 : index
    %11 = vector.load %arg3[%c0_5, %c0_6] : memref<1x20xf32, #tpu.memory_space<vmem>>, vector<1x20xf32>
    %12 = vector.broadcast %11 : vector<1x20xf32> to vector<256x20xf32>
    %13 = arith.addf %10, %12 : vector<256x20xf32>
    %cst_7 = arith.constant 0.000000e+00 : f32
    %14 = vector.broadcast %cst_7 : f32 to vector<256x20xf32>
    %15 = arith.maximumf %13, %14 : vector<256x20xf32>
    %16 = arith.truncf %15 : vector<256x20xf32> to vector<256x20xbf16>
    %17 = vector.extract_strided_slice %16 {offsets = [0, 0], sizes = [16, 20], strides = [1, 1]} : vector<256x20xbf16> to vector<16x20xbf16>
    %c0_8 = arith.constant 0 : index
    %c0_9 = arith.constant 0 : index
    %c0_10 = arith.constant 0 : index
    %18 = vector.load %arg4[%c0_8, %c0_9, %c0_10] : memref<16x20x50xbf16, #tpu.memory_space<vmem>>, vector<1x20x50xbf16>
    %19 = vector.shape_cast %18 : vector<1x20x50xbf16> to vector<20x50xbf16>
    %cst_11 = arith.constant dense<0.000000e+00> : vector<16x50xf32>
    %20 = tpu.matmul %17, %19, %cst_11 {dimension_numbers = #tpu.dot_dimension_numbers<[1], [0], [0], [1], [0, 0, 1, 1], [], []>} : vector<16x20xbf16>, vector<20x50xbf16>, vector<16x50xf32> -> vector<16x50xf32>
    %21 = vector.extract_strided_slice %16 {offsets = [16, 0], sizes = [16, 20], strides = [1, 1]} : vector<256x20xbf16> to vector<16x20xbf16>
    %c1 = arith.constant 1 : index
    %c0_12 = arith.constant 0 : index
    %c0_13 = arith.constant 0 : index
    %22 = vector.load %arg4[%c1, %c0_12, %c0_13] : memref<16x20x50xbf16, #tpu.memory_space<vmem>>, vector<1x20x50xbf16>
    %23 = vector.shape_cast %22 : vector<1x20x50xbf16> to vector<20x50xbf16>
    %cst_14 = arith.constant dense<0.000000e+00> : vector<16x50xf32>
    %24 = tpu.matmul %21, %23, %cst_14 {dimension_numbers = #tpu.dot_dimension_numbers<[1], [0], [0], [1], [0, 0, 1, 1], [], []>} : vector<16x20xbf16>, vector<20x50xbf16>, vector<16x50xf32> -> vector<16x50xf32>
    %25 = arith.addf %20, %24 : vector<16x50xf32>
    %26 = vector.extract_strided_slice %16 {offsets = [32, 0], sizes = [16, 20], strides = [1, 1]} : vector<256x20xbf16> to vector<16x20xbf16>
    %c2 = arith.constant 2 : index
    %c0_15 = arith.constant 0 : index
    %c0_16 = arith.constant 0 : index
    %27 = vector.load %arg4[%c2, %c0_15, %c0_16] : memref<16x20x50xbf16, #tpu.memory_space<vmem>>, vector<1x20x50xbf16>
    %28 = vector.shape_cast %27 : vector<1x20x50xbf16> to vector<20x50xbf16>
    %cst_17 = arith.constant dense<0.000000e+00> : vector<16x50xf32>
    %29 = tpu.matmul %26, %28, %cst_17 {dimension_numbers = #tpu.dot_dimension_numbers<[1], [0], [0], [1], [0, 0, 1, 1], [], []>} : vector<16x20xbf16>, vector<20x50xbf16>, vector<16x50xf32> -> vector<16x50xf32>
    %30 = arith.addf %25, %29 : vector<16x50xf32>
    %31 = vector.extract_strided_slice %16 {offsets = [48, 0], sizes = [16, 20], strides = [1, 1]} : vector<256x20xbf16> to vector<16x20xbf16>
    %c3 = arith.constant 3 : index
    %c0_18 = arith.constant 0 : index
    %c0_19 = arith.constant 0 : index
    %32 = vector.load %arg4[%c3, %c0_18, %c0_19] : memref<16x20x50xbf16, #tpu.memory_space<vmem>>, vector<1x20x50xbf16>
    %33 = vector.shape_cast %32 : vector<1x20x50xbf16> to vector<20x50xbf16>
    %cst_20 = arith.constant dense<0.000000e+00> : vector<16x50xf32>
    %34 = tpu.matmul %31, %33, %cst_20 {dimension_numbers = #tpu.dot_dimension_numbers<[1], [0], [0], [1], [0, 0, 1, 1], [], []>} : vector<16x20xbf16>, vector<20x50xbf16>, vector<16x50xf32> -> vector<16x50xf32>
    %35 = arith.addf %30, %34 : vector<16x50xf32>
    %36 = vector.extract_strided_slice %16 {offsets = [64, 0], sizes = [16, 20], strides = [1, 1]} : vector<256x20xbf16> to vector<16x20xbf16>
    %c4 = arith.constant 4 : index
    %c0_21 = arith.constant 0 : index
    %c0_22 = arith.constant 0 : index
    %37 = vector.load %arg4[%c4, %c0_21, %c0_22] : memref<16x20x50xbf16, #tpu.memory_space<vmem>>, vector<1x20x50xbf16>
    %38 = vector.shape_cast %37 : vector<1x20x50xbf16> to vector<20x50xbf16>
    %cst_23 = arith.constant dense<0.000000e+00> : vector<16x50xf32>
    %39 = tpu.matmul %36, %38, %cst_23 {dimension_numbers = #tpu.dot_dimension_numbers<[1], [0], [0], [1], [0, 0, 1, 1], [], []>} : vector<16x20xbf16>, vector<20x50xbf16>, vector<16x50xf32> -> vector<16x50xf32>
    %40 = arith.addf %35, %39 : vector<16x50xf32>
    %41 = vector.extract_strided_slice %16 {offsets = [80, 0], sizes = [16, 20], strides = [1, 1]} : vector<256x20xbf16> to vector<16x20xbf16>
    %c5 = arith.constant 5 : index
    %c0_24 = arith.constant 0 : index
    %c0_25 = arith.constant 0 : index
    %42 = vector.load %arg4[%c5, %c0_24, %c0_25] : memref<16x20x50xbf16, #tpu.memory_space<vmem>>, vector<1x20x50xbf16>
    %43 = vector.shape_cast %42 : vector<1x20x50xbf16> to vector<20x50xbf16>
    %cst_26 = arith.constant dense<0.000000e+00> : vector<16x50xf32>
    %44 = tpu.matmul %41, %43, %cst_26 {dimension_numbers = #tpu.dot_dimension_numbers<[1], [0], [0], [1], [0, 0, 1, 1], [], []>} : vector<16x20xbf16>, vector<20x50xbf16>, vector<16x50xf32> -> vector<16x50xf32>
    %45 = arith.addf %40, %44 : vector<16x50xf32>
    %46 = vector.extract_strided_slice %16 {offsets = [96, 0], sizes = [16, 20], strides = [1, 1]} : vector<256x20xbf16> to vector<16x20xbf16>
    %c6 = arith.constant 6 : index
    %c0_27 = arith.constant 0 : index
    %c0_28 = arith.constant 0 : index
    %47 = vector.load %arg4[%c6, %c0_27, %c0_28] : memref<16x20x50xbf16, #tpu.memory_space<vmem>>, vector<1x20x50xbf16>
    %48 = vector.shape_cast %47 : vector<1x20x50xbf16> to vector<20x50xbf16>
    %cst_29 = arith.constant dense<0.000000e+00> : vector<16x50xf32>
    %49 = tpu.matmul %46, %48, %cst_29 {dimension_numbers = #tpu.dot_dimension_numbers<[1], [0], [0], [1], [0, 0, 1, 1], [], []>} : vector<16x20xbf16>, vector<20x50xbf16>, vector<16x50xf32> -> vector<16x50xf32>
    %50 = arith.addf %45, %49 : vector<16x50xf32>
    %51 = vector.extract_strided_slice %16 {offsets = [112, 0], sizes = [16, 20], strides = [1, 1]} : vector<256x20xbf16> to vector<16x20xbf16>
    %c7 = arith.constant 7 : index
    %c0_30 = arith.constant 0 : index
    %c0_31 = arith.constant 0 : index
    %52 = vector.load %arg4[%c7, %c0_30, %c0_31] : memref<16x20x50xbf16, #tpu.memory_space<vmem>>, vector<1x20x50xbf16>
    %53 = vector.shape_cast %52 : vector<1x20x50xbf16> to vector<20x50xbf16>
    %cst_32 = arith.constant dense<0.000000e+00> : vector<16x50xf32>
    %54 = tpu.matmul %51, %53, %cst_32 {dimension_numbers = #tpu.dot_dimension_numbers<[1], [0], [0], [1], [0, 0, 1, 1], [], []>} : vector<16x20xbf16>, vector<20x50xbf16>, vector<16x50xf32> -> vector<16x50xf32>
    %55 = arith.addf %50, %54 : vector<16x50xf32>
    %56 = vector.extract_strided_slice %16 {offsets = [128, 0], sizes = [16, 20], strides = [1, 1]} : vector<256x20xbf16> to vector<16x20xbf16>
    %c8 = arith.constant 8 : index
    %c0_33 = arith.constant 0 : index
    %c0_34 = arith.constant 0 : index
    %57 = vector.load %arg4[%c8, %c0_33, %c0_34] : memref<16x20x50xbf16, #tpu.memory_space<vmem>>, vector<1x20x50xbf16>
    %58 = vector.shape_cast %57 : vector<1x20x50xbf16> to vector<20x50xbf16>
    %cst_35 = arith.constant dense<0.000000e+00> : vector<16x50xf32>
    %59 = tpu.matmul %56, %58, %cst_35 {dimension_numbers = #tpu.dot_dimension_numbers<[1], [0], [0], [1], [0, 0, 1, 1], [], []>} : vector<16x20xbf16>, vector<20x50xbf16>, vector<16x50xf32> -> vector<16x50xf32>
    %60 = arith.addf %55, %59 : vector<16x50xf32>
    %61 = vector.extract_strided_slice %16 {offsets = [144, 0], sizes = [16, 20], strides = [1, 1]} : vector<256x20xbf16> to vector<16x20xbf16>
    %c9 = arith.constant 9 : index
    %c0_36 = arith.constant 0 : index
    %c0_37 = arith.constant 0 : index
    %62 = vector.load %arg4[%c9, %c0_36, %c0_37] : memref<16x20x50xbf16, #tpu.memory_space<vmem>>, vector<1x20x50xbf16>
    %63 = vector.shape_cast %62 : vector<1x20x50xbf16> to vector<20x50xbf16>
    %cst_38 = arith.constant dense<0.000000e+00> : vector<16x50xf32>
    %64 = tpu.matmul %61, %63, %cst_38 {dimension_numbers = #tpu.dot_dimension_numbers<[1], [0], [0], [1], [0, 0, 1, 1], [], []>} : vector<16x20xbf16>, vector<20x50xbf16>, vector<16x50xf32> -> vector<16x50xf32>
    %65 = arith.addf %60, %64 : vector<16x50xf32>
    %66 = vector.extract_strided_slice %16 {offsets = [160, 0], sizes = [16, 20], strides = [1, 1]} : vector<256x20xbf16> to vector<16x20xbf16>
    %c10 = arith.constant 10 : index
    %c0_39 = arith.constant 0 : index
    %c0_40 = arith.constant 0 : index
    %67 = vector.load %arg4[%c10, %c0_39, %c0_40] : memref<16x20x50xbf16, #tpu.memory_space<vmem>>, vector<1x20x50xbf16>
    %68 = vector.shape_cast %67 : vector<1x20x50xbf16> to vector<20x50xbf16>
    %cst_41 = arith.constant dense<0.000000e+00> : vector<16x50xf32>
    %69 = tpu.matmul %66, %68, %cst_41 {dimension_numbers = #tpu.dot_dimension_numbers<[1], [0], [0], [1], [0, 0, 1, 1], [], []>} : vector<16x20xbf16>, vector<20x50xbf16>, vector<16x50xf32> -> vector<16x50xf32>
    %70 = arith.addf %65, %69 : vector<16x50xf32>
    %71 = vector.extract_strided_slice %16 {offsets = [176, 0], sizes = [16, 20], strides = [1, 1]} : vector<256x20xbf16> to vector<16x20xbf16>
    %c11 = arith.constant 11 : index
    %c0_42 = arith.constant 0 : index
    %c0_43 = arith.constant 0 : index
    %72 = vector.load %arg4[%c11, %c0_42, %c0_43] : memref<16x20x50xbf16, #tpu.memory_space<vmem>>, vector<1x20x50xbf16>
    %73 = vector.shape_cast %72 : vector<1x20x50xbf16> to vector<20x50xbf16>
    %cst_44 = arith.constant dense<0.000000e+00> : vector<16x50xf32>
    %74 = tpu.matmul %71, %73, %cst_44 {dimension_numbers = #tpu.dot_dimension_numbers<[1], [0], [0], [1], [0, 0, 1, 1], [], []>} : vector<16x20xbf16>, vector<20x50xbf16>, vector<16x50xf32> -> vector<16x50xf32>
    %75 = arith.addf %70, %74 : vector<16x50xf32>
    %76 = vector.extract_strided_slice %16 {offsets = [192, 0], sizes = [16, 20], strides = [1, 1]} : vector<256x20xbf16> to vector<16x20xbf16>
    %c12 = arith.constant 12 : index
    %c0_45 = arith.constant 0 : index
    %c0_46 = arith.constant 0 : index
    %77 = vector.load %arg4[%c12, %c0_45, %c0_46] : memref<16x20x50xbf16, #tpu.memory_space<vmem>>, vector<1x20x50xbf16>
    %78 = vector.shape_cast %77 : vector<1x20x50xbf16> to vector<20x50xbf16>
    %cst_47 = arith.constant dense<0.000000e+00> : vector<16x50xf32>
    %79 = tpu.matmul %76, %78, %cst_47 {dimension_numbers = #tpu.dot_dimension_numbers<[1], [0], [0], [1], [0, 0, 1, 1], [], []>} : vector<16x20xbf16>, vector<20x50xbf16>, vector<16x50xf32> -> vector<16x50xf32>
    %80 = arith.addf %75, %79 : vector<16x50xf32>
    %81 = vector.extract_strided_slice %16 {offsets = [208, 0], sizes = [16, 20], strides = [1, 1]} : vector<256x20xbf16> to vector<16x20xbf16>
    %c13 = arith.constant 13 : index
    %c0_48 = arith.constant 0 : index
    %c0_49 = arith.constant 0 : index
    %82 = vector.load %arg4[%c13, %c0_48, %c0_49] : memref<16x20x50xbf16, #tpu.memory_space<vmem>>, vector<1x20x50xbf16>
    %83 = vector.shape_cast %82 : vector<1x20x50xbf16> to vector<20x50xbf16>
    %cst_50 = arith.constant dense<0.000000e+00> : vector<16x50xf32>
    %84 = tpu.matmul %81, %83, %cst_50 {dimension_numbers = #tpu.dot_dimension_numbers<[1], [0], [0], [1], [0, 0, 1, 1], [], []>} : vector<16x20xbf16>, vector<20x50xbf16>, vector<16x50xf32> -> vector<16x50xf32>
    %85 = arith.addf %80, %84 : vector<16x50xf32>
    %86 = vector.extract_strided_slice %16 {offsets = [224, 0], sizes = [16, 20], strides = [1, 1]} : vector<256x20xbf16> to vector<16x20xbf16>
    %c14 = arith.constant 14 : index
    %c0_51 = arith.constant 0 : index
    %c0_52 = arith.constant 0 : index
    %87 = vector.load %arg4[%c14, %c0_51, %c0_52] : memref<16x20x50xbf16, #tpu.memory_space<vmem>>, vector<1x20x50xbf16>
    %88 = vector.shape_cast %87 : vector<1x20x50xbf16> to vector<20x50xbf16>
    %cst_53 = arith.constant dense<0.000000e+00> : vector<16x50xf32>
    %89 = tpu.matmul %86, %88, %cst_53 {dimension_numbers = #tpu.dot_dimension_numbers<[1], [0], [0], [1], [0, 0, 1, 1], [], []>} : vector<16x20xbf16>, vector<20x50xbf16>, vector<16x50xf32> -> vector<16x50xf32>
    %90 = arith.addf %85, %89 : vector<16x50xf32>
    %91 = vector.extract_strided_slice %16 {offsets = [240, 0], sizes = [16, 20], strides = [1, 1]} : vector<256x20xbf16> to vector<16x20xbf16>
    %c15 = arith.constant 15 : index
    %c0_54 = arith.constant 0 : index
    %c0_55 = arith.constant 0 : index
    %92 = vector.load %arg4[%c15, %c0_54, %c0_55] : memref<16x20x50xbf16, #tpu.memory_space<vmem>>, vector<1x20x50xbf16>
    %93 = vector.shape_cast %92 : vector<1x20x50xbf16> to vector<20x50xbf16>
    %cst_56 = arith.constant dense<0.000000e+00> : vector<16x50xf32>
    %94 = tpu.matmul %91, %93, %cst_56 {dimension_numbers = #tpu.dot_dimension_numbers<[1], [0], [0], [1], [0, 0, 1, 1], [], []>} : vector<16x20xbf16>, vector<20x50xbf16>, vector<16x50xf32> -> vector<16x50xf32>
    %95 = arith.addf %90, %94 : vector<16x50xf32>
    %c0_57 = arith.constant 0 : index
    %c0_58 = arith.constant 0 : index
    %96 = vector.load %arg5[%c0_57, %c0_58] : memref<1x50xf32, #tpu.memory_space<vmem>>, vector<1x50xf32>
    %97 = vector.broadcast %96 : vector<1x50xf32> to vector<16x50xf32>
    %98 = arith.addf %95, %97 : vector<16x50xf32>
    %cst_59 = arith.constant 0.000000e+00 : f32
    %99 = vector.broadcast %cst_59 : f32 to vector<16x50xf32>
    %100 = arith.maximumf %98, %99 : vector<16x50xf32>
    %101 = arith.truncf %100 : vector<16x50xf32> to vector<16x50xbf16>
    %c0_60 = arith.constant 0 : index
    %c0_61 = arith.constant 0 : index
    %102 = vector.load %arg6[%c0_60, %c0_61] : memref<50x10xbf16, #tpu.memory_space<vmem>>, vector<50x10xbf16>
    %cst_62 = arith.constant dense<0.000000e+00> : vector<16x10xf32>
    %103 = tpu.matmul %101, %102, %cst_62 {dimension_numbers = #tpu.dot_dimension_numbers<[1], [0], [0], [1], [0, 0, 1, 1], [], []>} : vector<16x50xbf16>, vector<50x10xbf16>, vector<16x10xf32> -> vector<16x10xf32>
    %c0_63 = arith.constant 0 : index
    %c0_64 = arith.constant 0 : index
    %104 = vector.load %arg7[%c0_63, %c0_64] : memref<1x10xf32, #tpu.memory_space<vmem>>, vector<1x10xf32>
    %105 = vector.broadcast %104 : vector<1x10xf32> to vector<16x10xf32>
    %106 = arith.addf %103, %105 : vector<16x10xf32>
    %cst_65 = arith.constant dense<0xFF800000> : vector<16xf32>
    %107 = vector.multi_reduction <maximumf>, %106, %cst_65 [1] : vector<16x10xf32> to vector<16xf32>
    %108 = vector.shape_cast %107 : vector<16xf32> to vector<16x1xf32>
    %109 = vector.broadcast %108 : vector<16x1xf32> to vector<16x10xf32>
    %110 = arith.subf %106, %109 : vector<16x10xf32>
    %111 = math.exp %110 : vector<16x10xf32>
    %cst_66 = arith.constant dense<0.000000e+00> : vector<16xf32>
    %112 = vector.multi_reduction <add>, %111, %cst_66 [1] : vector<16x10xf32> to vector<16xf32>
    %113 = vector.shape_cast %112 : vector<16xf32> to vector<16x1xf32>
    %114 = math.log %113 : vector<16x1xf32>
    %115 = vector.broadcast %114 : vector<16x1xf32> to vector<16x10xf32>
    %116 = arith.subf %110, %115 : vector<16x10xf32>
    %c0_67 = arith.constant 0 : index
    %c0_68 = arith.constant 0 : index
    %117 = vector.load %arg8[%c0_67, %c0_68] : memref<16x10xf32, #tpu.memory_space<vmem>>, vector<16x10xf32>
    tpu.vector_store %arg8[%c0_67, %c0_68], %116 {strides = array<i32>} : memref<16x10xf32, #tpu.memory_space<vmem>>, vector<16x10xf32>,
    return
  }
  func.func @transform_0(%arg0: i32) -> (i32, i32, i32, i32) {
    %c0_i32 = arith.constant 0 : i32
    %c0_i32_0 = arith.constant 0 : i32
    %c0_i32_1 = arith.constant 0 : i32
    %c0_i32_2 = arith.constant 0 : i32
    return %c0_i32, %c0_i32_0, %arg0, %c0_i32_1 : i32, i32, i32, i32
  }
  func.func @transform_1(%arg0: i32) -> (i32, i32) {
    %c0_i32 = arith.constant 0 : i32
    %c0_i32_0 = arith.constant 0 : i32
    %c0_i32_1 = arith.constant 0 : i32
    return %c0_i32, %c0_i32_0 : i32, i32
  }
  func.func @transform_2(%arg0: i32) -> (i32, i32) {
    %c0_i32 = arith.constant 0 : i32
    %c0_i32_0 = arith.constant 0 : i32
    %c0_i32_1 = arith.constant 0 : i32
    return %c0_i32, %c0_i32_0 : i32, i32
  }
  func.func @transform_3(%arg0: i32) -> (i32, i32, i32) {
    %c0_i32 = arith.constant 0 : i32
    %c0_i32_0 = arith.constant 0 : i32
    %c0_i32_1 = arith.constant 0 : i32
    %c0_i32_2 = arith.constant 0 : i32
    return %c0_i32, %c0_i32_0, %c0_i32_1 : i32, i32, i32
  }
  func.func @transform_4(%arg0: i32) -> (i32, i32) {
    %c0_i32 = arith.constant 0 : i32
    %c0_i32_0 = arith.constant 0 : i32
    %c0_i32_1 = arith.constant 0 : i32
    return %c0_i32, %c0_i32_0 : i32, i32
  }
  func.func @transform_5(%arg0: i32) -> (i32, i32) {
    %c0_i32 = arith.constant 0 : i32
    %c0_i32_0 = arith.constant 0 : i32
    %c0_i32_1 = arith.constant 0 : i32
    return %c0_i32, %c0_i32_0 : i32, i32
  }
  func.func @transform_6(%arg0: i32) -> (i32, i32) {
    %c0_i32 = arith.constant 0 : i32
    %c0_i32_0 = arith.constant 0 : i32
    %c0_i32_1 = arith.constant 0 : i32
    return %c0_i32, %c0_i32_0 : i32, i32
  }
  func.func @transform_7(%arg0: i32) -> (i32, i32) {
    %c0_i32 = arith.constant 0 : i32
    %c0_i32_0 = arith.constant 0 : i32
    return %arg0, %c0_i32 : i32, i32
  }
}

</mosaic_0001>

<llo_original>
// kernel: quant_lenet_forward.2
$region0: #{quant_lenet_forward.2}
  #allocation0 [shape = 'u32[]', space=smem, size = 0x4, offset = 0x4, fixed_abs, tag = 'smem constant byte address 0x4 - core index']
  #allocation1 [shape = 'u32[72,128]{1,0:T(1,128)}', space=vmem, size = 0x9000, scoped, tag = 'internal scratch']
  %s0 = inlined_call_operand.vmem [shape: bf16[4,16,144,32], index: 0, kind: input, shape index: {}]
  %s1 = inlined_call_operand.vmem [shape: bf16[32,10], index: 1, kind: input, shape index: {}]
  %s2 = inlined_call_operand.vmem [shape: f32[1,10], index: 2, kind: input, shape index: {}]
  %s3 = inlined_call_operand.vmem [shape: bf16[2304,10], index: 3, kind: output, shape index: {}]
  %s4 = sld [smem:[#allocation0]]
  $region22: #{quant_lenet_forward.2} parent=0
    _
  %s6 = ssub.s32 1, %s4
  %s7 = scalar_select 0, %s6, %s4
  // Predicated region
  $region2: #{quant_lenet_forward.2} parent=0 // pred_check
    _
  $region3: #{quant_lenet_forward.2} parent=0 // pred_check_branch
    %9 = sbr.rel (0) target = $region5
  $region4: #{quant_lenet_forward.2} parent=0 // pred_region
    _
  $region5: #{quant_lenet_forward.2} parent=0 // pred_fallthru
    _
  // Predicated region
  $region6: #{quant_lenet_forward.2} parent=0 // pred_check
    _
  $region7: #{quant_lenet_forward.2} parent=0 // pred_check_branch
    %11 = sbr.rel (0) target = $region9
  $region8: #{quant_lenet_forward.2} parent=0 // pred_region
    _
  $region9: #{quant_lenet_forward.2} parent=0 // pred_fallthru
    _
  // Predicated region
  $region10: #{quant_lenet_forward.2} parent=0 // pred_check
    _
  $region11: #{quant_lenet_forward.2} parent=0 // pred_check_branch
    %13 = sbr.rel (0) target = $region13
  $region12: #{quant_lenet_forward.2} parent=0 // pred_region
    _
  $region13: #{quant_lenet_forward.2} parent=0 // pred_fallthru
    _
  %v15 = vld [vmem:[%s0] sm:$0xf]
  %v16 = vld [vmem:[%s0 + $0x4] sm:$0xf]
  %v17 = vld [vmem:[%s0 + $0x8] sm:$0xf]
  %v18 = vld [vmem:[%s0 + $0xc] sm:$0xf]
  %v19 = vld [vmem:[%s0 + $0x10] sm:$0xf]
  %v20 = vld [vmem:[%s0 + $0x14] sm:$0xf]
  %v21 = vld [vmem:[%s0 + $0x18] sm:$0xf]
  %v22 = vld [vmem:[%s0 + $0x1c] sm:$0xf]
  %v23 = vld [vmem:[%s0 + $0x20] sm:$0xf]
  %v24 = vld [vmem:[%s0 + $0x24] sm:$0xf]
  %v25 = vld [vmem:[%s0 + $0x28] sm:$0xf]
  %v26 = vld [vmem:[%s0 + $0x2c] sm:$0xf]
  %v27 = vld [vmem:[%s0 + $0x30] sm:$0xf]
  %v28 = vld [vmem:[%s0 + $0x34] sm:$0xf]
  %v29 = vld [vmem:[%s0 + $0x38] sm:$0xf]
  %v30 = vld [vmem:[%s0 + $0x3c] sm:$0xf]
  %v31 = vld [vmem:[%s0 + $0x40] sm:$0xf]
  %v32 = vld [vmem:[%s0 + $0x44] sm:$0xf]
  %v33 = vld [vmem:[%s0 + $0x48] sm:$0xf]
  %v34 = vld [vmem:[%s0 + $0x4c] sm:$0xf]
  %v35 = vld [vmem:[%s0 + $0x50] sm:$0xf]
  %v36 = vld [vmem:[%s0 + $0x54] sm:$0xf]
  %v37 = vld [vmem:[%s0 + $0x58] sm:$0xf]
  %v38 = vld [vmem:[%s0 + $0x5c] sm:$0xf]
  %v39 = vld [vmem:[%s0 + $0x60] sm:$0xf]
  %v40 = vld [vmem:[%s0 + $0x64] sm:$0xf]
  %v41 = vld [vmem:[%s0 + $0x68] sm:$0xf]
  %v42 = vld [vmem:[%s0 + $0x6c] sm:$0xf]
  %v43 = vld [vmem:[%s0 + $0x70] sm:$0xf]
  %v44 = vld [vmem:[%s0 + $0x74] sm:$0xf]
  %v45 = vld [vmem:[%s0 + $0x78] sm:$0xf]
  %v46 = vld [vmem:[%s0 + $0x7c] sm:$0xf]
  %v47 = vld [vmem:[%s0 + $0x80] sm:$0xf]
  %v48 = vld [vmem:[%s0 + $0x84] sm:$0xf]
  %v49 = vld [vmem:[%s0 + $0x88] sm:$0xf]
  %v50 = vld [vmem:[%s0 + $0x8c] sm:$0xf]
  %v51 = vld [vmem:[%s0 + $0x90] sm:$0xf]
  %v52 = vld [vmem:[%s0 + $0x94] sm:$0xf]
  %v53 = vld [vmem:[%s0 + $0x98] sm:$0xf]
  %v54 = vld [vmem:[%s0 + $0x9c] sm:$0xf]
  %v55 = vld [vmem:[%s0 + $0xa0] sm:$0xf]
  %v56 = vld [vmem:[%s0 + $0xa4] sm:$0xf]
  %v57 = vld [vmem:[%s0 + $0xa8] sm:$0xf]
  %v58 = vld [vmem:[%s0 + $0xac] sm:$0xf]
  %v59 = vld [vmem:[%s0 + $0xb0] sm:$0xf]
  %v60 = vld [vmem:[%s0 + $0xb4] sm:$0xf]
  %v61 = vld [vmem:[%s0 + $0xb8] sm:$0xf]
  %v62 = vld [vmem:[%s0 + $0xbc] sm:$0xf]
  %v63 = vld [vmem:[%s0 + $0xc0] sm:$0xf]
  %v64 = vld [vmem:[%s0 + $0xc4] sm:$0xf]
  %v65 = vld [vmem:[%s0 + $0xc8] sm:$0xf]
  %v66 = vld [vmem:[%s0 + $0xcc] sm:$0xf]
  %v67 = vld [vmem:[%s0 + $0xd0] sm:$0xf]
  %v68 = vld [vmem:[%s0 + $0xd4] sm:$0xf]
  %v69 = vld [vmem:[%s0 + $0xd8] sm:$0xf]
  %v70 = vld [vmem:[%s0 + $0xdc] sm:$0xf]
  %v71 = vld [vmem:[%s0 + $0xe0] sm:$0xf]
  %v72 = vld [vmem:[%s0 + $0xe4] sm:$0xf]
  %v73 = vld [vmem:[%s0 + $0xe8] sm:$0xf]
  %v74 = vld [vmem:[%s0 + $0xec] sm:$0xf]
  %v75 = vld [vmem:[%s0 + $0xf0] sm:$0xf]
  %v76 = vld [vmem:[%s0 + $0xf4] sm:$0xf]
  %v77 = vld [vmem:[%s0 + $0xf8] sm:$0xf]
  %v78 = vld [vmem:[%s0 + $0xfc] sm:$0xf]
  %v79 = vld [vmem:[%s0 + $0x100] sm:$0xf]
  %v80 = vld [vmem:[%s0 + $0x104] sm:$0xf]
  %v81 = vld [vmem:[%s0 + $0x108] sm:$0xf]
  %v82 = vld [vmem:[%s0 + $0x10c] sm:$0xf]
  %v83 = vld [vmem:[%s0 + $0x110] sm:$0xf]
  %v84 = vld [vmem:[%s0 + $0x114] sm:$0xf]
  %v85 = vld [vmem:[%s0 + $0x118] sm:$0xf]
  %v86 = vld [vmem:[%s0 + $0x11c] sm:$0xf]
  %v87 = vld [vmem:[%s0 + $0x120] sm:$0xf]
  %v88 = vld [vmem:[%s0 + $0x124] sm:$0xf]
  %v89 = vld [vmem:[%s0 + $0x128] sm:$0xf]
  %v90 = vld [vmem:[%s0 + $0x12c] sm:$0xf]
  %v91 = vld [vmem:[%s0 + $0x130] sm:$0xf]
  %v92 = vld [vmem:[%s0 + $0x134] sm:$0xf]
  %v93 = vld [vmem:[%s0 + $0x138] sm:$0xf]
  %v94 = vld [vmem:[%s0 + $0x13c] sm:$0xf]
  %v95 = vld [vmem:[%s0 + $0x140] sm:$0xf]
  %v96 = vld [vmem:[%s0 + $0x144] sm:$0xf]
  %v97 = vld [vmem:[%s0 + $0x148] sm:$0xf]
  %v98 = vld [vmem:[%s0 + $0x14c] sm:$0xf]
  %v99 = vld [vmem:[%s0 + $0x150] sm:$0xf]
  %v100 = vld [vmem:[%s0 + $0x154] sm:$0xf]
  %v101 = vld [vmem:[%s0 + $0x158] sm:$0xf]
  %v102 = vld [vmem:[%s0 + $0x15c] sm:$0xf]
  %v103 = vld [vmem:[%s0 + $0x160] sm:$0xf]
  %v104 = vld [vmem:[%s0 + $0x164] sm:$0xf]
  %v105 = vld [vmem:[%s0 + $0x168] sm:$0xf]
  %v106 = vld [vmem:[%s0 + $0x16c] sm:$0xf]
  %v107 = vld [vmem:[%s0 + $0x170] sm:$0xf]
  %v108 = vld [vmem:[%s0 + $0x174] sm:$0xf]
  %v109 = vld [vmem:[%s0 + $0x178] sm:$0xf]
  %v110 = vld [vmem:[%s0 + $0x17c] sm:$0xf]
  %v111 = vld [vmem:[%s0 + $0x180] sm:$0xf]
  %v112 = vld [vmem:[%s0 + $0x184] sm:$0xf]
  %v113 = vld [vmem:[%s0 + $0x188] sm:$0xf]
  %v114 = vld [vmem:[%s0 + $0x18c] sm:$0xf]
  %v115 = vld [vmem:[%s0 + $0x190] sm:$0xf]
  %v116 = vld [vmem:[%s0 + $0x194] sm:$0xf]
  %v117 = vld [vmem:[%s0 + $0x198] sm:$0xf]
  %v118 = vld [vmem:[%s0 + $0x19c] sm:$0xf]
  %v119 = vld [vmem:[%s0 + $0x1a0] sm:$0xf]
  %v120 = vld [vmem:[%s0 + $0x1a4] sm:$0xf]
  %v121 = vld [vmem:[%s0 + $0x1a8] sm:$0xf]
  %v122 = vld [vmem:[%s0 + $0x1ac] sm:$0xf]
  %v123 = vld [vmem:[%s0 + $0x1b0] sm:$0xf]
  %v124 = vld [vmem:[%s0 + $0x1b4] sm:$0xf]
  %v125 = vld [vmem:[%s0 + $0x1b8] sm:$0xf]
  %v126 = vld [vmem:[%s0 + $0x1bc] sm:$0xf]
  %v127 = vld [vmem:[%s0 + $0x1c0] sm:$0xf]
  %v128 = vld [vmem:[%s0 + $0x1c4] sm:$0xf]
  %v129 = vld [vmem:[%s0 + $0x1c8] sm:$0xf]
  %v130 = vld [vmem:[%s0 + $0x1cc] sm:$0xf]
  %v131 = vld [vmem:[%s0 + $0x1d0] sm:$0xf]
  %v132 = vld [vmem:[%s0 + $0x1d4] sm:$0xf]
  %v133 = vld [vmem:[%s0 + $0x1d8] sm:$0xf]
  %v134 = vld [vmem:[%s0 + $0x1dc] sm:$0xf]
  %v135 = vld [vmem:[%s0 + $0x1e0] sm:$0xf]
  %v136 = vld [vmem:[%s0 + $0x1e4] sm:$0xf]
  %v137 = vld [vmem:[%s0 + $0x1e8] sm:$0xf]
  %v138 = vld [vmem:[%s0 + $0x1ec] sm:$0xf]
  %v139 = vld [vmem:[%s0 + $0x1f0] sm:$0xf]
  %v140 = vld [vmem:[%s0 + $0x1f4] sm:$0xf]
  %v141 = vld [vmem:[%s0 + $0x1f8] sm:$0xf]
  %v142 = vld [vmem:[%s0 + $0x1fc] sm:$0xf]
  %v143 = vld [vmem:[%s0 + $0x200] sm:$0xf]
  %v144 = vld [vmem:[%s0 + $0x204] sm:$0xf]
  %v145 = vld [vmem:[%s0 + $0x208] sm:$0xf]
  %v146 = vld [vmem:[%s0 + $0x20c] sm:$0xf]
  %v147 = vld [vmem:[%s0 + $0x210] sm:$0xf]
  %v148 = vld [vmem:[%s0 + $0x214] sm:$0xf]
  %v149 = vld [vmem:[%s0 + $0x218] sm:$0xf]
  %v150 = vld [vmem:[%s0 + $0x21c] sm:$0xf]
  %v151 = vld [vmem:[%s0 + $0x220] sm:$0xf]
  %v152 = vld [vmem:[%s0 + $0x224] sm:$0xf]
  %v153 = vld [vmem:[%s0 + $0x228] sm:$0xf]
  %v154 = vld [vmem:[%s0 + $0x22c] sm:$0xf]
  %v155 = vld [vmem:[%s0 + $0x230] sm:$0xf]
  %v156 = vld [vmem:[%s0 + $0x234] sm:$0xf]
  %v157 = vld [vmem:[%s0 + $0x238] sm:$0xf]
  %v158 = vld [vmem:[%s0 + $0x23c] sm:$0xf]
  %v159 = vld [vmem:[%s0 + $0x240] sm:$0xf]
  %v160 = vld [vmem:[%s0 + $0x244] sm:$0xf]
  %v161 = vld [vmem:[%s0 + $0x248] sm:$0xf]
  %v162 = vld [vmem:[%s0 + $0x24c] sm:$0xf]
  %v163 = vld [vmem:[%s0 + $0x250] sm:$0xf]
  %v164 = vld [vmem:[%s0 + $0x254] sm:$0xf]
  %v165 = vld [vmem:[%s0 + $0x258] sm:$0xf]
  %v166 = vld [vmem:[%s0 + $0x25c] sm:$0xf]
  %v167 = vld [vmem:[%s0 + $0x260] sm:$0xf]
  %v168 = vld [vmem:[%s0 + $0x264] sm:$0xf]
  %v169 = vld [vmem:[%s0 + $0x268] sm:$0xf]
  %v170 = vld [vmem:[%s0 + $0x26c] sm:$0xf]
  %v171 = vld [vmem:[%s0 + $0x270] sm:$0xf]
  %v172 = vld [vmem:[%s0 + $0x274] sm:$0xf]
  %v173 = vld [vmem:[%s0 + $0x278] sm:$0xf]
  %v174 = vld [vmem:[%s0 + $0x27c] sm:$0xf]
  %v175 = vld [vmem:[%s0 + $0x280] sm:$0xf]
  %v176 = vld [vmem:[%s0 + $0x284] sm:$0xf]
  %v177 = vld [vmem:[%s0 + $0x288] sm:$0xf]
  %v178 = vld [vmem:[%s0 + $0x28c] sm:$0xf]
  %v179 = vld [vmem:[%s0 + $0x290] sm:$0xf]
  %v180 = vld [vmem:[%s0 + $0x294] sm:$0xf]
  %v181 = vld [vmem:[%s0 + $0x298] sm:$0xf]
  %v182 = vld [vmem:[%s0 + $0x29c] sm:$0xf]
  %v183 = vld [vmem:[%s0 + $0x2a0] sm:$0xf]
  %v184 = vld [vmem:[%s0 + $0x2a4] sm:$0xf]
  %v185 = vld [vmem:[%s0 + $0x2a8] sm:$0xf]
  %v186 = vld [vmem:[%s0 + $0x2ac] sm:$0xf]
  %v187 = vld [vmem:[%s0 + $0x2b0] sm:$0xf]
  %v188 = vld [vmem:[%s0 + $0x2b4] sm:$0xf]
  %v189 = vld [vmem:[%s0 + $0x2b8] sm:$0xf]
  %v190 = vld [vmem:[%s0 + $0x2bc] sm:$0xf]
  %v191 = vld [vmem:[%s0 + $0x2c0] sm:$0xf]
  %v192 = vld [vmem:[%s0 + $0x2c4] sm:$0xf]
  %v193 = vld [vmem:[%s0 + $0x2c8] sm:$0xf]
  %v194 = vld [vmem:[%s0 + $0x2cc] sm:$0xf]
  %v195 = vld [vmem:[%s0 + $0x2d0] sm:$0xf]
  %v196 = vld [vmem:[%s0 + $0x2d4] sm:$0xf]
  %v197 = vld [vmem:[%s0 + $0x2d8] sm:$0xf]
  %v198 = vld [vmem:[%s0 + $0x2dc] sm:$0xf]
  %v199 = vld [vmem:[%s0 + $0x2e0] sm:$0xf]
  %v200 = vld [vmem:[%s0 + $0x2e4] sm:$0xf]
  %v201 = vld [vmem:[%s0 + $0x2e8] sm:$0xf]
  %v202 = vld [vmem:[%s0 + $0x2ec] sm:$0xf]
  %v203 = vld [vmem:[%s0 + $0x2f0] sm:$0xf]
  %v204 = vld [vmem:[%s0 + $0x2f4] sm:$0xf]
  %v205 = vld [vmem:[%s0 + $0x2f8] sm:$0xf]
  %v206 = vld [vmem:[%s0 + $0x2fc] sm:$0xf]
  %v207 = vld [vmem:[%s0 + $0x300] sm:$0xf]
  %v208 = vld [vmem:[%s0 + $0x304] sm:$0xf]
  %v209 = vld [vmem:[%s0 + $0x308] sm:$0xf]
  %v210 = vld [vmem:[%s0 + $0x30c] sm:$0xf]
  %v211 = vld [vmem:[%s0 + $0x310] sm:$0xf]
  %v212 = vld [vmem:[%s0 + $0x314] sm:$0xf]
  %v213 = vld [vmem:[%s0 + $0x318] sm:$0xf]
  %v214 = vld [vmem:[%s0 + $0x31c] sm:$0xf]
  %v215 = vld [vmem:[%s0 + $0x320] sm:$0xf]
  %v216 = vld [vmem:[%s0 + $0x324] sm:$0xf]
  %v217 = vld [vmem:[%s0 + $0x328] sm:$0xf]
  %v218 = vld [vmem:[%s0 + $0x32c] sm:$0xf]
  %v219 = vld [vmem:[%s0 + $0x330] sm:$0xf]
  %v220 = vld [vmem:[%s0 + $0x334] sm:$0xf]
  %v221 = vld [vmem:[%s0 + $0x338] sm:$0xf]
  %v222 = vld [vmem:[%s0 + $0x33c] sm:$0xf]
  %v223 = vld [vmem:[%s0 + $0x340] sm:$0xf]
  %v224 = vld [vmem:[%s0 + $0x344] sm:$0xf]
  %v225 = vld [vmem:[%s0 + $0x348] sm:$0xf]
  %v226 = vld [vmem:[%s0 + $0x34c] sm:$0xf]
  %v227 = vld [vmem:[%s0 + $0x350] sm:$0xf]
  %v228 = vld [vmem:[%s0 + $0x354] sm:$0xf]
  %v229 = vld [vmem:[%s0 + $0x358] sm:$0xf]
  %v230 = vld [vmem:[%s0 + $0x35c] sm:$0xf]
  %v231 = vld [vmem:[%s0 + $0x360] sm:$0xf]
  %v232 = vld [vmem:[%s0 + $0x364] sm:$0xf]
  %v233 = vld [vmem:[%s0 + $0x368] sm:$0xf]
  %v234 = vld [vmem:[%s0 + $0x36c] sm:$0xf]
  %v235 = vld [vmem:[%s0 + $0x370] sm:$0xf]
  %v236 = vld [vmem:[%s0 + $0x374] sm:$0xf]
  %v237 = vld [vmem:[%s0 + $0x378] sm:$0xf]
  %v238 = vld [vmem:[%s0 + $0x37c] sm:$0xf]
  %v239 = vld [vmem:[%s0 + $0x380] sm:$0xf]
  %v240 = vld [vmem:[%s0 + $0x384] sm:$0xf]
  %v241 = vld [vmem:[%s0 + $0x388] sm:$0xf]
  %v242 = vld [vmem:[%s0 + $0x38c] sm:$0xf]
  %v243 = vld [vmem:[%s0 + $0x390] sm:$0xf]
  %v244 = vld [vmem:[%s0 + $0x394] sm:$0xf]
  %v245 = vld [vmem:[%s0 + $0x398] sm:$0xf]
  %v246 = vld [vmem:[%s0 + $0x39c] sm:$0xf]
  %v247 = vld [vmem:[%s0 + $0x3a0] sm:$0xf]
  %v248 = vld [vmem:[%s0 + $0x3a4] sm:$0xf]
  %v249 = vld [vmem:[%s0 + $0x3a8] sm:$0xf]
  %v250 = vld [vmem:[%s0 + $0x3ac] sm:$0xf]
  %v251 = vld [vmem:[%s0 + $0x3b0] sm:$0xf]
  %v252 = vld [vmem:[%s0 + $0x3b4] sm:$0xf]
  %v253 = vld [vmem:[%s0 + $0x3b8] sm:$0xf]
  %v254 = vld [vmem:[%s0 + $0x3bc] sm:$0xf]
  %v255 = vld [vmem:[%s0 + $0x3c0] sm:$0xf]
  %v256 = vld [vmem:[%s0 + $0x3c4] sm:$0xf]
  %v257 = vld [vmem:[%s0 + $0x3c8] sm:$0xf]
  %v258 = vld [vmem:[%s0 + $0x3cc] sm:$0xf]
  %v259 = vld [vmem:[%s0 + $0x3d0] sm:$0xf]
  %v260 = vld [vmem:[%s0 + $0x3d4] sm:$0xf]
  %v261 = vld [vmem:[%s0 + $0x3d8] sm:$0xf]
  %v262 = vld [vmem:[%s0 + $0x3dc] sm:$0xf]
  %v263 = vld [vmem:[%s0 + $0x3e0] sm:$0xf]
  %v264 = vld [vmem:[%s0 + $0x3e4] sm:$0xf]
  %v265 = vld [vmem:[%s0 + $0x3e8] sm:$0xf]
  %v266 = vld [vmem:[%s0 + $0x3ec] sm:$0xf]
  %v267 = vld [vmem:[%s0 + $0x3f0] sm:$0xf]
  %v268 = vld [vmem:[%s0 + $0x3f4] sm:$0xf]
  %v269 = vld [vmem:[%s0 + $0x3f8] sm:$0xf]
  %v270 = vld [vmem:[%s0 + $0x3fc] sm:$0xf]
  %v271 = vld [vmem:[%s0 + $0x400] sm:$0xf]
  %v272 = vld [vmem:[%s0 + $0x404] sm:$0xf]
  %v273 = vld [vmem:[%s0 + $0x408] sm:$0xf]
  %v274 = vld [vmem:[%s0 + $0x40c] sm:$0xf]
  %v275 = vld [vmem:[%s0 + $0x410] sm:$0xf]
  %v276 = vld [vmem:[%s0 + $0x414] sm:$0xf]
  %v277 = vld [vmem:[%s0 + $0x418] sm:$0xf]
  %v278 = vld [vmem:[%s0 + $0x41c] sm:$0xf]
  %v279 = vld [vmem:[%s0 + $0x420] sm:$0xf]
  %v280 = vld [vmem:[%s0 + $0x424] sm:$0xf]
  %v281 = vld [vmem:[%s0 + $0x428] sm:$0xf]
  %v282 = vld [vmem:[%s0 + $0x42c] sm:$0xf]
  %v283 = vld [vmem:[%s0 + $0x430] sm:$0xf]
  %v284 = vld [vmem:[%s0 + $0x434] sm:$0xf]
  %v285 = vld [vmem:[%s0 + $0x438] sm:$0xf]
  %v286 = vld [vmem:[%s0 + $0x43c] sm:$0xf]
  %v287 = vld [vmem:[%s0 + $0x440] sm:$0xf]
  %v288 = vld [vmem:[%s0 + $0x444] sm:$0xf]
  %v289 = vld [vmem:[%s0 + $0x448] sm:$0xf]
  %v290 = vld [vmem:[%s0 + $0x44c] sm:$0xf]
  %v291 = vld [vmem:[%s0 + $0x450] sm:$0xf]
  %v292 = vld [vmem:[%s0 + $0x454] sm:$0xf]
  %v293 = vld [vmem:[%s0 + $0x458] sm:$0xf]
  %v294 = vld [vmem:[%s0 + $0x45c] sm:$0xf]
  %v295 = vld [vmem:[%s0 + $0x460] sm:$0xf]
  %v296 = vld [vmem:[%s0 + $0x464] sm:$0xf]
  %v297 = vld [vmem:[%s0 + $0x468] sm:$0xf]
  %v298 = vld [vmem:[%s0 + $0x46c] sm:$0xf]
  %v299 = vld [vmem:[%s0 + $0x470] sm:$0xf]
  %v300 = vld [vmem:[%s0 + $0x474] sm:$0xf]
  %v301 = vld [vmem:[%s0 + $0x478] sm:$0xf]
  %v302 = vld [vmem:[%s0 + $0x47c] sm:$0xf]
  %v303 = vld [vmem:[%s0 + $0x480] sm:$0xf]
  %v304 = vld [vmem:[%s0 + $0x484] sm:$0xf]
  %v305 = vld [vmem:[%s0 + $0x488] sm:$0xf]
  %v306 = vld [vmem:[%s0 + $0x48c] sm:$0xf]
  %v307 = vld [vmem:[%s0 + $0x490] sm:$0xf]
  %v308 = vld [vmem:[%s0 + $0x494] sm:$0xf]
  %v309 = vld [vmem:[%s0 + $0x498] sm:$0xf]
  %v310 = vld [vmem:[%s0 + $0x49c] sm:$0xf]
  %v311 = vld [vmem:[%s0 + $0x4a0] sm:$0xf]
  %v312 = vld [vmem:[%s0 + $0x4a4] sm:$0xf]
  %v313 = vld [vmem:[%s0 + $0x4a8] sm:$0xf]
  %v314 = vld [vmem:[%s0 + $0x4ac] sm:$0xf]
  %v315 = vld [vmem:[%s0 + $0x4b0] sm:$0xf]
  %v316 = vld [vmem:[%s0 + $0x4b4] sm:$0xf]
  %v317 = vld [vmem:[%s0 + $0x4b8] sm:$0xf]
  %v318 = vld [vmem:[%s0 + $0x4bc] sm:$0xf]
  %v319 = vld [vmem:[%s0 + $0x4c0] sm:$0xf]
  %v320 = vld [vmem:[%s0 + $0x4c4] sm:$0xf]
  %v321 = vld [vmem:[%s0 + $0x4c8] sm:$0xf]
  %v322 = vld [vmem:[%s0 + $0x4cc] sm:$0xf]
  %v323 = vld [vmem:[%s0 + $0x4d0] sm:$0xf]
  %v324 = vld [vmem:[%s0 + $0x4d4] sm:$0xf]
  %v325 = vld [vmem:[%s0 + $0x4d8] sm:$0xf]
  %v326 = vld [vmem:[%s0 + $0x4dc] sm:$0xf]
  %v327 = vld [vmem:[%s0 + $0x4e0] sm:$0xf]
  %v328 = vld [vmem:[%s0 + $0x4e4] sm:$0xf]
  %v329 = vld [vmem:[%s0 + $0x4e8] sm:$0xf]
  %v330 = vld [vmem:[%s0 + $0x4ec] sm:$0xf]
  %v331 = vld [vmem:[%s0 + $0x4f0] sm:$0xf]
  %v332 = vld [vmem:[%s0 + $0x4f4] sm:$0xf]
  %v333 = vld [vmem:[%s0 + $0x4f8] sm:$0xf]
  %v334 = vld [vmem:[%s0 + $0x4fc] sm:$0xf]
  %v335 = vld [vmem:[%s0 + $0x500] sm:$0xf]
  %v336 = vld [vmem:[%s0 + $0x504] sm:$0xf]
  %v337 = vld [vmem:[%s0 + $0x508] sm:$0xf]
  %v338 = vld [vmem:[%s0 + $0x50c] sm:$0xf]
  %v339 = vld [vmem:[%s0 + $0x510] sm:$0xf]
  %v340 = vld [vmem:[%s0 + $0x514] sm:$0xf]
  %v341 = vld [vmem:[%s0 + $0x518] sm:$0xf]
  %v342 = vld [vmem:[%s0 + $0x51c] sm:$0xf]
  %v343 = vld [vmem:[%s0 + $0x520] sm:$0xf]
  %v344 = vld [vmem:[%s0 + $0x524] sm:$0xf]
  %v345 = vld [vmem:[%s0 + $0x528] sm:$0xf]
  %v346 = vld [vmem:[%s0 + $0x52c] sm:$0xf]
  %v347 = vld [vmem:[%s0 + $0x530] sm:$0xf]
  %v348 = vld [vmem:[%s0 + $0x534] sm:$0xf]
  %v349 = vld [vmem:[%s0 + $0x538] sm:$0xf]
  %v350 = vld [vmem:[%s0 + $0x53c] sm:$0xf]
  %v351 = vld [vmem:[%s0 + $0x540] sm:$0xf]
  %v352 = vld [vmem:[%s0 + $0x544] sm:$0xf]
  %v353 = vld [vmem:[%s0 + $0x548] sm:$0xf]
  %v354 = vld [vmem:[%s0 + $0x54c] sm:$0xf]
  %v355 = vld [vmem:[%s0 + $0x550] sm:$0xf]
  %v356 = vld [vmem:[%s0 + $0x554] sm:$0xf]
  %v357 = vld [vmem:[%s0 + $0x558] sm:$0xf]
  %v358 = vld [vmem:[%s0 + $0x55c] sm:$0xf]
  %v359 = vld [vmem:[%s0 + $0x560] sm:$0xf]
  %v360 = vld [vmem:[%s0 + $0x564] sm:$0xf]
  %v361 = vld [vmem:[%s0 + $0x568] sm:$0xf]
  %v362 = vld [vmem:[%s0 + $0x56c] sm:$0xf]
  %v363 = vld [vmem:[%s0 + $0x570] sm:$0xf]
  %v364 = vld [vmem:[%s0 + $0x574] sm:$0xf]
  %v365 = vld [vmem:[%s0 + $0x578] sm:$0xf]
  %v366 = vld [vmem:[%s0 + $0x57c] sm:$0xf]
  %v367 = vld [vmem:[%s0 + $0x580] sm:$0xf]
  %v368 = vld [vmem:[%s0 + $0x584] sm:$0xf]
  %v369 = vld [vmem:[%s0 + $0x588] sm:$0xf]
  %v370 = vld [vmem:[%s0 + $0x58c] sm:$0xf]
  %v371 = vld [vmem:[%s0 + $0x590] sm:$0xf]
  %v372 = vld [vmem:[%s0 + $0x594] sm:$0xf]
  %v373 = vld [vmem:[%s0 + $0x598] sm:$0xf]
  %v374 = vld [vmem:[%s0 + $0x59c] sm:$0xf]
  %v375 = vld [vmem:[%s0 + $0x5a0] sm:$0xf]
  %v376 = vld [vmem:[%s0 + $0x5a4] sm:$0xf]
  %v377 = vld [vmem:[%s0 + $0x5a8] sm:$0xf]
  %v378 = vld [vmem:[%s0 + $0x5ac] sm:$0xf]
  %v379 = vld [vmem:[%s0 + $0x5b0] sm:$0xf]
  %v380 = vld [vmem:[%s0 + $0x5b4] sm:$0xf]
  %v381 = vld [vmem:[%s0 + $0x5b8] sm:$0xf]
  %v382 = vld [vmem:[%s0 + $0x5bc] sm:$0xf]
  %v383 = vld [vmem:[%s0 + $0x5c0] sm:$0xf]
  %v384 = vld [vmem:[%s0 + $0x5c4] sm:$0xf]
  %v385 = vld [vmem:[%s0 + $0x5c8] sm:$0xf]
  %v386 = vld [vmem:[%s0 + $0x5cc] sm:$0xf]
  %v387 = vld [vmem:[%s0 + $0x5d0] sm:$0xf]
  %v388 = vld [vmem:[%s0 + $0x5d4] sm:$0xf]
  %v389 = vld [vmem:[%s0 + $0x5d8] sm:$0xf]
  %v390 = vld [vmem:[%s0 + $0x5dc] sm:$0xf]
  %v391 = vld [vmem:[%s0 + $0x5e0] sm:$0xf]
  %v392 = vld [vmem:[%s0 + $0x5e4] sm:$0xf]
  %v393 = vld [vmem:[%s0 + $0x5e8] sm:$0xf]
  %v394 = vld [vmem:[%s0 + $0x5ec] sm:$0xf]
  %v395 = vld [vmem:[%s0 + $0x5f0] sm:$0xf]
  %v396 = vld [vmem:[%s0 + $0x5f4] sm:$0xf]
  %v397 = vld [vmem:[%s0 + $0x5f8] sm:$0xf]
  %v398 = vld [vmem:[%s0 + $0x5fc] sm:$0xf]
  %v399 = vld [vmem:[%s0 + $0x600] sm:$0xf]
  %v400 = vld [vmem:[%s0 + $0x604] sm:$0xf]
  %v401 = vld [vmem:[%s0 + $0x608] sm:$0xf]
  %v402 = vld [vmem:[%s0 + $0x60c] sm:$0xf]
  %v403 = vld [vmem:[%s0 + $0x610] sm:$0xf]
  %v404 = vld [vmem:[%s0 + $0x614] sm:$0xf]
  %v405 = vld [vmem:[%s0 + $0x618] sm:$0xf]
  %v406 = vld [vmem:[%s0 + $0x61c] sm:$0xf]
  %v407 = vld [vmem:[%s0 + $0x620] sm:$0xf]
  %v408 = vld [vmem:[%s0 + $0x624] sm:$0xf]
  %v409 = vld [vmem:[%s0 + $0x628] sm:$0xf]
  %v410 = vld [vmem:[%s0 + $0x62c] sm:$0xf]
  %v411 = vld [vmem:[%s0 + $0x630] sm:$0xf]
  %v412 = vld [vmem:[%s0 + $0x634] sm:$0xf]
  %v413 = vld [vmem:[%s0 + $0x638] sm:$0xf]
  %v414 = vld [vmem:[%s0 + $0x63c] sm:$0xf]
  %v415 = vld [vmem:[%s0 + $0x640] sm:$0xf]
  %v416 = vld [vmem:[%s0 + $0x644] sm:$0xf]
  %v417 = vld [vmem:[%s0 + $0x648] sm:$0xf]
  %v418 = vld [vmem:[%s0 + $0x64c] sm:$0xf]
  %v419 = vld [vmem:[%s0 + $0x650] sm:$0xf]
  %v420 = vld [vmem:[%s0 + $0x654] sm:$0xf]
  %v421 = vld [vmem:[%s0 + $0x658] sm:$0xf]
  %v422 = vld [vmem:[%s0 + $0x65c] sm:$0xf]
  %v423 = vld [vmem:[%s0 + $0x660] sm:$0xf]
  %v424 = vld [vmem:[%s0 + $0x664] sm:$0xf]
  %v425 = vld [vmem:[%s0 + $0x668] sm:$0xf]
  %v426 = vld [vmem:[%s0 + $0x66c] sm:$0xf]
  %v427 = vld [vmem:[%s0 + $0x670] sm:$0xf]
  %v428 = vld [vmem:[%s0 + $0x674] sm:$0xf]
  %v429 = vld [vmem:[%s0 + $0x678] sm:$0xf]
  %v430 = vld [vmem:[%s0 + $0x67c] sm:$0xf]
  %v431 = vld [vmem:[%s0 + $0x680] sm:$0xf]
  %v432 = vld [vmem:[%s0 + $0x684] sm:$0xf]
  %v433 = vld [vmem:[%s0 + $0x688] sm:$0xf]
  %v434 = vld [vmem:[%s0 + $0x68c] sm:$0xf]
  %v435 = vld [vmem:[%s0 + $0x690] sm:$0xf]
  %v436 = vld [vmem:[%s0 + $0x694] sm:$0xf]
  %v437 = vld [vmem:[%s0 + $0x698] sm:$0xf]
  %v438 = vld [vmem:[%s0 + $0x69c] sm:$0xf]
  %v439 = vld [vmem:[%s0 + $0x6a0] sm:$0xf]
  %v440 = vld [vmem:[%s0 + $0x6a4] sm:$0xf]
  %v441 = vld [vmem:[%s0 + $0x6a8] sm:$0xf]
  %v442 = vld [vmem:[%s0 + $0x6ac] sm:$0xf]
  %v443 = vld [vmem:[%s0 + $0x6b0] sm:$0xf]
  %v444 = vld [vmem:[%s0 + $0x6b4] sm:$0xf]
  %v445 = vld [vmem:[%s0 + $0x6b8] sm:$0xf]
  %v446 = vld [vmem:[%s0 + $0x6bc] sm:$0xf]
  %v447 = vld [vmem:[%s0 + $0x6c0] sm:$0xf]
  %v448 = vld [vmem:[%s0 + $0x6c4] sm:$0xf]
  %v449 = vld [vmem:[%s0 + $0x6c8] sm:$0xf]
  %v450 = vld [vmem:[%s0 + $0x6cc] sm:$0xf]
  %v451 = vld [vmem:[%s0 + $0x6d0] sm:$0xf]
  %v452 = vld [vmem:[%s0 + $0x6d4] sm:$0xf]
  %v453 = vld [vmem:[%s0 + $0x6d8] sm:$0xf]
  %v454 = vld [vmem:[%s0 + $0x6dc] sm:$0xf]
  %v455 = vld [vmem:[%s0 + $0x6e0] sm:$0xf]
  %v456 = vld [vmem:[%s0 + $0x6e4] sm:$0xf]
  %v457 = vld [vmem:[%s0 + $0x6e8] sm:$0xf]
  %v458 = vld [vmem:[%s0 + $0x6ec] sm:$0xf]
  %v459 = vld [vmem:[%s0 + $0x6f0] sm:$0xf]
  %v460 = vld [vmem:[%s0 + $0x6f4] sm:$0xf]
  %v461 = vld [vmem:[%s0 + $0x6f8] sm:$0xf]
  %v462 = vld [vmem:[%s0 + $0x6fc] sm:$0xf]
  %v463 = vld [vmem:[%s0 + $0x700] sm:$0xf]
  %v464 = vld [vmem:[%s0 + $0x704] sm:$0xf]
  %v465 = vld [vmem:[%s0 + $0x708] sm:$0xf]
  %v466 = vld [vmem:[%s0 + $0x70c] sm:$0xf]
  %v467 = vld [vmem:[%s0 + $0x710] sm:$0xf]
  %v468 = vld [vmem:[%s0 + $0x714] sm:$0xf]
  %v469 = vld [vmem:[%s0 + $0x718] sm:$0xf]
  %v470 = vld [vmem:[%s0 + $0x71c] sm:$0xf]
  %v471 = vld [vmem:[%s0 + $0x720] sm:$0xf]
  %v472 = vld [vmem:[%s0 + $0x724] sm:$0xf]
  %v473 = vld [vmem:[%s0 + $0x728] sm:$0xf]
  %v474 = vld [vmem:[%s0 + $0x72c] sm:$0xf]
  %v475 = vld [vmem:[%s0 + $0x730] sm:$0xf]
  %v476 = vld [vmem:[%s0 + $0x734] sm:$0xf]
  %v477 = vld [vmem:[%s0 + $0x738] sm:$0xf]
  %v478 = vld [vmem:[%s0 + $0x73c] sm:$0xf]
  %v479 = vld [vmem:[%s0 + $0x740] sm:$0xf]
  %v480 = vld [vmem:[%s0 + $0x744] sm:$0xf]
  %v481 = vld [vmem:[%s0 + $0x748] sm:$0xf]
  %v482 = vld [vmem:[%s0 + $0x74c] sm:$0xf]
  %v483 = vld [vmem:[%s0 + $0x750] sm:$0xf]
  %v484 = vld [vmem:[%s0 + $0x754] sm:$0xf]
  %v485 = vld [vmem:[%s0 + $0x758] sm:$0xf]
  %v486 = vld [vmem:[%s0 + $0x75c] sm:$0xf]
  %v487 = vld [vmem:[%s0 + $0x760] sm:$0xf]
  %v488 = vld [vmem:[%s0 + $0x764] sm:$0xf]
  %v489 = vld [vmem:[%s0 + $0x768] sm:$0xf]
  %v490 = vld [vmem:[%s0 + $0x76c] sm:$0xf]
  %v491 = vld [vmem:[%s0 + $0x770] sm:$0xf]
  %v492 = vld [vmem:[%s0 + $0x774] sm:$0xf]
  %v493 = vld [vmem:[%s0 + $0x778] sm:$0xf]
  %v494 = vld [vmem:[%s0 + $0x77c] sm:$0xf]
  %v495 = vld [vmem:[%s0 + $0x780] sm:$0xf]
  %v496 = vld [vmem:[%s0 + $0x784] sm:$0xf]
  %v497 = vld [vmem:[%s0 + $0x788] sm:$0xf]
  %v498 = vld [vmem:[%s0 + $0x78c] sm:$0xf]
  %v499 = vld [vmem:[%s0 + $0x790] sm:$0xf]
  %v500 = vld [vmem:[%s0 + $0x794] sm:$0xf]
  %v501 = vld [vmem:[%s0 + $0x798] sm:$0xf]
  %v502 = vld [vmem:[%s0 + $0x79c] sm:$0xf]
  %v503 = vld [vmem:[%s0 + $0x7a0] sm:$0xf]
  %v504 = vld [vmem:[%s0 + $0x7a4] sm:$0xf]
  %v505 = vld [vmem:[%s0 + $0x7a8] sm:$0xf]
  %v506 = vld [vmem:[%s0 + $0x7ac] sm:$0xf]
  %v507 = vld [vmem:[%s0 + $0x7b0] sm:$0xf]
  %v508 = vld [vmem:[%s0 + $0x7b4] sm:$0xf]
  %v509 = vld [vmem:[%s0 + $0x7b8] sm:$0xf]
  %v510 = vld [vmem:[%s0 + $0x7bc] sm:$0xf]
  %v511 = vld [vmem:[%s0 + $0x7c0] sm:$0xf]
  %v512 = vld [vmem:[%s0 + $0x7c4] sm:$0xf]
  %v513 = vld [vmem:[%s0 + $0x7c8] sm:$0xf]
  %v514 = vld [vmem:[%s0 + $0x7cc] sm:$0xf]
  %v515 = vld [vmem:[%s0 + $0x7d0] sm:$0xf]
  %v516 = vld [vmem:[%s0 + $0x7d4] sm:$0xf]
  %v517 = vld [vmem:[%s0 + $0x7d8] sm:$0xf]
  %v518 = vld [vmem:[%s0 + $0x7dc] sm:$0xf]
  %v519 = vld [vmem:[%s0 + $0x7e0] sm:$0xf]
  %v520 = vld [vmem:[%s0 + $0x7e4] sm:$0xf]
  %v521 = vld [vmem:[%s0 + $0x7e8] sm:$0xf]
  %v522 = vld [vmem:[%s0 + $0x7ec] sm:$0xf]
  %v523 = vld [vmem:[%s0 + $0x7f0] sm:$0xf]
  %v524 = vld [vmem:[%s0 + $0x7f4] sm:$0xf]
  %v525 = vld [vmem:[%s0 + $0x7f8] sm:$0xf]
  %v526 = vld [vmem:[%s0 + $0x7fc] sm:$0xf]
  %v527 = vld [vmem:[%s0 + $0x800] sm:$0xf]
  %v528 = vld [vmem:[%s0 + $0x804] sm:$0xf]
  %v529 = vld [vmem:[%s0 + $0x808] sm:$0xf]
  %v530 = vld [vmem:[%s0 + $0x80c] sm:$0xf]
  %v531 = vld [vmem:[%s0 + $0x810] sm:$0xf]
  %v532 = vld [vmem:[%s0 + $0x814] sm:$0xf]
  %v533 = vld [vmem:[%s0 + $0x818] sm:$0xf]
  %v534 = vld [vmem:[%s0 + $0x81c] sm:$0xf]
  %v535 = vld [vmem:[%s0 + $0x820] sm:$0xf]
  %v536 = vld [vmem:[%s0 + $0x824] sm:$0xf]
  %v537 = vld [vmem:[%s0 + $0x828] sm:$0xf]
  %v538 = vld [vmem:[%s0 + $0x82c] sm:$0xf]
  %v539 = vld [vmem:[%s0 + $0x830] sm:$0xf]
  %v540 = vld [vmem:[%s0 + $0x834] sm:$0xf]
  %v541 = vld [vmem:[%s0 + $0x838] sm:$0xf]
  %v542 = vld [vmem:[%s0 + $0x83c] sm:$0xf]
  %v543 = vld [vmem:[%s0 + $0x840] sm:$0xf]
  %v544 = vld [vmem:[%s0 + $0x844] sm:$0xf]
  %v545 = vld [vmem:[%s0 + $0x848] sm:$0xf]
  %v546 = vld [vmem:[%s0 + $0x84c] sm:$0xf]
  %v547 = vld [vmem:[%s0 + $0x850] sm:$0xf]
  %v548 = vld [vmem:[%s0 + $0x854] sm:$0xf]
  %v549 = vld [vmem:[%s0 + $0x858] sm:$0xf]
  %v550 = vld [vmem:[%s0 + $0x85c] sm:$0xf]
  %v551 = vld [vmem:[%s0 + $0x860] sm:$0xf]
  %v552 = vld [vmem:[%s0 + $0x864] sm:$0xf]
  %v553 = vld [vmem:[%s0 + $0x868] sm:$0xf]
  %v554 = vld [vmem:[%s0 + $0x86c] sm:$0xf]
  %v555 = vld [vmem:[%s0 + $0x870] sm:$0xf]
  %v556 = vld [vmem:[%s0 + $0x874] sm:$0xf]
  %v557 = vld [vmem:[%s0 + $0x878] sm:$0xf]
  %v558 = vld [vmem:[%s0 + $0x87c] sm:$0xf]
  %v559 = vld [vmem:[%s0 + $0x880] sm:$0xf]
  %v560 = vld [vmem:[%s0 + $0x884] sm:$0xf]
  %v561 = vld [vmem:[%s0 + $0x888] sm:$0xf]
  %v562 = vld [vmem:[%s0 + $0x88c] sm:$0xf]
  %v563 = vld [vmem:[%s0 + $0x890] sm:$0xf]
  %v564 = vld [vmem:[%s0 + $0x894] sm:$0xf]
  %v565 = vld [vmem:[%s0 + $0x898] sm:$0xf]
  %v566 = vld [vmem:[%s0 + $0x89c] sm:$0xf]
  %v567 = vld [vmem:[%s0 + $0x8a0] sm:$0xf]
  %v568 = vld [vmem:[%s0 + $0x8a4] sm:$0xf]
  %v569 = vld [vmem:[%s0 + $0x8a8] sm:$0xf]
  %v570 = vld [vmem:[%s0 + $0x8ac] sm:$0xf]
  %v571 = vld [vmem:[%s0 + $0x8b0] sm:$0xf]
  %v572 = vld [vmem:[%s0 + $0x8b4] sm:$0xf]
  %v573 = vld [vmem:[%s0 + $0x8b8] sm:$0xf]
  %v574 = vld [vmem:[%s0 + $0x8bc] sm:$0xf]
  %v575 = vld [vmem:[%s0 + $0x8c0] sm:$0xf]
  %v576 = vld [vmem:[%s0 + $0x8c4] sm:$0xf]
  %v577 = vld [vmem:[%s0 + $0x8c8] sm:$0xf]
  %v578 = vld [vmem:[%s0 + $0x8cc] sm:$0xf]
  %v579 = vld [vmem:[%s0 + $0x8d0] sm:$0xf]
  %v580 = vld [vmem:[%s0 + $0x8d4] sm:$0xf]
  %v581 = vld [vmem:[%s0 + $0x8d8] sm:$0xf]
  %v582 = vld [vmem:[%s0 + $0x8dc] sm:$0xf]
  %v583 = vld [vmem:[%s0 + $0x8e0] sm:$0xf]
  %v584 = vld [vmem:[%s0 + $0x8e4] sm:$0xf]
  %v585 = vld [vmem:[%s0 + $0x8e8] sm:$0xf]
  %v586 = vld [vmem:[%s0 + $0x8ec] sm:$0xf]
  %v587 = vld [vmem:[%s0 + $0x8f0] sm:$0xf]
  %v588 = vld [vmem:[%s0 + $0x8f4] sm:$0xf]
  %v589 = vld [vmem:[%s0 + $0x8f8] sm:$0xf]
  %v590 = vld [vmem:[%s0 + $0x8fc] sm:$0xf]
  %v591 = vld [vmem:[%s0 + $0x900] sm:$0xf]
  %v592 = vld [vmem:[%s0 + $0x904] sm:$0xf]
  %v593 = vld [vmem:[%s0 + $0x908] sm:$0xf]
  %v594 = vld [vmem:[%s0 + $0x90c] sm:$0xf]
  %v595 = vld [vmem:[%s0 + $0x910] sm:$0xf]
  %v596 = vld [vmem:[%s0 + $0x914] sm:$0xf]
  %v597 = vld [vmem:[%s0 + $0x918] sm:$0xf]
  %v598 = vld [vmem:[%s0 + $0x91c] sm:$0xf]
  %v599 = vld [vmem:[%s0 + $0x920] sm:$0xf]
  %v600 = vld [vmem:[%s0 + $0x924] sm:$0xf]
  %v601 = vld [vmem:[%s0 + $0x928] sm:$0xf]
  %v602 = vld [vmem:[%s0 + $0x92c] sm:$0xf]
  %v603 = vld [vmem:[%s0 + $0x930] sm:$0xf]
  %v604 = vld [vmem:[%s0 + $0x934] sm:$0xf]
  %v605 = vld [vmem:[%s0 + $0x938] sm:$0xf]
  %v606 = vld [vmem:[%s0 + $0x93c] sm:$0xf]
  %v607 = vld [vmem:[%s0 + $0x940] sm:$0xf]
  %v608 = vld [vmem:[%s0 + $0x944] sm:$0xf]
  %v609 = vld [vmem:[%s0 + $0x948] sm:$0xf]
  %v610 = vld [vmem:[%s0 + $0x94c] sm:$0xf]
  %v611 = vld [vmem:[%s0 + $0x950] sm:$0xf]
  %v612 = vld [vmem:[%s0 + $0x954] sm:$0xf]
  %v613 = vld [vmem:[%s0 + $0x958] sm:$0xf]
  %v614 = vld [vmem:[%s0 + $0x95c] sm:$0xf]
  %v615 = vld [vmem:[%s0 + $0x960] sm:$0xf]
  %v616 = vld [vmem:[%s0 + $0x964] sm:$0xf]
  %v617 = vld [vmem:[%s0 + $0x968] sm:$0xf]
  %v618 = vld [vmem:[%s0 + $0x96c] sm:$0xf]
  %v619 = vld [vmem:[%s0 + $0x970] sm:$0xf]
  %v620 = vld [vmem:[%s0 + $0x974] sm:$0xf]
  %v621 = vld [vmem:[%s0 + $0x978] sm:$0xf]
  %v622 = vld [vmem:[%s0 + $0x97c] sm:$0xf]
  %v623 = vld [vmem:[%s0 + $0x980] sm:$0xf]
  %v624 = vld [vmem:[%s0 + $0x984] sm:$0xf]
  %v625 = vld [vmem:[%s0 + $0x988] sm:$0xf]
  %v626 = vld [vmem:[%s0 + $0x98c] sm:$0xf]
  %v627 = vld [vmem:[%s0 + $0x990] sm:$0xf]
  %v628 = vld [vmem:[%s0 + $0x994] sm:$0xf]
  %v629 = vld [vmem:[%s0 + $0x998] sm:$0xf]
  %v630 = vld [vmem:[%s0 + $0x99c] sm:$0xf]
  %v631 = vld [vmem:[%s0 + $0x9a0] sm:$0xf]
  %v632 = vld [vmem:[%s0 + $0x9a4] sm:$0xf]
  %v633 = vld [vmem:[%s0 + $0x9a8] sm:$0xf]
  %v634 = vld [vmem:[%s0 + $0x9ac] sm:$0xf]
  %v635 = vld [vmem:[%s0 + $0x9b0] sm:$0xf]
  %v636 = vld [vmem:[%s0 + $0x9b4] sm:$0xf]
  %v637 = vld [vmem:[%s0 + $0x9b8] sm:$0xf]
  %v638 = vld [vmem:[%s0 + $0x9bc] sm:$0xf]
  %v639 = vld [vmem:[%s0 + $0x9c0] sm:$0xf]
  %v640 = vld [vmem:[%s0 + $0x9c4] sm:$0xf]
  %v641 = vld [vmem:[%s0 + $0x9c8] sm:$0xf]
  %v642 = vld [vmem:[%s0 + $0x9cc] sm:$0xf]
  %v643 = vld [vmem:[%s0 + $0x9d0] sm:$0xf]
  %v644 = vld [vmem:[%s0 + $0x9d4] sm:$0xf]
  %v645 = vld [vmem:[%s0 + $0x9d8] sm:$0xf]
  %v646 = vld [vmem:[%s0 + $0x9dc] sm:$0xf]
  %v647 = vld [vmem:[%s0 + $0x9e0] sm:$0xf]
  %v648 = vld [vmem:[%s0 + $0x9e4] sm:$0xf]
  %v649 = vld [vmem:[%s0 + $0x9e8] sm:$0xf]
  %v650 = vld [vmem:[%s0 + $0x9ec] sm:$0xf]
  %v651 = vld [vmem:[%s0 + $0x9f0] sm:$0xf]
  %v652 = vld [vmem:[%s0 + $0x9f4] sm:$0xf]
  %v653 = vld [vmem:[%s0 + $0x9f8] sm:$0xf]
  %v654 = vld [vmem:[%s0 + $0x9fc] sm:$0xf]
  %v655 = vld [vmem:[%s0 + $0xa00] sm:$0xf]
  %v656 = vld [vmem:[%s0 + $0xa04] sm:$0xf]
  %v657 = vld [vmem:[%s0 + $0xa08] sm:$0xf]
  %v658 = vld [vmem:[%s0 + $0xa0c] sm:$0xf]
  %v659 = vld [vmem:[%s0 + $0xa10] sm:$0xf]
  %v660 = vld [vmem:[%s0 + $0xa14] sm:$0xf]
  %v661 = vld [vmem:[%s0 + $0xa18] sm:$0xf]
  %v662 = vld [vmem:[%s0 + $0xa1c] sm:$0xf]
  %v663 = vld [vmem:[%s0 + $0xa20] sm:$0xf]
  %v664 = vld [vmem:[%s0 + $0xa24] sm:$0xf]
  %v665 = vld [vmem:[%s0 + $0xa28] sm:$0xf]
  %v666 = vld [vmem:[%s0 + $0xa2c] sm:$0xf]
  %v667 = vld [vmem:[%s0 + $0xa30] sm:$0xf]
  %v668 = vld [vmem:[%s0 + $0xa34] sm:$0xf]
  %v669 = vld [vmem:[%s0 + $0xa38] sm:$0xf]
  %v670 = vld [vmem:[%s0 + $0xa3c] sm:$0xf]
  %v671 = vld [vmem:[%s0 + $0xa40] sm:$0xf]
  %v672 = vld [vmem:[%s0 + $0xa44] sm:$0xf]
  %v673 = vld [vmem:[%s0 + $0xa48] sm:$0xf]
  %v674 = vld [vmem:[%s0 + $0xa4c] sm:$0xf]
  %v675 = vld [vmem:[%s0 + $0xa50] sm:$0xf]
  %v676 = vld [vmem:[%s0 + $0xa54] sm:$0xf]
  %v677 = vld [vmem:[%s0 + $0xa58] sm:$0xf]
  %v678 = vld [vmem:[%s0 + $0xa5c] sm:$0xf]
  %v679 = vld [vmem:[%s0 + $0xa60] sm:$0xf]
  %v680 = vld [vmem:[%s0 + $0xa64] sm:$0xf]
  %v681 = vld [vmem:[%s0 + $0xa68] sm:$0xf]
  %v682 = vld [vmem:[%s0 + $0xa6c] sm:$0xf]
  %v683 = vld [vmem:[%s0 + $0xa70] sm:$0xf]
  %v684 = vld [vmem:[%s0 + $0xa74] sm:$0xf]
  %v685 = vld [vmem:[%s0 + $0xa78] sm:$0xf]
  %v686 = vld [vmem:[%s0 + $0xa7c] sm:$0xf]
  %v687 = vld [vmem:[%s0 + $0xa80] sm:$0xf]
  %v688 = vld [vmem:[%s0 + $0xa84] sm:$0xf]
  %v689 = vld [vmem:[%s0 + $0xa88] sm:$0xf]
  %v690 = vld [vmem:[%s0 + $0xa8c] sm:$0xf]
  %v691 = vld [vmem:[%s0 + $0xa90] sm:$0xf]
  %v692 = vld [vmem:[%s0 + $0xa94] sm:$0xf]
  %v693 = vld [vmem:[%s0 + $0xa98] sm:$0xf]
  %v694 = vld [vmem:[%s0 + $0xa9c] sm:$0xf]
  %v695 = vld [vmem:[%s0 + $0xaa0] sm:$0xf]
  %v696 = vld [vmem:[%s0 + $0xaa4] sm:$0xf]
  %v697 = vld [vmem:[%s0 + $0xaa8] sm:$0xf]
  %v698 = vld [vmem:[%s0 + $0xaac] sm:$0xf]
  %v699 = vld [vmem:[%s0 + $0xab0] sm:$0xf]
  %v700 = vld [vmem:[%s0 + $0xab4] sm:$0xf]
  %v701 = vld [vmem:[%s0 + $0xab8] sm:$0xf]
  %v702 = vld [vmem:[%s0 + $0xabc] sm:$0xf]
  %v703 = vld [vmem:[%s0 + $0xac0] sm:$0xf]
  %v704 = vld [vmem:[%s0 + $0xac4] sm:$0xf]
  %v705 = vld [vmem:[%s0 + $0xac8] sm:$0xf]
  %v706 = vld [vmem:[%s0 + $0xacc] sm:$0xf]
  %v707 = vld [vmem:[%s0 + $0xad0] sm:$0xf]
  %v708 = vld [vmem:[%s0 + $0xad4] sm:$0xf]
  %v709 = vld [vmem:[%s0 + $0xad8] sm:$0xf]
  %v710 = vld [vmem:[%s0 + $0xadc] sm:$0xf]
  %v711 = vld [vmem:[%s0 + $0xae0] sm:$0xf]
  %v712 = vld [vmem:[%s0 + $0xae4] sm:$0xf]
  %v713 = vld [vmem:[%s0 + $0xae8] sm:$0xf]
  %v714 = vld [vmem:[%s0 + $0xaec] sm:$0xf]
  %v715 = vld [vmem:[%s0 + $0xaf0] sm:$0xf]
  %v716 = vld [vmem:[%s0 + $0xaf4] sm:$0xf]
  %v717 = vld [vmem:[%s0 + $0xaf8] sm:$0xf]
  %v718 = vld [vmem:[%s0 + $0xafc] sm:$0xf]
  %v719 = vld [vmem:[%s0 + $0xb00] sm:$0xf]
  %v720 = vld [vmem:[%s0 + $0xb04] sm:$0xf]
  %v721 = vld [vmem:[%s0 + $0xb08] sm:$0xf]
  %v722 = vld [vmem:[%s0 + $0xb0c] sm:$0xf]
  %v723 = vld [vmem:[%s0 + $0xb10] sm:$0xf]
  %v724 = vld [vmem:[%s0 + $0xb14] sm:$0xf]
  %v725 = vld [vmem:[%s0 + $0xb18] sm:$0xf]
  %v726 = vld [vmem:[%s0 + $0xb1c] sm:$0xf]
  %v727 = vld [vmem:[%s0 + $0xb20] sm:$0xf]
  %v728 = vld [vmem:[%s0 + $0xb24] sm:$0xf]
  %v729 = vld [vmem:[%s0 + $0xb28] sm:$0xf]
  %v730 = vld [vmem:[%s0 + $0xb2c] sm:$0xf]
  %v731 = vld [vmem:[%s0 + $0xb30] sm:$0xf]
  %v732 = vld [vmem:[%s0 + $0xb34] sm:$0xf]
  %v733 = vld [vmem:[%s0 + $0xb38] sm:$0xf]
  %v734 = vld [vmem:[%s0 + $0xb3c] sm:$0xf]
  %v735 = vld [vmem:[%s0 + $0xb40] sm:$0xf]
  %v736 = vld [vmem:[%s0 + $0xb44] sm:$0xf]
  %v737 = vld [vmem:[%s0 + $0xb48] sm:$0xf]
  %v738 = vld [vmem:[%s0 + $0xb4c] sm:$0xf]
  %v739 = vld [vmem:[%s0 + $0xb50] sm:$0xf]
  %v740 = vld [vmem:[%s0 + $0xb54] sm:$0xf]
  %v741 = vld [vmem:[%s0 + $0xb58] sm:$0xf]
  %v742 = vld [vmem:[%s0 + $0xb5c] sm:$0xf]
  %v743 = vld [vmem:[%s0 + $0xb60] sm:$0xf]
  %v744 = vld [vmem:[%s0 + $0xb64] sm:$0xf]
  %v745 = vld [vmem:[%s0 + $0xb68] sm:$0xf]
  %v746 = vld [vmem:[%s0 + $0xb6c] sm:$0xf]
  %v747 = vld [vmem:[%s0 + $0xb70] sm:$0xf]
  %v748 = vld [vmem:[%s0 + $0xb74] sm:$0xf]
  %v749 = vld [vmem:[%s0 + $0xb78] sm:$0xf]
  %v750 = vld [vmem:[%s0 + $0xb7c] sm:$0xf]
  %v751 = vld [vmem:[%s0 + $0xb80] sm:$0xf]
  %v752 = vld [vmem:[%s0 + $0xb84] sm:$0xf]
  %v753 = vld [vmem:[%s0 + $0xb88] sm:$0xf]
  %v754 = vld [vmem:[%s0 + $0xb8c] sm:$0xf]
  %v755 = vld [vmem:[%s0 + $0xb90] sm:$0xf]
  %v756 = vld [vmem:[%s0 + $0xb94] sm:$0xf]
  %v757 = vld [vmem:[%s0 + $0xb98] sm:$0xf]
  %v758 = vld [vmem:[%s0 + $0xb9c] sm:$0xf]
  %v759 = vld [vmem:[%s0 + $0xba0] sm:$0xf]
  %v760 = vld [vmem:[%s0 + $0xba4] sm:$0xf]
  %v761 = vld [vmem:[%s0 + $0xba8] sm:$0xf]
  %v762 = vld [vmem:[%s0 + $0xbac] sm:$0xf]
  %v763 = vld [vmem:[%s0 + $0xbb0] sm:$0xf]
  %v764 = vld [vmem:[%s0 + $0xbb4] sm:$0xf]
  %v765 = vld [vmem:[%s0 + $0xbb8] sm:$0xf]
  %v766 = vld [vmem:[%s0 + $0xbbc] sm:$0xf]
  %v767 = vld [vmem:[%s0 + $0xbc0] sm:$0xf]
  %v768 = vld [vmem:[%s0 + $0xbc4] sm:$0xf]
  %v769 = vld [vmem:[%s0 + $0xbc8] sm:$0xf]
  %v770 = vld [vmem:[%s0 + $0xbcc] sm:$0xf]
  %v771 = vld [vmem:[%s0 + $0xbd0] sm:$0xf]
  %v772 = vld [vmem:[%s0 + $0xbd4] sm:$0xf]
  %v773 = vld [vmem:[%s0 + $0xbd8] sm:$0xf]
  %v774 = vld [vmem:[%s0 + $0xbdc] sm:$0xf]
  %v775 = vld [vmem:[%s0 + $0xbe0] sm:$0xf]
  %v776 = vld [vmem:[%s0 + $0xbe4] sm:$0xf]
  %v777 = vld [vmem:[%s0 + $0xbe8] sm:$0xf]
  %v778 = vld [vmem:[%s0 + $0xbec] sm:$0xf]
  %v779 = vld [vmem:[%s0 + $0xbf0] sm:$0xf]
  %v780 = vld [vmem:[%s0 + $0xbf4] sm:$0xf]
  %v781 = vld [vmem:[%s0 + $0xbf8] sm:$0xf]
  %v782 = vld [vmem:[%s0 + $0xbfc] sm:$0xf]
  %v783 = vld [vmem:[%s0 + $0xc00] sm:$0xf]
  %v784 = vld [vmem:[%s0 + $0xc04] sm:$0xf]
  %v785 = vld [vmem:[%s0 + $0xc08] sm:$0xf]
  %v786 = vld [vmem:[%s0 + $0xc0c] sm:$0xf]
  %v787 = vld [vmem:[%s0 + $0xc10] sm:$0xf]
  %v788 = vld [vmem:[%s0 + $0xc14] sm:$0xf]
  %v789 = vld [vmem:[%s0 + $0xc18] sm:$0xf]
  %v790 = vld [vmem:[%s0 + $0xc1c] sm:$0xf]
  %v791 = vld [vmem:[%s0 + $0xc20] sm:$0xf]
  %v792 = vld [vmem:[%s0 + $0xc24] sm:$0xf]
  %v793 = vld [vmem:[%s0 + $0xc28] sm:$0xf]
  %v794 = vld [vmem:[%s0 + $0xc2c] sm:$0xf]
  %v795 = vld [vmem:[%s0 + $0xc30] sm:$0xf]
  %v796 = vld [vmem:[%s0 + $0xc34] sm:$0xf]
  %v797 = vld [vmem:[%s0 + $0xc38] sm:$0xf]
  %v798 = vld [vmem:[%s0 + $0xc3c] sm:$0xf]
  %v799 = vld [vmem:[%s0 + $0xc40] sm:$0xf]
  %v800 = vld [vmem:[%s0 + $0xc44] sm:$0xf]
  %v801 = vld [vmem:[%s0 + $0xc48] sm:$0xf]
  %v802 = vld [vmem:[%s0 + $0xc4c] sm:$0xf]
  %v803 = vld [vmem:[%s0 + $0xc50] sm:$0xf]
  %v804 = vld [vmem:[%s0 + $0xc54] sm:$0xf]
  %v805 = vld [vmem:[%s0 + $0xc58] sm:$0xf]
  %v806 = vld [vmem:[%s0 + $0xc5c] sm:$0xf]
  %v807 = vld [vmem:[%s0 + $0xc60] sm:$0xf]
  %v808 = vld [vmem:[%s0 + $0xc64] sm:$0xf]
  %v809 = vld [vmem:[%s0 + $0xc68] sm:$0xf]
  %v810 = vld [vmem:[%s0 + $0xc6c] sm:$0xf]
  %v811 = vld [vmem:[%s0 + $0xc70] sm:$0xf]
  %v812 = vld [vmem:[%s0 + $0xc74] sm:$0xf]
  %v813 = vld [vmem:[%s0 + $0xc78] sm:$0xf]
  %v814 = vld [vmem:[%s0 + $0xc7c] sm:$0xf]
  %v815 = vld [vmem:[%s0 + $0xc80] sm:$0xf]
  %v816 = vld [vmem:[%s0 + $0xc84] sm:$0xf]
  %v817 = vld [vmem:[%s0 + $0xc88] sm:$0xf]
  %v818 = vld [vmem:[%s0 + $0xc8c] sm:$0xf]
  %v819 = vld [vmem:[%s0 + $0xc90] sm:$0xf]
  %v820 = vld [vmem:[%s0 + $0xc94] sm:$0xf]
  %v821 = vld [vmem:[%s0 + $0xc98] sm:$0xf]
  %v822 = vld [vmem:[%s0 + $0xc9c] sm:$0xf]
  %v823 = vld [vmem:[%s0 + $0xca0] sm:$0xf]
  %v824 = vld [vmem:[%s0 + $0xca4] sm:$0xf]
  %v825 = vld [vmem:[%s0 + $0xca8] sm:$0xf]
  %v826 = vld [vmem:[%s0 + $0xcac] sm:$0xf]
  %v827 = vld [vmem:[%s0 + $0xcb0] sm:$0xf]
  %v828 = vld [vmem:[%s0 + $0xcb4] sm:$0xf]
  %v829 = vld [vmem:[%s0 + $0xcb8] sm:$0xf]
  %v830 = vld [vmem:[%s0 + $0xcbc] sm:$0xf]
  %v831 = vld [vmem:[%s0 + $0xcc0] sm:$0xf]
  %v832 = vld [vmem:[%s0 + $0xcc4] sm:$0xf]
  %v833 = vld [vmem:[%s0 + $0xcc8] sm:$0xf]
  %v834 = vld [vmem:[%s0 + $0xccc] sm:$0xf]
  %v835 = vld [vmem:[%s0 + $0xcd0] sm:$0xf]
  %v836 = vld [vmem:[%s0 + $0xcd4] sm:$0xf]
  %v837 = vld [vmem:[%s0 + $0xcd8] sm:$0xf]
  %v838 = vld [vmem:[%s0 + $0xcdc] sm:$0xf]
  %v839 = vld [vmem:[%s0 + $0xce0] sm:$0xf]
  %v840 = vld [vmem:[%s0 + $0xce4] sm:$0xf]
  %v841 = vld [vmem:[%s0 + $0xce8] sm:$0xf]
  %v842 = vld [vmem:[%s0 + $0xcec] sm:$0xf]
  %v843 = vld [vmem:[%s0 + $0xcf0] sm:$0xf]
  %v844 = vld [vmem:[%s0 + $0xcf4] sm:$0xf]
  %v845 = vld [vmem:[%s0 + $0xcf8] sm:$0xf]
  %v846 = vld [vmem:[%s0 + $0xcfc] sm:$0xf]
  %v847 = vld [vmem:[%s0 + $0xd00] sm:$0xf]
  %v848 = vld [vmem:[%s0 + $0xd04] sm:$0xf]
  %v849 = vld [vmem:[%s0 + $0xd08] sm:$0xf]
  %v850 = vld [vmem:[%s0 + $0xd0c] sm:$0xf]
  %v851 = vld [vmem:[%s0 + $0xd10] sm:$0xf]
  %v852 = vld [vmem:[%s0 + $0xd14] sm:$0xf]
  %v853 = vld [vmem:[%s0 + $0xd18] sm:$0xf]
  %v854 = vld [vmem:[%s0 + $0xd1c] sm:$0xf]
  %v855 = vld [vmem:[%s0 + $0xd20] sm:$0xf]
  %v856 = vld [vmem:[%s0 + $0xd24] sm:$0xf]
  %v857 = vld [vmem:[%s0 + $0xd28] sm:$0xf]
  %v858 = vld [vmem:[%s0 + $0xd2c] sm:$0xf]
  %v859 = vld [vmem:[%s0 + $0xd30] sm:$0xf]
  %v860 = vld [vmem:[%s0 + $0xd34] sm:$0xf]
  %v861 = vld [vmem:[%s0 + $0xd38] sm:$0xf]
  %v862 = vld [vmem:[%s0 + $0xd3c] sm:$0xf]
  %v863 = vld [vmem:[%s0 + $0xd40] sm:$0xf]
  %v864 = vld [vmem:[%s0 + $0xd44] sm:$0xf]
  %v865 = vld [vmem:[%s0 + $0xd48] sm:$0xf]
  %v866 = vld [vmem:[%s0 + $0xd4c] sm:$0xf]
  %v867 = vld [vmem:[%s0 + $0xd50] sm:$0xf]
  %v868 = vld [vmem:[%s0 + $0xd54] sm:$0xf]
  %v869 = vld [vmem:[%s0 + $0xd58] sm:$0xf]
  %v870 = vld [vmem:[%s0 + $0xd5c] sm:$0xf]
  %v871 = vld [vmem:[%s0 + $0xd60] sm:$0xf]
  %v872 = vld [vmem:[%s0 + $0xd64] sm:$0xf]
  %v873 = vld [vmem:[%s0 + $0xd68] sm:$0xf]
  %v874 = vld [vmem:[%s0 + $0xd6c] sm:$0xf]
  %v875 = vld [vmem:[%s0 + $0xd70] sm:$0xf]
  %v876 = vld [vmem:[%s0 + $0xd74] sm:$0xf]
  %v877 = vld [vmem:[%s0 + $0xd78] sm:$0xf]
  %v878 = vld [vmem:[%s0 + $0xd7c] sm:$0xf]
  %v879 = vld [vmem:[%s0 + $0xd80] sm:$0xf]
  %v880 = vld [vmem:[%s0 + $0xd84] sm:$0xf]
  %v881 = vld [vmem:[%s0 + $0xd88] sm:$0xf]
  %v882 = vld [vmem:[%s0 + $0xd8c] sm:$0xf]
  %v883 = vld [vmem:[%s0 + $0xd90] sm:$0xf]
  %v884 = vld [vmem:[%s0 + $0xd94] sm:$0xf]
  %v885 = vld [vmem:[%s0 + $0xd98] sm:$0xf]
  %v886 = vld [vmem:[%s0 + $0xd9c] sm:$0xf]
  %v887 = vld [vmem:[%s0 + $0xda0] sm:$0xf]
  %v888 = vld [vmem:[%s0 + $0xda4] sm:$0xf]
  %v889 = vld [vmem:[%s0 + $0xda8] sm:$0xf]
  %v890 = vld [vmem:[%s0 + $0xdac] sm:$0xf]
  %v891 = vld [vmem:[%s0 + $0xdb0] sm:$0xf]
  %v892 = vld [vmem:[%s0 + $0xdb4] sm:$0xf]
  %v893 = vld [vmem:[%s0 + $0xdb8] sm:$0xf]
  %v894 = vld [vmem:[%s0 + $0xdbc] sm:$0xf]
  %v895 = vld [vmem:[%s0 + $0xdc0] sm:$0xf]
  %v896 = vld [vmem:[%s0 + $0xdc4] sm:$0xf]
  %v897 = vld [vmem:[%s0 + $0xdc8] sm:$0xf]
  %v898 = vld [vmem:[%s0 + $0xdcc] sm:$0xf]
  %v899 = vld [vmem:[%s0 + $0xdd0] sm:$0xf]
  %v900 = vld [vmem:[%s0 + $0xdd4] sm:$0xf]
  %v901 = vld [vmem:[%s0 + $0xdd8] sm:$0xf]
  %v902 = vld [vmem:[%s0 + $0xddc] sm:$0xf]
  %v903 = vld [vmem:[%s0 + $0xde0] sm:$0xf]
  %v904 = vld [vmem:[%s0 + $0xde4] sm:$0xf]
  %v905 = vld [vmem:[%s0 + $0xde8] sm:$0xf]
  %v906 = vld [vmem:[%s0 + $0xdec] sm:$0xf]
  %v907 = vld [vmem:[%s0 + $0xdf0] sm:$0xf]
  %v908 = vld [vmem:[%s0 + $0xdf4] sm:$0xf]
  %v909 = vld [vmem:[%s0 + $0xdf8] sm:$0xf]
  %v910 = vld [vmem:[%s0 + $0xdfc] sm:$0xf]
  %v911 = vld [vmem:[%s0 + $0xe00] sm:$0xf]
  %v912 = vld [vmem:[%s0 + $0xe04] sm:$0xf]
  %v913 = vld [vmem:[%s0 + $0xe08] sm:$0xf]
  %v914 = vld [vmem:[%s0 + $0xe0c] sm:$0xf]
  %v915 = vld [vmem:[%s0 + $0xe10] sm:$0xf]
  %v916 = vld [vmem:[%s0 + $0xe14] sm:$0xf]
  %v917 = vld [vmem:[%s0 + $0xe18] sm:$0xf]
  %v918 = vld [vmem:[%s0 + $0xe1c] sm:$0xf]
  %v919 = vld [vmem:[%s0 + $0xe20] sm:$0xf]
  %v920 = vld [vmem:[%s0 + $0xe24] sm:$0xf]
  %v921 = vld [vmem:[%s0 + $0xe28] sm:$0xf]
  %v922 = vld [vmem:[%s0 + $0xe2c] sm:$0xf]
  %v923 = vld [vmem:[%s0 + $0xe30] sm:$0xf]
  %v924 = vld [vmem:[%s0 + $0xe34] sm:$0xf]
  %v925 = vld [vmem:[%s0 + $0xe38] sm:$0xf]
  %v926 = vld [vmem:[%s0 + $0xe3c] sm:$0xf]
  %v927 = vld [vmem:[%s0 + $0xe40] sm:$0xf]
  %v928 = vld [vmem:[%s0 + $0xe44] sm:$0xf]
  %v929 = vld [vmem:[%s0 + $0xe48] sm:$0xf]
  %v930 = vld [vmem:[%s0 + $0xe4c] sm:$0xf]
  %v931 = vld [vmem:[%s0 + $0xe50] sm:$0xf]
  %v932 = vld [vmem:[%s0 + $0xe54] sm:$0xf]
  %v933 = vld [vmem:[%s0 + $0xe58] sm:$0xf]
  %v934 = vld [vmem:[%s0 + $0xe5c] sm:$0xf]
  %v935 = vld [vmem:[%s0 + $0xe60] sm:$0xf]
  %v936 = vld [vmem:[%s0 + $0xe64] sm:$0xf]
  %v937 = vld [vmem:[%s0 + $0xe68] sm:$0xf]
  %v938 = vld [vmem:[%s0 + $0xe6c] sm:$0xf]
  %v939 = vld [vmem:[%s0 + $0xe70] sm:$0xf]
  %v940 = vld [vmem:[%s0 + $0xe74] sm:$0xf]
  %v941 = vld [vmem:[%s0 + $0xe78] sm:$0xf]
  %v942 = vld [vmem:[%s0 + $0xe7c] sm:$0xf]
  %v943 = vld [vmem:[%s0 + $0xe80] sm:$0xf]
  %v944 = vld [vmem:[%s0 + $0xe84] sm:$0xf]
  %v945 = vld [vmem:[%s0 + $0xe88] sm:$0xf]
  %v946 = vld [vmem:[%s0 + $0xe8c] sm:$0xf]
  %v947 = vld [vmem:[%s0 + $0xe90] sm:$0xf]
  %v948 = vld [vmem:[%s0 + $0xe94] sm:$0xf]
  %v949 = vld [vmem:[%s0 + $0xe98] sm:$0xf]
  %v950 = vld [vmem:[%s0 + $0xe9c] sm:$0xf]
  %v951 = vld [vmem:[%s0 + $0xea0] sm:$0xf]
  %v952 = vld [vmem:[%s0 + $0xea4] sm:$0xf]
  %v953 = vld [vmem:[%s0 + $0xea8] sm:$0xf]
  %v954 = vld [vmem:[%s0 + $0xeac] sm:$0xf]
  %v955 = vld [vmem:[%s0 + $0xeb0] sm:$0xf]
  %v956 = vld [vmem:[%s0 + $0xeb4] sm:$0xf]
  %v957 = vld [vmem:[%s0 + $0xeb8] sm:$0xf]
  %v958 = vld [vmem:[%s0 + $0xebc] sm:$0xf]
  %v959 = vld [vmem:[%s0 + $0xec0] sm:$0xf]
  %v960 = vld [vmem:[%s0 + $0xec4] sm:$0xf]
  %v961 = vld [vmem:[%s0 + $0xec8] sm:$0xf]
  %v962 = vld [vmem:[%s0 + $0xecc] sm:$0xf]
  %v963 = vld [vmem:[%s0 + $0xed0] sm:$0xf]
  %v964 = vld [vmem:[%s0 + $0xed4] sm:$0xf]
  %v965 = vld [vmem:[%s0 + $0xed8] sm:$0xf]
  %v966 = vld [vmem:[%s0 + $0xedc] sm:$0xf]
  %v967 = vld [vmem:[%s0 + $0xee0] sm:$0xf]
  %v968 = vld [vmem:[%s0 + $0xee4] sm:$0xf]
  %v969 = vld [vmem:[%s0 + $0xee8] sm:$0xf]
  %v970 = vld [vmem:[%s0 + $0xeec] sm:$0xf]
  %v971 = vld [vmem:[%s0 + $0xef0] sm:$0xf]
  %v972 = vld [vmem:[%s0 + $0xef4] sm:$0xf]
  %v973 = vld [vmem:[%s0 + $0xef8] sm:$0xf]
  %v974 = vld [vmem:[%s0 + $0xefc] sm:$0xf]
  %v975 = vld [vmem:[%s0 + $0xf00] sm:$0xf]
  %v976 = vld [vmem:[%s0 + $0xf04] sm:$0xf]
  %v977 = vld [vmem:[%s0 + $0xf08] sm:$0xf]
  %v978 = vld [vmem:[%s0 + $0xf0c] sm:$0xf]
  %v979 = vld [vmem:[%s0 + $0xf10] sm:$0xf]
  %v980 = vld [vmem:[%s0 + $0xf14] sm:$0xf]
  %v981 = vld [vmem:[%s0 + $0xf18] sm:$0xf]
  %v982 = vld [vmem:[%s0 + $0xf1c] sm:$0xf]
  %v983 = vld [vmem:[%s0 + $0xf20] sm:$0xf]
  %v984 = vld [vmem:[%s0 + $0xf24] sm:$0xf]
  %v985 = vld [vmem:[%s0 + $0xf28] sm:$0xf]
  %v986 = vld [vmem:[%s0 + $0xf2c] sm:$0xf]
  %v987 = vld [vmem:[%s0 + $0xf30] sm:$0xf]
  %v988 = vld [vmem:[%s0 + $0xf34] sm:$0xf]
  %v989 = vld [vmem:[%s0 + $0xf38] sm:$0xf]
  %v990 = vld [vmem:[%s0 + $0xf3c] sm:$0xf]
  %v991 = vld [vmem:[%s0 + $0xf40] sm:$0xf]
  %v992 = vld [vmem:[%s0 + $0xf44] sm:$0xf]
  %v993 = vld [vmem:[%s0 + $0xf48] sm:$0xf]
  %v994 = vld [vmem:[%s0 + $0xf4c] sm:$0xf]
  %v995 = vld [vmem:[%s0 + $0xf50] sm:$0xf]
  %v996 = vld [vmem:[%s0 + $0xf54] sm:$0xf]
  %v997 = vld [vmem:[%s0 + $0xf58] sm:$0xf]
  %v998 = vld [vmem:[%s0 + $0xf5c] sm:$0xf]
  %v999 = vld [vmem:[%s0 + $0xf60] sm:$0xf]
  %v1000 = vld [vmem:[%s0 + $0xf64] sm:$0xf]
  %v1001 = vld [vmem:[%s0 + $0xf68] sm:$0xf]
  %v1002 = vld [vmem:[%s0 + $0xf6c] sm:$0xf]
  %v1003 = vld [vmem:[%s0 + $0xf70] sm:$0xf]
  %v1004 = vld [vmem:[%s0 + $0xf74] sm:$0xf]
  %v1005 = vld [vmem:[%s0 + $0xf78] sm:$0xf]
  %v1006 = vld [vmem:[%s0 + $0xf7c] sm:$0xf]
  %v1007 = vld [vmem:[%s0 + $0xf80] sm:$0xf]
  %v1008 = vld [vmem:[%s0 + $0xf84] sm:$0xf]
  %v1009 = vld [vmem:[%s0 + $0xf88] sm:$0xf]
  %v1010 = vld [vmem:[%s0 + $0xf8c] sm:$0xf]
  %v1011 = vld [vmem:[%s0 + $0xf90] sm:$0xf]
  %v1012 = vld [vmem:[%s0 + $0xf94] sm:$0xf]
  %v1013 = vld [vmem:[%s0 + $0xf98] sm:$0xf]
  %v1014 = vld [vmem:[%s0 + $0xf9c] sm:$0xf]
  %v1015 = vld [vmem:[%s0 + $0xfa0] sm:$0xf]
  %v1016 = vld [vmem:[%s0 + $0xfa4] sm:$0xf]
  %v1017 = vld [vmem:[%s0 + $0xfa8] sm:$0xf]
  %v1018 = vld [vmem:[%s0 + $0xfac] sm:$0xf]
  %v1019 = vld [vmem:[%s0 + $0xfb0] sm:$0xf]
  %v1020 = vld [vmem:[%s0 + $0xfb4] sm:$0xf]
  %v1021 = vld [vmem:[%s0 + $0xfb8] sm:$0xf]
  %v1022 = vld [vmem:[%s0 + $0xfbc] sm:$0xf]
  %v1023 = vld [vmem:[%s0 + $0xfc0] sm:$0xf]
  %v1024 = vld [vmem:[%s0 + $0xfc4] sm:$0xf]
  %v1025 = vld [vmem:[%s0 + $0xfc8] sm:$0xf]
  %v1026 = vld [vmem:[%s0 + $0xfcc] sm:$0xf]
  %v1027 = vld [vmem:[%s0 + $0xfd0] sm:$0xf]
  %v1028 = vld [vmem:[%s0 + $0xfd4] sm:$0xf]
  %v1029 = vld [vmem:[%s0 + $0xfd8] sm:$0xf]
  %v1030 = vld [vmem:[%s0 + $0xfdc] sm:$0xf]
  %v1031 = vld [vmem:[%s0 + $0xfe0] sm:$0xf]
  %v1032 = vld [vmem:[%s0 + $0xfe4] sm:$0xf]
  %v1033 = vld [vmem:[%s0 + $0xfe8] sm:$0xf]
  %v1034 = vld [vmem:[%s0 + $0xfec] sm:$0xf]
  %v1035 = vld [vmem:[%s0 + $0xff0] sm:$0xf]
  %v1036 = vld [vmem:[%s0 + $0xff4] sm:$0xf]
  %v1037 = vld [vmem:[%s0 + $0xff8] sm:$0xf]
  %v1038 = vld [vmem:[%s0 + $0xffc] sm:$0xf]
  %v1039 = vld [vmem:[%s0 + $0x1000] sm:$0xf]
  %v1040 = vld [vmem:[%s0 + $0x1004] sm:$0xf]
  %v1041 = vld [vmem:[%s0 + $0x1008] sm:$0xf]
  %v1042 = vld [vmem:[%s0 + $0x100c] sm:$0xf]
  %v1043 = vld [vmem:[%s0 + $0x1010] sm:$0xf]
  %v1044 = vld [vmem:[%s0 + $0x1014] sm:$0xf]
  %v1045 = vld [vmem:[%s0 + $0x1018] sm:$0xf]
  %v1046 = vld [vmem:[%s0 + $0x101c] sm:$0xf]
  %v1047 = vld [vmem:[%s0 + $0x1020] sm:$0xf]
  %v1048 = vld [vmem:[%s0 + $0x1024] sm:$0xf]
  %v1049 = vld [vmem:[%s0 + $0x1028] sm:$0xf]
  %v1050 = vld [vmem:[%s0 + $0x102c] sm:$0xf]
  %v1051 = vld [vmem:[%s0 + $0x1030] sm:$0xf]
  %v1052 = vld [vmem:[%s0 + $0x1034] sm:$0xf]
  %v1053 = vld [vmem:[%s0 + $0x1038] sm:$0xf]
  %v1054 = vld [vmem:[%s0 + $0x103c] sm:$0xf]
  %v1055 = vld [vmem:[%s0 + $0x1040] sm:$0xf]
  %v1056 = vld [vmem:[%s0 + $0x1044] sm:$0xf]
  %v1057 = vld [vmem:[%s0 + $0x1048] sm:$0xf]
  %v1058 = vld [vmem:[%s0 + $0x104c] sm:$0xf]
  %v1059 = vld [vmem:[%s0 + $0x1050] sm:$0xf]
  %v1060 = vld [vmem:[%s0 + $0x1054] sm:$0xf]
  %v1061 = vld [vmem:[%s0 + $0x1058] sm:$0xf]
  %v1062 = vld [vmem:[%s0 + $0x105c] sm:$0xf]
  %v1063 = vld [vmem:[%s0 + $0x1060] sm:$0xf]
  %v1064 = vld [vmem:[%s0 + $0x1064] sm:$0xf]
  %v1065 = vld [vmem:[%s0 + $0x1068] sm:$0xf]
  %v1066 = vld [vmem:[%s0 + $0x106c] sm:$0xf]
  %v1067 = vld [vmem:[%s0 + $0x1070] sm:$0xf]
  %v1068 = vld [vmem:[%s0 + $0x1074] sm:$0xf]
  %v1069 = vld [vmem:[%s0 + $0x1078] sm:$0xf]
  %v1070 = vld [vmem:[%s0 + $0x107c] sm:$0xf]
  %v1071 = vld [vmem:[%s0 + $0x1080] sm:$0xf]
  %v1072 = vld [vmem:[%s0 + $0x1084] sm:$0xf]
  %v1073 = vld [vmem:[%s0 + $0x1088] sm:$0xf]
  %v1074 = vld [vmem:[%s0 + $0x108c] sm:$0xf]
  %v1075 = vld [vmem:[%s0 + $0x1090] sm:$0xf]
  %v1076 = vld [vmem:[%s0 + $0x1094] sm:$0xf]
  %v1077 = vld [vmem:[%s0 + $0x1098] sm:$0xf]
  %v1078 = vld [vmem:[%s0 + $0x109c] sm:$0xf]
  %v1079 = vld [vmem:[%s0 + $0x10a0] sm:$0xf]
  %v1080 = vld [vmem:[%s0 + $0x10a4] sm:$0xf]
  %v1081 = vld [vmem:[%s0 + $0x10a8] sm:$0xf]
  %v1082 = vld [vmem:[%s0 + $0x10ac] sm:$0xf]
  %v1083 = vld [vmem:[%s0 + $0x10b0] sm:$0xf]
  %v1084 = vld [vmem:[%s0 + $0x10b4] sm:$0xf]
  %v1085 = vld [vmem:[%s0 + $0x10b8] sm:$0xf]
  %v1086 = vld [vmem:[%s0 + $0x10bc] sm:$0xf]
  %v1087 = vld [vmem:[%s0 + $0x10c0] sm:$0xf]
  %v1088 = vld [vmem:[%s0 + $0x10c4] sm:$0xf]
  %v1089 = vld [vmem:[%s0 + $0x10c8] sm:$0xf]
  %v1090 = vld [vmem:[%s0 + $0x10cc] sm:$0xf]
  %v1091 = vld [vmem:[%s0 + $0x10d0] sm:$0xf]
  %v1092 = vld [vmem:[%s0 + $0x10d4] sm:$0xf]
  %v1093 = vld [vmem:[%s0 + $0x10d8] sm:$0xf]
  %v1094 = vld [vmem:[%s0 + $0x10dc] sm:$0xf]
  %v1095 = vld [vmem:[%s0 + $0x10e0] sm:$0xf]
  %v1096 = vld [vmem:[%s0 + $0x10e4] sm:$0xf]
  %v1097 = vld [vmem:[%s0 + $0x10e8] sm:$0xf]
  %v1098 = vld [vmem:[%s0 + $0x10ec] sm:$0xf]
  %v1099 = vld [vmem:[%s0 + $0x10f0] sm:$0xf]
  %v1100 = vld [vmem:[%s0 + $0x10f4] sm:$0xf]
  %v1101 = vld [vmem:[%s0 + $0x10f8] sm:$0xf]
  %v1102 = vld [vmem:[%s0 + $0x10fc] sm:$0xf]
  %v1103 = vld [vmem:[%s0 + $0x1100] sm:$0xf]
  %v1104 = vld [vmem:[%s0 + $0x1104] sm:$0xf]
  %v1105 = vld [vmem:[%s0 + $0x1108] sm:$0xf]
  %v1106 = vld [vmem:[%s0 + $0x110c] sm:$0xf]
  %v1107 = vld [vmem:[%s0 + $0x1110] sm:$0xf]
  %v1108 = vld [vmem:[%s0 + $0x1114] sm:$0xf]
  %v1109 = vld [vmem:[%s0 + $0x1118] sm:$0xf]
  %v1110 = vld [vmem:[%s0 + $0x111c] sm:$0xf]
  %v1111 = vld [vmem:[%s0 + $0x1120] sm:$0xf]
  %v1112 = vld [vmem:[%s0 + $0x1124] sm:$0xf]
  %v1113 = vld [vmem:[%s0 + $0x1128] sm:$0xf]
  %v1114 = vld [vmem:[%s0 + $0x112c] sm:$0xf]
  %v1115 = vld [vmem:[%s0 + $0x1130] sm:$0xf]
  %v1116 = vld [vmem:[%s0 + $0x1134] sm:$0xf]
  %v1117 = vld [vmem:[%s0 + $0x1138] sm:$0xf]
  %v1118 = vld [vmem:[%s0 + $0x113c] sm:$0xf]
  %v1119 = vld [vmem:[%s0 + $0x1140] sm:$0xf]
  %v1120 = vld [vmem:[%s0 + $0x1144] sm:$0xf]
  %v1121 = vld [vmem:[%s0 + $0x1148] sm:$0xf]
  %v1122 = vld [vmem:[%s0 + $0x114c] sm:$0xf]
  %v1123 = vld [vmem:[%s0 + $0x1150] sm:$0xf]
  %v1124 = vld [vmem:[%s0 + $0x1154] sm:$0xf]
  %v1125 = vld [vmem:[%s0 + $0x1158] sm:$0xf]
  %v1126 = vld [vmem:[%s0 + $0x115c] sm:$0xf]
  %v1127 = vld [vmem:[%s0 + $0x1160] sm:$0xf]
  %v1128 = vld [vmem:[%s0 + $0x1164] sm:$0xf]
  %v1129 = vld [vmem:[%s0 + $0x1168] sm:$0xf]
  %v1130 = vld [vmem:[%s0 + $0x116c] sm:$0xf]
  %v1131 = vld [vmem:[%s0 + $0x1170] sm:$0xf]
  %v1132 = vld [vmem:[%s0 + $0x1174] sm:$0xf]
  %v1133 = vld [vmem:[%s0 + $0x1178] sm:$0xf]
  %v1134 = vld [vmem:[%s0 + $0x117c] sm:$0xf]
  %v1135 = vld [vmem:[%s0 + $0x1180] sm:$0xf]
  %v1136 = vld [vmem:[%s0 + $0x1184] sm:$0xf]
  %v1137 = vld [vmem:[%s0 + $0x1188] sm:$0xf]
  %v1138 = vld [vmem:[%s0 + $0x118c] sm:$0xf]
  %v1139 = vld [vmem:[%s0 + $0x1190] sm:$0xf]
  %v1140 = vld [vmem:[%s0 + $0x1194] sm:$0xf]
  %v1141 = vld [vmem:[%s0 + $0x1198] sm:$0xf]
  %v1142 = vld [vmem:[%s0 + $0x119c] sm:$0xf]
  %v1143 = vld [vmem:[%s0 + $0x11a0] sm:$0xf]
  %v1144 = vld [vmem:[%s0 + $0x11a4] sm:$0xf]
  %v1145 = vld [vmem:[%s0 + $0x11a8] sm:$0xf]
  %v1146 = vld [vmem:[%s0 + $0x11ac] sm:$0xf]
  %v1147 = vld [vmem:[%s0 + $0x11b0] sm:$0xf]
  %v1148 = vld [vmem:[%s0 + $0x11b4] sm:$0xf]
  %v1149 = vld [vmem:[%s0 + $0x11b8] sm:$0xf]
  %v1150 = vld [vmem:[%s0 + $0x11bc] sm:$0xf]
  %v1151 = vld [vmem:[%s0 + $0x11c0] sm:$0xf]
  %v1152 = vld [vmem:[%s0 + $0x11c4] sm:$0xf]
  %v1153 = vld [vmem:[%s0 + $0x11c8] sm:$0xf]
  %v1154 = vld [vmem:[%s0 + $0x11cc] sm:$0xf]
  %v1155 = vld [vmem:[%s0 + $0x11d0] sm:$0xf]
  %v1156 = vld [vmem:[%s0 + $0x11d4] sm:$0xf]
  %v1157 = vld [vmem:[%s0 + $0x11d8] sm:$0xf]
  %v1158 = vld [vmem:[%s0 + $0x11dc] sm:$0xf]
  %v1159 = vld [vmem:[%s0 + $0x11e0] sm:$0xf]
  %v1160 = vld [vmem:[%s0 + $0x11e4] sm:$0xf]
  %v1161 = vld [vmem:[%s0 + $0x11e8] sm:$0xf]
  %v1162 = vld [vmem:[%s0 + $0x11ec] sm:$0xf]
  %v1163 = vld [vmem:[%s0 + $0x11f0] sm:$0xf]
  %v1164 = vld [vmem:[%s0 + $0x11f4] sm:$0xf]
  %v1165 = vld [vmem:[%s0 + $0x11f8] sm:$0xf]
  %v1166 = vld [vmem:[%s0 + $0x11fc] sm:$0xf]
  %v1167 = vld [vmem:[%s1] sm:$0xf]
  %v1168 = vld [vmem:[%s1 + $0x4] sm:$0xf]
  %v1169 = vld [vmem:[%s1 + $0x8] sm:$0xf]
  %v1170 = vld [vmem:[%s1 + $0xc] sm:$0xf]
  %v2323 = vunpack.c.l.b16 %v15
  %v2324 = vunpack.c.l.b16 %v16
  %v2325 = vunpack.c.l.b16 %v17
  %v2326 = vunpack.c.l.b16 %v18
  %v2327 = vunpack.c.l.b16 %v19
  %v2328 = vunpack.c.l.b16 %v20
  %v2329 = vunpack.c.l.b16 %v21
  %v2330 = vunpack.c.l.b16 %v22
  %v2331 = vunpack.c.l.b16 %v23
  %v2332 = vunpack.c.l.b16 %v24
  %v2333 = vunpack.c.l.b16 %v25
  %v2334 = vunpack.c.l.b16 %v26
  %v2335 = vunpack.c.l.b16 %v27
  %v2336 = vunpack.c.l.b16 %v28
  %v2337 = vunpack.c.l.b16 %v29
  %v2338 = vunpack.c.l.b16 %v30
  %v2339 = vunpack.c.l.b16 %v31
  %v2340 = vunpack.c.l.b16 %v32
  %v2341 = vunpack.c.l.b16 %v33
  %v2342 = vunpack.c.l.b16 %v34
  %v2343 = vunpack.c.l.b16 %v35
  %v2344 = vunpack.c.l.b16 %v36
  %v2345 = vunpack.c.l.b16 %v37
  %v2346 = vunpack.c.l.b16 %v38
  %v2347 = vunpack.c.l.b16 %v39
  %v2348 = vunpack.c.l.b16 %v40
  %v2349 = vunpack.c.l.b16 %v41
  %v2350 = vunpack.c.l.b16 %v42
  %v2351 = vunpack.c.l.b16 %v43
  %v2352 = vunpack.c.l.b16 %v44
  %v2353 = vunpack.c.l.b16 %v45
  %v2354 = vunpack.c.l.b16 %v46
  %v2355 = vunpack.c.l.b16 %v47
  %v2356 = vunpack.c.l.b16 %v48
  %v2357 = vunpack.c.l.b16 %v49
  %v2358 = vunpack.c.l.b16 %v50
  %v2359 = vunpack.c.l.b16 %v51
  %v2360 = vunpack.c.l.b16 %v52
  %v2361 = vunpack.c.l.b16 %v53
  %v2362 = vunpack.c.l.b16 %v54
  %v2363 = vunpack.c.l.b16 %v55
  %v2364 = vunpack.c.l.b16 %v56
  %v2365 = vunpack.c.l.b16 %v57
  %v2366 = vunpack.c.l.b16 %v58
  %v2367 = vunpack.c.l.b16 %v59
  %v2368 = vunpack.c.l.b16 %v60
  %v2369 = vunpack.c.l.b16 %v61
  %v2370 = vunpack.c.l.b16 %v62
  %v2371 = vunpack.c.l.b16 %v63
  %v2372 = vunpack.c.l.b16 %v64
  %v2373 = vunpack.c.l.b16 %v65
  %v2374 = vunpack.c.l.b16 %v66
  %v2375 = vunpack.c.l.b16 %v67
  %v2376 = vunpack.c.l.b16 %v68
  %v2377 = vunpack.c.l.b16 %v69
  %v2378 = vunpack.c.l.b16 %v70
  %v2379 = vunpack.c.l.b16 %v71
  %v2380 = vunpack.c.l.b16 %v72
  %v2381 = vunpack.c.l.b16 %v73
  %v2382 = vunpack.c.l.b16 %v74
  %v2383 = vunpack.c.l.b16 %v75
  %v2384 = vunpack.c.l.b16 %v76
  %v2385 = vunpack.c.l.b16 %v77
  %v2386 = vunpack.c.l.b16 %v78
  %v2387 = vunpack.c.l.b16 %v79
  %v2388 = vunpack.c.l.b16 %v80
  %v2389 = vunpack.c.l.b16 %v81
  %v2390 = vunpack.c.l.b16 %v82
  %v2391 = vunpack.c.l.b16 %v83
  %v2392 = vunpack.c.l.b16 %v84
  %v2393 = vunpack.c.l.b16 %v85
  %v2394 = vunpack.c.l.b16 %v86
  %v2395 = vunpack.c.l.b16 %v87
  %v2396 = vunpack.c.l.b16 %v88
  %v2397 = vunpack.c.l.b16 %v89
  %v2398 = vunpack.c.l.b16 %v90
  %v2399 = vunpack.c.l.b16 %v91
  %v2400 = vunpack.c.l.b16 %v92
  %v2401 = vunpack.c.l.b16 %v93
  %v2402 = vunpack.c.l.b16 %v94
  %v2403 = vunpack.c.l.b16 %v95
  %v2404 = vunpack.c.l.b16 %v96
  %v2405 = vunpack.c.l.b16 %v97
  %v2406 = vunpack.c.l.b16 %v98
  %v2407 = vunpack.c.l.b16 %v99
  %v2408 = vunpack.c.l.b16 %v100
  %v2409 = vunpack.c.l.b16 %v101
  %v2410 = vunpack.c.l.b16 %v102
  %v2411 = vunpack.c.l.b16 %v103
  %v2412 = vunpack.c.l.b16 %v104
  %v2413 = vunpack.c.l.b16 %v105
  %v2414 = vunpack.c.l.b16 %v106
  %v2415 = vunpack.c.l.b16 %v107
  %v2416 = vunpack.c.l.b16 %v108
  %v2417 = vunpack.c.l.b16 %v109
  %v2418 = vunpack.c.l.b16 %v110
  %v2419 = vunpack.c.l.b16 %v111
  %v2420 = vunpack.c.l.b16 %v112
  %v2421 = vunpack.c.l.b16 %v113
  %v2422 = vunpack.c.l.b16 %v114
  %v2423 = vunpack.c.l.b16 %v115
  %v2424 = vunpack.c.l.b16 %v116
  %v2425 = vunpack.c.l.b16 %v117
  %v2426 = vunpack.c.l.b16 %v118
  %v2427 = vunpack.c.l.b16 %v119
  %v2428 = vunpack.c.l.b16 %v120
  %v2429 = vunpack.c.l.b16 %v121
  %v2430 = vunpack.c.l.b16 %v122
  %v2431 = vunpack.c.l.b16 %v123
  %v2432 = vunpack.c.l.b16 %v124
  %v2433 = vunpack.c.l.b16 %v125
  %v2434 = vunpack.c.l.b16 %v126
  %v2435 = vunpack.c.l.b16 %v127
  %v2436 = vunpack.c.l.b16 %v128
  %v2437 = vunpack.c.l.b16 %v129
  %v2438 = vunpack.c.l.b16 %v130
  %v2439 = vunpack.c.l.b16 %v131
  %v2440 = vunpack.c.l.b16 %v132
  %v2441 = vunpack.c.l.b16 %v133
  %v2442 = vunpack.c.l.b16 %v134
  %v2443 = vunpack.c.l.b16 %v135
  %v2444 = vunpack.c.l.b16 %v136
  %v2445 = vunpack.c.l.b16 %v137
  %v2446 = vunpack.c.l.b16 %v138
  %v2447 = vunpack.c.l.b16 %v139
  %v2448 = vunpack.c.l.b16 %v140
  %v2449 = vunpack.c.l.b16 %v141
  %v2450 = vunpack.c.l.b16 %v142
  %v2451 = vunpack.c.l.b16 %v143
  %v2452 = vunpack.c.l.b16 %v144
  %v2453 = vunpack.c.l.b16 %v145
  %v2454 = vunpack.c.l.b16 %v146
  %v2455 = vunpack.c.l.b16 %v147
  %v2456 = vunpack.c.l.b16 %v148
  %v2457 = vunpack.c.l.b16 %v149
  %v2458 = vunpack.c.l.b16 %v150
  %v2459 = vunpack.c.l.b16 %v151
  %v2460 = vunpack.c.l.b16 %v152
  %v2461 = vunpack.c.l.b16 %v153
  %v2462 = vunpack.c.l.b16 %v154
  %v2463 = vunpack.c.l.b16 %v155
  %v2464 = vunpack.c.l.b16 %v156
  %v2465 = vunpack.c.l.b16 %v157
  %v2466 = vunpack.c.l.b16 %v158
  %v2467 = vunpack.c.l.b16 %v159
  %v2468 = vunpack.c.l.b16 %v160
  %v2469 = vunpack.c.l.b16 %v161
  %v2470 = vunpack.c.l.b16 %v162
  %v2471 = vunpack.c.l.b16 %v163
  %v2472 = vunpack.c.l.b16 %v164
  %v2473 = vunpack.c.l.b16 %v165
  %v2474 = vunpack.c.l.b16 %v166
  %v2475 = vunpack.c.l.b16 %v167
  %v2476 = vunpack.c.l.b16 %v168
  %v2477 = vunpack.c.l.b16 %v169
  %v2478 = vunpack.c.l.b16 %v170
  %v2479 = vunpack.c.l.b16 %v171
  %v2480 = vunpack.c.l.b16 %v172
  %v2481 = vunpack.c.l.b16 %v173
  %v2482 = vunpack.c.l.b16 %v174
  %v2483 = vunpack.c.l.b16 %v175
  %v2484 = vunpack.c.l.b16 %v176
  %v2485 = vunpack.c.l.b16 %v177
  %v2486 = vunpack.c.l.b16 %v178
  %v2487 = vunpack.c.l.b16 %v179
  %v2488 = vunpack.c.l.b16 %v180
  %v2489 = vunpack.c.l.b16 %v181
  %v2490 = vunpack.c.l.b16 %v182
  %v2491 = vunpack.c.l.b16 %v183
  %v2492 = vunpack.c.l.b16 %v184
  %v2493 = vunpack.c.l.b16 %v185
  %v2494 = vunpack.c.l.b16 %v186
  %v2495 = vunpack.c.l.b16 %v187
  %v2496 = vunpack.c.l.b16 %v188
  %v2497 = vunpack.c.l.b16 %v189
  %v2498 = vunpack.c.l.b16 %v190
  %v2499 = vunpack.c.l.b16 %v191
  %v2500 = vunpack.c.l.b16 %v192
  %v2501 = vunpack.c.l.b16 %v193
  %v2502 = vunpack.c.l.b16 %v194
  %v2503 = vunpack.c.l.b16 %v195
  %v2504 = vunpack.c.l.b16 %v196
  %v2505 = vunpack.c.l.b16 %v197
  %v2506 = vunpack.c.l.b16 %v198
  %v2507 = vunpack.c.l.b16 %v199
  %v2508 = vunpack.c.l.b16 %v200
  %v2509 = vunpack.c.l.b16 %v201
  %v2510 = vunpack.c.l.b16 %v202
  %v2511 = vunpack.c.l.b16 %v203
  %v2512 = vunpack.c.l.b16 %v204
  %v2513 = vunpack.c.l.b16 %v205
  %v2514 = vunpack.c.l.b16 %v206
  %v2515 = vunpack.c.l.b16 %v207
  %v2516 = vunpack.c.l.b16 %v208
  %v2517 = vunpack.c.l.b16 %v209
  %v2518 = vunpack.c.l.b16 %v210
  %v2519 = vunpack.c.l.b16 %v211
  %v2520 = vunpack.c.l.b16 %v212
  %v2521 = vunpack.c.l.b16 %v213
  %v2522 = vunpack.c.l.b16 %v214
  %v2523 = vunpack.c.l.b16 %v215
  %v2524 = vunpack.c.l.b16 %v216
  %v2525 = vunpack.c.l.b16 %v217
  %v2526 = vunpack.c.l.b16 %v218
  %v2527 = vunpack.c.l.b16 %v219
  %v2528 = vunpack.c.l.b16 %v220
  %v2529 = vunpack.c.l.b16 %v221
  %v2530 = vunpack.c.l.b16 %v222
  %v2531 = vunpack.c.l.b16 %v223
  %v2532 = vunpack.c.l.b16 %v224
  %v2533 = vunpack.c.l.b16 %v225
  %v2534 = vunpack.c.l.b16 %v226
  %v2535 = vunpack.c.l.b16 %v227
  %v2536 = vunpack.c.l.b16 %v228
  %v2537 = vunpack.c.l.b16 %v229
  %v2538 = vunpack.c.l.b16 %v230
  %v2539 = vunpack.c.l.b16 %v231
  %v2540 = vunpack.c.l.b16 %v232
  %v2541 = vunpack.c.l.b16 %v233
  %v2542 = vunpack.c.l.b16 %v234
  %v2543 = vunpack.c.l.b16 %v235
  %v2544 = vunpack.c.l.b16 %v236
  %v2545 = vunpack.c.l.b16 %v237
  %v2546 = vunpack.c.l.b16 %v238
  %v2547 = vunpack.c.l.b16 %v239
  %v2548 = vunpack.c.l.b16 %v240
  %v2549 = vunpack.c.l.b16 %v241
  %v2550 = vunpack.c.l.b16 %v242
  %v2551 = vunpack.c.l.b16 %v243
  %v2552 = vunpack.c.l.b16 %v244
  %v2553 = vunpack.c.l.b16 %v245
  %v2554 = vunpack.c.l.b16 %v246
  %v2555 = vunpack.c.l.b16 %v247
  %v2556 = vunpack.c.l.b16 %v248
  %v2557 = vunpack.c.l.b16 %v249
  %v2558 = vunpack.c.l.b16 %v250
  %v2559 = vunpack.c.l.b16 %v251
  %v2560 = vunpack.c.l.b16 %v252
  %v2561 = vunpack.c.l.b16 %v253
  %v2562 = vunpack.c.l.b16 %v254
  %v2563 = vunpack.c.l.b16 %v255
  %v2564 = vunpack.c.l.b16 %v256
  %v2565 = vunpack.c.l.b16 %v257
  %v2566 = vunpack.c.l.b16 %v258
  %v2567 = vunpack.c.l.b16 %v259
  %v2568 = vunpack.c.l.b16 %v260
  %v2569 = vunpack.c.l.b16 %v261
  %v2570 = vunpack.c.l.b16 %v262
  %v2571 = vunpack.c.l.b16 %v263
  %v2572 = vunpack.c.l.b16 %v264
  %v2573 = vunpack.c.l.b16 %v265
  %v2574 = vunpack.c.l.b16 %v266
  %v2575 = vunpack.c.l.b16 %v267
  %v2576 = vunpack.c.l.b16 %v268
  %v2577 = vunpack.c.l.b16 %v269
  %v2578 = vunpack.c.l.b16 %v270
  %v2579 = vunpack.c.l.b16 %v271
  %v2580 = vunpack.c.l.b16 %v272
  %v2581 = vunpack.c.l.b16 %v273
  %v2582 = vunpack.c.l.b16 %v274
  %v2583 = vunpack.c.l.b16 %v275
  %v2584 = vunpack.c.l.b16 %v276
  %v2585 = vunpack.c.l.b16 %v277
  %v2586 = vunpack.c.l.b16 %v278
  %v2587 = vunpack.c.l.b16 %v279
  %v2588 = vunpack.c.l.b16 %v280
  %v2589 = vunpack.c.l.b16 %v281
  %v2590 = vunpack.c.l.b16 %v282
  %v2591 = vunpack.c.l.b16 %v283
  %v2592 = vunpack.c.l.b16 %v284
  %v2593 = vunpack.c.l.b16 %v285
  %v2594 = vunpack.c.l.b16 %v286
  %v2595 = vunpack.c.l.b16 %v287
  %v2596 = vunpack.c.l.b16 %v288
  %v2597 = vunpack.c.l.b16 %v289
  %v2598 = vunpack.c.l.b16 %v290
  %v2599 = vunpack.c.l.b16 %v291
  %v2600 = vunpack.c.l.b16 %v292
  %v2601 = vunpack.c.l.b16 %v293
  %v2602 = vunpack.c.l.b16 %v294
  %v2603 = vunpack.c.l.b16 %v295
  %v2604 = vunpack.c.l.b16 %v296
  %v2605 = vunpack.c.l.b16 %v297
  %v2606 = vunpack.c.l.b16 %v298
  %v2607 = vunpack.c.l.b16 %v299
  %v2608 = vunpack.c.l.b16 %v300
  %v2609 = vunpack.c.l.b16 %v301
  %v2610 = vunpack.c.l.b16 %v302
  %v2611 = vunpack.c.l.b16 %v303
  %v2612 = vunpack.c.l.b16 %v304
  %v2613 = vunpack.c.l.b16 %v305
  %v2614 = vunpack.c.l.b16 %v306
  %v2615 = vunpack.c.l.b16 %v307
  %v2616 = vunpack.c.l.b16 %v308
  %v2617 = vunpack.c.l.b16 %v309
  %v2618 = vunpack.c.l.b16 %v310
  %v2619 = vunpack.c.l.b16 %v311
  %v2620 = vunpack.c.l.b16 %v312
  %v2621 = vunpack.c.l.b16 %v313
  %v2622 = vunpack.c.l.b16 %v314
  %v2623 = vunpack.c.l.b16 %v315
  %v2624 = vunpack.c.l.b16 %v316
  %v2625 = vunpack.c.l.b16 %v317
  %v2626 = vunpack.c.l.b16 %v318
  %v2627 = vunpack.c.l.b16 %v319
  %v2628 = vunpack.c.l.b16 %v320
  %v2629 = vunpack.c.l.b16 %v321
  %v2630 = vunpack.c.l.b16 %v322
  %v2631 = vunpack.c.l.b16 %v323
  %v2632 = vunpack.c.l.b16 %v324
  %v2633 = vunpack.c.l.b16 %v325
  %v2634 = vunpack.c.l.b16 %v326
  %v2635 = vunpack.c.l.b16 %v327
  %v2636 = vunpack.c.l.b16 %v328
  %v2637 = vunpack.c.l.b16 %v329
  %v2638 = vunpack.c.l.b16 %v330
  %v2639 = vunpack.c.l.b16 %v331
  %v2640 = vunpack.c.l.b16 %v332
  %v2641 = vunpack.c.l.b16 %v333
  %v2642 = vunpack.c.l.b16 %v334
  %v2643 = vunpack.c.l.b16 %v335
  %v2644 = vunpack.c.l.b16 %v336
  %v2645 = vunpack.c.l.b16 %v337
  %v2646 = vunpack.c.l.b16 %v338
  %v2647 = vunpack.c.l.b16 %v339
  %v2648 = vunpack.c.l.b16 %v340
  %v2649 = vunpack.c.l.b16 %v341
  %v2650 = vunpack.c.l.b16 %v342
  %v2651 = vunpack.c.l.b16 %v343
  %v2652 = vunpack.c.l.b16 %v344
  %v2653 = vunpack.c.l.b16 %v345
  %v2654 = vunpack.c.l.b16 %v346
  %v2655 = vunpack.c.l.b16 %v347
  %v2656 = vunpack.c.l.b16 %v348
  %v2657 = vunpack.c.l.b16 %v349
  %v2658 = vunpack.c.l.b16 %v350
  %v2659 = vunpack.c.l.b16 %v351
  %v2660 = vunpack.c.l.b16 %v352
  %v2661 = vunpack.c.l.b16 %v353
  %v2662 = vunpack.c.l.b16 %v354
  %v2663 = vunpack.c.l.b16 %v355
  %v2664 = vunpack.c.l.b16 %v356
  %v2665 = vunpack.c.l.b16 %v357
  %v2666 = vunpack.c.l.b16 %v358
  %v2667 = vunpack.c.l.b16 %v359
  %v2668 = vunpack.c.l.b16 %v360
  %v2669 = vunpack.c.l.b16 %v361
  %v2670 = vunpack.c.l.b16 %v362
  %v2671 = vunpack.c.l.b16 %v363
  %v2672 = vunpack.c.l.b16 %v364
  %v2673 = vunpack.c.l.b16 %v365
  %v2674 = vunpack.c.l.b16 %v366
  %v2675 = vunpack.c.l.b16 %v367
  %v2676 = vunpack.c.l.b16 %v368
  %v2677 = vunpack.c.l.b16 %v369
  %v2678 = vunpack.c.l.b16 %v370
  %v2679 = vunpack.c.l.b16 %v371
  %v2680 = vunpack.c.l.b16 %v372
  %v2681 = vunpack.c.l.b16 %v373
  %v2682 = vunpack.c.l.b16 %v374
  %v2683 = vunpack.c.l.b16 %v375
  %v2684 = vunpack.c.l.b16 %v376
  %v2685 = vunpack.c.l.b16 %v377
  %v2686 = vunpack.c.l.b16 %v378
  %v2687 = vunpack.c.l.b16 %v379
  %v2688 = vunpack.c.l.b16 %v380
  %v2689 = vunpack.c.l.b16 %v381
  %v2690 = vunpack.c.l.b16 %v382
  %v2691 = vunpack.c.l.b16 %v383
  %v2692 = vunpack.c.l.b16 %v384
  %v2693 = vunpack.c.l.b16 %v385
  %v2694 = vunpack.c.l.b16 %v386
  %v2695 = vunpack.c.l.b16 %v387
  %v2696 = vunpack.c.l.b16 %v388
  %v2697 = vunpack.c.l.b16 %v389
  %v2698 = vunpack.c.l.b16 %v390
  %v2699 = vunpack.c.l.b16 %v391
  %v2700 = vunpack.c.l.b16 %v392
  %v2701 = vunpack.c.l.b16 %v393
  %v2702 = vunpack.c.l.b16 %v394
  %v2703 = vunpack.c.l.b16 %v395
  %v2704 = vunpack.c.l.b16 %v396
  %v2705 = vunpack.c.l.b16 %v397
  %v2706 = vunpack.c.l.b16 %v398
  %v2707 = vunpack.c.l.b16 %v399
  %v2708 = vunpack.c.l.b16 %v400
  %v2709 = vunpack.c.l.b16 %v401
  %v2710 = vunpack.c.l.b16 %v402
  %v2711 = vunpack.c.l.b16 %v403
  %v2712 = vunpack.c.l.b16 %v404
  %v2713 = vunpack.c.l.b16 %v405
  %v2714 = vunpack.c.l.b16 %v406
  %v2715 = vunpack.c.l.b16 %v407
  %v2716 = vunpack.c.l.b16 %v408
  %v2717 = vunpack.c.l.b16 %v409
  %v2718 = vunpack.c.l.b16 %v410
  %v2719 = vunpack.c.l.b16 %v411
  %v2720 = vunpack.c.l.b16 %v412
  %v2721 = vunpack.c.l.b16 %v413
  %v2722 = vunpack.c.l.b16 %v414
  %v2723 = vunpack.c.l.b16 %v415
  %v2724 = vunpack.c.l.b16 %v416
  %v2725 = vunpack.c.l.b16 %v417
  %v2726 = vunpack.c.l.b16 %v418
  %v2727 = vunpack.c.l.b16 %v419
  %v2728 = vunpack.c.l.b16 %v420
  %v2729 = vunpack.c.l.b16 %v421
  %v2730 = vunpack.c.l.b16 %v422
  %v2731 = vunpack.c.l.b16 %v423
  %v2732 = vunpack.c.l.b16 %v424
  %v2733 = vunpack.c.l.b16 %v425
  %v2734 = vunpack.c.l.b16 %v426
  %v2735 = vunpack.c.l.b16 %v427
  %v2736 = vunpack.c.l.b16 %v428
  %v2737 = vunpack.c.l.b16 %v429
  %v2738 = vunpack.c.l.b16 %v430
  %v2739 = vunpack.c.l.b16 %v431
  %v2740 = vunpack.c.l.b16 %v432
  %v2741 = vunpack.c.l.b16 %v433
  %v2742 = vunpack.c.l.b16 %v434
  %v2743 = vunpack.c.l.b16 %v435
  %v2744 = vunpack.c.l.b16 %v436
  %v2745 = vunpack.c.l.b16 %v437
  %v2746 = vunpack.c.l.b16 %v438
  %v2747 = vunpack.c.l.b16 %v439
  %v2748 = vunpack.c.l.b16 %v440
  %v2749 = vunpack.c.l.b16 %v441
  %v2750 = vunpack.c.l.b16 %v442
  %v2751 = vunpack.c.l.b16 %v443
  %v2752 = vunpack.c.l.b16 %v444
  %v2753 = vunpack.c.l.b16 %v445
  %v2754 = vunpack.c.l.b16 %v446
  %v2755 = vunpack.c.l.b16 %v447
  %v2756 = vunpack.c.l.b16 %v448
  %v2757 = vunpack.c.l.b16 %v449
  %v2758 = vunpack.c.l.b16 %v450
  %v2759 = vunpack.c.l.b16 %v451
  %v2760 = vunpack.c.l.b16 %v452
  %v2761 = vunpack.c.l.b16 %v453
  %v2762 = vunpack.c.l.b16 %v454
  %v2763 = vunpack.c.l.b16 %v455
  %v2764 = vunpack.c.l.b16 %v456
  %v2765 = vunpack.c.l.b16 %v457
  %v2766 = vunpack.c.l.b16 %v458
  %v2767 = vunpack.c.l.b16 %v459
  %v2768 = vunpack.c.l.b16 %v460
  %v2769 = vunpack.c.l.b16 %v461
  %v2770 = vunpack.c.l.b16 %v462
  %v2771 = vunpack.c.l.b16 %v463
  %v2772 = vunpack.c.l.b16 %v464
  %v2773 = vunpack.c.l.b16 %v465
  %v2774 = vunpack.c.l.b16 %v466
  %v2775 = vunpack.c.l.b16 %v467
  %v2776 = vunpack.c.l.b16 %v468
  %v2777 = vunpack.c.l.b16 %v469
  %v2778 = vunpack.c.l.b16 %v470
  %v2779 = vunpack.c.l.b16 %v471
  %v2780 = vunpack.c.l.b16 %v472
  %v2781 = vunpack.c.l.b16 %v473
  %v2782 = vunpack.c.l.b16 %v474
  %v2783 = vunpack.c.l.b16 %v475
  %v2784 = vunpack.c.l.b16 %v476
  %v2785 = vunpack.c.l.b16 %v477
  %v2786 = vunpack.c.l.b16 %v478
  %v2787 = vunpack.c.l.b16 %v479
  %v2788 = vunpack.c.l.b16 %v480
  %v2789 = vunpack.c.l.b16 %v481
  %v2790 = vunpack.c.l.b16 %v482
  %v2791 = vunpack.c.l.b16 %v483
  %v2792 = vunpack.c.l.b16 %v484
  %v2793 = vunpack.c.l.b16 %v485
  %v2794 = vunpack.c.l.b16 %v486
  %v2795 = vunpack.c.l.b16 %v487
  %v2796 = vunpack.c.l.b16 %v488
  %v2797 = vunpack.c.l.b16 %v489
  %v2798 = vunpack.c.l.b16 %v490
  %v2799 = vunpack.c.l.b16 %v491
  %v2800 = vunpack.c.l.b16 %v492
  %v2801 = vunpack.c.l.b16 %v493
  %v2802 = vunpack.c.l.b16 %v494
  %v2803 = vunpack.c.l.b16 %v495
  %v2804 = vunpack.c.l.b16 %v496
  %v2805 = vunpack.c.l.b16 %v497
  %v2806 = vunpack.c.l.b16 %v498
  %v2807 = vunpack.c.l.b16 %v499
  %v2808 = vunpack.c.l.b16 %v500
  %v2809 = vunpack.c.l.b16 %v501
  %v2810 = vunpack.c.l.b16 %v502
  %v2811 = vunpack.c.l.b16 %v503
  %v2812 = vunpack.c.l.b16 %v504
  %v2813 = vunpack.c.l.b16 %v505
  %v2814 = vunpack.c.l.b16 %v506
  %v2815 = vunpack.c.l.b16 %v507
  %v2816 = vunpack.c.l.b16 %v508
  %v2817 = vunpack.c.l.b16 %v509
  %v2818 = vunpack.c.l.b16 %v510
  %v2819 = vunpack.c.l.b16 %v511
  %v2820 = vunpack.c.l.b16 %v512
  %v2821 = vunpack.c.l.b16 %v513
  %v2822 = vunpack.c.l.b16 %v514
  %v2823 = vunpack.c.l.b16 %v515
  %v2824 = vunpack.c.l.b16 %v516
  %v2825 = vunpack.c.l.b16 %v517
  %v2826 = vunpack.c.l.b16 %v518
  %v2827 = vunpack.c.l.b16 %v519
  %v2828 = vunpack.c.l.b16 %v520
  %v2829 = vunpack.c.l.b16 %v521
  %v2830 = vunpack.c.l.b16 %v522
  %v2831 = vunpack.c.l.b16 %v523
  %v2832 = vunpack.c.l.b16 %v524
  %v2833 = vunpack.c.l.b16 %v525
  %v2834 = vunpack.c.l.b16 %v526
  %v2835 = vunpack.c.l.b16 %v527
  %v2836 = vunpack.c.l.b16 %v528
  %v2837 = vunpack.c.l.b16 %v529
  %v2838 = vunpack.c.l.b16 %v530
  %v2839 = vunpack.c.l.b16 %v531
  %v2840 = vunpack.c.l.b16 %v532
  %v2841 = vunpack.c.l.b16 %v533
  %v2842 = vunpack.c.l.b16 %v534
  %v2843 = vunpack.c.l.b16 %v535
  %v2844 = vunpack.c.l.b16 %v536
  %v2845 = vunpack.c.l.b16 %v537
  %v2846 = vunpack.c.l.b16 %v538
  %v2847 = vunpack.c.l.b16 %v539
  %v2848 = vunpack.c.l.b16 %v540
  %v2849 = vunpack.c.l.b16 %v541
  %v2850 = vunpack.c.l.b16 %v542
  %v2851 = vunpack.c.l.b16 %v543
  %v2852 = vunpack.c.l.b16 %v544
  %v2853 = vunpack.c.l.b16 %v545
  %v2854 = vunpack.c.l.b16 %v546
  %v2855 = vunpack.c.l.b16 %v547
  %v2856 = vunpack.c.l.b16 %v548
  %v2857 = vunpack.c.l.b16 %v549
  %v2858 = vunpack.c.l.b16 %v550
  %v2859 = vunpack.c.l.b16 %v551
  %v2860 = vunpack.c.l.b16 %v552
  %v2861 = vunpack.c.l.b16 %v553
  %v2862 = vunpack.c.l.b16 %v554
  %v2863 = vunpack.c.l.b16 %v555
  %v2864 = vunpack.c.l.b16 %v556
  %v2865 = vunpack.c.l.b16 %v557
  %v2866 = vunpack.c.l.b16 %v558
  %v2867 = vunpack.c.l.b16 %v559
  %v2868 = vunpack.c.l.b16 %v560
  %v2869 = vunpack.c.l.b16 %v561
  %v2870 = vunpack.c.l.b16 %v562
  %v2871 = vunpack.c.l.b16 %v563
  %v2872 = vunpack.c.l.b16 %v564
  %v2873 = vunpack.c.l.b16 %v565
  %v2874 = vunpack.c.l.b16 %v566
  %v2875 = vunpack.c.l.b16 %v567
  %v2876 = vunpack.c.l.b16 %v568
  %v2877 = vunpack.c.l.b16 %v569
  %v2878 = vunpack.c.l.b16 %v570
  %v2879 = vunpack.c.l.b16 %v571
  %v2880 = vunpack.c.l.b16 %v572
  %v2881 = vunpack.c.l.b16 %v573
  %v2882 = vunpack.c.l.b16 %v574
  %v2883 = vunpack.c.l.b16 %v575
  %v2884 = vunpack.c.l.b16 %v576
  %v2885 = vunpack.c.l.b16 %v577
  %v2886 = vunpack.c.l.b16 %v578
  %v2887 = vunpack.c.l.b16 %v579
  %v2888 = vunpack.c.l.b16 %v580
  %v2889 = vunpack.c.l.b16 %v581
  %v2890 = vunpack.c.l.b16 %v582
  %v2891 = vunpack.c.l.b16 %v583
  %v2892 = vunpack.c.l.b16 %v584
  %v2893 = vunpack.c.l.b16 %v585
  %v2894 = vunpack.c.l.b16 %v586
  %v2895 = vunpack.c.l.b16 %v587
  %v2896 = vunpack.c.l.b16 %v588
  %v2897 = vunpack.c.l.b16 %v589
  %v2898 = vunpack.c.l.b16 %v590
  %v2899 = vunpack.c.l.b16 %v591
  %v2900 = vunpack.c.l.b16 %v592
  %v2901 = vunpack.c.l.b16 %v593
  %v2902 = vunpack.c.l.b16 %v594
  %v2903 = vunpack.c.l.b16 %v595
  %v2904 = vunpack.c.l.b16 %v596
  %v2905 = vunpack.c.l.b16 %v597
  %v2906 = vunpack.c.l.b16 %v598
  %v2907 = vunpack.c.l.b16 %v599
  %v2908 = vunpack.c.l.b16 %v600
  %v2909 = vunpack.c.l.b16 %v601
  %v2910 = vunpack.c.l.b16 %v602
  %v2911 = vunpack.c.l.b16 %v603
  %v2912 = vunpack.c.l.b16 %v604
  %v2913 = vunpack.c.l.b16 %v605
  %v2914 = vunpack.c.l.b16 %v606
  %v2915 = vunpack.c.l.b16 %v607
  %v2916 = vunpack.c.l.b16 %v608
  %v2917 = vunpack.c.l.b16 %v609
  %v2918 = vunpack.c.l.b16 %v610
  %v2919 = vunpack.c.l.b16 %v611
  %v2920 = vunpack.c.l.b16 %v612
  %v2921 = vunpack.c.l.b16 %v613
  %v2922 = vunpack.c.l.b16 %v614
  %v2923 = vunpack.c.l.b16 %v615
  %v2924 = vunpack.c.l.b16 %v616
  %v2925 = vunpack.c.l.b16 %v617
  %v2926 = vunpack.c.l.b16 %v618
  %v2927 = vunpack.c.l.b16 %v619
  %v2928 = vunpack.c.l.b16 %v620
  %v2929 = vunpack.c.l.b16 %v621
  %v2930 = vunpack.c.l.b16 %v622
  %v2931 = vunpack.c.l.b16 %v623
  %v2932 = vunpack.c.l.b16 %v624
  %v2933 = vunpack.c.l.b16 %v625
  %v2934 = vunpack.c.l.b16 %v626
  %v2935 = vunpack.c.l.b16 %v627
  %v2936 = vunpack.c.l.b16 %v628
  %v2937 = vunpack.c.l.b16 %v629
  %v2938 = vunpack.c.l.b16 %v630
  %v2939 = vunpack.c.l.b16 %v631
  %v2940 = vunpack.c.l.b16 %v632
  %v2941 = vunpack.c.l.b16 %v633
  %v2942 = vunpack.c.l.b16 %v634
  %v2943 = vunpack.c.l.b16 %v635
  %v2944 = vunpack.c.l.b16 %v636
  %v2945 = vunpack.c.l.b16 %v637
  %v2946 = vunpack.c.l.b16 %v638
  %v2947 = vunpack.c.l.b16 %v639
  %v2948 = vunpack.c.l.b16 %v640
  %v2949 = vunpack.c.l.b16 %v641
  %v2950 = vunpack.c.l.b16 %v642
  %v2951 = vunpack.c.l.b16 %v643
  %v2952 = vunpack.c.l.b16 %v644
  %v2953 = vunpack.c.l.b16 %v645
  %v2954 = vunpack.c.l.b16 %v646
  %v2955 = vunpack.c.l.b16 %v647
  %v2956 = vunpack.c.l.b16 %v648
  %v2957 = vunpack.c.l.b16 %v649
  %v2958 = vunpack.c.l.b16 %v650
  %v2959 = vunpack.c.l.b16 %v651
  %v2960 = vunpack.c.l.b16 %v652
  %v2961 = vunpack.c.l.b16 %v653
  %v2962 = vunpack.c.l.b16 %v654
  %v2963 = vunpack.c.l.b16 %v655
  %v2964 = vunpack.c.l.b16 %v656
  %v2965 = vunpack.c.l.b16 %v657
  %v2966 = vunpack.c.l.b16 %v658
  %v2967 = vunpack.c.l.b16 %v659
  %v2968 = vunpack.c.l.b16 %v660
  %v2969 = vunpack.c.l.b16 %v661
  %v2970 = vunpack.c.l.b16 %v662
  %v2971 = vunpack.c.l.b16 %v663
  %v2972 = vunpack.c.l.b16 %v664
  %v2973 = vunpack.c.l.b16 %v665
  %v2974 = vunpack.c.l.b16 %v666
  %v2975 = vunpack.c.l.b16 %v667
  %v2976 = vunpack.c.l.b16 %v668
  %v2977 = vunpack.c.l.b16 %v669
  %v2978 = vunpack.c.l.b16 %v670
  %v2979 = vunpack.c.l.b16 %v671
  %v2980 = vunpack.c.l.b16 %v672
  %v2981 = vunpack.c.l.b16 %v673
  %v2982 = vunpack.c.l.b16 %v674
  %v2983 = vunpack.c.l.b16 %v675
  %v2984 = vunpack.c.l.b16 %v676
  %v2985 = vunpack.c.l.b16 %v677
  %v2986 = vunpack.c.l.b16 %v678
  %v2987 = vunpack.c.l.b16 %v679
  %v2988 = vunpack.c.l.b16 %v680
  %v2989 = vunpack.c.l.b16 %v681
  %v2990 = vunpack.c.l.b16 %v682
  %v2991 = vunpack.c.l.b16 %v683
  %v2992 = vunpack.c.l.b16 %v684
  %v2993 = vunpack.c.l.b16 %v685
  %v2994 = vunpack.c.l.b16 %v686
  %v2995 = vunpack.c.l.b16 %v687
  %v2996 = vunpack.c.l.b16 %v688
  %v2997 = vunpack.c.l.b16 %v689
  %v2998 = vunpack.c.l.b16 %v690
  %v2999 = vunpack.c.l.b16 %v691
  %v3000 = vunpack.c.l.b16 %v692
  %v3001 = vunpack.c.l.b16 %v693
  %v3002 = vunpack.c.l.b16 %v694
  %v3003 = vunpack.c.l.b16 %v695
  %v3004 = vunpack.c.l.b16 %v696
  %v3005 = vunpack.c.l.b16 %v697
  %v3006 = vunpack.c.l.b16 %v698
  %v3007 = vunpack.c.l.b16 %v699
  %v3008 = vunpack.c.l.b16 %v700
  %v3009 = vunpack.c.l.b16 %v701
  %v3010 = vunpack.c.l.b16 %v702
  %v3011 = vunpack.c.l.b16 %v703
  %v3012 = vunpack.c.l.b16 %v704
  %v3013 = vunpack.c.l.b16 %v705
  %v3014 = vunpack.c.l.b16 %v706
  %v3015 = vunpack.c.l.b16 %v707
  %v3016 = vunpack.c.l.b16 %v708
  %v3017 = vunpack.c.l.b16 %v709
  %v3018 = vunpack.c.l.b16 %v710
  %v3019 = vunpack.c.l.b16 %v711
  %v3020 = vunpack.c.l.b16 %v712
  %v3021 = vunpack.c.l.b16 %v713
  %v3022 = vunpack.c.l.b16 %v714
  %v3023 = vunpack.c.l.b16 %v715
  %v3024 = vunpack.c.l.b16 %v716
  %v3025 = vunpack.c.l.b16 %v717
  %v3026 = vunpack.c.l.b16 %v718
  %v3027 = vunpack.c.l.b16 %v719
  %v3028 = vunpack.c.l.b16 %v720
  %v3029 = vunpack.c.l.b16 %v721
  %v3030 = vunpack.c.l.b16 %v722
  %v3031 = vunpack.c.l.b16 %v723
  %v3032 = vunpack.c.l.b16 %v724
  %v3033 = vunpack.c.l.b16 %v725
  %v3034 = vunpack.c.l.b16 %v726
  %v3035 = vunpack.c.l.b16 %v727
  %v3036 = vunpack.c.l.b16 %v728
  %v3037 = vunpack.c.l.b16 %v729
  %v3038 = vunpack.c.l.b16 %v730
  %v3039 = vunpack.c.l.b16 %v731
  %v3040 = vunpack.c.l.b16 %v732
  %v3041 = vunpack.c.l.b16 %v733
  %v3042 = vunpack.c.l.b16 %v734
  %v3043 = vunpack.c.l.b16 %v735
  %v3044 = vunpack.c.l.b16 %v736
  %v3045 = vunpack.c.l.b16 %v737
  %v3046 = vunpack.c.l.b16 %v738
  %v3047 = vunpack.c.l.b16 %v739
  %v3048 = vunpack.c.l.b16 %v740
  %v3049 = vunpack.c.l.b16 %v741
  %v3050 = vunpack.c.l.b16 %v742
  %v3051 = vunpack.c.l.b16 %v743
  %v3052 = vunpack.c.l.b16 %v744
  %v3053 = vunpack.c.l.b16 %v745
  %v3054 = vunpack.c.l.b16 %v746
  %v3055 = vunpack.c.l.b16 %v747
  %v3056 = vunpack.c.l.b16 %v748
  %v3057 = vunpack.c.l.b16 %v749
  %v3058 = vunpack.c.l.b16 %v750
  %v3059 = vunpack.c.l.b16 %v751
  %v3060 = vunpack.c.l.b16 %v752
  %v3061 = vunpack.c.l.b16 %v753
  %v3062 = vunpack.c.l.b16 %v754
  %v3063 = vunpack.c.l.b16 %v755
  %v3064 = vunpack.c.l.b16 %v756
  %v3065 = vunpack.c.l.b16 %v757
  %v3066 = vunpack.c.l.b16 %v758
  %v3067 = vunpack.c.l.b16 %v759
  %v3068 = vunpack.c.l.b16 %v760
  %v3069 = vunpack.c.l.b16 %v761
  %v3070 = vunpack.c.l.b16 %v762
  %v3071 = vunpack.c.l.b16 %v763
  %v3072 = vunpack.c.l.b16 %v764
  %v3073 = vunpack.c.l.b16 %v765
  %v3074 = vunpack.c.l.b16 %v766
  %v3075 = vunpack.c.l.b16 %v767
  %v3076 = vunpack.c.l.b16 %v768
  %v3077 = vunpack.c.l.b16 %v769
  %v3078 = vunpack.c.l.b16 %v770
  %v3079 = vunpack.c.l.b16 %v771
  %v3080 = vunpack.c.l.b16 %v772
  %v3081 = vunpack.c.l.b16 %v773
  %v3082 = vunpack.c.l.b16 %v774
  %v3083 = vunpack.c.l.b16 %v775
  %v3084 = vunpack.c.l.b16 %v776
  %v3085 = vunpack.c.l.b16 %v777
  %v3086 = vunpack.c.l.b16 %v778
  %v3087 = vunpack.c.l.b16 %v779
  %v3088 = vunpack.c.l.b16 %v780
  %v3089 = vunpack.c.l.b16 %v781
  %v3090 = vunpack.c.l.b16 %v782
  %v3091 = vunpack.c.l.b16 %v783
  %v3092 = vunpack.c.l.b16 %v784
  %v3093 = vunpack.c.l.b16 %v785
  %v3094 = vunpack.c.l.b16 %v786
  %v3095 = vunpack.c.l.b16 %v787
  %v3096 = vunpack.c.l.b16 %v788
  %v3097 = vunpack.c.l.b16 %v789
  %v3098 = vunpack.c.l.b16 %v790
  %v3099 = vunpack.c.l.b16 %v791
  %v3100 = vunpack.c.l.b16 %v792
  %v3101 = vunpack.c.l.b16 %v793
  %v3102 = vunpack.c.l.b16 %v794
  %v3103 = vunpack.c.l.b16 %v795
  %v3104 = vunpack.c.l.b16 %v796
  %v3105 = vunpack.c.l.b16 %v797
  %v3106 = vunpack.c.l.b16 %v798
  %v3107 = vunpack.c.l.b16 %v799
  %v3108 = vunpack.c.l.b16 %v800
  %v3109 = vunpack.c.l.b16 %v801
  %v3110 = vunpack.c.l.b16 %v802
  %v3111 = vunpack.c.l.b16 %v803
  %v3112 = vunpack.c.l.b16 %v804
  %v3113 = vunpack.c.l.b16 %v805
  %v3114 = vunpack.c.l.b16 %v806
  %v3115 = vunpack.c.l.b16 %v807
  %v3116 = vunpack.c.l.b16 %v808
  %v3117 = vunpack.c.l.b16 %v809
  %v3118 = vunpack.c.l.b16 %v810
  %v3119 = vunpack.c.l.b16 %v811
  %v3120 = vunpack.c.l.b16 %v812
  %v3121 = vunpack.c.l.b16 %v813
  %v3122 = vunpack.c.l.b16 %v814
  %v3123 = vunpack.c.l.b16 %v815
  %v3124 = vunpack.c.l.b16 %v816
  %v3125 = vunpack.c.l.b16 %v817
  %v3126 = vunpack.c.l.b16 %v818
  %v3127 = vunpack.c.l.b16 %v819
  %v3128 = vunpack.c.l.b16 %v820
  %v3129 = vunpack.c.l.b16 %v821
  %v3130 = vunpack.c.l.b16 %v822
  %v3131 = vunpack.c.l.b16 %v823
  %v3132 = vunpack.c.l.b16 %v824
  %v3133 = vunpack.c.l.b16 %v825
  %v3134 = vunpack.c.l.b16 %v826
  %v3135 = vunpack.c.l.b16 %v827
  %v3136 = vunpack.c.l.b16 %v828
  %v3137 = vunpack.c.l.b16 %v829
  %v3138 = vunpack.c.l.b16 %v830
  %v3139 = vunpack.c.l.b16 %v831
  %v3140 = vunpack.c.l.b16 %v832
  %v3141 = vunpack.c.l.b16 %v833
  %v3142 = vunpack.c.l.b16 %v834
  %v3143 = vunpack.c.l.b16 %v835
  %v3144 = vunpack.c.l.b16 %v836
  %v3145 = vunpack.c.l.b16 %v837
  %v3146 = vunpack.c.l.b16 %v838
  %v3147 = vunpack.c.l.b16 %v839
  %v3148 = vunpack.c.l.b16 %v840
  %v3149 = vunpack.c.l.b16 %v841
  %v3150 = vunpack.c.l.b16 %v842
  %v3151 = vunpack.c.l.b16 %v843
  %v3152 = vunpack.c.l.b16 %v844
  %v3153 = vunpack.c.l.b16 %v845
  %v3154 = vunpack.c.l.b16 %v846
  %v3155 = vunpack.c.l.b16 %v847
  %v3156 = vunpack.c.l.b16 %v848
  %v3157 = vunpack.c.l.b16 %v849
  %v3158 = vunpack.c.l.b16 %v850
  %v3159 = vunpack.c.l.b16 %v851
  %v3160 = vunpack.c.l.b16 %v852
  %v3161 = vunpack.c.l.b16 %v853
  %v3162 = vunpack.c.l.b16 %v854
  %v3163 = vunpack.c.l.b16 %v855
  %v3164 = vunpack.c.l.b16 %v856
  %v3165 = vunpack.c.l.b16 %v857
  %v3166 = vunpack.c.l.b16 %v858
  %v3167 = vunpack.c.l.b16 %v859
  %v3168 = vunpack.c.l.b16 %v860
  %v3169 = vunpack.c.l.b16 %v861
  %v3170 = vunpack.c.l.b16 %v862
  %v3171 = vunpack.c.l.b16 %v863
  %v3172 = vunpack.c.l.b16 %v864
  %v3173 = vunpack.c.l.b16 %v865
  %v3174 = vunpack.c.l.b16 %v866
  %v3175 = vunpack.c.l.b16 %v867
  %v3176 = vunpack.c.l.b16 %v868
  %v3177 = vunpack.c.l.b16 %v869
  %v3178 = vunpack.c.l.b16 %v870
  %v3179 = vunpack.c.l.b16 %v871
  %v3180 = vunpack.c.l.b16 %v872
  %v3181 = vunpack.c.l.b16 %v873
  %v3182 = vunpack.c.l.b16 %v874
  %v3183 = vunpack.c.l.b16 %v875
  %v3184 = vunpack.c.l.b16 %v876
  %v3185 = vunpack.c.l.b16 %v877
  %v3186 = vunpack.c.l.b16 %v878
  %v3187 = vunpack.c.l.b16 %v879
  %v3188 = vunpack.c.l.b16 %v880
  %v3189 = vunpack.c.l.b16 %v881
  %v3190 = vunpack.c.l.b16 %v882
  %v3191 = vunpack.c.l.b16 %v883
  %v3192 = vunpack.c.l.b16 %v884
  %v3193 = vunpack.c.l.b16 %v885
  %v3194 = vunpack.c.l.b16 %v886
  %v3195 = vunpack.c.l.b16 %v887
  %v3196 = vunpack.c.l.b16 %v888
  %v3197 = vunpack.c.l.b16 %v889
  %v3198 = vunpack.c.l.b16 %v890
  %v3199 = vunpack.c.l.b16 %v891
  %v3200 = vunpack.c.l.b16 %v892
  %v3201 = vunpack.c.l.b16 %v893
  %v3202 = vunpack.c.l.b16 %v894
  %v3203 = vunpack.c.l.b16 %v895
  %v3204 = vunpack.c.l.b16 %v896
  %v3205 = vunpack.c.l.b16 %v897
  %v3206 = vunpack.c.l.b16 %v898
  %v3207 = vunpack.c.l.b16 %v899
  %v3208 = vunpack.c.l.b16 %v900
  %v3209 = vunpack.c.l.b16 %v901
  %v3210 = vunpack.c.l.b16 %v902
  %v3211 = vunpack.c.l.b16 %v903
  %v3212 = vunpack.c.l.b16 %v904
  %v3213 = vunpack.c.l.b16 %v905
  %v3214 = vunpack.c.l.b16 %v906
  %v3215 = vunpack.c.l.b16 %v907
  %v3216 = vunpack.c.l.b16 %v908
  %v3217 = vunpack.c.l.b16 %v909
  %v3218 = vunpack.c.l.b16 %v910
  %v3219 = vunpack.c.l.b16 %v911
  %v3220 = vunpack.c.l.b16 %v912
  %v3221 = vunpack.c.l.b16 %v913
  %v3222 = vunpack.c.l.b16 %v914
  %v3223 = vunpack.c.l.b16 %v915
  %v3224 = vunpack.c.l.b16 %v916
  %v3225 = vunpack.c.l.b16 %v917
  %v3226 = vunpack.c.l.b16 %v918
  %v3227 = vunpack.c.l.b16 %v919
  %v3228 = vunpack.c.l.b16 %v920
  %v3229 = vunpack.c.l.b16 %v921
  %v3230 = vunpack.c.l.b16 %v922
  %v3231 = vunpack.c.l.b16 %v923
  %v3232 = vunpack.c.l.b16 %v924
  %v3233 = vunpack.c.l.b16 %v925
  %v3234 = vunpack.c.l.b16 %v926
  %v3235 = vunpack.c.l.b16 %v927
  %v3236 = vunpack.c.l.b16 %v928
  %v3237 = vunpack.c.l.b16 %v929
  %v3238 = vunpack.c.l.b16 %v930
  %v3239 = vunpack.c.l.b16 %v931
  %v3240 = vunpack.c.l.b16 %v932
  %v3241 = vunpack.c.l.b16 %v933
  %v3242 = vunpack.c.l.b16 %v934
  %v3243 = vunpack.c.l.b16 %v935
  %v3244 = vunpack.c.l.b16 %v936
  %v3245 = vunpack.c.l.b16 %v937
  %v3246 = vunpack.c.l.b16 %v938
  %v3247 = vunpack.c.l.b16 %v939
  %v3248 = vunpack.c.l.b16 %v940
  %v3249 = vunpack.c.l.b16 %v941
  %v3250 = vunpack.c.l.b16 %v942
  %v3251 = vunpack.c.l.b16 %v943
  %v3252 = vunpack.c.l.b16 %v944
  %v3253 = vunpack.c.l.b16 %v945
  %v3254 = vunpack.c.l.b16 %v946
  %v3255 = vunpack.c.l.b16 %v947
  %v3256 = vunpack.c.l.b16 %v948
  %v3257 = vunpack.c.l.b16 %v949
  %v3258 = vunpack.c.l.b16 %v950
  %v3259 = vunpack.c.l.b16 %v951
  %v3260 = vunpack.c.l.b16 %v952
  %v3261 = vunpack.c.l.b16 %v953
  %v3262 = vunpack.c.l.b16 %v954
  %v3263 = vunpack.c.l.b16 %v955
  %v3264 = vunpack.c.l.b16 %v956
  %v3265 = vunpack.c.l.b16 %v957
  %v3266 = vunpack.c.l.b16 %v958
  %v3267 = vunpack.c.l.b16 %v959
  %v3268 = vunpack.c.l.b16 %v960
  %v3269 = vunpack.c.l.b16 %v961
  %v3270 = vunpack.c.l.b16 %v962
  %v3271 = vunpack.c.l.b16 %v963
  %v3272 = vunpack.c.l.b16 %v964
  %v3273 = vunpack.c.l.b16 %v965
  %v3274 = vunpack.c.l.b16 %v966
  %v3275 = vunpack.c.l.b16 %v967
  %v3276 = vunpack.c.l.b16 %v968
  %v3277 = vunpack.c.l.b16 %v969
  %v3278 = vunpack.c.l.b16 %v970
  %v3279 = vunpack.c.l.b16 %v971
  %v3280 = vunpack.c.l.b16 %v972
  %v3281 = vunpack.c.l.b16 %v973
  %v3282 = vunpack.c.l.b16 %v974
  %v3283 = vunpack.c.l.b16 %v975
  %v3284 = vunpack.c.l.b16 %v976
  %v3285 = vunpack.c.l.b16 %v977
  %v3286 = vunpack.c.l.b16 %v978
  %v3287 = vunpack.c.l.b16 %v979
  %v3288 = vunpack.c.l.b16 %v980
  %v3289 = vunpack.c.l.b16 %v981
  %v3290 = vunpack.c.l.b16 %v982
  %v3291 = vunpack.c.l.b16 %v983
  %v3292 = vunpack.c.l.b16 %v984
  %v3293 = vunpack.c.l.b16 %v985
  %v3294 = vunpack.c.l.b16 %v986
  %v3295 = vunpack.c.l.b16 %v987
  %v3296 = vunpack.c.l.b16 %v988
  %v3297 = vunpack.c.l.b16 %v989
  %v3298 = vunpack.c.l.b16 %v990
  %v3299 = vunpack.c.l.b16 %v991
  %v3300 = vunpack.c.l.b16 %v992
  %v3301 = vunpack.c.l.b16 %v993
  %v3302 = vunpack.c.l.b16 %v994
  %v3303 = vunpack.c.l.b16 %v995
  %v3304 = vunpack.c.l.b16 %v996
  %v3305 = vunpack.c.l.b16 %v997
  %v3306 = vunpack.c.l.b16 %v998
  %v3307 = vunpack.c.l.b16 %v999
  %v3308 = vunpack.c.l.b16 %v1000
  %v3309 = vunpack.c.l.b16 %v1001
  %v3310 = vunpack.c.l.b16 %v1002
  %v3311 = vunpack.c.l.b16 %v1003
  %v3312 = vunpack.c.l.b16 %v1004
  %v3313 = vunpack.c.l.b16 %v1005
  %v3314 = vunpack.c.l.b16 %v1006
  %v3315 = vunpack.c.l.b16 %v1007
  %v3316 = vunpack.c.l.b16 %v1008
  %v3317 = vunpack.c.l.b16 %v1009
  %v3318 = vunpack.c.l.b16 %v1010
  %v3319 = vunpack.c.l.b16 %v1011
  %v3320 = vunpack.c.l.b16 %v1012
  %v3321 = vunpack.c.l.b16 %v1013
  %v3322 = vunpack.c.l.b16 %v1014
  %v3323 = vunpack.c.l.b16 %v1015
  %v3324 = vunpack.c.l.b16 %v1016
  %v3325 = vunpack.c.l.b16 %v1017
  %v3326 = vunpack.c.l.b16 %v1018
  %v3327 = vunpack.c.l.b16 %v1019
  %v3328 = vunpack.c.l.b16 %v1020
  %v3329 = vunpack.c.l.b16 %v1021
  %v3330 = vunpack.c.l.b16 %v1022
  %v3331 = vunpack.c.l.b16 %v1023
  %v3332 = vunpack.c.l.b16 %v1024
  %v3333 = vunpack.c.l.b16 %v1025
  %v3334 = vunpack.c.l.b16 %v1026
  %v3335 = vunpack.c.l.b16 %v1027
  %v3336 = vunpack.c.l.b16 %v1028
  %v3337 = vunpack.c.l.b16 %v1029
  %v3338 = vunpack.c.l.b16 %v1030
  %v3339 = vunpack.c.l.b16 %v1031
  %v3340 = vunpack.c.l.b16 %v1032
  %v3341 = vunpack.c.l.b16 %v1033
  %v3342 = vunpack.c.l.b16 %v1034
  %v3343 = vunpack.c.l.b16 %v1035
  %v3344 = vunpack.c.l.b16 %v1036
  %v3345 = vunpack.c.l.b16 %v1037
  %v3346 = vunpack.c.l.b16 %v1038
  %v3347 = vunpack.c.l.b16 %v1039
  %v3348 = vunpack.c.l.b16 %v1040
  %v3349 = vunpack.c.l.b16 %v1041
  %v3350 = vunpack.c.l.b16 %v1042
  %v3351 = vunpack.c.l.b16 %v1043
  %v3352 = vunpack.c.l.b16 %v1044
  %v3353 = vunpack.c.l.b16 %v1045
  %v3354 = vunpack.c.l.b16 %v1046
  %v3355 = vunpack.c.l.b16 %v1047
  %v3356 = vunpack.c.l.b16 %v1048
  %v3357 = vunpack.c.l.b16 %v1049
  %v3358 = vunpack.c.l.b16 %v1050
  %v3359 = vunpack.c.l.b16 %v1051
  %v3360 = vunpack.c.l.b16 %v1052
  %v3361 = vunpack.c.l.b16 %v1053
  %v3362 = vunpack.c.l.b16 %v1054
  %v3363 = vunpack.c.l.b16 %v1055
  %v3364 = vunpack.c.l.b16 %v1056
  %v3365 = vunpack.c.l.b16 %v1057
  %v3366 = vunpack.c.l.b16 %v1058
  %v3367 = vunpack.c.l.b16 %v1059
  %v3368 = vunpack.c.l.b16 %v1060
  %v3369 = vunpack.c.l.b16 %v1061
  %v3370 = vunpack.c.l.b16 %v1062
  %v3371 = vunpack.c.l.b16 %v1063
  %v3372 = vunpack.c.l.b16 %v1064
  %v3373 = vunpack.c.l.b16 %v1065
  %v3374 = vunpack.c.l.b16 %v1066
  %v3375 = vunpack.c.l.b16 %v1067
  %v3376 = vunpack.c.l.b16 %v1068
  %v3377 = vunpack.c.l.b16 %v1069
  %v3378 = vunpack.c.l.b16 %v1070
  %v3379 = vunpack.c.l.b16 %v1071
  %v3380 = vunpack.c.l.b16 %v1072
  %v3381 = vunpack.c.l.b16 %v1073
  %v3382 = vunpack.c.l.b16 %v1074
  %v3383 = vunpack.c.l.b16 %v1075
  %v3384 = vunpack.c.l.b16 %v1076
  %v3385 = vunpack.c.l.b16 %v1077
  %v3386 = vunpack.c.l.b16 %v1078
  %v3387 = vunpack.c.l.b16 %v1079
  %v3388 = vunpack.c.l.b16 %v1080
  %v3389 = vunpack.c.l.b16 %v1081
  %v3390 = vunpack.c.l.b16 %v1082
  %v3391 = vunpack.c.l.b16 %v1083
  %v3392 = vunpack.c.l.b16 %v1084
  %v3393 = vunpack.c.l.b16 %v1085
  %v3394 = vunpack.c.l.b16 %v1086
  %v3395 = vunpack.c.l.b16 %v1087
  %v3396 = vunpack.c.l.b16 %v1088
  %v3397 = vunpack.c.l.b16 %v1089
  %v3398 = vunpack.c.l.b16 %v1090
  %v3399 = vunpack.c.l.b16 %v1091
  %v3400 = vunpack.c.l.b16 %v1092
  %v3401 = vunpack.c.l.b16 %v1093
  %v3402 = vunpack.c.l.b16 %v1094
  %v3403 = vunpack.c.l.b16 %v1095
  %v3404 = vunpack.c.l.b16 %v1096
  %v3405 = vunpack.c.l.b16 %v1097
  %v3406 = vunpack.c.l.b16 %v1098
  %v3407 = vunpack.c.l.b16 %v1099
  %v3408 = vunpack.c.l.b16 %v1100
  %v3409 = vunpack.c.l.b16 %v1101
  %v3410 = vunpack.c.l.b16 %v1102
  %v3411 = vunpack.c.l.b16 %v1103
  %v3412 = vunpack.c.l.b16 %v1104
  %v3413 = vunpack.c.l.b16 %v1105
  %v3414 = vunpack.c.l.b16 %v1106
  %v3415 = vunpack.c.l.b16 %v1107
  %v3416 = vunpack.c.l.b16 %v1108
  %v3417 = vunpack.c.l.b16 %v1109
  %v3418 = vunpack.c.l.b16 %v1110
  %v3419 = vunpack.c.l.b16 %v1111
  %v3420 = vunpack.c.l.b16 %v1112
  %v3421 = vunpack.c.l.b16 %v1113
  %v3422 = vunpack.c.l.b16 %v1114
  %v3423 = vunpack.c.l.b16 %v1115
  %v3424 = vunpack.c.l.b16 %v1116
  %v3425 = vunpack.c.l.b16 %v1117
  %v3426 = vunpack.c.l.b16 %v1118
  %v3427 = vunpack.c.l.b16 %v1119
  %v3428 = vunpack.c.l.b16 %v1120
  %v3429 = vunpack.c.l.b16 %v1121
  %v3430 = vunpack.c.l.b16 %v1122
  %v3431 = vunpack.c.l.b16 %v1123
  %v3432 = vunpack.c.l.b16 %v1124
  %v3433 = vunpack.c.l.b16 %v1125
  %v3434 = vunpack.c.l.b16 %v1126
  %v3435 = vunpack.c.l.b16 %v1127
  %v3436 = vunpack.c.l.b16 %v1128
  %v3437 = vunpack.c.l.b16 %v1129
  %v3438 = vunpack.c.l.b16 %v1130
  %v3439 = vunpack.c.l.b16 %v1131
  %v3440 = vunpack.c.l.b16 %v1132
  %v3441 = vunpack.c.l.b16 %v1133
  %v3442 = vunpack.c.l.b16 %v1134
  %v3443 = vunpack.c.l.b16 %v1135
  %v3444 = vunpack.c.l.b16 %v1136
  %v3445 = vunpack.c.l.b16 %v1137
  %v3446 = vunpack.c.l.b16 %v1138
  %v3447 = vunpack.c.l.b16 %v1139
  %v3448 = vunpack.c.l.b16 %v1140
  %v3449 = vunpack.c.l.b16 %v1141
  %v3450 = vunpack.c.l.b16 %v1142
  %v3451 = vunpack.c.l.b16 %v1143
  %v3452 = vunpack.c.l.b16 %v1144
  %v3453 = vunpack.c.l.b16 %v1145
  %v3454 = vunpack.c.l.b16 %v1146
  %v3455 = vunpack.c.l.b16 %v1147
  %v3456 = vunpack.c.l.b16 %v1148
  %v3457 = vunpack.c.l.b16 %v1149
  %v3458 = vunpack.c.l.b16 %v1150
  %v3459 = vunpack.c.l.b16 %v1151
  %v3460 = vunpack.c.l.b16 %v1152
  %v3461 = vunpack.c.l.b16 %v1153
  %v3462 = vunpack.c.l.b16 %v1154
  %v3463 = vunpack.c.l.b16 %v1155
  %v3464 = vunpack.c.l.b16 %v1156
  %v3465 = vunpack.c.l.b16 %v1157
  %v3466 = vunpack.c.l.b16 %v1158
  %v3467 = vunpack.c.l.b16 %v1159
  %v3468 = vunpack.c.l.b16 %v1160
  %v3469 = vunpack.c.l.b16 %v1161
  %v3470 = vunpack.c.l.b16 %v1162
  %v3471 = vunpack.c.l.b16 %v1163
  %v3472 = vunpack.c.l.b16 %v1164
  %v3473 = vunpack.c.l.b16 %v1165
  %v3474 = vunpack.c.l.b16 %v1166
  %v3475 = vpack.c.b16 %v2324, %v2323
  %v3476 = vpack.c.b16 %v2326, %v2325
  %v3477 = vpack.c.b16 %v2328, %v2327
  %v3478 = vpack.c.b16 %v2330, %v2329
  %v3479 = vpack.c.b16 %v2332, %v2331
  %v3480 = vpack.c.b16 %v2334, %v2333
  %v3481 = vpack.c.b16 %v2336, %v2335
  %v3482 = vpack.c.b16 %v2338, %v2337
  %v3483 = vpack.c.b16 %v2340, %v2339
  %v3484 = vpack.c.b16 %v2342, %v2341
  %v3485 = vpack.c.b16 %v2344, %v2343
  %v3486 = vpack.c.b16 %v2346, %v2345
  %v3487 = vpack.c.b16 %v2348, %v2347
  %v3488 = vpack.c.b16 %v2350, %v2349
  %v3489 = vpack.c.b16 %v2352, %v2351
  %v3490 = vpack.c.b16 %v2354, %v2353
  %v3491 = vpack.c.b16 %v2356, %v2355
  %v3492 = vpack.c.b16 %v2358, %v2357
  %v3493 = vpack.c.b16 %v2360, %v2359
  %v3494 = vpack.c.b16 %v2362, %v2361
  %v3495 = vpack.c.b16 %v2364, %v2363
  %v3496 = vpack.c.b16 %v2366, %v2365
  %v3497 = vpack.c.b16 %v2368, %v2367
  %v3498 = vpack.c.b16 %v2370, %v2369
  %v3499 = vpack.c.b16 %v2372, %v2371
  %v3500 = vpack.c.b16 %v2374, %v2373
  %v3501 = vpack.c.b16 %v2376, %v2375
  %v3502 = vpack.c.b16 %v2378, %v2377
  %v3503 = vpack.c.b16 %v2380, %v2379
  %v3504 = vpack.c.b16 %v2382, %v2381
  %v3505 = vpack.c.b16 %v2384, %v2383
  %v3506 = vpack.c.b16 %v2386, %v2385
  %v3507 = vpack.c.b16 %v2388, %v2387
  %v3508 = vpack.c.b16 %v2390, %v2389
  %v3509 = vpack.c.b16 %v2392, %v2391
  %v3510 = vpack.c.b16 %v2394, %v2393
  %v3511 = vpack.c.b16 %v2396, %v2395
  %v3512 = vpack.c.b16 %v2398, %v2397
  %v3513 = vpack.c.b16 %v2400, %v2399
  %v3514 = vpack.c.b16 %v2402, %v2401
  %v3515 = vpack.c.b16 %v2404, %v2403
  %v3516 = vpack.c.b16 %v2406, %v2405
  %v3517 = vpack.c.b16 %v2408, %v2407
  %v3518 = vpack.c.b16 %v2410, %v2409
  %v3519 = vpack.c.b16 %v2412, %v2411
  %v3520 = vpack.c.b16 %v2414, %v2413
  %v3521 = vpack.c.b16 %v2416, %v2415
  %v3522 = vpack.c.b16 %v2418, %v2417
  %v3523 = vpack.c.b16 %v2420, %v2419
  %v3524 = vpack.c.b16 %v2422, %v2421
  %v3525 = vpack.c.b16 %v2424, %v2423
  %v3526 = vpack.c.b16 %v2426, %v2425
  %v3527 = vpack.c.b16 %v2428, %v2427
  %v3528 = vpack.c.b16 %v2430, %v2429
  %v3529 = vpack.c.b16 %v2432, %v2431
  %v3530 = vpack.c.b16 %v2434, %v2433
  %v3531 = vpack.c.b16 %v2436, %v2435
  %v3532 = vpack.c.b16 %v2438, %v2437
  %v3533 = vpack.c.b16 %v2440, %v2439
  %v3534 = vpack.c.b16 %v2442, %v2441
  %v3535 = vpack.c.b16 %v2444, %v2443
  %v3536 = vpack.c.b16 %v2446, %v2445
  %v3537 = vpack.c.b16 %v2448, %v2447
  %v3538 = vpack.c.b16 %v2450, %v2449
  %v3539 = vpack.c.b16 %v2452, %v2451
  %v3540 = vpack.c.b16 %v2454, %v2453
  %v3541 = vpack.c.b16 %v2456, %v2455
  %v3542 = vpack.c.b16 %v2458, %v2457
  %v3543 = vpack.c.b16 %v2460, %v2459
  %v3544 = vpack.c.b16 %v2462, %v2461
  %v3545 = vpack.c.b16 %v2464, %v2463
  %v3546 = vpack.c.b16 %v2466, %v2465
  %v3547 = vpack.c.b16 %v2468, %v2467
  %v3548 = vpack.c.b16 %v2470, %v2469
  %v3549 = vpack.c.b16 %v2472, %v2471
  %v3550 = vpack.c.b16 %v2474, %v2473
  %v3551 = vpack.c.b16 %v2476, %v2475
  %v3552 = vpack.c.b16 %v2478, %v2477
  %v3553 = vpack.c.b16 %v2480, %v2479
  %v3554 = vpack.c.b16 %v2482, %v2481
  %v3555 = vpack.c.b16 %v2484, %v2483
  %v3556 = vpack.c.b16 %v2486, %v2485
  %v3557 = vpack.c.b16 %v2488, %v2487
  %v3558 = vpack.c.b16 %v2490, %v2489
  %v3559 = vpack.c.b16 %v2492, %v2491
  %v3560 = vpack.c.b16 %v2494, %v2493
  %v3561 = vpack.c.b16 %v2496, %v2495
  %v3562 = vpack.c.b16 %v2498, %v2497
  %v3563 = vpack.c.b16 %v2500, %v2499
  %v3564 = vpack.c.b16 %v2502, %v2501
  %v3565 = vpack.c.b16 %v2504, %v2503
  %v3566 = vpack.c.b16 %v2506, %v2505
  %v3567 = vpack.c.b16 %v2508, %v2507
  %v3568 = vpack.c.b16 %v2510, %v2509
  %v3569 = vpack.c.b16 %v2512, %v2511
  %v3570 = vpack.c.b16 %v2514, %v2513
  %v3571 = vpack.c.b16 %v2516, %v2515
  %v3572 = vpack.c.b16 %v2518, %v2517
  %v3573 = vpack.c.b16 %v2520, %v2519
  %v3574 = vpack.c.b16 %v2522, %v2521
  %v3575 = vpack.c.b16 %v2524, %v2523
  %v3576 = vpack.c.b16 %v2526, %v2525
  %v3577 = vpack.c.b16 %v2528, %v2527
  %v3578 = vpack.c.b16 %v2530, %v2529
  %v3579 = vpack.c.b16 %v2532, %v2531
  %v3580 = vpack.c.b16 %v2534, %v2533
  %v3581 = vpack.c.b16 %v2536, %v2535
  %v3582 = vpack.c.b16 %v2538, %v2537
  %v3583 = vpack.c.b16 %v2540, %v2539
  %v3584 = vpack.c.b16 %v2542, %v2541
  %v3585 = vpack.c.b16 %v2544, %v2543
  %v3586 = vpack.c.b16 %v2546, %v2545
  %v3587 = vpack.c.b16 %v2548, %v2547
  %v3588 = vpack.c.b16 %v2550, %v2549
  %v3589 = vpack.c.b16 %v2552, %v2551
  %v3590 = vpack.c.b16 %v2554, %v2553
  %v3591 = vpack.c.b16 %v2556, %v2555
  %v3592 = vpack.c.b16 %v2558, %v2557
  %v3593 = vpack.c.b16 %v2560, %v2559
  %v3594 = vpack.c.b16 %v2562, %v2561
  %v3595 = vpack.c.b16 %v2564, %v2563
  %v3596 = vpack.c.b16 %v2566, %v2565
  %v3597 = vpack.c.b16 %v2568, %v2567
  %v3598 = vpack.c.b16 %v2570, %v2569
  %v3599 = vpack.c.b16 %v2572, %v2571
  %v3600 = vpack.c.b16 %v2574, %v2573
  %v3601 = vpack.c.b16 %v2576, %v2575
  %v3602 = vpack.c.b16 %v2578, %v2577
  %v3603 = vpack.c.b16 %v2580, %v2579
  %v3604 = vpack.c.b16 %v2582, %v2581
  %v3605 = vpack.c.b16 %v2584, %v2583
  %v3606 = vpack.c.b16 %v2586, %v2585
  %v3607 = vpack.c.b16 %v2588, %v2587
  %v3608 = vpack.c.b16 %v2590, %v2589
  %v3609 = vpack.c.b16 %v2592, %v2591
  %v3610 = vpack.c.b16 %v2594, %v2593
  %v3611 = vpack.c.b16 %v2596, %v2595
  %v3612 = vpack.c.b16 %v2598, %v2597
  %v3613 = vpack.c.b16 %v2600, %v2599
  %v3614 = vpack.c.b16 %v2602, %v2601
  %v3615 = vpack.c.b16 %v2604, %v2603
  %v3616 = vpack.c.b16 %v2606, %v2605
  %v3617 = vpack.c.b16 %v2608, %v2607
  %v3618 = vpack.c.b16 %v2610, %v2609
  %v3619 = vpack.c.b16 %v2612, %v2611
  %v3620 = vpack.c.b16 %v2614, %v2613
  %v3621 = vpack.c.b16 %v2616, %v2615
  %v3622 = vpack.c.b16 %v2618, %v2617
  %v3623 = vpack.c.b16 %v2620, %v2619
  %v3624 = vpack.c.b16 %v2622, %v2621
  %v3625 = vpack.c.b16 %v2624, %v2623
  %v3626 = vpack.c.b16 %v2626, %v2625
  %v3627 = vpack.c.b16 %v2628, %v2627
  %v3628 = vpack.c.b16 %v2630, %v2629
  %v3629 = vpack.c.b16 %v2632, %v2631
  %v3630 = vpack.c.b16 %v2634, %v2633
  %v3631 = vpack.c.b16 %v2636, %v2635
  %v3632 = vpack.c.b16 %v2638, %v2637
  %v3633 = vpack.c.b16 %v2640, %v2639
  %v3634 = vpack.c.b16 %v2642, %v2641
  %v3635 = vpack.c.b16 %v2644, %v2643
  %v3636 = vpack.c.b16 %v2646, %v2645
  %v3637 = vpack.c.b16 %v2648, %v2647
  %v3638 = vpack.c.b16 %v2650, %v2649
  %v3639 = vpack.c.b16 %v2652, %v2651
  %v3640 = vpack.c.b16 %v2654, %v2653
  %v3641 = vpack.c.b16 %v2656, %v2655
  %v3642 = vpack.c.b16 %v2658, %v2657
  %v3643 = vpack.c.b16 %v2660, %v2659
  %v3644 = vpack.c.b16 %v2662, %v2661
  %v3645 = vpack.c.b16 %v2664, %v2663
  %v3646 = vpack.c.b16 %v2666, %v2665
  %v3647 = vpack.c.b16 %v2668, %v2667
  %v3648 = vpack.c.b16 %v2670, %v2669
  %v3649 = vpack.c.b16 %v2672, %v2671
  %v3650 = vpack.c.b16 %v2674, %v2673
  %v3651 = vpack.c.b16 %v2676, %v2675
  %v3652 = vpack.c.b16 %v2678, %v2677
  %v3653 = vpack.c.b16 %v2680, %v2679
  %v3654 = vpack.c.b16 %v2682, %v2681
  %v3655 = vpack.c.b16 %v2684, %v2683
  %v3656 = vpack.c.b16 %v2686, %v2685
  %v3657 = vpack.c.b16 %v2688, %v2687
  %v3658 = vpack.c.b16 %v2690, %v2689
  %v3659 = vpack.c.b16 %v2692, %v2691
  %v3660 = vpack.c.b16 %v2694, %v2693
  %v3661 = vpack.c.b16 %v2696, %v2695
  %v3662 = vpack.c.b16 %v2698, %v2697
  %v3663 = vpack.c.b16 %v2700, %v2699
  %v3664 = vpack.c.b16 %v2702, %v2701
  %v3665 = vpack.c.b16 %v2704, %v2703
  %v3666 = vpack.c.b16 %v2706, %v2705
  %v3667 = vpack.c.b16 %v2708, %v2707
  %v3668 = vpack.c.b16 %v2710, %v2709
  %v3669 = vpack.c.b16 %v2712, %v2711
  %v3670 = vpack.c.b16 %v2714, %v2713
  %v3671 = vpack.c.b16 %v2716, %v2715
  %v3672 = vpack.c.b16 %v2718, %v2717
  %v3673 = vpack.c.b16 %v2720, %v2719
  %v3674 = vpack.c.b16 %v2722, %v2721
  %v3675 = vpack.c.b16 %v2724, %v2723
  %v3676 = vpack.c.b16 %v2726, %v2725
  %v3677 = vpack.c.b16 %v2728, %v2727
  %v3678 = vpack.c.b16 %v2730, %v2729
  %v3679 = vpack.c.b16 %v2732, %v2731
  %v3680 = vpack.c.b16 %v2734, %v2733
  %v3681 = vpack.c.b16 %v2736, %v2735
  %v3682 = vpack.c.b16 %v2738, %v2737
  %v3683 = vpack.c.b16 %v2740, %v2739
  %v3684 = vpack.c.b16 %v2742, %v2741
  %v3685 = vpack.c.b16 %v2744, %v2743
  %v3686 = vpack.c.b16 %v2746, %v2745
  %v3687 = vpack.c.b16 %v2748, %v2747
  %v3688 = vpack.c.b16 %v2750, %v2749
  %v3689 = vpack.c.b16 %v2752, %v2751
  %v3690 = vpack.c.b16 %v2754, %v2753
  %v3691 = vpack.c.b16 %v2756, %v2755
  %v3692 = vpack.c.b16 %v2758, %v2757
  %v3693 = vpack.c.b16 %v2760, %v2759
  %v3694 = vpack.c.b16 %v2762, %v2761
  %v3695 = vpack.c.b16 %v2764, %v2763
  %v3696 = vpack.c.b16 %v2766, %v2765
  %v3697 = vpack.c.b16 %v2768, %v2767
  %v3698 = vpack.c.b16 %v2770, %v2769
  %v3699 = vpack.c.b16 %v2772, %v2771
  %v3700 = vpack.c.b16 %v2774, %v2773
  %v3701 = vpack.c.b16 %v2776, %v2775
  %v3702 = vpack.c.b16 %v2778, %v2777
  %v3703 = vpack.c.b16 %v2780, %v2779
  %v3704 = vpack.c.b16 %v2782, %v2781
  %v3705 = vpack.c.b16 %v2784, %v2783
  %v3706 = vpack.c.b16 %v2786, %v2785
  %v3707 = vpack.c.b16 %v2788, %v2787
  %v3708 = vpack.c.b16 %v2790, %v2789
  %v3709 = vpack.c.b16 %v2792, %v2791
  %v3710 = vpack.c.b16 %v2794, %v2793
  %v3711 = vpack.c.b16 %v2796, %v2795
  %v3712 = vpack.c.b16 %v2798, %v2797
  %v3713 = vpack.c.b16 %v2800, %v2799
  %v3714 = vpack.c.b16 %v2802, %v2801
  %v3715 = vpack.c.b16 %v2804, %v2803
  %v3716 = vpack.c.b16 %v2806, %v2805
  %v3717 = vpack.c.b16 %v2808, %v2807
  %v3718 = vpack.c.b16 %v2810, %v2809
  %v3719 = vpack.c.b16 %v2812, %v2811
  %v3720 = vpack.c.b16 %v2814, %v2813
  %v3721 = vpack.c.b16 %v2816, %v2815
  %v3722 = vpack.c.b16 %v2818, %v2817
  %v3723 = vpack.c.b16 %v2820, %v2819
  %v3724 = vpack.c.b16 %v2822, %v2821
  %v3725 = vpack.c.b16 %v2824, %v2823
  %v3726 = vpack.c.b16 %v2826, %v2825
  %v3727 = vpack.c.b16 %v2828, %v2827
  %v3728 = vpack.c.b16 %v2830, %v2829
  %v3729 = vpack.c.b16 %v2832, %v2831
  %v3730 = vpack.c.b16 %v2834, %v2833
  %v3731 = vpack.c.b16 %v2836, %v2835
  %v3732 = vpack.c.b16 %v2838, %v2837
  %v3733 = vpack.c.b16 %v2840, %v2839
  %v3734 = vpack.c.b16 %v2842, %v2841
  %v3735 = vpack.c.b16 %v2844, %v2843
  %v3736 = vpack.c.b16 %v2846, %v2845
  %v3737 = vpack.c.b16 %v2848, %v2847
  %v3738 = vpack.c.b16 %v2850, %v2849
  %v3739 = vpack.c.b16 %v2852, %v2851
  %v3740 = vpack.c.b16 %v2854, %v2853
  %v3741 = vpack.c.b16 %v2856, %v2855
  %v3742 = vpack.c.b16 %v2858, %v2857
  %v3743 = vpack.c.b16 %v2860, %v2859
  %v3744 = vpack.c.b16 %v2862, %v2861
  %v3745 = vpack.c.b16 %v2864, %v2863
  %v3746 = vpack.c.b16 %v2866, %v2865
  %v3747 = vpack.c.b16 %v2868, %v2867
  %v3748 = vpack.c.b16 %v2870, %v2869
  %v3749 = vpack.c.b16 %v2872, %v2871
  %v3750 = vpack.c.b16 %v2874, %v2873
  %v3751 = vpack.c.b16 %v2876, %v2875
  %v3752 = vpack.c.b16 %v2878, %v2877
  %v3753 = vpack.c.b16 %v2880, %v2879
  %v3754 = vpack.c.b16 %v2882, %v2881
  %v3755 = vpack.c.b16 %v2884, %v2883
  %v3756 = vpack.c.b16 %v2886, %v2885
  %v3757 = vpack.c.b16 %v2888, %v2887
  %v3758 = vpack.c.b16 %v2890, %v2889
  %v3759 = vpack.c.b16 %v2892, %v2891
  %v3760 = vpack.c.b16 %v2894, %v2893
  %v3761 = vpack.c.b16 %v2896, %v2895
  %v3762 = vpack.c.b16 %v2898, %v2897
  %v3763 = vpack.c.b16 %v2900, %v2899
  %v3764 = vpack.c.b16 %v2902, %v2901
  %v3765 = vpack.c.b16 %v2904, %v2903
  %v3766 = vpack.c.b16 %v2906, %v2905
  %v3767 = vpack.c.b16 %v2908, %v2907
  %v3768 = vpack.c.b16 %v2910, %v2909
  %v3769 = vpack.c.b16 %v2912, %v2911
  %v3770 = vpack.c.b16 %v2914, %v2913
  %v3771 = vpack.c.b16 %v2916, %v2915
  %v3772 = vpack.c.b16 %v2918, %v2917
  %v3773 = vpack.c.b16 %v2920, %v2919
  %v3774 = vpack.c.b16 %v2922, %v2921
  %v3775 = vpack.c.b16 %v2924, %v2923
  %v3776 = vpack.c.b16 %v2926, %v2925
  %v3777 = vpack.c.b16 %v2928, %v2927
  %v3778 = vpack.c.b16 %v2930, %v2929
  %v3779 = vpack.c.b16 %v2932, %v2931
  %v3780 = vpack.c.b16 %v2934, %v2933
  %v3781 = vpack.c.b16 %v2936, %v2935
  %v3782 = vpack.c.b16 %v2938, %v2937
  %v3783 = vpack.c.b16 %v2940, %v2939
  %v3784 = vpack.c.b16 %v2942, %v2941
  %v3785 = vpack.c.b16 %v2944, %v2943
  %v3786 = vpack.c.b16 %v2946, %v2945
  %v3787 = vpack.c.b16 %v2948, %v2947
  %v3788 = vpack.c.b16 %v2950, %v2949
  %v3789 = vpack.c.b16 %v2952, %v2951
  %v3790 = vpack.c.b16 %v2954, %v2953
  %v3791 = vpack.c.b16 %v2956, %v2955
  %v3792 = vpack.c.b16 %v2958, %v2957
  %v3793 = vpack.c.b16 %v2960, %v2959
  %v3794 = vpack.c.b16 %v2962, %v2961
  %v3795 = vpack.c.b16 %v2964, %v2963
  %v3796 = vpack.c.b16 %v2966, %v2965
  %v3797 = vpack.c.b16 %v2968, %v2967
  %v3798 = vpack.c.b16 %v2970, %v2969
  %v3799 = vpack.c.b16 %v2972, %v2971
  %v3800 = vpack.c.b16 %v2974, %v2973
  %v3801 = vpack.c.b16 %v2976, %v2975
  %v3802 = vpack.c.b16 %v2978, %v2977
  %v3803 = vpack.c.b16 %v2980, %v2979
  %v3804 = vpack.c.b16 %v2982, %v2981
  %v3805 = vpack.c.b16 %v2984, %v2983
  %v3806 = vpack.c.b16 %v2986, %v2985
  %v3807 = vpack.c.b16 %v2988, %v2987
  %v3808 = vpack.c.b16 %v2990, %v2989
  %v3809 = vpack.c.b16 %v2992, %v2991
  %v3810 = vpack.c.b16 %v2994, %v2993
  %v3811 = vpack.c.b16 %v2996, %v2995
  %v3812 = vpack.c.b16 %v2998, %v2997
  %v3813 = vpack.c.b16 %v3000, %v2999
  %v3814 = vpack.c.b16 %v3002, %v3001
  %v3815 = vpack.c.b16 %v3004, %v3003
  %v3816 = vpack.c.b16 %v3006, %v3005
  %v3817 = vpack.c.b16 %v3008, %v3007
  %v3818 = vpack.c.b16 %v3010, %v3009
  %v3819 = vpack.c.b16 %v3012, %v3011
  %v3820 = vpack.c.b16 %v3014, %v3013
  %v3821 = vpack.c.b16 %v3016, %v3015
  %v3822 = vpack.c.b16 %v3018, %v3017
  %v3823 = vpack.c.b16 %v3020, %v3019
  %v3824 = vpack.c.b16 %v3022, %v3021
  %v3825 = vpack.c.b16 %v3024, %v3023
  %v3826 = vpack.c.b16 %v3026, %v3025
  %v3827 = vpack.c.b16 %v3028, %v3027
  %v3828 = vpack.c.b16 %v3030, %v3029
  %v3829 = vpack.c.b16 %v3032, %v3031
  %v3830 = vpack.c.b16 %v3034, %v3033
  %v3831 = vpack.c.b16 %v3036, %v3035
  %v3832 = vpack.c.b16 %v3038, %v3037
  %v3833 = vpack.c.b16 %v3040, %v3039
  %v3834 = vpack.c.b16 %v3042, %v3041
  %v3835 = vpack.c.b16 %v3044, %v3043
  %v3836 = vpack.c.b16 %v3046, %v3045
  %v3837 = vpack.c.b16 %v3048, %v3047
  %v3838 = vpack.c.b16 %v3050, %v3049
  %v3839 = vpack.c.b16 %v3052, %v3051
  %v3840 = vpack.c.b16 %v3054, %v3053
  %v3841 = vpack.c.b16 %v3056, %v3055
  %v3842 = vpack.c.b16 %v3058, %v3057
  %v3843 = vpack.c.b16 %v3060, %v3059
  %v3844 = vpack.c.b16 %v3062, %v3061
  %v3845 = vpack.c.b16 %v3064, %v3063
  %v3846 = vpack.c.b16 %v3066, %v3065
  %v3847 = vpack.c.b16 %v3068, %v3067
  %v3848 = vpack.c.b16 %v3070, %v3069
  %v3849 = vpack.c.b16 %v3072, %v3071
  %v3850 = vpack.c.b16 %v3074, %v3073
  %v3851 = vpack.c.b16 %v3076, %v3075
  %v3852 = vpack.c.b16 %v3078, %v3077
  %v3853 = vpack.c.b16 %v3080, %v3079
  %v3854 = vpack.c.b16 %v3082, %v3081
  %v3855 = vpack.c.b16 %v3084, %v3083
  %v3856 = vpack.c.b16 %v3086, %v3085
  %v3857 = vpack.c.b16 %v3088, %v3087
  %v3858 = vpack.c.b16 %v3090, %v3089
  %v3859 = vpack.c.b16 %v3092, %v3091
  %v3860 = vpack.c.b16 %v3094, %v3093
  %v3861 = vpack.c.b16 %v3096, %v3095
  %v3862 = vpack.c.b16 %v3098, %v3097
  %v3863 = vpack.c.b16 %v3100, %v3099
  %v3864 = vpack.c.b16 %v3102, %v3101
  %v3865 = vpack.c.b16 %v3104, %v3103
  %v3866 = vpack.c.b16 %v3106, %v3105
  %v3867 = vpack.c.b16 %v3108, %v3107
  %v3868 = vpack.c.b16 %v3110, %v3109
  %v3869 = vpack.c.b16 %v3112, %v3111
  %v3870 = vpack.c.b16 %v3114, %v3113
  %v3871 = vpack.c.b16 %v3116, %v3115
  %v3872 = vpack.c.b16 %v3118, %v3117
  %v3873 = vpack.c.b16 %v3120, %v3119
  %v3874 = vpack.c.b16 %v3122, %v3121
  %v3875 = vpack.c.b16 %v3124, %v3123
  %v3876 = vpack.c.b16 %v3126, %v3125
  %v3877 = vpack.c.b16 %v3128, %v3127
  %v3878 = vpack.c.b16 %v3130, %v3129
  %v3879 = vpack.c.b16 %v3132, %v3131
  %v3880 = vpack.c.b16 %v3134, %v3133
  %v3881 = vpack.c.b16 %v3136, %v3135
  %v3882 = vpack.c.b16 %v3138, %v3137
  %v3883 = vpack.c.b16 %v3140, %v3139
  %v3884 = vpack.c.b16 %v3142, %v3141
  %v3885 = vpack.c.b16 %v3144, %v3143
  %v3886 = vpack.c.b16 %v3146, %v3145
  %v3887 = vpack.c.b16 %v3148, %v3147
  %v3888 = vpack.c.b16 %v3150, %v3149
  %v3889 = vpack.c.b16 %v3152, %v3151
  %v3890 = vpack.c.b16 %v3154, %v3153
  %v3891 = vpack.c.b16 %v3156, %v3155
  %v3892 = vpack.c.b16 %v3158, %v3157
  %v3893 = vpack.c.b16 %v3160, %v3159
  %v3894 = vpack.c.b16 %v3162, %v3161
  %v3895 = vpack.c.b16 %v3164, %v3163
  %v3896 = vpack.c.b16 %v3166, %v3165
  %v3897 = vpack.c.b16 %v3168, %v3167
  %v3898 = vpack.c.b16 %v3170, %v3169
  %v3899 = vpack.c.b16 %v3172, %v3171
  %v3900 = vpack.c.b16 %v3174, %v3173
  %v3901 = vpack.c.b16 %v3176, %v3175
  %v3902 = vpack.c.b16 %v3178, %v3177
  %v3903 = vpack.c.b16 %v3180, %v3179
  %v3904 = vpack.c.b16 %v3182, %v3181
  %v3905 = vpack.c.b16 %v3184, %v3183
  %v3906 = vpack.c.b16 %v3186, %v3185
  %v3907 = vpack.c.b16 %v3188, %v3187
  %v3908 = vpack.c.b16 %v3190, %v3189
  %v3909 = vpack.c.b16 %v3192, %v3191
  %v3910 = vpack.c.b16 %v3194, %v3193
  %v3911 = vpack.c.b16 %v3196, %v3195
  %v3912 = vpack.c.b16 %v3198, %v3197
  %v3913 = vpack.c.b16 %v3200, %v3199
  %v3914 = vpack.c.b16 %v3202, %v3201
  %v3915 = vpack.c.b16 %v3204, %v3203
  %v3916 = vpack.c.b16 %v3206, %v3205
  %v3917 = vpack.c.b16 %v3208, %v3207
  %v3918 = vpack.c.b16 %v3210, %v3209
  %v3919 = vpack.c.b16 %v3212, %v3211
  %v3920 = vpack.c.b16 %v3214, %v3213
  %v3921 = vpack.c.b16 %v3216, %v3215
  %v3922 = vpack.c.b16 %v3218, %v3217
  %v3923 = vpack.c.b16 %v3220, %v3219
  %v3924 = vpack.c.b16 %v3222, %v3221
  %v3925 = vpack.c.b16 %v3224, %v3223
  %v3926 = vpack.c.b16 %v3226, %v3225
  %v3927 = vpack.c.b16 %v3228, %v3227
  %v3928 = vpack.c.b16 %v3230, %v3229
  %v3929 = vpack.c.b16 %v3232, %v3231
  %v3930 = vpack.c.b16 %v3234, %v3233
  %v3931 = vpack.c.b16 %v3236, %v3235
  %v3932 = vpack.c.b16 %v3238, %v3237
  %v3933 = vpack.c.b16 %v3240, %v3239
  %v3934 = vpack.c.b16 %v3242, %v3241
  %v3935 = vpack.c.b16 %v3244, %v3243
  %v3936 = vpack.c.b16 %v3246, %v3245
  %v3937 = vpack.c.b16 %v3248, %v3247
  %v3938 = vpack.c.b16 %v3250, %v3249
  %v3939 = vpack.c.b16 %v3252, %v3251
  %v3940 = vpack.c.b16 %v3254, %v3253
  %v3941 = vpack.c.b16 %v3256, %v3255
  %v3942 = vpack.c.b16 %v3258, %v3257
  %v3943 = vpack.c.b16 %v3260, %v3259
  %v3944 = vpack.c.b16 %v3262, %v3261
  %v3945 = vpack.c.b16 %v3264, %v3263
  %v3946 = vpack.c.b16 %v3266, %v3265
  %v3947 = vpack.c.b16 %v3268, %v3267
  %v3948 = vpack.c.b16 %v3270, %v3269
  %v3949 = vpack.c.b16 %v3272, %v3271
  %v3950 = vpack.c.b16 %v3274, %v3273
  %v3951 = vpack.c.b16 %v3276, %v3275
  %v3952 = vpack.c.b16 %v3278, %v3277
  %v3953 = vpack.c.b16 %v3280, %v3279
  %v3954 = vpack.c.b16 %v3282, %v3281
  %v3955 = vpack.c.b16 %v3284, %v3283
  %v3956 = vpack.c.b16 %v3286, %v3285
  %v3957 = vpack.c.b16 %v3288, %v3287
  %v3958 = vpack.c.b16 %v3290, %v3289
  %v3959 = vpack.c.b16 %v3292, %v3291
  %v3960 = vpack.c.b16 %v3294, %v3293
  %v3961 = vpack.c.b16 %v3296, %v3295
  %v3962 = vpack.c.b16 %v3298, %v3297
  %v3963 = vpack.c.b16 %v3300, %v3299
  %v3964 = vpack.c.b16 %v3302, %v3301
  %v3965 = vpack.c.b16 %v3304, %v3303
  %v3966 = vpack.c.b16 %v3306, %v3305
  %v3967 = vpack.c.b16 %v3308, %v3307
  %v3968 = vpack.c.b16 %v3310, %v3309
  %v3969 = vpack.c.b16 %v3312, %v3311
  %v3970 = vpack.c.b16 %v3314, %v3313
  %v3971 = vpack.c.b16 %v3316, %v3315
  %v3972 = vpack.c.b16 %v3318, %v3317
  %v3973 = vpack.c.b16 %v3320, %v3319
  %v3974 = vpack.c.b16 %v3322, %v3321
  %v3975 = vpack.c.b16 %v3324, %v3323
  %v3976 = vpack.c.b16 %v3326, %v3325
  %v3977 = vpack.c.b16 %v3328, %v3327
  %v3978 = vpack.c.b16 %v3330, %v3329
  %v3979 = vpack.c.b16 %v3332, %v3331
  %v3980 = vpack.c.b16 %v3334, %v3333
  %v3981 = vpack.c.b16 %v3336, %v3335
  %v3982 = vpack.c.b16 %v3338, %v3337
  %v3983 = vpack.c.b16 %v3340, %v3339
  %v3984 = vpack.c.b16 %v3342, %v3341
  %v3985 = vpack.c.b16 %v3344, %v3343
  %v3986 = vpack.c.b16 %v3346, %v3345
  %v3987 = vpack.c.b16 %v3348, %v3347
  %v3988 = vpack.c.b16 %v3350, %v3349
  %v3989 = vpack.c.b16 %v3352, %v3351
  %v3990 = vpack.c.b16 %v3354, %v3353
  %v3991 = vpack.c.b16 %v3356, %v3355
  %v3992 = vpack.c.b16 %v3358, %v3357
  %v3993 = vpack.c.b16 %v3360, %v3359
  %v3994 = vpack.c.b16 %v3362, %v3361
  %v3995 = vpack.c.b16 %v3364, %v3363
  %v3996 = vpack.c.b16 %v3366, %v3365
  %v3997 = vpack.c.b16 %v3368, %v3367
  %v3998 = vpack.c.b16 %v3370, %v3369
  %v3999 = vpack.c.b16 %v3372, %v3371
  %v4000 = vpack.c.b16 %v3374, %v3373
  %v4001 = vpack.c.b16 %v3376, %v3375
  %v4002 = vpack.c.b16 %v3378, %v3377
  %v4003 = vpack.c.b16 %v3380, %v3379
  %v4004 = vpack.c.b16 %v3382, %v3381
  %v4005 = vpack.c.b16 %v3384, %v3383
  %v4006 = vpack.c.b16 %v3386, %v3385
  %v4007 = vpack.c.b16 %v3388, %v3387
  %v4008 = vpack.c.b16 %v3390, %v3389
  %v4009 = vpack.c.b16 %v3392, %v3391
  %v4010 = vpack.c.b16 %v3394, %v3393
  %v4011 = vpack.c.b16 %v3396, %v3395
  %v4012 = vpack.c.b16 %v3398, %v3397
  %v4013 = vpack.c.b16 %v3400, %v3399
  %v4014 = vpack.c.b16 %v3402, %v3401
  %v4015 = vpack.c.b16 %v3404, %v3403
  %v4016 = vpack.c.b16 %v3406, %v3405
  %v4017 = vpack.c.b16 %v3408, %v3407
  %v4018 = vpack.c.b16 %v3410, %v3409
  %v4019 = vpack.c.b16 %v3412, %v3411
  %v4020 = vpack.c.b16 %v3414, %v3413
  %v4021 = vpack.c.b16 %v3416, %v3415
  %v4022 = vpack.c.b16 %v3418, %v3417
  %v4023 = vpack.c.b16 %v3420, %v3419
  %v4024 = vpack.c.b16 %v3422, %v3421
  %v4025 = vpack.c.b16 %v3424, %v3423
  %v4026 = vpack.c.b16 %v3426, %v3425
  %v4027 = vpack.c.b16 %v3428, %v3427
  %v4028 = vpack.c.b16 %v3430, %v3429
  %v4029 = vpack.c.b16 %v3432, %v3431
  %v4030 = vpack.c.b16 %v3434, %v3433
  %v4031 = vpack.c.b16 %v3436, %v3435
  %v4032 = vpack.c.b16 %v3438, %v3437
  %v4033 = vpack.c.b16 %v3440, %v3439
  %v4034 = vpack.c.b16 %v3442, %v3441
  %v4035 = vpack.c.b16 %v3444, %v3443
  %v4036 = vpack.c.b16 %v3446, %v3445
  %v4037 = vpack.c.b16 %v3448, %v3447
  %v4038 = vpack.c.b16 %v3450, %v3449
  %v4039 = vpack.c.b16 %v3452, %v3451
  %v4040 = vpack.c.b16 %v3454, %v3453
  %v4041 = vpack.c.b16 %v3456, %v3455
  %v4042 = vpack.c.b16 %v3458, %v3457
  %v4043 = vpack.c.b16 %v3460, %v3459
  %v4044 = vpack.c.b16 %v3462, %v3461
  %v4045 = vpack.c.b16 %v3464, %v3463
  %v4046 = vpack.c.b16 %v3466, %v3465
  %v4047 = vpack.c.b16 %v3468, %v3467
  %v4048 = vpack.c.b16 %v3470, %v3469
  %v4049 = vpack.c.b16 %v3472, %v3471
  %v4050 = vpack.c.b16 %v3474, %v3473
  %v4055 = vunpack.c.l.b16 %v1167
  %v4056 = vunpack.c.l.b16 %v1168
  %v4057 = vunpack.c.l.b16 %v1169
  %v4058 = vunpack.c.l.b16 %v1170
  %v4059 = vpack.c.b16 %v4056, %v4055
  %v4060 = vpack.c.b16 %v4058, %v4057
  %vm4063 = vcmask 261120
  %v4065 = vsel %vm4063, %v3475, 0
  %v4068 = vsel %vm4063, %v3476, 0
  %v4071 = vsel %vm4063, %v3477, 0
  %v4074 = vsel %vm4063, %v3478, 0
  %v4077 = vsel %vm4063, %v3479, 0
  %v4080 = vsel %vm4063, %v3480, 0
  %v4083 = vsel %vm4063, %v3481, 0
  %v4086 = vsel %vm4063, %v3482, 0
  %v4089 = vsel %vm4063, %v3483, 0
  %v4092 = vsel %vm4063, %v3484, 0
  %v4095 = vsel %vm4063, %v3485, 0
  %v4098 = vsel %vm4063, %v3486, 0
  %v4101 = vsel %vm4063, %v3487, 0
  %v4104 = vsel %vm4063, %v3488, 0
  %v4107 = vsel %vm4063, %v3489, 0
  %v4110 = vsel %vm4063, %v3490, 0
  %v4113 = vsel %vm4063, %v3491, 0
  %v4116 = vsel %vm4063, %v3492, 0
  %v4119 = vsel %vm4063, %v3493, 0
  %v4122 = vsel %vm4063, %v3494, 0
  %v4125 = vsel %vm4063, %v3495, 0
  %v4128 = vsel %vm4063, %v3496, 0
  %v4131 = vsel %vm4063, %v3497, 0
  %v4134 = vsel %vm4063, %v3498, 0
  %v4137 = vsel %vm4063, %v3499, 0
  %v4140 = vsel %vm4063, %v3500, 0
  %v4143 = vsel %vm4063, %v3501, 0
  %v4146 = vsel %vm4063, %v3502, 0
  %v4149 = vsel %vm4063, %v3503, 0
  %v4152 = vsel %vm4063, %v3504, 0
  %v4155 = vsel %vm4063, %v3505, 0
  %v4158 = vsel %vm4063, %v3506, 0
  %v4161 = vsel %vm4063, %v3507, 0
  %v4164 = vsel %vm4063, %v3508, 0
  %v4167 = vsel %vm4063, %v3509, 0
  %v4170 = vsel %vm4063, %v3510, 0
  %v4173 = vsel %vm4063, %v3511, 0
  %v4176 = vsel %vm4063, %v3512, 0
  %v4179 = vsel %vm4063, %v3513, 0
  %v4182 = vsel %vm4063, %v3514, 0
  %v4185 = vsel %vm4063, %v3515, 0
  %v4188 = vsel %vm4063, %v3516, 0
  %v4191 = vsel %vm4063, %v3517, 0
  %v4194 = vsel %vm4063, %v3518, 0
  %v4197 = vsel %vm4063, %v3519, 0
  %v4200 = vsel %vm4063, %v3520, 0
  %v4203 = vsel %vm4063, %v3521, 0
  %v4206 = vsel %vm4063, %v3522, 0
  %v4209 = vsel %vm4063, %v3523, 0
  %v4212 = vsel %vm4063, %v3524, 0
  %v4215 = vsel %vm4063, %v3525, 0
  %v4218 = vsel %vm4063, %v3526, 0
  %v4221 = vsel %vm4063, %v3527, 0
  %v4224 = vsel %vm4063, %v3528, 0
  %v4227 = vsel %vm4063, %v3529, 0
  %v4230 = vsel %vm4063, %v3530, 0
  %v4233 = vsel %vm4063, %v3531, 0
  %v4236 = vsel %vm4063, %v3532, 0
  %v4239 = vsel %vm4063, %v3533, 0
  %v4242 = vsel %vm4063, %v3534, 0
  %v4245 = vsel %vm4063, %v3535, 0
  %v4248 = vsel %vm4063, %v3536, 0
  %v4251 = vsel %vm4063, %v3537, 0
  %v4254 = vsel %vm4063, %v3538, 0
  %v4257 = vsel %vm4063, %v3539, 0
  %v4260 = vsel %vm4063, %v3540, 0
  %v4263 = vsel %vm4063, %v3541, 0
  %v4266 = vsel %vm4063, %v3542, 0
  %v4269 = vsel %vm4063, %v3543, 0
  %v4272 = vsel %vm4063, %v3544, 0
  %v4275 = vsel %vm4063, %v3545, 0
  %v4278 = vsel %vm4063, %v3546, 0
  %v4281 = vsel %vm4063, %v3547, 0
  %v4284 = vsel %vm4063, %v3548, 0
  %v4287 = vsel %vm4063, %v3549, 0
  %v4290 = vsel %vm4063, %v3550, 0
  %v4293 = vsel %vm4063, %v3551, 0
  %v4296 = vsel %vm4063, %v3552, 0
  %v4299 = vsel %vm4063, %v3553, 0
  %v4302 = vsel %vm4063, %v3554, 0
  %v4305 = vsel %vm4063, %v3555, 0
  %v4308 = vsel %vm4063, %v3556, 0
  %v4311 = vsel %vm4063, %v3557, 0
  %v4314 = vsel %vm4063, %v3558, 0
  %v4317 = vsel %vm4063, %v3559, 0
  %v4320 = vsel %vm4063, %v3560, 0
  %v4323 = vsel %vm4063, %v3561, 0
  %v4326 = vsel %vm4063, %v3562, 0
  %v4329 = vsel %vm4063, %v3563, 0
  %v4332 = vsel %vm4063, %v3564, 0
  %v4335 = vsel %vm4063, %v3565, 0
  %v4338 = vsel %vm4063, %v3566, 0
  %v4341 = vsel %vm4063, %v3567, 0
  %v4344 = vsel %vm4063, %v3568, 0
  %v4347 = vsel %vm4063, %v3569, 0
  %v4350 = vsel %vm4063, %v3570, 0
  %v4353 = vsel %vm4063, %v3571, 0
  %v4356 = vsel %vm4063, %v3572, 0
  %v4359 = vsel %vm4063, %v3573, 0
  %v4362 = vsel %vm4063, %v3574, 0
  %v4365 = vsel %vm4063, %v3575, 0
  %v4368 = vsel %vm4063, %v3576, 0
  %v4371 = vsel %vm4063, %v3577, 0
  %v4374 = vsel %vm4063, %v3578, 0
  %v4377 = vsel %vm4063, %v3579, 0
  %v4380 = vsel %vm4063, %v3580, 0
  %v4383 = vsel %vm4063, %v3581, 0
  %v4386 = vsel %vm4063, %v3582, 0
  %v4389 = vsel %vm4063, %v3583, 0
  %v4392 = vsel %vm4063, %v3584, 0
  %v4395 = vsel %vm4063, %v3585, 0
  %v4398 = vsel %vm4063, %v3586, 0
  %v4401 = vsel %vm4063, %v3587, 0
  %v4404 = vsel %vm4063, %v3588, 0
  %v4407 = vsel %vm4063, %v3589, 0
  %v4410 = vsel %vm4063, %v3590, 0
  %v4413 = vsel %vm4063, %v3591, 0
  %v4416 = vsel %vm4063, %v3592, 0
  %v4419 = vsel %vm4063, %v3593, 0
  %v4422 = vsel %vm4063, %v3594, 0
  %v4425 = vsel %vm4063, %v3595, 0
  %v4428 = vsel %vm4063, %v3596, 0
  %v4431 = vsel %vm4063, %v3597, 0
  %v4434 = vsel %vm4063, %v3598, 0
  %v4437 = vsel %vm4063, %v3599, 0
  %v4440 = vsel %vm4063, %v3600, 0
  %v4443 = vsel %vm4063, %v3601, 0
  %v4446 = vsel %vm4063, %v3602, 0
  %v4449 = vsel %vm4063, %v3603, 0
  %v4452 = vsel %vm4063, %v3604, 0
  %v4455 = vsel %vm4063, %v3605, 0
  %v4458 = vsel %vm4063, %v3606, 0
  %v4461 = vsel %vm4063, %v3607, 0
  %v4464 = vsel %vm4063, %v3608, 0
  %v4467 = vsel %vm4063, %v3609, 0
  %v4470 = vsel %vm4063, %v3610, 0
  %v4473 = vsel %vm4063, %v3611, 0
  %v4476 = vsel %vm4063, %v3612, 0
  %v4479 = vsel %vm4063, %v3613, 0
  %v4482 = vsel %vm4063, %v3614, 0
  %v4485 = vsel %vm4063, %v3615, 0
  %v4488 = vsel %vm4063, %v3616, 0
  %v4491 = vsel %vm4063, %v3617, 0
  %v4494 = vsel %vm4063, %v3618, 0
  %v4497 = vsel %vm4063, %v3619, 0
  %v4500 = vsel %vm4063, %v3620, 0
  %v4503 = vsel %vm4063, %v3621, 0
  %v4506 = vsel %vm4063, %v3622, 0
  %v4509 = vsel %vm4063, %v3623, 0
  %v4512 = vsel %vm4063, %v3624, 0
  %v4515 = vsel %vm4063, %v3625, 0
  %v4518 = vsel %vm4063, %v3626, 0
  %v4521 = vsel %vm4063, %v3627, 0
  %v4524 = vsel %vm4063, %v3628, 0
  %v4527 = vsel %vm4063, %v3629, 0
  %v4530 = vsel %vm4063, %v3630, 0
  %v4533 = vsel %vm4063, %v3631, 0
  %v4536 = vsel %vm4063, %v3632, 0
  %v4539 = vsel %vm4063, %v3633, 0
  %v4542 = vsel %vm4063, %v3634, 0
  %v4545 = vsel %vm4063, %v3635, 0
  %v4548 = vsel %vm4063, %v3636, 0
  %v4551 = vsel %vm4063, %v3637, 0
  %v4554 = vsel %vm4063, %v3638, 0
  %v4557 = vsel %vm4063, %v3639, 0
  %v4560 = vsel %vm4063, %v3640, 0
  %v4563 = vsel %vm4063, %v3641, 0
  %v4566 = vsel %vm4063, %v3642, 0
  %v4569 = vsel %vm4063, %v3643, 0
  %v4572 = vsel %vm4063, %v3644, 0
  %v4575 = vsel %vm4063, %v3645, 0
  %v4578 = vsel %vm4063, %v3646, 0
  %v4581 = vsel %vm4063, %v3647, 0
  %v4584 = vsel %vm4063, %v3648, 0
  %v4587 = vsel %vm4063, %v3649, 0
  %v4590 = vsel %vm4063, %v3650, 0
  %v4593 = vsel %vm4063, %v3651, 0
  %v4596 = vsel %vm4063, %v3652, 0
  %v4599 = vsel %vm4063, %v3653, 0
  %v4602 = vsel %vm4063, %v3654, 0
  %v4605 = vsel %vm4063, %v3655, 0
  %v4608 = vsel %vm4063, %v3656, 0
  %v4611 = vsel %vm4063, %v3657, 0
  %v4614 = vsel %vm4063, %v3658, 0
  %v4617 = vsel %vm4063, %v3659, 0
  %v4620 = vsel %vm4063, %v3660, 0
  %v4623 = vsel %vm4063, %v3661, 0
  %v4626 = vsel %vm4063, %v3662, 0
  %v4629 = vsel %vm4063, %v3663, 0
  %v4632 = vsel %vm4063, %v3664, 0
  %v4635 = vsel %vm4063, %v3665, 0
  %v4638 = vsel %vm4063, %v3666, 0
  %v4641 = vsel %vm4063, %v3667, 0
  %v4644 = vsel %vm4063, %v3668, 0
  %v4647 = vsel %vm4063, %v3669, 0
  %v4650 = vsel %vm4063, %v3670, 0
  %v4653 = vsel %vm4063, %v3671, 0
  %v4656 = vsel %vm4063, %v3672, 0
  %v4659 = vsel %vm4063, %v3673, 0
  %v4662 = vsel %vm4063, %v3674, 0
  %v4665 = vsel %vm4063, %v3675, 0
  %v4668 = vsel %vm4063, %v3676, 0
  %v4671 = vsel %vm4063, %v3677, 0
  %v4674 = vsel %vm4063, %v3678, 0
  %v4677 = vsel %vm4063, %v3679, 0
  %v4680 = vsel %vm4063, %v3680, 0
  %v4683 = vsel %vm4063, %v3681, 0
  %v4686 = vsel %vm4063, %v3682, 0
  %v4689 = vsel %vm4063, %v3683, 0
  %v4692 = vsel %vm4063, %v3684, 0
  %v4695 = vsel %vm4063, %v3685, 0
  %v4698 = vsel %vm4063, %v3686, 0
  %v4701 = vsel %vm4063, %v3687, 0
  %v4704 = vsel %vm4063, %v3688, 0
  %v4707 = vsel %vm4063, %v3689, 0
  %v4710 = vsel %vm4063, %v3690, 0
  %v4713 = vsel %vm4063, %v3691, 0
  %v4716 = vsel %vm4063, %v3692, 0
  %v4719 = vsel %vm4063, %v3693, 0
  %v4722 = vsel %vm4063, %v3694, 0
  %v4725 = vsel %vm4063, %v3695, 0
  %v4728 = vsel %vm4063, %v3696, 0
  %v4731 = vsel %vm4063, %v3697, 0
  %v4734 = vsel %vm4063, %v3698, 0
  %v4737 = vsel %vm4063, %v3699, 0
  %v4740 = vsel %vm4063, %v3700, 0
  %v4743 = vsel %vm4063, %v3701, 0
  %v4746 = vsel %vm4063, %v3702, 0
  %v4749 = vsel %vm4063, %v3703, 0
  %v4752 = vsel %vm4063, %v3704, 0
  %v4755 = vsel %vm4063, %v3705, 0
  %v4758 = vsel %vm4063, %v3706, 0
  %v4761 = vsel %vm4063, %v3707, 0
  %v4764 = vsel %vm4063, %v3708, 0
  %v4767 = vsel %vm4063, %v3709, 0
  %v4770 = vsel %vm4063, %v3710, 0
  %v4773 = vsel %vm4063, %v3711, 0
  %v4776 = vsel %vm4063, %v3712, 0
  %v4779 = vsel %vm4063, %v3713, 0
  %v4782 = vsel %vm4063, %v3714, 0
  %v4785 = vsel %vm4063, %v3715, 0
  %v4788 = vsel %vm4063, %v3716, 0
  %v4791 = vsel %vm4063, %v3717, 0
  %v4794 = vsel %vm4063, %v3718, 0
  %v4797 = vsel %vm4063, %v3719, 0
  %v4800 = vsel %vm4063, %v3720, 0
  %v4803 = vsel %vm4063, %v3721, 0
  %v4806 = vsel %vm4063, %v3722, 0
  %v4809 = vsel %vm4063, %v3723, 0
  %v4812 = vsel %vm4063, %v3724, 0
  %v4815 = vsel %vm4063, %v3725, 0
  %v4818 = vsel %vm4063, %v3726, 0
  %v4821 = vsel %vm4063, %v3727, 0
  %v4824 = vsel %vm4063, %v3728, 0
  %v4827 = vsel %vm4063, %v3729, 0
  %v4830 = vsel %vm4063, %v3730, 0
  %v4833 = vsel %vm4063, %v3731, 0
  %v4836 = vsel %vm4063, %v3732, 0
  %v4839 = vsel %vm4063, %v3733, 0
  %v4842 = vsel %vm4063, %v3734, 0
  %v4845 = vsel %vm4063, %v3735, 0
  %v4848 = vsel %vm4063, %v3736, 0
  %v4851 = vsel %vm4063, %v3737, 0
  %v4854 = vsel %vm4063, %v3738, 0
  %v4857 = vsel %vm4063, %v3739, 0
  %v4860 = vsel %vm4063, %v3740, 0
  %v4863 = vsel %vm4063, %v3741, 0
  %v4866 = vsel %vm4063, %v3742, 0
  %v4869 = vsel %vm4063, %v3743, 0
  %v4872 = vsel %vm4063, %v3744, 0
  %v4875 = vsel %vm4063, %v3745, 0
  %v4878 = vsel %vm4063, %v3746, 0
  %v4881 = vsel %vm4063, %v3747, 0
  %v4884 = vsel %vm4063, %v3748, 0
  %v4887 = vsel %vm4063, %v3749, 0
  %v4890 = vsel %vm4063, %v3750, 0
  %v4893 = vsel %vm4063, %v3751, 0
  %v4896 = vsel %vm4063, %v3752, 0
  %v4899 = vsel %vm4063, %v3753, 0
  %v4902 = vsel %vm4063, %v3754, 0
  %v4905 = vsel %vm4063, %v3755, 0
  %v4908 = vsel %vm4063, %v3756, 0
  %v4911 = vsel %vm4063, %v3757, 0
  %v4914 = vsel %vm4063, %v3758, 0
  %v4917 = vsel %vm4063, %v3759, 0
  %v4920 = vsel %vm4063, %v3760, 0
  %v4923 = vsel %vm4063, %v3761, 0
  %v4926 = vsel %vm4063, %v3762, 0
  %v4929 = vsel %vm4063, %v3763, 0
  %v4932 = vsel %vm4063, %v3764, 0
  %v4935 = vsel %vm4063, %v3765, 0
  %v4938 = vsel %vm4063, %v3766, 0
  %v4941 = vsel %vm4063, %v3767, 0
  %v4944 = vsel %vm4063, %v3768, 0
  %v4947 = vsel %vm4063, %v3769, 0
  %v4950 = vsel %vm4063, %v3770, 0
  %v4953 = vsel %vm4063, %v3771, 0
  %v4956 = vsel %vm4063, %v3772, 0
  %v4959 = vsel %vm4063, %v3773, 0
  %v4962 = vsel %vm4063, %v3774, 0
  %v4965 = vsel %vm4063, %v3775, 0
  %v4968 = vsel %vm4063, %v3776, 0
  %v4971 = vsel %vm4063, %v3777, 0
  %v4974 = vsel %vm4063, %v3778, 0
  %v4977 = vsel %vm4063, %v3779, 0
  %v4980 = vsel %vm4063, %v3780, 0
  %v4983 = vsel %vm4063, %v3781, 0
  %v4986 = vsel %vm4063, %v3782, 0
  %v4989 = vsel %vm4063, %v3783, 0
  %v4992 = vsel %vm4063, %v3784, 0
  %v4995 = vsel %vm4063, %v3785, 0
  %v4998 = vsel %vm4063, %v3786, 0
  %v5001 = vsel %vm4063, %v3787, 0
  %v5004 = vsel %vm4063, %v3788, 0
  %v5007 = vsel %vm4063, %v3789, 0
  %v5010 = vsel %vm4063, %v3790, 0
  %v5013 = vsel %vm4063, %v3791, 0
  %v5016 = vsel %vm4063, %v3792, 0
  %v5019 = vsel %vm4063, %v3793, 0
  %v5022 = vsel %vm4063, %v3794, 0
  %v5025 = vsel %vm4063, %v3795, 0
  %v5028 = vsel %vm4063, %v3796, 0
  %v5031 = vsel %vm4063, %v3797, 0
  %v5034 = vsel %vm4063, %v3798, 0
  %v5037 = vsel %vm4063, %v3799, 0
  %v5040 = vsel %vm4063, %v3800, 0
  %v5043 = vsel %vm4063, %v3801, 0
  %v5046 = vsel %vm4063, %v3802, 0
  %v5049 = vsel %vm4063, %v3803, 0
  %v5052 = vsel %vm4063, %v3804, 0
  %v5055 = vsel %vm4063, %v3805, 0
  %v5058 = vsel %vm4063, %v3806, 0
  %v5061 = vsel %vm4063, %v3807, 0
  %v5064 = vsel %vm4063, %v3808, 0
  %v5067 = vsel %vm4063, %v3809, 0
  %v5070 = vsel %vm4063, %v3810, 0
  %v5073 = vsel %vm4063, %v3811, 0
  %v5076 = vsel %vm4063, %v3812, 0
  %v5079 = vsel %vm4063, %v3813, 0
  %v5082 = vsel %vm4063, %v3814, 0
  %v5085 = vsel %vm4063, %v3815, 0
  %v5088 = vsel %vm4063, %v3816, 0
  %v5091 = vsel %vm4063, %v3817, 0
  %v5094 = vsel %vm4063, %v3818, 0
  %v5097 = vsel %vm4063, %v3819, 0
  %v5100 = vsel %vm4063, %v3820, 0
  %v5103 = vsel %vm4063, %v3821, 0
  %v5106 = vsel %vm4063, %v3822, 0
  %v5109 = vsel %vm4063, %v3823, 0
  %v5112 = vsel %vm4063, %v3824, 0
  %v5115 = vsel %vm4063, %v3825, 0
  %v5118 = vsel %vm4063, %v3826, 0
  %v5121 = vsel %vm4063, %v3827, 0
  %v5124 = vsel %vm4063, %v3828, 0
  %v5127 = vsel %vm4063, %v3829, 0
  %v5130 = vsel %vm4063, %v3830, 0
  %v5133 = vsel %vm4063, %v3831, 0
  %v5136 = vsel %vm4063, %v3832, 0
  %v5139 = vsel %vm4063, %v3833, 0
  %v5142 = vsel %vm4063, %v3834, 0
  %v5145 = vsel %vm4063, %v3835, 0
  %v5148 = vsel %vm4063, %v3836, 0
  %v5151 = vsel %vm4063, %v3837, 0
  %v5154 = vsel %vm4063, %v3838, 0
  %v5157 = vsel %vm4063, %v3839, 0
  %v5160 = vsel %vm4063, %v3840, 0
  %v5163 = vsel %vm4063, %v3841, 0
  %v5166 = vsel %vm4063, %v3842, 0
  %v5169 = vsel %vm4063, %v3843, 0
  %v5172 = vsel %vm4063, %v3844, 0
  %v5175 = vsel %vm4063, %v3845, 0
  %v5178 = vsel %vm4063, %v3846, 0
  %v5181 = vsel %vm4063, %v3847, 0
  %v5184 = vsel %vm4063, %v3848, 0
  %v5187 = vsel %vm4063, %v3849, 0
  %v5190 = vsel %vm4063, %v3850, 0
  %v5193 = vsel %vm4063, %v3851, 0
  %v5196 = vsel %vm4063, %v3852, 0
  %v5199 = vsel %vm4063, %v3853, 0
  %v5202 = vsel %vm4063, %v3854, 0
  %v5205 = vsel %vm4063, %v3855, 0
  %v5208 = vsel %vm4063, %v3856, 0
  %v5211 = vsel %vm4063, %v3857, 0
  %v5214 = vsel %vm4063, %v3858, 0
  %v5217 = vsel %vm4063, %v3859, 0
  %v5220 = vsel %vm4063, %v3860, 0
  %v5223 = vsel %vm4063, %v3861, 0
  %v5226 = vsel %vm4063, %v3862, 0
  %v5229 = vsel %vm4063, %v3863, 0
  %v5232 = vsel %vm4063, %v3864, 0
  %v5235 = vsel %vm4063, %v3865, 0
  %v5238 = vsel %vm4063, %v3866, 0
  %v5241 = vsel %vm4063, %v3867, 0
  %v5244 = vsel %vm4063, %v3868, 0
  %v5247 = vsel %vm4063, %v3869, 0
  %v5250 = vsel %vm4063, %v3870, 0
  %v5253 = vsel %vm4063, %v3871, 0
  %v5256 = vsel %vm4063, %v3872, 0
  %v5259 = vsel %vm4063, %v3873, 0
  %v5262 = vsel %vm4063, %v3874, 0
  %v5265 = vsel %vm4063, %v3875, 0
  %v5268 = vsel %vm4063, %v3876, 0
  %v5271 = vsel %vm4063, %v3877, 0
  %v5274 = vsel %vm4063, %v3878, 0
  %v5277 = vsel %vm4063, %v3879, 0
  %v5280 = vsel %vm4063, %v3880, 0
  %v5283 = vsel %vm4063, %v3881, 0
  %v5286 = vsel %vm4063, %v3882, 0
  %v5289 = vsel %vm4063, %v3883, 0
  %v5292 = vsel %vm4063, %v3884, 0
  %v5295 = vsel %vm4063, %v3885, 0
  %v5298 = vsel %vm4063, %v3886, 0
  %v5301 = vsel %vm4063, %v3887, 0
  %v5304 = vsel %vm4063, %v3888, 0
  %v5307 = vsel %vm4063, %v3889, 0
  %v5310 = vsel %vm4063, %v3890, 0
  %v5313 = vsel %vm4063, %v3891, 0
  %v5316 = vsel %vm4063, %v3892, 0
  %v5319 = vsel %vm4063, %v3893, 0
  %v5322 = vsel %vm4063, %v3894, 0
  %v5325 = vsel %vm4063, %v3895, 0
  %v5328 = vsel %vm4063, %v3896, 0
  %v5331 = vsel %vm4063, %v3897, 0
  %v5334 = vsel %vm4063, %v3898, 0
  %v5337 = vsel %vm4063, %v3899, 0
  %v5340 = vsel %vm4063, %v3900, 0
  %v5343 = vsel %vm4063, %v3901, 0
  %v5346 = vsel %vm4063, %v3902, 0
  %v5349 = vsel %vm4063, %v3903, 0
  %v5352 = vsel %vm4063, %v3904, 0
  %v5355 = vsel %vm4063, %v3905, 0
  %v5358 = vsel %vm4063, %v3906, 0
  %v5361 = vsel %vm4063, %v3907, 0
  %v5364 = vsel %vm4063, %v3908, 0
  %v5367 = vsel %vm4063, %v3909, 0
  %v5370 = vsel %vm4063, %v3910, 0
  %v5373 = vsel %vm4063, %v3911, 0
  %v5376 = vsel %vm4063, %v3912, 0
  %v5379 = vsel %vm4063, %v3913, 0
  %v5382 = vsel %vm4063, %v3914, 0
  %v5385 = vsel %vm4063, %v3915, 0
  %v5388 = vsel %vm4063, %v3916, 0
  %v5391 = vsel %vm4063, %v3917, 0
  %v5394 = vsel %vm4063, %v3918, 0
  %v5397 = vsel %vm4063, %v3919, 0
  %v5400 = vsel %vm4063, %v3920, 0
  %v5403 = vsel %vm4063, %v3921, 0
  %v5406 = vsel %vm4063, %v3922, 0
  %v5409 = vsel %vm4063, %v3923, 0
  %v5412 = vsel %vm4063, %v3924, 0
  %v5415 = vsel %vm4063, %v3925, 0
  %v5418 = vsel %vm4063, %v3926, 0
  %v5421 = vsel %vm4063, %v3927, 0
  %v5424 = vsel %vm4063, %v3928, 0
  %v5427 = vsel %vm4063, %v3929, 0
  %v5430 = vsel %vm4063, %v3930, 0
  %v5433 = vsel %vm4063, %v3931, 0
  %v5436 = vsel %vm4063, %v3932, 0
  %v5439 = vsel %vm4063, %v3933, 0
  %v5442 = vsel %vm4063, %v3934, 0
  %v5445 = vsel %vm4063, %v3935, 0
  %v5448 = vsel %vm4063, %v3936, 0
  %v5451 = vsel %vm4063, %v3937, 0
  %v5454 = vsel %vm4063, %v3938, 0
  %v5457 = vsel %vm4063, %v3939, 0
  %v5460 = vsel %vm4063, %v3940, 0
  %v5463 = vsel %vm4063, %v3941, 0
  %v5466 = vsel %vm4063, %v3942, 0
  %v5469 = vsel %vm4063, %v3943, 0
  %v5472 = vsel %vm4063, %v3944, 0
  %v5475 = vsel %vm4063, %v3945, 0
  %v5478 = vsel %vm4063, %v3946, 0
  %v5481 = vsel %vm4063, %v3947, 0
  %v5484 = vsel %vm4063, %v3948, 0
  %v5487 = vsel %vm4063, %v3949, 0
  %v5490 = vsel %vm4063, %v3950, 0
  %v5493 = vsel %vm4063, %v3951, 0
  %v5496 = vsel %vm4063, %v3952, 0
  %v5499 = vsel %vm4063, %v3953, 0
  %v5502 = vsel %vm4063, %v3954, 0
  %v5505 = vsel %vm4063, %v3955, 0
  %v5508 = vsel %vm4063, %v3956, 0
  %v5511 = vsel %vm4063, %v3957, 0
  %v5514 = vsel %vm4063, %v3958, 0
  %v5517 = vsel %vm4063, %v3959, 0
  %v5520 = vsel %vm4063, %v3960, 0
  %v5523 = vsel %vm4063, %v3961, 0
  %v5526 = vsel %vm4063, %v3962, 0
  %v5529 = vsel %vm4063, %v3963, 0
  %v5532 = vsel %vm4063, %v3964, 0
  %v5535 = vsel %vm4063, %v3965, 0
  %v5538 = vsel %vm4063, %v3966, 0
  %v5541 = vsel %vm4063, %v3967, 0
  %v5544 = vsel %vm4063, %v3968, 0
  %v5547 = vsel %vm4063, %v3969, 0
  %v5550 = vsel %vm4063, %v3970, 0
  %v5553 = vsel %vm4063, %v3971, 0
  %v5556 = vsel %vm4063, %v3972, 0
  %v5559 = vsel %vm4063, %v3973, 0
  %v5562 = vsel %vm4063, %v3974, 0
  %v5565 = vsel %vm4063, %v3975, 0
  %v5568 = vsel %vm4063, %v3976, 0
  %v5571 = vsel %vm4063, %v3977, 0
  %v5574 = vsel %vm4063, %v3978, 0
  %v5577 = vsel %vm4063, %v3979, 0
  %v5580 = vsel %vm4063, %v3980, 0
  %v5583 = vsel %vm4063, %v3981, 0
  %v5586 = vsel %vm4063, %v3982, 0
  %v5589 = vsel %vm4063, %v3983, 0
  %v5592 = vsel %vm4063, %v3984, 0
  %v5595 = vsel %vm4063, %v3985, 0
  %v5598 = vsel %vm4063, %v3986, 0
  %v5601 = vsel %vm4063, %v3987, 0
  %v5604 = vsel %vm4063, %v3988, 0
  %v5607 = vsel %vm4063, %v3989, 0
  %v5610 = vsel %vm4063, %v3990, 0
  %v5613 = vsel %vm4063, %v3991, 0
  %v5616 = vsel %vm4063, %v3992, 0
  %v5619 = vsel %vm4063, %v3993, 0
  %v5622 = vsel %vm4063, %v3994, 0
  %v5625 = vsel %vm4063, %v3995, 0
  %v5628 = vsel %vm4063, %v3996, 0
  %v5631 = vsel %vm4063, %v3997, 0
  %v5634 = vsel %vm4063, %v3998, 0
  %v5637 = vsel %vm4063, %v3999, 0
  %v5640 = vsel %vm4063, %v4000, 0
  %v5643 = vsel %vm4063, %v4001, 0
  %v5646 = vsel %vm4063, %v4002, 0
  %v5649 = vsel %vm4063, %v4003, 0
  %v5652 = vsel %vm4063, %v4004, 0
  %v5655 = vsel %vm4063, %v4005, 0
  %v5658 = vsel %vm4063, %v4006, 0
  %v5661 = vsel %vm4063, %v4007, 0
  %v5664 = vsel %vm4063, %v4008, 0
  %v5667 = vsel %vm4063, %v4009, 0
  %v5670 = vsel %vm4063, %v4010, 0
  %v5673 = vsel %vm4063, %v4011, 0
  %v5676 = vsel %vm4063, %v4012, 0
  %v5679 = vsel %vm4063, %v4013, 0
  %v5682 = vsel %vm4063, %v4014, 0
  %v5685 = vsel %vm4063, %v4015, 0
  %v5688 = vsel %vm4063, %v4016, 0
  %v5691 = vsel %vm4063, %v4017, 0
  %v5694 = vsel %vm4063, %v4018, 0
  %v5697 = vsel %vm4063, %v4019, 0
  %v5700 = vsel %vm4063, %v4020, 0
  %v5703 = vsel %vm4063, %v4021, 0
  %v5706 = vsel %vm4063, %v4022, 0
  %v5709 = vsel %vm4063, %v4023, 0
  %v5712 = vsel %vm4063, %v4024, 0
  %v5715 = vsel %vm4063, %v4025, 0
  %v5718 = vsel %vm4063, %v4026, 0
  %v5721 = vsel %vm4063, %v4027, 0
  %v5724 = vsel %vm4063, %v4028, 0
  %v5727 = vsel %vm4063, %v4029, 0
  %v5730 = vsel %vm4063, %v4030, 0
  %v5733 = vsel %vm4063, %v4031, 0
  %v5736 = vsel %vm4063, %v4032, 0
  %v5739 = vsel %vm4063, %v4033, 0
  %v5742 = vsel %vm4063, %v4034, 0
  %v5745 = vsel %vm4063, %v4035, 0
  %v5748 = vsel %vm4063, %v4036, 0
  %v5751 = vsel %vm4063, %v4037, 0
  %v5754 = vsel %vm4063, %v4038, 0
  %v5757 = vsel %vm4063, %v4039, 0
  %v5760 = vsel %vm4063, %v4040, 0
  %v5763 = vsel %vm4063, %v4041, 0
  %v5766 = vsel %vm4063, %v4042, 0
  %v5769 = vsel %vm4063, %v4043, 0
  %v5772 = vsel %vm4063, %v4044, 0
  %v5775 = vsel %vm4063, %v4045, 0
  %v5778 = vsel %vm4063, %v4046, 0
  %v5781 = vsel %vm4063, %v4047, 0
  %v5784 = vsel %vm4063, %v4048, 0
  %v5787 = vsel %vm4063, %v4049, 0
  %v5790 = vsel %vm4063, %v4050, 0
  %5792 = vmatpush.bf16.msra.mxu0 0
  %5793 = vmatpush.bf16.msra.mxu0 0
  %5794 = vmatpush.bf16.msra.mxu0 0
  %5795 = vmatpush.bf16.msra.mxu0 0
  %5796 = vmatpush.bf16.msra.mxu0 0
  %5797 = vmatpush.bf16.msra.mxu0 0
  %5798 = vmatpush.bf16.msra.mxu0 %v4060
  %5799 = vmatpush.bf16.msra.mxu0 %v4059
  %5800 = vmatmul.bf16.gmra.mxu0 %v4065
  %v5801 = vpop.f32.mrf.mxu0
  %v5802 = vadd.f32 0.0, %v5801
  %v5803 = vpop.f32.mrf.mxu0
  %v5804 = vadd.f32 0.0, %v5803
  %5805 = vmatmul.bf16.gmra.mxu0 %v4068
  %v5806 = vpop.f32.mrf.mxu0
  %v5807 = vadd.f32 0.0, %v5806
  %v5808 = vpop.f32.mrf.mxu0
  %v5809 = vadd.f32 0.0, %v5808
  %5810 = vmatmul.bf16.gmra.mxu0 %v4071
  %v5811 = vpop.f32.mrf.mxu0
  %v5812 = vadd.f32 0.0, %v5811
  %v5813 = vpop.f32.mrf.mxu0
  %v5814 = vadd.f32 0.0, %v5813
  %5815 = vmatmul.bf16.gmra.mxu0 %v4074
  %v5816 = vpop.f32.mrf.mxu0
  %v5817 = vadd.f32 0.0, %v5816
  %v5818 = vpop.f32.mrf.mxu0
  %v5819 = vadd.f32 0.0, %v5818
  %5820 = vmatmul.bf16.gmra.mxu0 %v4077
  %v5821 = vpop.f32.mrf.mxu0
  %v5822 = vadd.f32 0.0, %v5821
  %v5823 = vpop.f32.mrf.mxu0
  %v5824 = vadd.f32 0.0, %v5823
  %5825 = vmatmul.bf16.gmra.mxu0 %v4080
  %v5826 = vpop.f32.mrf.mxu0
  %v5827 = vadd.f32 0.0, %v5826
  %v5828 = vpop.f32.mrf.mxu0
  %v5829 = vadd.f32 0.0, %v5828
  %5830 = vmatmul.bf16.gmra.mxu0 %v4083
  %v5831 = vpop.f32.mrf.mxu0
  %v5832 = vadd.f32 0.0, %v5831
  %v5833 = vpop.f32.mrf.mxu0
  %v5834 = vadd.f32 0.0, %v5833
  %5835 = vmatmul.bf16.gmra.mxu0 %v4086
  %v5836 = vpop.f32.mrf.mxu0
  %v5837 = vadd.f32 0.0, %v5836
  %v5838 = vpop.f32.mrf.mxu0
  %v5839 = vadd.f32 0.0, %v5838
  %5840 = vmatmul.bf16.gmra.mxu0 %v4089
  %v5841 = vpop.f32.mrf.mxu0
  %v5842 = vadd.f32 0.0, %v5841
  %v5843 = vpop.f32.mrf.mxu0
  %v5844 = vadd.f32 0.0, %v5843
  %5845 = vmatmul.bf16.gmra.mxu0 %v4092
  %v5846 = vpop.f32.mrf.mxu0
  %v5847 = vadd.f32 0.0, %v5846
  %v5848 = vpop.f32.mrf.mxu0
  %v5849 = vadd.f32 0.0, %v5848
  %5850 = vmatmul.bf16.gmra.mxu0 %v4095
  %v5851 = vpop.f32.mrf.mxu0
  %v5852 = vadd.f32 0.0, %v5851
  %v5853 = vpop.f32.mrf.mxu0
  %v5854 = vadd.f32 0.0, %v5853
  %5855 = vmatmul.bf16.gmra.mxu0 %v4098
  %v5856 = vpop.f32.mrf.mxu0
  %v5857 = vadd.f32 0.0, %v5856
  %v5858 = vpop.f32.mrf.mxu0
  %v5859 = vadd.f32 0.0, %v5858
  %5860 = vmatmul.bf16.gmra.mxu0 %v4101
  %v5861 = vpop.f32.mrf.mxu0
  %v5862 = vadd.f32 0.0, %v5861
  %v5863 = vpop.f32.mrf.mxu0
  %v5864 = vadd.f32 0.0, %v5863
  %5865 = vmatmul.bf16.gmra.mxu0 %v4104
  %v5866 = vpop.f32.mrf.mxu0
  %v5867 = vadd.f32 0.0, %v5866
  %v5868 = vpop.f32.mrf.mxu0
  %v5869 = vadd.f32 0.0, %v5868
  %5870 = vmatmul.bf16.gmra.mxu0 %v4107
  %v5871 = vpop.f32.mrf.mxu0
  %v5872 = vadd.f32 0.0, %v5871
  %v5873 = vpop.f32.mrf.mxu0
  %v5874 = vadd.f32 0.0, %v5873
  %5875 = vmatmul.bf16.gmra.mxu0 %v4110
  %v5876 = vpop.f32.mrf.mxu0
  %v5877 = vadd.f32 0.0, %v5876
  %v5878 = vpop.f32.mrf.mxu0
  %v5879 = vadd.f32 0.0, %v5878
  %5880 = vmatmul.bf16.gmra.mxu0 %v4113
  %v5881 = vpop.f32.mrf.mxu0
  %v5882 = vadd.f32 0.0, %v5881
  %v5883 = vpop.f32.mrf.mxu0
  %v5884 = vadd.f32 0.0, %v5883
  %5885 = vmatmul.bf16.gmra.mxu0 %v4116
  %v5886 = vpop.f32.mrf.mxu0
  %v5887 = vadd.f32 0.0, %v5886
  %v5888 = vpop.f32.mrf.mxu0
  %v5889 = vadd.f32 0.0, %v5888
  %5890 = vmatmul.bf16.gmra.mxu0 %v4119
  %v5891 = vpop.f32.mrf.mxu0
  %v5892 = vadd.f32 0.0, %v5891
  %v5893 = vpop.f32.mrf.mxu0
  %v5894 = vadd.f32 0.0, %v5893
  %5895 = vmatmul.bf16.gmra.mxu0 %v4122
  %v5896 = vpop.f32.mrf.mxu0
  %v5897 = vadd.f32 0.0, %v5896
  %v5898 = vpop.f32.mrf.mxu0
  %v5899 = vadd.f32 0.0, %v5898
  %5900 = vmatmul.bf16.gmra.mxu0 %v4125
  %v5901 = vpop.f32.mrf.mxu0
  %v5902 = vadd.f32 0.0, %v5901
  %v5903 = vpop.f32.mrf.mxu0
  %v5904 = vadd.f32 0.0, %v5903
  %5905 = vmatmul.bf16.gmra.mxu0 %v4128
  %v5906 = vpop.f32.mrf.mxu0
  %v5907 = vadd.f32 0.0, %v5906
  %v5908 = vpop.f32.mrf.mxu0
  %v5909 = vadd.f32 0.0, %v5908
  %5910 = vmatmul.bf16.gmra.mxu0 %v4131
  %v5911 = vpop.f32.mrf.mxu0
  %v5912 = vadd.f32 0.0, %v5911
  %v5913 = vpop.f32.mrf.mxu0
  %v5914 = vadd.f32 0.0, %v5913
  %5915 = vmatmul.bf16.gmra.mxu0 %v4134
  %v5916 = vpop.f32.mrf.mxu0
  %v5917 = vadd.f32 0.0, %v5916
  %v5918 = vpop.f32.mrf.mxu0
  %v5919 = vadd.f32 0.0, %v5918
  %5920 = vmatmul.bf16.gmra.mxu0 %v4137
  %v5921 = vpop.f32.mrf.mxu0
  %v5922 = vadd.f32 0.0, %v5921
  %v5923 = vpop.f32.mrf.mxu0
  %v5924 = vadd.f32 0.0, %v5923
  %5925 = vmatmul.bf16.gmra.mxu0 %v4140
  %v5926 = vpop.f32.mrf.mxu0
  %v5927 = vadd.f32 0.0, %v5926
  %v5928 = vpop.f32.mrf.mxu0
  %v5929 = vadd.f32 0.0, %v5928
  %5930 = vmatmul.bf16.gmra.mxu0 %v4143
  %v5931 = vpop.f32.mrf.mxu0
  %v5932 = vadd.f32 0.0, %v5931
  %v5933 = vpop.f32.mrf.mxu0
  %v5934 = vadd.f32 0.0, %v5933
  %5935 = vmatmul.bf16.gmra.mxu0 %v4146
  %v5936 = vpop.f32.mrf.mxu0
  %v5937 = vadd.f32 0.0, %v5936
  %v5938 = vpop.f32.mrf.mxu0
  %v5939 = vadd.f32 0.0, %v5938
  %5940 = vmatmul.bf16.gmra.mxu0 %v4149
  %v5941 = vpop.f32.mrf.mxu0
  %v5942 = vadd.f32 0.0, %v5941
  %v5943 = vpop.f32.mrf.mxu0
  %v5944 = vadd.f32 0.0, %v5943
  %5945 = vmatmul.bf16.gmra.mxu0 %v4152
  %v5946 = vpop.f32.mrf.mxu0
  %v5947 = vadd.f32 0.0, %v5946
  %v5948 = vpop.f32.mrf.mxu0
  %v5949 = vadd.f32 0.0, %v5948
  %5950 = vmatmul.bf16.gmra.mxu0 %v4155
  %v5951 = vpop.f32.mrf.mxu0
  %v5952 = vadd.f32 0.0, %v5951
  %v5953 = vpop.f32.mrf.mxu0
  %v5954 = vadd.f32 0.0, %v5953
  %5955 = vmatmul.bf16.gmra.mxu0 %v4158
  %v5956 = vpop.f32.mrf.mxu0
  %v5957 = vadd.f32 0.0, %v5956
  %v5958 = vpop.f32.mrf.mxu0
  %v5959 = vadd.f32 0.0, %v5958
  %5960 = vmatmul.bf16.gmra.mxu0 %v4161
  %v5961 = vpop.f32.mrf.mxu0
  %v5962 = vadd.f32 0.0, %v5961
  %v5963 = vpop.f32.mrf.mxu0
  %v5964 = vadd.f32 0.0, %v5963
  %5965 = vmatmul.bf16.gmra.mxu0 %v4164
  %v5966 = vpop.f32.mrf.mxu0
  %v5967 = vadd.f32 0.0, %v5966
  %v5968 = vpop.f32.mrf.mxu0
  %v5969 = vadd.f32 0.0, %v5968
  %5970 = vmatmul.bf16.gmra.mxu0 %v4167
  %v5971 = vpop.f32.mrf.mxu0
  %v5972 = vadd.f32 0.0, %v5971
  %v5973 = vpop.f32.mrf.mxu0
  %v5974 = vadd.f32 0.0, %v5973
  %5975 = vmatmul.bf16.gmra.mxu0 %v4170
  %v5976 = vpop.f32.mrf.mxu0
  %v5977 = vadd.f32 0.0, %v5976
  %v5978 = vpop.f32.mrf.mxu0
  %v5979 = vadd.f32 0.0, %v5978
  %5980 = vmatmul.bf16.gmra.mxu0 %v4173
  %v5981 = vpop.f32.mrf.mxu0
  %v5982 = vadd.f32 0.0, %v5981
  %v5983 = vpop.f32.mrf.mxu0
  %v5984 = vadd.f32 0.0, %v5983
  %5985 = vmatmul.bf16.gmra.mxu0 %v4176
  %v5986 = vpop.f32.mrf.mxu0
  %v5987 = vadd.f32 0.0, %v5986
  %v5988 = vpop.f32.mrf.mxu0
  %v5989 = vadd.f32 0.0, %v5988
  %5990 = vmatmul.bf16.gmra.mxu0 %v4179
  %v5991 = vpop.f32.mrf.mxu0
  %v5992 = vadd.f32 0.0, %v5991
  %v5993 = vpop.f32.mrf.mxu0
  %v5994 = vadd.f32 0.0, %v5993
  %5995 = vmatmul.bf16.gmra.mxu0 %v4182
  %v5996 = vpop.f32.mrf.mxu0
  %v5997 = vadd.f32 0.0, %v5996
  %v5998 = vpop.f32.mrf.mxu0
  %v5999 = vadd.f32 0.0, %v5998
  %6000 = vmatmul.bf16.gmra.mxu0 %v4185
  %v6001 = vpop.f32.mrf.mxu0
  %v6002 = vadd.f32 0.0, %v6001
  %v6003 = vpop.f32.mrf.mxu0
  %v6004 = vadd.f32 0.0, %v6003
  %6005 = vmatmul.bf16.gmra.mxu0 %v4188
  %v6006 = vpop.f32.mrf.mxu0
  %v6007 = vadd.f32 0.0, %v6006
  %v6008 = vpop.f32.mrf.mxu0
  %v6009 = vadd.f32 0.0, %v6008
  %6010 = vmatmul.bf16.gmra.mxu0 %v4191
  %v6011 = vpop.f32.mrf.mxu0
  %v6012 = vadd.f32 0.0, %v6011
  %v6013 = vpop.f32.mrf.mxu0
  %v6014 = vadd.f32 0.0, %v6013
  %6015 = vmatmul.bf16.gmra.mxu0 %v4194
  %v6016 = vpop.f32.mrf.mxu0
  %v6017 = vadd.f32 0.0, %v6016
  %v6018 = vpop.f32.mrf.mxu0
  %v6019 = vadd.f32 0.0, %v6018
  %6020 = vmatmul.bf16.gmra.mxu0 %v4197
  %v6021 = vpop.f32.mrf.mxu0
  %v6022 = vadd.f32 0.0, %v6021
  %v6023 = vpop.f32.mrf.mxu0
  %v6024 = vadd.f32 0.0, %v6023
  %6025 = vmatmul.bf16.gmra.mxu0 %v4200
  %v6026 = vpop.f32.mrf.mxu0
  %v6027 = vadd.f32 0.0, %v6026
  %v6028 = vpop.f32.mrf.mxu0
  %v6029 = vadd.f32 0.0, %v6028
  %6030 = vmatmul.bf16.gmra.mxu0 %v4203
  %v6031 = vpop.f32.mrf.mxu0
  %v6032 = vadd.f32 0.0, %v6031
  %v6033 = vpop.f32.mrf.mxu0
  %v6034 = vadd.f32 0.0, %v6033
  %6035 = vmatmul.bf16.gmra.mxu0 %v4206
  %v6036 = vpop.f32.mrf.mxu0
  %v6037 = vadd.f32 0.0, %v6036
  %v6038 = vpop.f32.mrf.mxu0
  %v6039 = vadd.f32 0.0, %v6038
  %6040 = vmatmul.bf16.gmra.mxu0 %v4209
  %v6041 = vpop.f32.mrf.mxu0
  %v6042 = vadd.f32 0.0, %v6041
  %v6043 = vpop.f32.mrf.mxu0
  %v6044 = vadd.f32 0.0, %v6043
  %6045 = vmatmul.bf16.gmra.mxu0 %v4212
  %v6046 = vpop.f32.mrf.mxu0
  %v6047 = vadd.f32 0.0, %v6046
  %v6048 = vpop.f32.mrf.mxu0
  %v6049 = vadd.f32 0.0, %v6048
  %6050 = vmatmul.bf16.gmra.mxu0 %v4215
  %v6051 = vpop.f32.mrf.mxu0
  %v6052 = vadd.f32 0.0, %v6051
  %v6053 = vpop.f32.mrf.mxu0
  %v6054 = vadd.f32 0.0, %v6053
  %6055 = vmatmul.bf16.gmra.mxu0 %v4218
  %v6056 = vpop.f32.mrf.mxu0
  %v6057 = vadd.f32 0.0, %v6056
  %v6058 = vpop.f32.mrf.mxu0
  %v6059 = vadd.f32 0.0, %v6058
  %6060 = vmatmul.bf16.gmra.mxu0 %v4221
  %v6061 = vpop.f32.mrf.mxu0
  %v6062 = vadd.f32 0.0, %v6061
  %v6063 = vpop.f32.mrf.mxu0
  %v6064 = vadd.f32 0.0, %v6063
  %6065 = vmatmul.bf16.gmra.mxu0 %v4224
  %v6066 = vpop.f32.mrf.mxu0
  %v6067 = vadd.f32 0.0, %v6066
  %v6068 = vpop.f32.mrf.mxu0
  %v6069 = vadd.f32 0.0, %v6068
  %6070 = vmatmul.bf16.gmra.mxu0 %v4227
  %v6071 = vpop.f32.mrf.mxu0
  %v6072 = vadd.f32 0.0, %v6071
  %v6073 = vpop.f32.mrf.mxu0
  %v6074 = vadd.f32 0.0, %v6073
  %6075 = vmatmul.bf16.gmra.mxu0 %v4230
  %v6076 = vpop.f32.mrf.mxu0
  %v6077 = vadd.f32 0.0, %v6076
  %v6078 = vpop.f32.mrf.mxu0
  %v6079 = vadd.f32 0.0, %v6078
  %6080 = vmatmul.bf16.gmra.mxu0 %v4233
  %v6081 = vpop.f32.mrf.mxu0
  %v6082 = vadd.f32 0.0, %v6081
  %v6083 = vpop.f32.mrf.mxu0
  %v6084 = vadd.f32 0.0, %v6083
  %6085 = vmatmul.bf16.gmra.mxu0 %v4236
  %v6086 = vpop.f32.mrf.mxu0
  %v6087 = vadd.f32 0.0, %v6086
  %v6088 = vpop.f32.mrf.mxu0
  %v6089 = vadd.f32 0.0, %v6088
  %6090 = vmatmul.bf16.gmra.mxu0 %v4239
  %v6091 = vpop.f32.mrf.mxu0
  %v6092 = vadd.f32 0.0, %v6091
  %v6093 = vpop.f32.mrf.mxu0
  %v6094 = vadd.f32 0.0, %v6093
  %6095 = vmatmul.bf16.gmra.mxu0 %v4242
  %v6096 = vpop.f32.mrf.mxu0
  %v6097 = vadd.f32 0.0, %v6096
  %v6098 = vpop.f32.mrf.mxu0
  %v6099 = vadd.f32 0.0, %v6098
  %6100 = vmatmul.bf16.gmra.mxu0 %v4245
  %v6101 = vpop.f32.mrf.mxu0
  %v6102 = vadd.f32 0.0, %v6101
  %v6103 = vpop.f32.mrf.mxu0
  %v6104 = vadd.f32 0.0, %v6103
  %6105 = vmatmul.bf16.gmra.mxu0 %v4248
  %v6106 = vpop.f32.mrf.mxu0
  %v6107 = vadd.f32 0.0, %v6106
  %v6108 = vpop.f32.mrf.mxu0
  %v6109 = vadd.f32 0.0, %v6108
  %6110 = vmatmul.bf16.gmra.mxu0 %v4251
  %v6111 = vpop.f32.mrf.mxu0
  %v6112 = vadd.f32 0.0, %v6111
  %v6113 = vpop.f32.mrf.mxu0
  %v6114 = vadd.f32 0.0, %v6113
  %6115 = vmatmul.bf16.gmra.mxu0 %v4254
  %v6116 = vpop.f32.mrf.mxu0
  %v6117 = vadd.f32 0.0, %v6116
  %v6118 = vpop.f32.mrf.mxu0
  %v6119 = vadd.f32 0.0, %v6118
  %6120 = vmatmul.bf16.gmra.mxu0 %v4257
  %v6121 = vpop.f32.mrf.mxu0
  %v6122 = vadd.f32 0.0, %v6121
  %v6123 = vpop.f32.mrf.mxu0
  %v6124 = vadd.f32 0.0, %v6123
  %6125 = vmatmul.bf16.gmra.mxu0 %v4260
  %v6126 = vpop.f32.mrf.mxu0
  %v6127 = vadd.f32 0.0, %v6126
  %v6128 = vpop.f32.mrf.mxu0
  %v6129 = vadd.f32 0.0, %v6128
  %6130 = vmatmul.bf16.gmra.mxu0 %v4263
  %v6131 = vpop.f32.mrf.mxu0
  %v6132 = vadd.f32 0.0, %v6131
  %v6133 = vpop.f32.mrf.mxu0
  %v6134 = vadd.f32 0.0, %v6133
  %6135 = vmatmul.bf16.gmra.mxu0 %v4266
  %v6136 = vpop.f32.mrf.mxu0
  %v6137 = vadd.f32 0.0, %v6136
  %v6138 = vpop.f32.mrf.mxu0
  %v6139 = vadd.f32 0.0, %v6138
  %6140 = vmatmul.bf16.gmra.mxu0 %v4269
  %v6141 = vpop.f32.mrf.mxu0
  %v6142 = vadd.f32 0.0, %v6141
  %v6143 = vpop.f32.mrf.mxu0
  %v6144 = vadd.f32 0.0, %v6143
  %6145 = vmatmul.bf16.gmra.mxu0 %v4272
  %v6146 = vpop.f32.mrf.mxu0
  %v6147 = vadd.f32 0.0, %v6146
  %v6148 = vpop.f32.mrf.mxu0
  %v6149 = vadd.f32 0.0, %v6148
  %6150 = vmatmul.bf16.gmra.mxu0 %v4275
  %v6151 = vpop.f32.mrf.mxu0
  %v6152 = vadd.f32 0.0, %v6151
  %v6153 = vpop.f32.mrf.mxu0
  %v6154 = vadd.f32 0.0, %v6153
  %6155 = vmatmul.bf16.gmra.mxu0 %v4278
  %v6156 = vpop.f32.mrf.mxu0
  %v6157 = vadd.f32 0.0, %v6156
  %v6158 = vpop.f32.mrf.mxu0
  %v6159 = vadd.f32 0.0, %v6158
  %6160 = vmatmul.bf16.gmra.mxu0 %v4281
  %v6161 = vpop.f32.mrf.mxu0
  %v6162 = vadd.f32 0.0, %v6161
  %v6163 = vpop.f32.mrf.mxu0
  %v6164 = vadd.f32 0.0, %v6163
  %6165 = vmatmul.bf16.gmra.mxu0 %v4284
  %v6166 = vpop.f32.mrf.mxu0
  %v6167 = vadd.f32 0.0, %v6166
  %v6168 = vpop.f32.mrf.mxu0
  %v6169 = vadd.f32 0.0, %v6168
  %6170 = vmatmul.bf16.gmra.mxu0 %v4287
  %v6171 = vpop.f32.mrf.mxu0
  %v6172 = vadd.f32 0.0, %v6171
  %v6173 = vpop.f32.mrf.mxu0
  %v6174 = vadd.f32 0.0, %v6173
  %6175 = vmatmul.bf16.gmra.mxu0 %v4290
  %v6176 = vpop.f32.mrf.mxu0
  %v6177 = vadd.f32 0.0, %v6176
  %v6178 = vpop.f32.mrf.mxu0
  %v6179 = vadd.f32 0.0, %v6178
  %6180 = vmatmul.bf16.gmra.mxu0 %v4293
  %v6181 = vpop.f32.mrf.mxu0
  %v6182 = vadd.f32 0.0, %v6181
  %v6183 = vpop.f32.mrf.mxu0
  %v6184 = vadd.f32 0.0, %v6183
  %6185 = vmatmul.bf16.gmra.mxu0 %v4296
  %v6186 = vpop.f32.mrf.mxu0
  %v6187 = vadd.f32 0.0, %v6186
  %v6188 = vpop.f32.mrf.mxu0
  %v6189 = vadd.f32 0.0, %v6188
  %6190 = vmatmul.bf16.gmra.mxu0 %v4299
  %v6191 = vpop.f32.mrf.mxu0
  %v6192 = vadd.f32 0.0, %v6191
  %v6193 = vpop.f32.mrf.mxu0
  %v6194 = vadd.f32 0.0, %v6193
  %6195 = vmatmul.bf16.gmra.mxu0 %v4302
  %v6196 = vpop.f32.mrf.mxu0
  %v6197 = vadd.f32 0.0, %v6196
  %v6198 = vpop.f32.mrf.mxu0
  %v6199 = vadd.f32 0.0, %v6198
  %6200 = vmatmul.bf16.gmra.mxu0 %v4305
  %v6201 = vpop.f32.mrf.mxu0
  %v6202 = vadd.f32 0.0, %v6201
  %v6203 = vpop.f32.mrf.mxu0
  %v6204 = vadd.f32 0.0, %v6203
  %6205 = vmatmul.bf16.gmra.mxu0 %v4308
  %v6206 = vpop.f32.mrf.mxu0
  %v6207 = vadd.f32 0.0, %v6206
  %v6208 = vpop.f32.mrf.mxu0
  %v6209 = vadd.f32 0.0, %v6208
  %6210 = vmatmul.bf16.gmra.mxu0 %v4311
  %v6211 = vpop.f32.mrf.mxu0
  %v6212 = vadd.f32 0.0, %v6211
  %v6213 = vpop.f32.mrf.mxu0
  %v6214 = vadd.f32 0.0, %v6213
  %6215 = vmatmul.bf16.gmra.mxu0 %v4314
  %v6216 = vpop.f32.mrf.mxu0
  %v6217 = vadd.f32 0.0, %v6216
  %v6218 = vpop.f32.mrf.mxu0
  %v6219 = vadd.f32 0.0, %v6218
  %6220 = vmatmul.bf16.gmra.mxu0 %v4317
  %v6221 = vpop.f32.mrf.mxu0
  %v6222 = vadd.f32 0.0, %v6221
  %v6223 = vpop.f32.mrf.mxu0
  %v6224 = vadd.f32 0.0, %v6223
  %6225 = vmatmul.bf16.gmra.mxu0 %v4320
  %v6226 = vpop.f32.mrf.mxu0
  %v6227 = vadd.f32 0.0, %v6226
  %v6228 = vpop.f32.mrf.mxu0
  %v6229 = vadd.f32 0.0, %v6228
  %6230 = vmatmul.bf16.gmra.mxu0 %v4323
  %v6231 = vpop.f32.mrf.mxu0
  %v6232 = vadd.f32 0.0, %v6231
  %v6233 = vpop.f32.mrf.mxu0
  %v6234 = vadd.f32 0.0, %v6233
  %6235 = vmatmul.bf16.gmra.mxu0 %v4326
  %v6236 = vpop.f32.mrf.mxu0
  %v6237 = vadd.f32 0.0, %v6236
  %v6238 = vpop.f32.mrf.mxu0
  %v6239 = vadd.f32 0.0, %v6238
  %6240 = vmatmul.bf16.gmra.mxu0 %v4329
  %v6241 = vpop.f32.mrf.mxu0
  %v6242 = vadd.f32 0.0, %v6241
  %v6243 = vpop.f32.mrf.mxu0
  %v6244 = vadd.f32 0.0, %v6243
  %6245 = vmatmul.bf16.gmra.mxu0 %v4332
  %v6246 = vpop.f32.mrf.mxu0
  %v6247 = vadd.f32 0.0, %v6246
  %v6248 = vpop.f32.mrf.mxu0
  %v6249 = vadd.f32 0.0, %v6248
  %6250 = vmatmul.bf16.gmra.mxu0 %v4335
  %v6251 = vpop.f32.mrf.mxu0
  %v6252 = vadd.f32 0.0, %v6251
  %v6253 = vpop.f32.mrf.mxu0
  %v6254 = vadd.f32 0.0, %v6253
  %6255 = vmatmul.bf16.gmra.mxu0 %v4338
  %v6256 = vpop.f32.mrf.mxu0
  %v6257 = vadd.f32 0.0, %v6256
  %v6258 = vpop.f32.mrf.mxu0
  %v6259 = vadd.f32 0.0, %v6258
  %6260 = vmatmul.bf16.gmra.mxu0 %v4341
  %v6261 = vpop.f32.mrf.mxu0
  %v6262 = vadd.f32 0.0, %v6261
  %v6263 = vpop.f32.mrf.mxu0
  %v6264 = vadd.f32 0.0, %v6263
  %6265 = vmatmul.bf16.gmra.mxu0 %v4344
  %v6266 = vpop.f32.mrf.mxu0
  %v6267 = vadd.f32 0.0, %v6266
  %v6268 = vpop.f32.mrf.mxu0
  %v6269 = vadd.f32 0.0, %v6268
  %6270 = vmatmul.bf16.gmra.mxu0 %v4347
  %v6271 = vpop.f32.mrf.mxu0
  %v6272 = vadd.f32 0.0, %v6271
  %v6273 = vpop.f32.mrf.mxu0
  %v6274 = vadd.f32 0.0, %v6273
  %6275 = vmatmul.bf16.gmra.mxu0 %v4350
  %v6276 = vpop.f32.mrf.mxu0
  %v6277 = vadd.f32 0.0, %v6276
  %v6278 = vpop.f32.mrf.mxu0
  %v6279 = vadd.f32 0.0, %v6278
  %6280 = vmatmul.bf16.gmra.mxu0 %v4353
  %v6281 = vpop.f32.mrf.mxu0
  %v6282 = vadd.f32 0.0, %v6281
  %v6283 = vpop.f32.mrf.mxu0
  %v6284 = vadd.f32 0.0, %v6283
  %6285 = vmatmul.bf16.gmra.mxu0 %v4356
  %v6286 = vpop.f32.mrf.mxu0
  %v6287 = vadd.f32 0.0, %v6286
  %v6288 = vpop.f32.mrf.mxu0
  %v6289 = vadd.f32 0.0, %v6288
  %6290 = vmatmul.bf16.gmra.mxu0 %v4359
  %v6291 = vpop.f32.mrf.mxu0
  %v6292 = vadd.f32 0.0, %v6291
  %v6293 = vpop.f32.mrf.mxu0
  %v6294 = vadd.f32 0.0, %v6293
  %6295 = vmatmul.bf16.gmra.mxu0 %v4362
  %v6296 = vpop.f32.mrf.mxu0
  %v6297 = vadd.f32 0.0, %v6296
  %v6298 = vpop.f32.mrf.mxu0
  %v6299 = vadd.f32 0.0, %v6298
  %6300 = vmatmul.bf16.gmra.mxu0 %v4365
  %v6301 = vpop.f32.mrf.mxu0
  %v6302 = vadd.f32 0.0, %v6301
  %v6303 = vpop.f32.mrf.mxu0
  %v6304 = vadd.f32 0.0, %v6303
  %6305 = vmatmul.bf16.gmra.mxu0 %v4368
  %v6306 = vpop.f32.mrf.mxu0
  %v6307 = vadd.f32 0.0, %v6306
  %v6308 = vpop.f32.mrf.mxu0
  %v6309 = vadd.f32 0.0, %v6308
  %6310 = vmatmul.bf16.gmra.mxu0 %v4371
  %v6311 = vpop.f32.mrf.mxu0
  %v6312 = vadd.f32 0.0, %v6311
  %v6313 = vpop.f32.mrf.mxu0
  %v6314 = vadd.f32 0.0, %v6313
  %6315 = vmatmul.bf16.gmra.mxu0 %v4374
  %v6316 = vpop.f32.mrf.mxu0
  %v6317 = vadd.f32 0.0, %v6316
  %v6318 = vpop.f32.mrf.mxu0
  %v6319 = vadd.f32 0.0, %v6318
  %6320 = vmatmul.bf16.gmra.mxu0 %v4377
  %v6321 = vpop.f32.mrf.mxu0
  %v6322 = vadd.f32 0.0, %v6321
  %v6323 = vpop.f32.mrf.mxu0
  %v6324 = vadd.f32 0.0, %v6323
  %6325 = vmatmul.bf16.gmra.mxu0 %v4380
  %v6326 = vpop.f32.mrf.mxu0
  %v6327 = vadd.f32 0.0, %v6326
  %v6328 = vpop.f32.mrf.mxu0
  %v6329 = vadd.f32 0.0, %v6328
  %6330 = vmatmul.bf16.gmra.mxu0 %v4383
  %v6331 = vpop.f32.mrf.mxu0
  %v6332 = vadd.f32 0.0, %v6331
  %v6333 = vpop.f32.mrf.mxu0
  %v6334 = vadd.f32 0.0, %v6333
  %6335 = vmatmul.bf16.gmra.mxu0 %v4386
  %v6336 = vpop.f32.mrf.mxu0
  %v6337 = vadd.f32 0.0, %v6336
  %v6338 = vpop.f32.mrf.mxu0
  %v6339 = vadd.f32 0.0, %v6338
  %6340 = vmatmul.bf16.gmra.mxu0 %v4389
  %v6341 = vpop.f32.mrf.mxu0
  %v6342 = vadd.f32 0.0, %v6341
  %v6343 = vpop.f32.mrf.mxu0
  %v6344 = vadd.f32 0.0, %v6343
  %6345 = vmatmul.bf16.gmra.mxu0 %v4392
  %v6346 = vpop.f32.mrf.mxu0
  %v6347 = vadd.f32 0.0, %v6346
  %v6348 = vpop.f32.mrf.mxu0
  %v6349 = vadd.f32 0.0, %v6348
  %6350 = vmatmul.bf16.gmra.mxu0 %v4395
  %v6351 = vpop.f32.mrf.mxu0
  %v6352 = vadd.f32 0.0, %v6351
  %v6353 = vpop.f32.mrf.mxu0
  %v6354 = vadd.f32 0.0, %v6353
  %6355 = vmatmul.bf16.gmra.mxu0 %v4398
  %v6356 = vpop.f32.mrf.mxu0
  %v6357 = vadd.f32 0.0, %v6356
  %v6358 = vpop.f32.mrf.mxu0
  %v6359 = vadd.f32 0.0, %v6358
  %6360 = vmatmul.bf16.gmra.mxu0 %v4401
  %v6361 = vpop.f32.mrf.mxu0
  %v6362 = vadd.f32 0.0, %v6361
  %v6363 = vpop.f32.mrf.mxu0
  %v6364 = vadd.f32 0.0, %v6363
  %6365 = vmatmul.bf16.gmra.mxu0 %v4404
  %v6366 = vpop.f32.mrf.mxu0
  %v6367 = vadd.f32 0.0, %v6366
  %v6368 = vpop.f32.mrf.mxu0
  %v6369 = vadd.f32 0.0, %v6368
  %6370 = vmatmul.bf16.gmra.mxu0 %v4407
  %v6371 = vpop.f32.mrf.mxu0
  %v6372 = vadd.f32 0.0, %v6371
  %v6373 = vpop.f32.mrf.mxu0
  %v6374 = vadd.f32 0.0, %v6373
  %6375 = vmatmul.bf16.gmra.mxu0 %v4410
  %v6376 = vpop.f32.mrf.mxu0
  %v6377 = vadd.f32 0.0, %v6376
  %v6378 = vpop.f32.mrf.mxu0
  %v6379 = vadd.f32 0.0, %v6378
  %6380 = vmatmul.bf16.gmra.mxu0 %v4413
  %v6381 = vpop.f32.mrf.mxu0
  %v6382 = vadd.f32 0.0, %v6381
  %v6383 = vpop.f32.mrf.mxu0
  %v6384 = vadd.f32 0.0, %v6383
  %6385 = vmatmul.bf16.gmra.mxu0 %v4416
  %v6386 = vpop.f32.mrf.mxu0
  %v6387 = vadd.f32 0.0, %v6386
  %v6388 = vpop.f32.mrf.mxu0
  %v6389 = vadd.f32 0.0, %v6388
  %6390 = vmatmul.bf16.gmra.mxu0 %v4419
  %v6391 = vpop.f32.mrf.mxu0
  %v6392 = vadd.f32 0.0, %v6391
  %v6393 = vpop.f32.mrf.mxu0
  %v6394 = vadd.f32 0.0, %v6393
  %6395 = vmatmul.bf16.gmra.mxu0 %v4422
  %v6396 = vpop.f32.mrf.mxu0
  %v6397 = vadd.f32 0.0, %v6396
  %v6398 = vpop.f32.mrf.mxu0
  %v6399 = vadd.f32 0.0, %v6398
  %6400 = vmatmul.bf16.gmra.mxu0 %v4425
  %v6401 = vpop.f32.mrf.mxu0
  %v6402 = vadd.f32 0.0, %v6401
  %v6403 = vpop.f32.mrf.mxu0
  %v6404 = vadd.f32 0.0, %v6403
  %6405 = vmatmul.bf16.gmra.mxu0 %v4428
  %v6406 = vpop.f32.mrf.mxu0
  %v6407 = vadd.f32 0.0, %v6406
  %v6408 = vpop.f32.mrf.mxu0
  %v6409 = vadd.f32 0.0, %v6408
  %6410 = vmatmul.bf16.gmra.mxu0 %v4431
  %v6411 = vpop.f32.mrf.mxu0
  %v6412 = vadd.f32 0.0, %v6411
  %v6413 = vpop.f32.mrf.mxu0
  %v6414 = vadd.f32 0.0, %v6413
  %6415 = vmatmul.bf16.gmra.mxu0 %v4434
  %v6416 = vpop.f32.mrf.mxu0
  %v6417 = vadd.f32 0.0, %v6416
  %v6418 = vpop.f32.mrf.mxu0
  %v6419 = vadd.f32 0.0, %v6418
  %6420 = vmatmul.bf16.gmra.mxu0 %v4437
  %v6421 = vpop.f32.mrf.mxu0
  %v6422 = vadd.f32 0.0, %v6421
  %v6423 = vpop.f32.mrf.mxu0
  %v6424 = vadd.f32 0.0, %v6423
  %6425 = vmatmul.bf16.gmra.mxu0 %v4440
  %v6426 = vpop.f32.mrf.mxu0
  %v6427 = vadd.f32 0.0, %v6426
  %v6428 = vpop.f32.mrf.mxu0
  %v6429 = vadd.f32 0.0, %v6428
  %6430 = vmatmul.bf16.gmra.mxu0 %v4443
  %v6431 = vpop.f32.mrf.mxu0
  %v6432 = vadd.f32 0.0, %v6431
  %v6433 = vpop.f32.mrf.mxu0
  %v6434 = vadd.f32 0.0, %v6433
  %6435 = vmatmul.bf16.gmra.mxu0 %v4446
  %v6436 = vpop.f32.mrf.mxu0
  %v6437 = vadd.f32 0.0, %v6436
  %v6438 = vpop.f32.mrf.mxu0
  %v6439 = vadd.f32 0.0, %v6438
  %6440 = vmatmul.bf16.gmra.mxu0 %v4449
  %v6441 = vpop.f32.mrf.mxu0
  %v6442 = vadd.f32 0.0, %v6441
  %v6443 = vpop.f32.mrf.mxu0
  %v6444 = vadd.f32 0.0, %v6443
  %6445 = vmatmul.bf16.gmra.mxu0 %v4452
  %v6446 = vpop.f32.mrf.mxu0
  %v6447 = vadd.f32 0.0, %v6446
  %v6448 = vpop.f32.mrf.mxu0
  %v6449 = vadd.f32 0.0, %v6448
  %6450 = vmatmul.bf16.gmra.mxu0 %v4455
  %v6451 = vpop.f32.mrf.mxu0
  %v6452 = vadd.f32 0.0, %v6451
  %v6453 = vpop.f32.mrf.mxu0
  %v6454 = vadd.f32 0.0, %v6453
  %6455 = vmatmul.bf16.gmra.mxu0 %v4458
  %v6456 = vpop.f32.mrf.mxu0
  %v6457 = vadd.f32 0.0, %v6456
  %v6458 = vpop.f32.mrf.mxu0
  %v6459 = vadd.f32 0.0, %v6458
  %6460 = vmatmul.bf16.gmra.mxu0 %v4461
  %v6461 = vpop.f32.mrf.mxu0
  %v6462 = vadd.f32 0.0, %v6461
  %v6463 = vpop.f32.mrf.mxu0
  %v6464 = vadd.f32 0.0, %v6463
  %6465 = vmatmul.bf16.gmra.mxu0 %v4464
  %v6466 = vpop.f32.mrf.mxu0
  %v6467 = vadd.f32 0.0, %v6466
  %v6468 = vpop.f32.mrf.mxu0
  %v6469 = vadd.f32 0.0, %v6468
  %6470 = vmatmul.bf16.gmra.mxu0 %v4467
  %v6471 = vpop.f32.mrf.mxu0
  %v6472 = vadd.f32 0.0, %v6471
  %v6473 = vpop.f32.mrf.mxu0
  %v6474 = vadd.f32 0.0, %v6473
  %6475 = vmatmul.bf16.gmra.mxu0 %v4470
  %v6476 = vpop.f32.mrf.mxu0
  %v6477 = vadd.f32 0.0, %v6476
  %v6478 = vpop.f32.mrf.mxu0
  %v6479 = vadd.f32 0.0, %v6478
  %6480 = vmatmul.bf16.gmra.mxu0 %v4473
  %v6481 = vpop.f32.mrf.mxu0
  %v6482 = vadd.f32 0.0, %v6481
  %v6483 = vpop.f32.mrf.mxu0
  %v6484 = vadd.f32 0.0, %v6483
  %6485 = vmatmul.bf16.gmra.mxu0 %v4476
  %v6486 = vpop.f32.mrf.mxu0
  %v6487 = vadd.f32 0.0, %v6486
  %v6488 = vpop.f32.mrf.mxu0
  %v6489 = vadd.f32 0.0, %v6488
  %6490 = vmatmul.bf16.gmra.mxu0 %v4479
  %v6491 = vpop.f32.mrf.mxu0
  %v6492 = vadd.f32 0.0, %v6491
  %v6493 = vpop.f32.mrf.mxu0
  %v6494 = vadd.f32 0.0, %v6493
  %6495 = vmatmul.bf16.gmra.mxu0 %v4482
  %v6496 = vpop.f32.mrf.mxu0
  %v6497 = vadd.f32 0.0, %v6496
  %v6498 = vpop.f32.mrf.mxu0
  %v6499 = vadd.f32 0.0, %v6498
  %6500 = vmatmul.bf16.gmra.mxu0 %v4485
  %v6501 = vpop.f32.mrf.mxu0
  %v6502 = vadd.f32 0.0, %v6501
  %v6503 = vpop.f32.mrf.mxu0
  %v6504 = vadd.f32 0.0, %v6503
  %6505 = vmatmul.bf16.gmra.mxu0 %v4488
  %v6506 = vpop.f32.mrf.mxu0
  %v6507 = vadd.f32 0.0, %v6506
  %v6508 = vpop.f32.mrf.mxu0
  %v6509 = vadd.f32 0.0, %v6508
  %6510 = vmatmul.bf16.gmra.mxu0 %v4491
  %v6511 = vpop.f32.mrf.mxu0
  %v6512 = vadd.f32 0.0, %v6511
  %v6513 = vpop.f32.mrf.mxu0
  %v6514 = vadd.f32 0.0, %v6513
  %6515 = vmatmul.bf16.gmra.mxu0 %v4494
  %v6516 = vpop.f32.mrf.mxu0
  %v6517 = vadd.f32 0.0, %v6516
  %v6518 = vpop.f32.mrf.mxu0
  %v6519 = vadd.f32 0.0, %v6518
  %6520 = vmatmul.bf16.gmra.mxu0 %v4497
  %v6521 = vpop.f32.mrf.mxu0
  %v6522 = vadd.f32 0.0, %v6521
  %v6523 = vpop.f32.mrf.mxu0
  %v6524 = vadd.f32 0.0, %v6523
  %6525 = vmatmul.bf16.gmra.mxu0 %v4500
  %v6526 = vpop.f32.mrf.mxu0
  %v6527 = vadd.f32 0.0, %v6526
  %v6528 = vpop.f32.mrf.mxu0
  %v6529 = vadd.f32 0.0, %v6528
  %6530 = vmatmul.bf16.gmra.mxu0 %v4503
  %v6531 = vpop.f32.mrf.mxu0
  %v6532 = vadd.f32 0.0, %v6531
  %v6533 = vpop.f32.mrf.mxu0
  %v6534 = vadd.f32 0.0, %v6533
  %6535 = vmatmul.bf16.gmra.mxu0 %v4506
  %v6536 = vpop.f32.mrf.mxu0
  %v6537 = vadd.f32 0.0, %v6536
  %v6538 = vpop.f32.mrf.mxu0
  %v6539 = vadd.f32 0.0, %v6538
  %6540 = vmatmul.bf16.gmra.mxu0 %v4509
  %v6541 = vpop.f32.mrf.mxu0
  %v6542 = vadd.f32 0.0, %v6541
  %v6543 = vpop.f32.mrf.mxu0
  %v6544 = vadd.f32 0.0, %v6543
  %6545 = vmatmul.bf16.gmra.mxu0 %v4512
  %v6546 = vpop.f32.mrf.mxu0
  %v6547 = vadd.f32 0.0, %v6546
  %v6548 = vpop.f32.mrf.mxu0
  %v6549 = vadd.f32 0.0, %v6548
  %6550 = vmatmul.bf16.gmra.mxu0 %v4515
  %v6551 = vpop.f32.mrf.mxu0
  %v6552 = vadd.f32 0.0, %v6551
  %v6553 = vpop.f32.mrf.mxu0
  %v6554 = vadd.f32 0.0, %v6553
  %6555 = vmatmul.bf16.gmra.mxu0 %v4518
  %v6556 = vpop.f32.mrf.mxu0
  %v6557 = vadd.f32 0.0, %v6556
  %v6558 = vpop.f32.mrf.mxu0
  %v6559 = vadd.f32 0.0, %v6558
  %6560 = vmatmul.bf16.gmra.mxu0 %v4521
  %v6561 = vpop.f32.mrf.mxu0
  %v6562 = vadd.f32 0.0, %v6561
  %v6563 = vpop.f32.mrf.mxu0
  %v6564 = vadd.f32 0.0, %v6563
  %6565 = vmatmul.bf16.gmra.mxu0 %v4524
  %v6566 = vpop.f32.mrf.mxu0
  %v6567 = vadd.f32 0.0, %v6566
  %v6568 = vpop.f32.mrf.mxu0
  %v6569 = vadd.f32 0.0, %v6568
  %6570 = vmatmul.bf16.gmra.mxu0 %v4527
  %v6571 = vpop.f32.mrf.mxu0
  %v6572 = vadd.f32 0.0, %v6571
  %v6573 = vpop.f32.mrf.mxu0
  %v6574 = vadd.f32 0.0, %v6573
  %6575 = vmatmul.bf16.gmra.mxu0 %v4530
  %v6576 = vpop.f32.mrf.mxu0
  %v6577 = vadd.f32 0.0, %v6576
  %v6578 = vpop.f32.mrf.mxu0
  %v6579 = vadd.f32 0.0, %v6578
  %6580 = vmatmul.bf16.gmra.mxu0 %v4533
  %v6581 = vpop.f32.mrf.mxu0
  %v6582 = vadd.f32 0.0, %v6581
  %v6583 = vpop.f32.mrf.mxu0
  %v6584 = vadd.f32 0.0, %v6583
  %6585 = vmatmul.bf16.gmra.mxu0 %v4536
  %v6586 = vpop.f32.mrf.mxu0
  %v6587 = vadd.f32 0.0, %v6586
  %v6588 = vpop.f32.mrf.mxu0
  %v6589 = vadd.f32 0.0, %v6588
  %6590 = vmatmul.bf16.gmra.mxu0 %v4539
  %v6591 = vpop.f32.mrf.mxu0
  %v6592 = vadd.f32 0.0, %v6591
  %v6593 = vpop.f32.mrf.mxu0
  %v6594 = vadd.f32 0.0, %v6593
  %6595 = vmatmul.bf16.gmra.mxu0 %v4542
  %v6596 = vpop.f32.mrf.mxu0
  %v6597 = vadd.f32 0.0, %v6596
  %v6598 = vpop.f32.mrf.mxu0
  %v6599 = vadd.f32 0.0, %v6598
  %6600 = vmatmul.bf16.gmra.mxu0 %v4545
  %v6601 = vpop.f32.mrf.mxu0
  %v6602 = vadd.f32 0.0, %v6601
  %v6603 = vpop.f32.mrf.mxu0
  %v6604 = vadd.f32 0.0, %v6603
  %6605 = vmatmul.bf16.gmra.mxu0 %v4548
  %v6606 = vpop.f32.mrf.mxu0
  %v6607 = vadd.f32 0.0, %v6606
  %v6608 = vpop.f32.mrf.mxu0
  %v6609 = vadd.f32 0.0, %v6608
  %6610 = vmatmul.bf16.gmra.mxu0 %v4551
  %v6611 = vpop.f32.mrf.mxu0
  %v6612 = vadd.f32 0.0, %v6611
  %v6613 = vpop.f32.mrf.mxu0
  %v6614 = vadd.f32 0.0, %v6613
  %6615 = vmatmul.bf16.gmra.mxu0 %v4554
  %v6616 = vpop.f32.mrf.mxu0
  %v6617 = vadd.f32 0.0, %v6616
  %v6618 = vpop.f32.mrf.mxu0
  %v6619 = vadd.f32 0.0, %v6618
  %6620 = vmatmul.bf16.gmra.mxu0 %v4557
  %v6621 = vpop.f32.mrf.mxu0
  %v6622 = vadd.f32 0.0, %v6621
  %v6623 = vpop.f32.mrf.mxu0
  %v6624 = vadd.f32 0.0, %v6623
  %6625 = vmatmul.bf16.gmra.mxu0 %v4560
  %v6626 = vpop.f32.mrf.mxu0
  %v6627 = vadd.f32 0.0, %v6626
  %v6628 = vpop.f32.mrf.mxu0
  %v6629 = vadd.f32 0.0, %v6628
  %6630 = vmatmul.bf16.gmra.mxu0 %v4563
  %v6631 = vpop.f32.mrf.mxu0
  %v6632 = vadd.f32 0.0, %v6631
  %v6633 = vpop.f32.mrf.mxu0
  %v6634 = vadd.f32 0.0, %v6633
  %6635 = vmatmul.bf16.gmra.mxu0 %v4566
  %v6636 = vpop.f32.mrf.mxu0
  %v6637 = vadd.f32 0.0, %v6636
  %v6638 = vpop.f32.mrf.mxu0
  %v6639 = vadd.f32 0.0, %v6638
  %6640 = vmatmul.bf16.gmra.mxu0 %v4569
  %v6641 = vpop.f32.mrf.mxu0
  %v6642 = vadd.f32 0.0, %v6641
  %v6643 = vpop.f32.mrf.mxu0
  %v6644 = vadd.f32 0.0, %v6643
  %6645 = vmatmul.bf16.gmra.mxu0 %v4572
  %v6646 = vpop.f32.mrf.mxu0
  %v6647 = vadd.f32 0.0, %v6646
  %v6648 = vpop.f32.mrf.mxu0
  %v6649 = vadd.f32 0.0, %v6648
  %6650 = vmatmul.bf16.gmra.mxu0 %v4575
  %v6651 = vpop.f32.mrf.mxu0
  %v6652 = vadd.f32 0.0, %v6651
  %v6653 = vpop.f32.mrf.mxu0
  %v6654 = vadd.f32 0.0, %v6653
  %6655 = vmatmul.bf16.gmra.mxu0 %v4578
  %v6656 = vpop.f32.mrf.mxu0
  %v6657 = vadd.f32 0.0, %v6656
  %v6658 = vpop.f32.mrf.mxu0
  %v6659 = vadd.f32 0.0, %v6658
  %6660 = vmatmul.bf16.gmra.mxu0 %v4581
  %v6661 = vpop.f32.mrf.mxu0
  %v6662 = vadd.f32 0.0, %v6661
  %v6663 = vpop.f32.mrf.mxu0
  %v6664 = vadd.f32 0.0, %v6663
  %6665 = vmatmul.bf16.gmra.mxu0 %v4584
  %v6666 = vpop.f32.mrf.mxu0
  %v6667 = vadd.f32 0.0, %v6666
  %v6668 = vpop.f32.mrf.mxu0
  %v6669 = vadd.f32 0.0, %v6668
  %6670 = vmatmul.bf16.gmra.mxu0 %v4587
  %v6671 = vpop.f32.mrf.mxu0
  %v6672 = vadd.f32 0.0, %v6671
  %v6673 = vpop.f32.mrf.mxu0
  %v6674 = vadd.f32 0.0, %v6673
  %6675 = vmatmul.bf16.gmra.mxu0 %v4590
  %v6676 = vpop.f32.mrf.mxu0
  %v6677 = vadd.f32 0.0, %v6676
  %v6678 = vpop.f32.mrf.mxu0
  %v6679 = vadd.f32 0.0, %v6678
  %6680 = vmatmul.bf16.gmra.mxu0 %v4593
  %v6681 = vpop.f32.mrf.mxu0
  %v6682 = vadd.f32 0.0, %v6681
  %v6683 = vpop.f32.mrf.mxu0
  %v6684 = vadd.f32 0.0, %v6683
  %6685 = vmatmul.bf16.gmra.mxu0 %v4596
  %v6686 = vpop.f32.mrf.mxu0
  %v6687 = vadd.f32 0.0, %v6686
  %v6688 = vpop.f32.mrf.mxu0
  %v6689 = vadd.f32 0.0, %v6688
  %6690 = vmatmul.bf16.gmra.mxu0 %v4599
  %v6691 = vpop.f32.mrf.mxu0
  %v6692 = vadd.f32 0.0, %v6691
  %v6693 = vpop.f32.mrf.mxu0
  %v6694 = vadd.f32 0.0, %v6693
  %6695 = vmatmul.bf16.gmra.mxu0 %v4602
  %v6696 = vpop.f32.mrf.mxu0
  %v6697 = vadd.f32 0.0, %v6696
  %v6698 = vpop.f32.mrf.mxu0
  %v6699 = vadd.f32 0.0, %v6698
  %6700 = vmatmul.bf16.gmra.mxu0 %v4605
  %v6701 = vpop.f32.mrf.mxu0
  %v6702 = vadd.f32 0.0, %v6701
  %v6703 = vpop.f32.mrf.mxu0
  %v6704 = vadd.f32 0.0, %v6703
  %6705 = vmatmul.bf16.gmra.mxu0 %v4608
  %v6706 = vpop.f32.mrf.mxu0
  %v6707 = vadd.f32 0.0, %v6706
  %v6708 = vpop.f32.mrf.mxu0
  %v6709 = vadd.f32 0.0, %v6708
  %6710 = vmatmul.bf16.gmra.mxu0 %v4611
  %v6711 = vpop.f32.mrf.mxu0
  %v6712 = vadd.f32 0.0, %v6711
  %v6713 = vpop.f32.mrf.mxu0
  %v6714 = vadd.f32 0.0, %v6713
  %6715 = vmatmul.bf16.gmra.mxu0 %v4614
  %v6716 = vpop.f32.mrf.mxu0
  %v6717 = vadd.f32 0.0, %v6716
  %v6718 = vpop.f32.mrf.mxu0
  %v6719 = vadd.f32 0.0, %v6718
  %6720 = vmatmul.bf16.gmra.mxu0 %v4617
  %v6721 = vpop.f32.mrf.mxu0
  %v6722 = vadd.f32 0.0, %v6721
  %v6723 = vpop.f32.mrf.mxu0
  %v6724 = vadd.f32 0.0, %v6723
  %6725 = vmatmul.bf16.gmra.mxu0 %v4620
  %v6726 = vpop.f32.mrf.mxu0
  %v6727 = vadd.f32 0.0, %v6726
  %v6728 = vpop.f32.mrf.mxu0
  %v6729 = vadd.f32 0.0, %v6728
  %6730 = vmatmul.bf16.gmra.mxu0 %v4623
  %v6731 = vpop.f32.mrf.mxu0
  %v6732 = vadd.f32 0.0, %v6731
  %v6733 = vpop.f32.mrf.mxu0
  %v6734 = vadd.f32 0.0, %v6733
  %6735 = vmatmul.bf16.gmra.mxu0 %v4626
  %v6736 = vpop.f32.mrf.mxu0
  %v6737 = vadd.f32 0.0, %v6736
  %v6738 = vpop.f32.mrf.mxu0
  %v6739 = vadd.f32 0.0, %v6738
  %6740 = vmatmul.bf16.gmra.mxu0 %v4629
  %v6741 = vpop.f32.mrf.mxu0
  %v6742 = vadd.f32 0.0, %v6741
  %v6743 = vpop.f32.mrf.mxu0
  %v6744 = vadd.f32 0.0, %v6743
  %6745 = vmatmul.bf16.gmra.mxu0 %v4632
  %v6746 = vpop.f32.mrf.mxu0
  %v6747 = vadd.f32 0.0, %v6746
  %v6748 = vpop.f32.mrf.mxu0
  %v6749 = vadd.f32 0.0, %v6748
  %6750 = vmatmul.bf16.gmra.mxu0 %v4635
  %v6751 = vpop.f32.mrf.mxu0
  %v6752 = vadd.f32 0.0, %v6751
  %v6753 = vpop.f32.mrf.mxu0
  %v6754 = vadd.f32 0.0, %v6753
  %6755 = vmatmul.bf16.gmra.mxu0 %v4638
  %v6756 = vpop.f32.mrf.mxu0
  %v6757 = vadd.f32 0.0, %v6756
  %v6758 = vpop.f32.mrf.mxu0
  %v6759 = vadd.f32 0.0, %v6758
  %6760 = vmatmul.bf16.gmra.mxu0 %v4641
  %v6761 = vpop.f32.mrf.mxu0
  %v6762 = vadd.f32 0.0, %v6761
  %v6763 = vpop.f32.mrf.mxu0
  %v6764 = vadd.f32 0.0, %v6763
  %6765 = vmatmul.bf16.gmra.mxu0 %v4644
  %v6766 = vpop.f32.mrf.mxu0
  %v6767 = vadd.f32 0.0, %v6766
  %v6768 = vpop.f32.mrf.mxu0
  %v6769 = vadd.f32 0.0, %v6768
  %6770 = vmatmul.bf16.gmra.mxu0 %v4647
  %v6771 = vpop.f32.mrf.mxu0
  %v6772 = vadd.f32 0.0, %v6771
  %v6773 = vpop.f32.mrf.mxu0
  %v6774 = vadd.f32 0.0, %v6773
  %6775 = vmatmul.bf16.gmra.mxu0 %v4650
  %v6776 = vpop.f32.mrf.mxu0
  %v6777 = vadd.f32 0.0, %v6776
  %v6778 = vpop.f32.mrf.mxu0
  %v6779 = vadd.f32 0.0, %v6778
  %6780 = vmatmul.bf16.gmra.mxu0 %v4653
  %v6781 = vpop.f32.mrf.mxu0
  %v6782 = vadd.f32 0.0, %v6781
  %v6783 = vpop.f32.mrf.mxu0
  %v6784 = vadd.f32 0.0, %v6783
  %6785 = vmatmul.bf16.gmra.mxu0 %v4656
  %v6786 = vpop.f32.mrf.mxu0
  %v6787 = vadd.f32 0.0, %v6786
  %v6788 = vpop.f32.mrf.mxu0
  %v6789 = vadd.f32 0.0, %v6788
  %6790 = vmatmul.bf16.gmra.mxu0 %v4659
  %v6791 = vpop.f32.mrf.mxu0
  %v6792 = vadd.f32 0.0, %v6791
  %v6793 = vpop.f32.mrf.mxu0
  %v6794 = vadd.f32 0.0, %v6793
  %6795 = vmatmul.bf16.gmra.mxu0 %v4662
  %v6796 = vpop.f32.mrf.mxu0
  %v6797 = vadd.f32 0.0, %v6796
  %v6798 = vpop.f32.mrf.mxu0
  %v6799 = vadd.f32 0.0, %v6798
  %6800 = vmatmul.bf16.gmra.mxu0 %v4665
  %v6801 = vpop.f32.mrf.mxu0
  %v6802 = vadd.f32 0.0, %v6801
  %v6803 = vpop.f32.mrf.mxu0
  %v6804 = vadd.f32 0.0, %v6803
  %6805 = vmatmul.bf16.gmra.mxu0 %v4668
  %v6806 = vpop.f32.mrf.mxu0
  %v6807 = vadd.f32 0.0, %v6806
  %v6808 = vpop.f32.mrf.mxu0
  %v6809 = vadd.f32 0.0, %v6808
  %6810 = vmatmul.bf16.gmra.mxu0 %v4671
  %v6811 = vpop.f32.mrf.mxu0
  %v6812 = vadd.f32 0.0, %v6811
  %v6813 = vpop.f32.mrf.mxu0
  %v6814 = vadd.f32 0.0, %v6813
  %6815 = vmatmul.bf16.gmra.mxu0 %v4674
  %v6816 = vpop.f32.mrf.mxu0
  %v6817 = vadd.f32 0.0, %v6816
  %v6818 = vpop.f32.mrf.mxu0
  %v6819 = vadd.f32 0.0, %v6818
  %6820 = vmatmul.bf16.gmra.mxu0 %v4677
  %v6821 = vpop.f32.mrf.mxu0
  %v6822 = vadd.f32 0.0, %v6821
  %v6823 = vpop.f32.mrf.mxu0
  %v6824 = vadd.f32 0.0, %v6823
  %6825 = vmatmul.bf16.gmra.mxu0 %v4680
  %v6826 = vpop.f32.mrf.mxu0
  %v6827 = vadd.f32 0.0, %v6826
  %v6828 = vpop.f32.mrf.mxu0
  %v6829 = vadd.f32 0.0, %v6828
  %6830 = vmatmul.bf16.gmra.mxu0 %v4683
  %v6831 = vpop.f32.mrf.mxu0
  %v6832 = vadd.f32 0.0, %v6831
  %v6833 = vpop.f32.mrf.mxu0
  %v6834 = vadd.f32 0.0, %v6833
  %6835 = vmatmul.bf16.gmra.mxu0 %v4686
  %v6836 = vpop.f32.mrf.mxu0
  %v6837 = vadd.f32 0.0, %v6836
  %v6838 = vpop.f32.mrf.mxu0
  %v6839 = vadd.f32 0.0, %v6838
  %6840 = vmatmul.bf16.gmra.mxu0 %v4689
  %v6841 = vpop.f32.mrf.mxu0
  %v6842 = vadd.f32 0.0, %v6841
  %v6843 = vpop.f32.mrf.mxu0
  %v6844 = vadd.f32 0.0, %v6843
  %6845 = vmatmul.bf16.gmra.mxu0 %v4692
  %v6846 = vpop.f32.mrf.mxu0
  %v6847 = vadd.f32 0.0, %v6846
  %v6848 = vpop.f32.mrf.mxu0
  %v6849 = vadd.f32 0.0, %v6848
  %6850 = vmatmul.bf16.gmra.mxu0 %v4695
  %v6851 = vpop.f32.mrf.mxu0
  %v6852 = vadd.f32 0.0, %v6851
  %v6853 = vpop.f32.mrf.mxu0
  %v6854 = vadd.f32 0.0, %v6853
  %6855 = vmatmul.bf16.gmra.mxu0 %v4698
  %v6856 = vpop.f32.mrf.mxu0
  %v6857 = vadd.f32 0.0, %v6856
  %v6858 = vpop.f32.mrf.mxu0
  %v6859 = vadd.f32 0.0, %v6858
  %6860 = vmatmul.bf16.gmra.mxu0 %v4701
  %v6861 = vpop.f32.mrf.mxu0
  %v6862 = vadd.f32 0.0, %v6861
  %v6863 = vpop.f32.mrf.mxu0
  %v6864 = vadd.f32 0.0, %v6863
  %6865 = vmatmul.bf16.gmra.mxu0 %v4704
  %v6866 = vpop.f32.mrf.mxu0
  %v6867 = vadd.f32 0.0, %v6866
  %v6868 = vpop.f32.mrf.mxu0
  %v6869 = vadd.f32 0.0, %v6868
  %6870 = vmatmul.bf16.gmra.mxu0 %v4707
  %v6871 = vpop.f32.mrf.mxu0
  %v6872 = vadd.f32 0.0, %v6871
  %v6873 = vpop.f32.mrf.mxu0
  %v6874 = vadd.f32 0.0, %v6873
  %6875 = vmatmul.bf16.gmra.mxu0 %v4710
  %v6876 = vpop.f32.mrf.mxu0
  %v6877 = vadd.f32 0.0, %v6876
  %v6878 = vpop.f32.mrf.mxu0
  %v6879 = vadd.f32 0.0, %v6878
  %6880 = vmatmul.bf16.gmra.mxu0 %v4713
  %v6881 = vpop.f32.mrf.mxu0
  %v6882 = vadd.f32 0.0, %v6881
  %v6883 = vpop.f32.mrf.mxu0
  %v6884 = vadd.f32 0.0, %v6883
  %6885 = vmatmul.bf16.gmra.mxu0 %v4716
  %v6886 = vpop.f32.mrf.mxu0
  %v6887 = vadd.f32 0.0, %v6886
  %v6888 = vpop.f32.mrf.mxu0
  %v6889 = vadd.f32 0.0, %v6888
  %6890 = vmatmul.bf16.gmra.mxu0 %v4719
  %v6891 = vpop.f32.mrf.mxu0
  %v6892 = vadd.f32 0.0, %v6891
  %v6893 = vpop.f32.mrf.mxu0
  %v6894 = vadd.f32 0.0, %v6893
  %6895 = vmatmul.bf16.gmra.mxu0 %v4722
  %v6896 = vpop.f32.mrf.mxu0
  %v6897 = vadd.f32 0.0, %v6896
  %v6898 = vpop.f32.mrf.mxu0
  %v6899 = vadd.f32 0.0, %v6898
  %6900 = vmatmul.bf16.gmra.mxu0 %v4725
  %v6901 = vpop.f32.mrf.mxu0
  %v6902 = vadd.f32 0.0, %v6901
  %v6903 = vpop.f32.mrf.mxu0
  %v6904 = vadd.f32 0.0, %v6903
  %6905 = vmatmul.bf16.gmra.mxu0 %v4728
  %v6906 = vpop.f32.mrf.mxu0
  %v6907 = vadd.f32 0.0, %v6906
  %v6908 = vpop.f32.mrf.mxu0
  %v6909 = vadd.f32 0.0, %v6908
  %6910 = vmatmul.bf16.gmra.mxu0 %v4731
  %v6911 = vpop.f32.mrf.mxu0
  %v6912 = vadd.f32 0.0, %v6911
  %v6913 = vpop.f32.mrf.mxu0
  %v6914 = vadd.f32 0.0, %v6913
  %6915 = vmatmul.bf16.gmra.mxu0 %v4734
  %v6916 = vpop.f32.mrf.mxu0
  %v6917 = vadd.f32 0.0, %v6916
  %v6918 = vpop.f32.mrf.mxu0
  %v6919 = vadd.f32 0.0, %v6918
  %6920 = vmatmul.bf16.gmra.mxu0 %v4737
  %v6921 = vpop.f32.mrf.mxu0
  %v6922 = vadd.f32 0.0, %v6921
  %v6923 = vpop.f32.mrf.mxu0
  %v6924 = vadd.f32 0.0, %v6923
  %6925 = vmatmul.bf16.gmra.mxu0 %v4740
  %v6926 = vpop.f32.mrf.mxu0
  %v6927 = vadd.f32 0.0, %v6926
  %v6928 = vpop.f32.mrf.mxu0
  %v6929 = vadd.f32 0.0, %v6928
  %6930 = vmatmul.bf16.gmra.mxu0 %v4743
  %v6931 = vpop.f32.mrf.mxu0
  %v6932 = vadd.f32 0.0, %v6931
  %v6933 = vpop.f32.mrf.mxu0
  %v6934 = vadd.f32 0.0, %v6933
  %6935 = vmatmul.bf16.gmra.mxu0 %v4746
  %v6936 = vpop.f32.mrf.mxu0
  %v6937 = vadd.f32 0.0, %v6936
  %v6938 = vpop.f32.mrf.mxu0
  %v6939 = vadd.f32 0.0, %v6938
  %6940 = vmatmul.bf16.gmra.mxu0 %v4749
  %v6941 = vpop.f32.mrf.mxu0
  %v6942 = vadd.f32 0.0, %v6941
  %v6943 = vpop.f32.mrf.mxu0
  %v6944 = vadd.f32 0.0, %v6943
  %6945 = vmatmul.bf16.gmra.mxu0 %v4752
  %v6946 = vpop.f32.mrf.mxu0
  %v6947 = vadd.f32 0.0, %v6946
  %v6948 = vpop.f32.mrf.mxu0
  %v6949 = vadd.f32 0.0, %v6948
  %6950 = vmatmul.bf16.gmra.mxu0 %v4755
  %v6951 = vpop.f32.mrf.mxu0
  %v6952 = vadd.f32 0.0, %v6951
  %v6953 = vpop.f32.mrf.mxu0
  %v6954 = vadd.f32 0.0, %v6953
  %6955 = vmatmul.bf16.gmra.mxu0 %v4758
  %v6956 = vpop.f32.mrf.mxu0
  %v6957 = vadd.f32 0.0, %v6956
  %v6958 = vpop.f32.mrf.mxu0
  %v6959 = vadd.f32 0.0, %v6958
  %6960 = vmatmul.bf16.gmra.mxu0 %v4761
  %v6961 = vpop.f32.mrf.mxu0
  %v6962 = vadd.f32 0.0, %v6961
  %v6963 = vpop.f32.mrf.mxu0
  %v6964 = vadd.f32 0.0, %v6963
  %6965 = vmatmul.bf16.gmra.mxu0 %v4764
  %v6966 = vpop.f32.mrf.mxu0
  %v6967 = vadd.f32 0.0, %v6966
  %v6968 = vpop.f32.mrf.mxu0
  %v6969 = vadd.f32 0.0, %v6968
  %6970 = vmatmul.bf16.gmra.mxu0 %v4767
  %v6971 = vpop.f32.mrf.mxu0
  %v6972 = vadd.f32 0.0, %v6971
  %v6973 = vpop.f32.mrf.mxu0
  %v6974 = vadd.f32 0.0, %v6973
  %6975 = vmatmul.bf16.gmra.mxu0 %v4770
  %v6976 = vpop.f32.mrf.mxu0
  %v6977 = vadd.f32 0.0, %v6976
  %v6978 = vpop.f32.mrf.mxu0
  %v6979 = vadd.f32 0.0, %v6978
  %6980 = vmatmul.bf16.gmra.mxu0 %v4773
  %v6981 = vpop.f32.mrf.mxu0
  %v6982 = vadd.f32 0.0, %v6981
  %v6983 = vpop.f32.mrf.mxu0
  %v6984 = vadd.f32 0.0, %v6983
  %6985 = vmatmul.bf16.gmra.mxu0 %v4776
  %v6986 = vpop.f32.mrf.mxu0
  %v6987 = vadd.f32 0.0, %v6986
  %v6988 = vpop.f32.mrf.mxu0
  %v6989 = vadd.f32 0.0, %v6988
  %6990 = vmatmul.bf16.gmra.mxu0 %v4779
  %v6991 = vpop.f32.mrf.mxu0
  %v6992 = vadd.f32 0.0, %v6991
  %v6993 = vpop.f32.mrf.mxu0
  %v6994 = vadd.f32 0.0, %v6993
  %6995 = vmatmul.bf16.gmra.mxu0 %v4782
  %v6996 = vpop.f32.mrf.mxu0
  %v6997 = vadd.f32 0.0, %v6996
  %v6998 = vpop.f32.mrf.mxu0
  %v6999 = vadd.f32 0.0, %v6998
  %7000 = vmatmul.bf16.gmra.mxu0 %v4785
  %v7001 = vpop.f32.mrf.mxu0
  %v7002 = vadd.f32 0.0, %v7001
  %v7003 = vpop.f32.mrf.mxu0
  %v7004 = vadd.f32 0.0, %v7003
  %7005 = vmatmul.bf16.gmra.mxu0 %v4788
  %v7006 = vpop.f32.mrf.mxu0
  %v7007 = vadd.f32 0.0, %v7006
  %v7008 = vpop.f32.mrf.mxu0
  %v7009 = vadd.f32 0.0, %v7008
  %7010 = vmatmul.bf16.gmra.mxu0 %v4791
  %v7011 = vpop.f32.mrf.mxu0
  %v7012 = vadd.f32 0.0, %v7011
  %v7013 = vpop.f32.mrf.mxu0
  %v7014 = vadd.f32 0.0, %v7013
  %7015 = vmatmul.bf16.gmra.mxu0 %v4794
  %v7016 = vpop.f32.mrf.mxu0
  %v7017 = vadd.f32 0.0, %v7016
  %v7018 = vpop.f32.mrf.mxu0
  %v7019 = vadd.f32 0.0, %v7018
  %7020 = vmatmul.bf16.gmra.mxu0 %v4797
  %v7021 = vpop.f32.mrf.mxu0
  %v7022 = vadd.f32 0.0, %v7021
  %v7023 = vpop.f32.mrf.mxu0
  %v7024 = vadd.f32 0.0, %v7023
  %7025 = vmatmul.bf16.gmra.mxu0 %v4800
  %v7026 = vpop.f32.mrf.mxu0
  %v7027 = vadd.f32 0.0, %v7026
  %v7028 = vpop.f32.mrf.mxu0
  %v7029 = vadd.f32 0.0, %v7028
  %7030 = vmatmul.bf16.gmra.mxu0 %v4803
  %v7031 = vpop.f32.mrf.mxu0
  %v7032 = vadd.f32 0.0, %v7031
  %v7033 = vpop.f32.mrf.mxu0
  %v7034 = vadd.f32 0.0, %v7033
  %7035 = vmatmul.bf16.gmra.mxu0 %v4806
  %v7036 = vpop.f32.mrf.mxu0
  %v7037 = vadd.f32 0.0, %v7036
  %v7038 = vpop.f32.mrf.mxu0
  %v7039 = vadd.f32 0.0, %v7038
  %7040 = vmatmul.bf16.gmra.mxu0 %v4809
  %v7041 = vpop.f32.mrf.mxu0
  %v7042 = vadd.f32 0.0, %v7041
  %v7043 = vpop.f32.mrf.mxu0
  %v7044 = vadd.f32 0.0, %v7043
  %7045 = vmatmul.bf16.gmra.mxu0 %v4812
  %v7046 = vpop.f32.mrf.mxu0
  %v7047 = vadd.f32 0.0, %v7046
  %v7048 = vpop.f32.mrf.mxu0
  %v7049 = vadd.f32 0.0, %v7048
  %7050 = vmatmul.bf16.gmra.mxu0 %v4815
  %v7051 = vpop.f32.mrf.mxu0
  %v7052 = vadd.f32 0.0, %v7051
  %v7053 = vpop.f32.mrf.mxu0
  %v7054 = vadd.f32 0.0, %v7053
  %7055 = vmatmul.bf16.gmra.mxu0 %v4818
  %v7056 = vpop.f32.mrf.mxu0
  %v7057 = vadd.f32 0.0, %v7056
  %v7058 = vpop.f32.mrf.mxu0
  %v7059 = vadd.f32 0.0, %v7058
  %7060 = vmatmul.bf16.gmra.mxu0 %v4821
  %v7061 = vpop.f32.mrf.mxu0
  %v7062 = vadd.f32 0.0, %v7061
  %v7063 = vpop.f32.mrf.mxu0
  %v7064 = vadd.f32 0.0, %v7063
  %7065 = vmatmul.bf16.gmra.mxu0 %v4824
  %v7066 = vpop.f32.mrf.mxu0
  %v7067 = vadd.f32 0.0, %v7066
  %v7068 = vpop.f32.mrf.mxu0
  %v7069 = vadd.f32 0.0, %v7068
  %7070 = vmatmul.bf16.gmra.mxu0 %v4827
  %v7071 = vpop.f32.mrf.mxu0
  %v7072 = vadd.f32 0.0, %v7071
  %v7073 = vpop.f32.mrf.mxu0
  %v7074 = vadd.f32 0.0, %v7073
  %7075 = vmatmul.bf16.gmra.mxu0 %v4830
  %v7076 = vpop.f32.mrf.mxu0
  %v7077 = vadd.f32 0.0, %v7076
  %v7078 = vpop.f32.mrf.mxu0
  %v7079 = vadd.f32 0.0, %v7078
  %7080 = vmatmul.bf16.gmra.mxu0 %v4833
  %v7081 = vpop.f32.mrf.mxu0
  %v7082 = vadd.f32 0.0, %v7081
  %v7083 = vpop.f32.mrf.mxu0
  %v7084 = vadd.f32 0.0, %v7083
  %7085 = vmatmul.bf16.gmra.mxu0 %v4836
  %v7086 = vpop.f32.mrf.mxu0
  %v7087 = vadd.f32 0.0, %v7086
  %v7088 = vpop.f32.mrf.mxu0
  %v7089 = vadd.f32 0.0, %v7088
  %7090 = vmatmul.bf16.gmra.mxu0 %v4839
  %v7091 = vpop.f32.mrf.mxu0
  %v7092 = vadd.f32 0.0, %v7091
  %v7093 = vpop.f32.mrf.mxu0
  %v7094 = vadd.f32 0.0, %v7093
  %7095 = vmatmul.bf16.gmra.mxu0 %v4842
  %v7096 = vpop.f32.mrf.mxu0
  %v7097 = vadd.f32 0.0, %v7096
  %v7098 = vpop.f32.mrf.mxu0
  %v7099 = vadd.f32 0.0, %v7098
  %7100 = vmatmul.bf16.gmra.mxu0 %v4845
  %v7101 = vpop.f32.mrf.mxu0
  %v7102 = vadd.f32 0.0, %v7101
  %v7103 = vpop.f32.mrf.mxu0
  %v7104 = vadd.f32 0.0, %v7103
  %7105 = vmatmul.bf16.gmra.mxu0 %v4848
  %v7106 = vpop.f32.mrf.mxu0
  %v7107 = vadd.f32 0.0, %v7106
  %v7108 = vpop.f32.mrf.mxu0
  %v7109 = vadd.f32 0.0, %v7108
  %7110 = vmatmul.bf16.gmra.mxu0 %v4851
  %v7111 = vpop.f32.mrf.mxu0
  %v7112 = vadd.f32 0.0, %v7111
  %v7113 = vpop.f32.mrf.mxu0
  %v7114 = vadd.f32 0.0, %v7113
  %7115 = vmatmul.bf16.gmra.mxu0 %v4854
  %v7116 = vpop.f32.mrf.mxu0
  %v7117 = vadd.f32 0.0, %v7116
  %v7118 = vpop.f32.mrf.mxu0
  %v7119 = vadd.f32 0.0, %v7118
  %7120 = vmatmul.bf16.gmra.mxu0 %v4857
  %v7121 = vpop.f32.mrf.mxu0
  %v7122 = vadd.f32 0.0, %v7121
  %v7123 = vpop.f32.mrf.mxu0
  %v7124 = vadd.f32 0.0, %v7123
  %7125 = vmatmul.bf16.gmra.mxu0 %v4860
  %v7126 = vpop.f32.mrf.mxu0
  %v7127 = vadd.f32 0.0, %v7126
  %v7128 = vpop.f32.mrf.mxu0
  %v7129 = vadd.f32 0.0, %v7128
  %7130 = vmatmul.bf16.gmra.mxu0 %v4863
  %v7131 = vpop.f32.mrf.mxu0
  %v7132 = vadd.f32 0.0, %v7131
  %v7133 = vpop.f32.mrf.mxu0
  %v7134 = vadd.f32 0.0, %v7133
  %7135 = vmatmul.bf16.gmra.mxu0 %v4866
  %v7136 = vpop.f32.mrf.mxu0
  %v7137 = vadd.f32 0.0, %v7136
  %v7138 = vpop.f32.mrf.mxu0
  %v7139 = vadd.f32 0.0, %v7138
  %7140 = vmatmul.bf16.gmra.mxu0 %v4869
  %v7141 = vpop.f32.mrf.mxu0
  %v7142 = vadd.f32 0.0, %v7141
  %v7143 = vpop.f32.mrf.mxu0
  %v7144 = vadd.f32 0.0, %v7143
  %7145 = vmatmul.bf16.gmra.mxu0 %v4872
  %v7146 = vpop.f32.mrf.mxu0
  %v7147 = vadd.f32 0.0, %v7146
  %v7148 = vpop.f32.mrf.mxu0
  %v7149 = vadd.f32 0.0, %v7148
  %7150 = vmatmul.bf16.gmra.mxu0 %v4875
  %v7151 = vpop.f32.mrf.mxu0
  %v7152 = vadd.f32 0.0, %v7151
  %v7153 = vpop.f32.mrf.mxu0
  %v7154 = vadd.f32 0.0, %v7153
  %7155 = vmatmul.bf16.gmra.mxu0 %v4878
  %v7156 = vpop.f32.mrf.mxu0
  %v7157 = vadd.f32 0.0, %v7156
  %v7158 = vpop.f32.mrf.mxu0
  %v7159 = vadd.f32 0.0, %v7158
  %7160 = vmatmul.bf16.gmra.mxu0 %v4881
  %v7161 = vpop.f32.mrf.mxu0
  %v7162 = vadd.f32 0.0, %v7161
  %v7163 = vpop.f32.mrf.mxu0
  %v7164 = vadd.f32 0.0, %v7163
  %7165 = vmatmul.bf16.gmra.mxu0 %v4884
  %v7166 = vpop.f32.mrf.mxu0
  %v7167 = vadd.f32 0.0, %v7166
  %v7168 = vpop.f32.mrf.mxu0
  %v7169 = vadd.f32 0.0, %v7168
  %7170 = vmatmul.bf16.gmra.mxu0 %v4887
  %v7171 = vpop.f32.mrf.mxu0
  %v7172 = vadd.f32 0.0, %v7171
  %v7173 = vpop.f32.mrf.mxu0
  %v7174 = vadd.f32 0.0, %v7173
  %7175 = vmatmul.bf16.gmra.mxu0 %v4890
  %v7176 = vpop.f32.mrf.mxu0
  %v7177 = vadd.f32 0.0, %v7176
  %v7178 = vpop.f32.mrf.mxu0
  %v7179 = vadd.f32 0.0, %v7178
  %7180 = vmatmul.bf16.gmra.mxu0 %v4893
  %v7181 = vpop.f32.mrf.mxu0
  %v7182 = vadd.f32 0.0, %v7181
  %v7183 = vpop.f32.mrf.mxu0
  %v7184 = vadd.f32 0.0, %v7183
  %7185 = vmatmul.bf16.gmra.mxu0 %v4896
  %v7186 = vpop.f32.mrf.mxu0
  %v7187 = vadd.f32 0.0, %v7186
  %v7188 = vpop.f32.mrf.mxu0
  %v7189 = vadd.f32 0.0, %v7188
  %7190 = vmatmul.bf16.gmra.mxu0 %v4899
  %v7191 = vpop.f32.mrf.mxu0
  %v7192 = vadd.f32 0.0, %v7191
  %v7193 = vpop.f32.mrf.mxu0
  %v7194 = vadd.f32 0.0, %v7193
  %7195 = vmatmul.bf16.gmra.mxu0 %v4902
  %v7196 = vpop.f32.mrf.mxu0
  %v7197 = vadd.f32 0.0, %v7196
  %v7198 = vpop.f32.mrf.mxu0
  %v7199 = vadd.f32 0.0, %v7198
  %7200 = vmatmul.bf16.gmra.mxu0 %v4905
  %v7201 = vpop.f32.mrf.mxu0
  %v7202 = vadd.f32 0.0, %v7201
  %v7203 = vpop.f32.mrf.mxu0
  %v7204 = vadd.f32 0.0, %v7203
  %7205 = vmatmul.bf16.gmra.mxu0 %v4908
  %v7206 = vpop.f32.mrf.mxu0
  %v7207 = vadd.f32 0.0, %v7206
  %v7208 = vpop.f32.mrf.mxu0
  %v7209 = vadd.f32 0.0, %v7208
  %7210 = vmatmul.bf16.gmra.mxu0 %v4911
  %v7211 = vpop.f32.mrf.mxu0
  %v7212 = vadd.f32 0.0, %v7211
  %v7213 = vpop.f32.mrf.mxu0
  %v7214 = vadd.f32 0.0, %v7213
  %7215 = vmatmul.bf16.gmra.mxu0 %v4914
  %v7216 = vpop.f32.mrf.mxu0
  %v7217 = vadd.f32 0.0, %v7216
  %v7218 = vpop.f32.mrf.mxu0
  %v7219 = vadd.f32 0.0, %v7218
  %7220 = vmatmul.bf16.gmra.mxu0 %v4917
  %v7221 = vpop.f32.mrf.mxu0
  %v7222 = vadd.f32 0.0, %v7221
  %v7223 = vpop.f32.mrf.mxu0
  %v7224 = vadd.f32 0.0, %v7223
  %7225 = vmatmul.bf16.gmra.mxu0 %v4920
  %v7226 = vpop.f32.mrf.mxu0
  %v7227 = vadd.f32 0.0, %v7226
  %v7228 = vpop.f32.mrf.mxu0
  %v7229 = vadd.f32 0.0, %v7228
  %7230 = vmatmul.bf16.gmra.mxu0 %v4923
  %v7231 = vpop.f32.mrf.mxu0
  %v7232 = vadd.f32 0.0, %v7231
  %v7233 = vpop.f32.mrf.mxu0
  %v7234 = vadd.f32 0.0, %v7233
  %7235 = vmatmul.bf16.gmra.mxu0 %v4926
  %v7236 = vpop.f32.mrf.mxu0
  %v7237 = vadd.f32 0.0, %v7236
  %v7238 = vpop.f32.mrf.mxu0
  %v7239 = vadd.f32 0.0, %v7238
  %7240 = vmatmul.bf16.gmra.mxu0 %v4929
  %v7241 = vpop.f32.mrf.mxu0
  %v7242 = vadd.f32 0.0, %v7241
  %v7243 = vpop.f32.mrf.mxu0
  %v7244 = vadd.f32 0.0, %v7243
  %7245 = vmatmul.bf16.gmra.mxu0 %v4932
  %v7246 = vpop.f32.mrf.mxu0
  %v7247 = vadd.f32 0.0, %v7246
  %v7248 = vpop.f32.mrf.mxu0
  %v7249 = vadd.f32 0.0, %v7248
  %7250 = vmatmul.bf16.gmra.mxu0 %v4935
  %v7251 = vpop.f32.mrf.mxu0
  %v7252 = vadd.f32 0.0, %v7251
  %v7253 = vpop.f32.mrf.mxu0
  %v7254 = vadd.f32 0.0, %v7253
  %7255 = vmatmul.bf16.gmra.mxu0 %v4938
  %v7256 = vpop.f32.mrf.mxu0
  %v7257 = vadd.f32 0.0, %v7256
  %v7258 = vpop.f32.mrf.mxu0
  %v7259 = vadd.f32 0.0, %v7258
  %7260 = vmatmul.bf16.gmra.mxu0 %v4941
  %v7261 = vpop.f32.mrf.mxu0
  %v7262 = vadd.f32 0.0, %v7261
  %v7263 = vpop.f32.mrf.mxu0
  %v7264 = vadd.f32 0.0, %v7263
  %7265 = vmatmul.bf16.gmra.mxu0 %v4944
  %v7266 = vpop.f32.mrf.mxu0
  %v7267 = vadd.f32 0.0, %v7266
  %v7268 = vpop.f32.mrf.mxu0
  %v7269 = vadd.f32 0.0, %v7268
  %7270 = vmatmul.bf16.gmra.mxu0 %v4947
  %v7271 = vpop.f32.mrf.mxu0
  %v7272 = vadd.f32 0.0, %v7271
  %v7273 = vpop.f32.mrf.mxu0
  %v7274 = vadd.f32 0.0, %v7273
  %7275 = vmatmul.bf16.gmra.mxu0 %v4950
  %v7276 = vpop.f32.mrf.mxu0
  %v7277 = vadd.f32 0.0, %v7276
  %v7278 = vpop.f32.mrf.mxu0
  %v7279 = vadd.f32 0.0, %v7278
  %7280 = vmatmul.bf16.gmra.mxu0 %v4953
  %v7281 = vpop.f32.mrf.mxu0
  %v7282 = vadd.f32 0.0, %v7281
  %v7283 = vpop.f32.mrf.mxu0
  %v7284 = vadd.f32 0.0, %v7283
  %7285 = vmatmul.bf16.gmra.mxu0 %v4956
  %v7286 = vpop.f32.mrf.mxu0
  %v7287 = vadd.f32 0.0, %v7286
  %v7288 = vpop.f32.mrf.mxu0
  %v7289 = vadd.f32 0.0, %v7288
  %7290 = vmatmul.bf16.gmra.mxu0 %v4959
  %v7291 = vpop.f32.mrf.mxu0
  %v7292 = vadd.f32 0.0, %v7291
  %v7293 = vpop.f32.mrf.mxu0
  %v7294 = vadd.f32 0.0, %v7293
  %7295 = vmatmul.bf16.gmra.mxu0 %v4962
  %v7296 = vpop.f32.mrf.mxu0
  %v7297 = vadd.f32 0.0, %v7296
  %v7298 = vpop.f32.mrf.mxu0
  %v7299 = vadd.f32 0.0, %v7298
  %7300 = vmatmul.bf16.gmra.mxu0 %v4965
  %v7301 = vpop.f32.mrf.mxu0
  %v7302 = vadd.f32 0.0, %v7301
  %v7303 = vpop.f32.mrf.mxu0
  %v7304 = vadd.f32 0.0, %v7303
  %7305 = vmatmul.bf16.gmra.mxu0 %v4968
  %v7306 = vpop.f32.mrf.mxu0
  %v7307 = vadd.f32 0.0, %v7306
  %v7308 = vpop.f32.mrf.mxu0
  %v7309 = vadd.f32 0.0, %v7308
  %7310 = vmatmul.bf16.gmra.mxu0 %v4971
  %v7311 = vpop.f32.mrf.mxu0
  %v7312 = vadd.f32 0.0, %v7311
  %v7313 = vpop.f32.mrf.mxu0
  %v7314 = vadd.f32 0.0, %v7313
  %7315 = vmatmul.bf16.gmra.mxu0 %v4974
  %v7316 = vpop.f32.mrf.mxu0
  %v7317 = vadd.f32 0.0, %v7316
  %v7318 = vpop.f32.mrf.mxu0
  %v7319 = vadd.f32 0.0, %v7318
  %7320 = vmatmul.bf16.gmra.mxu0 %v4977
  %v7321 = vpop.f32.mrf.mxu0
  %v7322 = vadd.f32 0.0, %v7321
  %v7323 = vpop.f32.mrf.mxu0
  %v7324 = vadd.f32 0.0, %v7323
  %7325 = vmatmul.bf16.gmra.mxu0 %v4980
  %v7326 = vpop.f32.mrf.mxu0
  %v7327 = vadd.f32 0.0, %v7326
  %v7328 = vpop.f32.mrf.mxu0
  %v7329 = vadd.f32 0.0, %v7328
  %7330 = vmatmul.bf16.gmra.mxu0 %v4983
  %v7331 = vpop.f32.mrf.mxu0
  %v7332 = vadd.f32 0.0, %v7331
  %v7333 = vpop.f32.mrf.mxu0
  %v7334 = vadd.f32 0.0, %v7333
  %7335 = vmatmul.bf16.gmra.mxu0 %v4986
  %v7336 = vpop.f32.mrf.mxu0
  %v7337 = vadd.f32 0.0, %v7336
  %v7338 = vpop.f32.mrf.mxu0
  %v7339 = vadd.f32 0.0, %v7338
  %7340 = vmatmul.bf16.gmra.mxu0 %v4989
  %v7341 = vpop.f32.mrf.mxu0
  %v7342 = vadd.f32 0.0, %v7341
  %v7343 = vpop.f32.mrf.mxu0
  %v7344 = vadd.f32 0.0, %v7343
  %7345 = vmatmul.bf16.gmra.mxu0 %v4992
  %v7346 = vpop.f32.mrf.mxu0
  %v7347 = vadd.f32 0.0, %v7346
  %v7348 = vpop.f32.mrf.mxu0
  %v7349 = vadd.f32 0.0, %v7348
  %7350 = vmatmul.bf16.gmra.mxu0 %v4995
  %v7351 = vpop.f32.mrf.mxu0
  %v7352 = vadd.f32 0.0, %v7351
  %v7353 = vpop.f32.mrf.mxu0
  %v7354 = vadd.f32 0.0, %v7353
  %7355 = vmatmul.bf16.gmra.mxu0 %v4998
  %v7356 = vpop.f32.mrf.mxu0
  %v7357 = vadd.f32 0.0, %v7356
  %v7358 = vpop.f32.mrf.mxu0
  %v7359 = vadd.f32 0.0, %v7358
  %7360 = vmatmul.bf16.gmra.mxu0 %v5001
  %v7361 = vpop.f32.mrf.mxu0
  %v7362 = vadd.f32 0.0, %v7361
  %v7363 = vpop.f32.mrf.mxu0
  %v7364 = vadd.f32 0.0, %v7363
  %7365 = vmatmul.bf16.gmra.mxu0 %v5004
  %v7366 = vpop.f32.mrf.mxu0
  %v7367 = vadd.f32 0.0, %v7366
  %v7368 = vpop.f32.mrf.mxu0
  %v7369 = vadd.f32 0.0, %v7368
  %7370 = vmatmul.bf16.gmra.mxu0 %v5007
  %v7371 = vpop.f32.mrf.mxu0
  %v7372 = vadd.f32 0.0, %v7371
  %v7373 = vpop.f32.mrf.mxu0
  %v7374 = vadd.f32 0.0, %v7373
  %7375 = vmatmul.bf16.gmra.mxu0 %v5010
  %v7376 = vpop.f32.mrf.mxu0
  %v7377 = vadd.f32 0.0, %v7376
  %v7378 = vpop.f32.mrf.mxu0
  %v7379 = vadd.f32 0.0, %v7378
  %7380 = vmatmul.bf16.gmra.mxu0 %v5013
  %v7381 = vpop.f32.mrf.mxu0
  %v7382 = vadd.f32 0.0, %v7381
  %v7383 = vpop.f32.mrf.mxu0
  %v7384 = vadd.f32 0.0, %v7383
  %7385 = vmatmul.bf16.gmra.mxu0 %v5016
  %v7386 = vpop.f32.mrf.mxu0
  %v7387 = vadd.f32 0.0, %v7386
  %v7388 = vpop.f32.mrf.mxu0
  %v7389 = vadd.f32 0.0, %v7388
  %7390 = vmatmul.bf16.gmra.mxu0 %v5019
  %v7391 = vpop.f32.mrf.mxu0
  %v7392 = vadd.f32 0.0, %v7391
  %v7393 = vpop.f32.mrf.mxu0
  %v7394 = vadd.f32 0.0, %v7393
  %7395 = vmatmul.bf16.gmra.mxu0 %v5022
  %v7396 = vpop.f32.mrf.mxu0
  %v7397 = vadd.f32 0.0, %v7396
  %v7398 = vpop.f32.mrf.mxu0
  %v7399 = vadd.f32 0.0, %v7398
  %7400 = vmatmul.bf16.gmra.mxu0 %v5025
  %v7401 = vpop.f32.mrf.mxu0
  %v7402 = vadd.f32 0.0, %v7401
  %v7403 = vpop.f32.mrf.mxu0
  %v7404 = vadd.f32 0.0, %v7403
  %7405 = vmatmul.bf16.gmra.mxu0 %v5028
  %v7406 = vpop.f32.mrf.mxu0
  %v7407 = vadd.f32 0.0, %v7406
  %v7408 = vpop.f32.mrf.mxu0
  %v7409 = vadd.f32 0.0, %v7408
  %7410 = vmatmul.bf16.gmra.mxu0 %v5031
  %v7411 = vpop.f32.mrf.mxu0
  %v7412 = vadd.f32 0.0, %v7411
  %v7413 = vpop.f32.mrf.mxu0
  %v7414 = vadd.f32 0.0, %v7413
  %7415 = vmatmul.bf16.gmra.mxu0 %v5034
  %v7416 = vpop.f32.mrf.mxu0
  %v7417 = vadd.f32 0.0, %v7416
  %v7418 = vpop.f32.mrf.mxu0
  %v7419 = vadd.f32 0.0, %v7418
  %7420 = vmatmul.bf16.gmra.mxu0 %v5037
  %v7421 = vpop.f32.mrf.mxu0
  %v7422 = vadd.f32 0.0, %v7421
  %v7423 = vpop.f32.mrf.mxu0
  %v7424 = vadd.f32 0.0, %v7423
  %7425 = vmatmul.bf16.gmra.mxu0 %v5040
  %v7426 = vpop.f32.mrf.mxu0
  %v7427 = vadd.f32 0.0, %v7426
  %v7428 = vpop.f32.mrf.mxu0
  %v7429 = vadd.f32 0.0, %v7428
  %7430 = vmatmul.bf16.gmra.mxu0 %v5043
  %v7431 = vpop.f32.mrf.mxu0
  %v7432 = vadd.f32 0.0, %v7431
  %v7433 = vpop.f32.mrf.mxu0
  %v7434 = vadd.f32 0.0, %v7433
  %7435 = vmatmul.bf16.gmra.mxu0 %v5046
  %v7436 = vpop.f32.mrf.mxu0
  %v7437 = vadd.f32 0.0, %v7436
  %v7438 = vpop.f32.mrf.mxu0
  %v7439 = vadd.f32 0.0, %v7438
  %7440 = vmatmul.bf16.gmra.mxu0 %v5049
  %v7441 = vpop.f32.mrf.mxu0
  %v7442 = vadd.f32 0.0, %v7441
  %v7443 = vpop.f32.mrf.mxu0
  %v7444 = vadd.f32 0.0, %v7443
  %7445 = vmatmul.bf16.gmra.mxu0 %v5052
  %v7446 = vpop.f32.mrf.mxu0
  %v7447 = vadd.f32 0.0, %v7446
  %v7448 = vpop.f32.mrf.mxu0
  %v7449 = vadd.f32 0.0, %v7448
  %7450 = vmatmul.bf16.gmra.mxu0 %v5055
  %v7451 = vpop.f32.mrf.mxu0
  %v7452 = vadd.f32 0.0, %v7451
  %v7453 = vpop.f32.mrf.mxu0
  %v7454 = vadd.f32 0.0, %v7453
  %7455 = vmatmul.bf16.gmra.mxu0 %v5058
  %v7456 = vpop.f32.mrf.mxu0
  %v7457 = vadd.f32 0.0, %v7456
  %v7458 = vpop.f32.mrf.mxu0
  %v7459 = vadd.f32 0.0, %v7458
  %7460 = vmatmul.bf16.gmra.mxu0 %v5061
  %v7461 = vpop.f32.mrf.mxu0
  %v7462 = vadd.f32 0.0, %v7461
  %v7463 = vpop.f32.mrf.mxu0
  %v7464 = vadd.f32 0.0, %v7463
  %7465 = vmatmul.bf16.gmra.mxu0 %v5064
  %v7466 = vpop.f32.mrf.mxu0
  %v7467 = vadd.f32 0.0, %v7466
  %v7468 = vpop.f32.mrf.mxu0
  %v7469 = vadd.f32 0.0, %v7468
  %7470 = vmatmul.bf16.gmra.mxu0 %v5067
  %v7471 = vpop.f32.mrf.mxu0
  %v7472 = vadd.f32 0.0, %v7471
  %v7473 = vpop.f32.mrf.mxu0
  %v7474 = vadd.f32 0.0, %v7473
  %7475 = vmatmul.bf16.gmra.mxu0 %v5070
  %v7476 = vpop.f32.mrf.mxu0
  %v7477 = vadd.f32 0.0, %v7476
  %v7478 = vpop.f32.mrf.mxu0
  %v7479 = vadd.f32 0.0, %v7478
  %7480 = vmatmul.bf16.gmra.mxu0 %v5073
  %v7481 = vpop.f32.mrf.mxu0
  %v7482 = vadd.f32 0.0, %v7481
  %v7483 = vpop.f32.mrf.mxu0
  %v7484 = vadd.f32 0.0, %v7483
  %7485 = vmatmul.bf16.gmra.mxu0 %v5076
  %v7486 = vpop.f32.mrf.mxu0
  %v7487 = vadd.f32 0.0, %v7486
  %v7488 = vpop.f32.mrf.mxu0
  %v7489 = vadd.f32 0.0, %v7488
  %7490 = vmatmul.bf16.gmra.mxu0 %v5079
  %v7491 = vpop.f32.mrf.mxu0
  %v7492 = vadd.f32 0.0, %v7491
  %v7493 = vpop.f32.mrf.mxu0
  %v7494 = vadd.f32 0.0, %v7493
  %7495 = vmatmul.bf16.gmra.mxu0 %v5082
  %v7496 = vpop.f32.mrf.mxu0
  %v7497 = vadd.f32 0.0, %v7496
  %v7498 = vpop.f32.mrf.mxu0
  %v7499 = vadd.f32 0.0, %v7498
  %7500 = vmatmul.bf16.gmra.mxu0 %v5085
  %v7501 = vpop.f32.mrf.mxu0
  %v7502 = vadd.f32 0.0, %v7501
  %v7503 = vpop.f32.mrf.mxu0
  %v7504 = vadd.f32 0.0, %v7503
  %7505 = vmatmul.bf16.gmra.mxu0 %v5088
  %v7506 = vpop.f32.mrf.mxu0
  %v7507 = vadd.f32 0.0, %v7506
  %v7508 = vpop.f32.mrf.mxu0
  %v7509 = vadd.f32 0.0, %v7508
  %7510 = vmatmul.bf16.gmra.mxu0 %v5091
  %v7511 = vpop.f32.mrf.mxu0
  %v7512 = vadd.f32 0.0, %v7511
  %v7513 = vpop.f32.mrf.mxu0
  %v7514 = vadd.f32 0.0, %v7513
  %7515 = vmatmul.bf16.gmra.mxu0 %v5094
  %v7516 = vpop.f32.mrf.mxu0
  %v7517 = vadd.f32 0.0, %v7516
  %v7518 = vpop.f32.mrf.mxu0
  %v7519 = vadd.f32 0.0, %v7518
  %7520 = vmatmul.bf16.gmra.mxu0 %v5097
  %v7521 = vpop.f32.mrf.mxu0
  %v7522 = vadd.f32 0.0, %v7521
  %v7523 = vpop.f32.mrf.mxu0
  %v7524 = vadd.f32 0.0, %v7523
  %7525 = vmatmul.bf16.gmra.mxu0 %v5100
  %v7526 = vpop.f32.mrf.mxu0
  %v7527 = vadd.f32 0.0, %v7526
  %v7528 = vpop.f32.mrf.mxu0
  %v7529 = vadd.f32 0.0, %v7528
  %7530 = vmatmul.bf16.gmra.mxu0 %v5103
  %v7531 = vpop.f32.mrf.mxu0
  %v7532 = vadd.f32 0.0, %v7531
  %v7533 = vpop.f32.mrf.mxu0
  %v7534 = vadd.f32 0.0, %v7533
  %7535 = vmatmul.bf16.gmra.mxu0 %v5106
  %v7536 = vpop.f32.mrf.mxu0
  %v7537 = vadd.f32 0.0, %v7536
  %v7538 = vpop.f32.mrf.mxu0
  %v7539 = vadd.f32 0.0, %v7538
  %7540 = vmatmul.bf16.gmra.mxu0 %v5109
  %v7541 = vpop.f32.mrf.mxu0
  %v7542 = vadd.f32 0.0, %v7541
  %v7543 = vpop.f32.mrf.mxu0
  %v7544 = vadd.f32 0.0, %v7543
  %7545 = vmatmul.bf16.gmra.mxu0 %v5112
  %v7546 = vpop.f32.mrf.mxu0
  %v7547 = vadd.f32 0.0, %v7546
  %v7548 = vpop.f32.mrf.mxu0
  %v7549 = vadd.f32 0.0, %v7548
  %7550 = vmatmul.bf16.gmra.mxu0 %v5115
  %v7551 = vpop.f32.mrf.mxu0
  %v7552 = vadd.f32 0.0, %v7551
  %v7553 = vpop.f32.mrf.mxu0
  %v7554 = vadd.f32 0.0, %v7553
  %7555 = vmatmul.bf16.gmra.mxu0 %v5118
  %v7556 = vpop.f32.mrf.mxu0
  %v7557 = vadd.f32 0.0, %v7556
  %v7558 = vpop.f32.mrf.mxu0
  %v7559 = vadd.f32 0.0, %v7558
  %7560 = vmatmul.bf16.gmra.mxu0 %v5121
  %v7561 = vpop.f32.mrf.mxu0
  %v7562 = vadd.f32 0.0, %v7561
  %v7563 = vpop.f32.mrf.mxu0
  %v7564 = vadd.f32 0.0, %v7563
  %7565 = vmatmul.bf16.gmra.mxu0 %v5124
  %v7566 = vpop.f32.mrf.mxu0
  %v7567 = vadd.f32 0.0, %v7566
  %v7568 = vpop.f32.mrf.mxu0
  %v7569 = vadd.f32 0.0, %v7568
  %7570 = vmatmul.bf16.gmra.mxu0 %v5127
  %v7571 = vpop.f32.mrf.mxu0
  %v7572 = vadd.f32 0.0, %v7571
  %v7573 = vpop.f32.mrf.mxu0
  %v7574 = vadd.f32 0.0, %v7573
  %7575 = vmatmul.bf16.gmra.mxu0 %v5130
  %v7576 = vpop.f32.mrf.mxu0
  %v7577 = vadd.f32 0.0, %v7576
  %v7578 = vpop.f32.mrf.mxu0
  %v7579 = vadd.f32 0.0, %v7578
  %7580 = vmatmul.bf16.gmra.mxu0 %v5133
  %v7581 = vpop.f32.mrf.mxu0
  %v7582 = vadd.f32 0.0, %v7581
  %v7583 = vpop.f32.mrf.mxu0
  %v7584 = vadd.f32 0.0, %v7583
  %7585 = vmatmul.bf16.gmra.mxu0 %v5136
  %v7586 = vpop.f32.mrf.mxu0
  %v7587 = vadd.f32 0.0, %v7586
  %v7588 = vpop.f32.mrf.mxu0
  %v7589 = vadd.f32 0.0, %v7588
  %7590 = vmatmul.bf16.gmra.mxu0 %v5139
  %v7591 = vpop.f32.mrf.mxu0
  %v7592 = vadd.f32 0.0, %v7591
  %v7593 = vpop.f32.mrf.mxu0
  %v7594 = vadd.f32 0.0, %v7593
  %7595 = vmatmul.bf16.gmra.mxu0 %v5142
  %v7596 = vpop.f32.mrf.mxu0
  %v7597 = vadd.f32 0.0, %v7596
  %v7598 = vpop.f32.mrf.mxu0
  %v7599 = vadd.f32 0.0, %v7598
  %7600 = vmatmul.bf16.gmra.mxu0 %v5145
  %v7601 = vpop.f32.mrf.mxu0
  %v7602 = vadd.f32 0.0, %v7601
  %v7603 = vpop.f32.mrf.mxu0
  %v7604 = vadd.f32 0.0, %v7603
  %7605 = vmatmul.bf16.gmra.mxu0 %v5148
  %v7606 = vpop.f32.mrf.mxu0
  %v7607 = vadd.f32 0.0, %v7606
  %v7608 = vpop.f32.mrf.mxu0
  %v7609 = vadd.f32 0.0, %v7608
  %7610 = vmatmul.bf16.gmra.mxu0 %v5151
  %v7611 = vpop.f32.mrf.mxu0
  %v7612 = vadd.f32 0.0, %v7611
  %v7613 = vpop.f32.mrf.mxu0
  %v7614 = vadd.f32 0.0, %v7613
  %7615 = vmatmul.bf16.gmra.mxu0 %v5154
  %v7616 = vpop.f32.mrf.mxu0
  %v7617 = vadd.f32 0.0, %v7616
  %v7618 = vpop.f32.mrf.mxu0
  %v7619 = vadd.f32 0.0, %v7618
  %7620 = vmatmul.bf16.gmra.mxu0 %v5157
  %v7621 = vpop.f32.mrf.mxu0
  %v7622 = vadd.f32 0.0, %v7621
  %v7623 = vpop.f32.mrf.mxu0
  %v7624 = vadd.f32 0.0, %v7623
  %7625 = vmatmul.bf16.gmra.mxu0 %v5160
  %v7626 = vpop.f32.mrf.mxu0
  %v7627 = vadd.f32 0.0, %v7626
  %v7628 = vpop.f32.mrf.mxu0
  %v7629 = vadd.f32 0.0, %v7628
  %7630 = vmatmul.bf16.gmra.mxu0 %v5163
  %v7631 = vpop.f32.mrf.mxu0
  %v7632 = vadd.f32 0.0, %v7631
  %v7633 = vpop.f32.mrf.mxu0
  %v7634 = vadd.f32 0.0, %v7633
  %7635 = vmatmul.bf16.gmra.mxu0 %v5166
  %v7636 = vpop.f32.mrf.mxu0
  %v7637 = vadd.f32 0.0, %v7636
  %v7638 = vpop.f32.mrf.mxu0
  %v7639 = vadd.f32 0.0, %v7638
  %7640 = vmatmul.bf16.gmra.mxu0 %v5169
  %v7641 = vpop.f32.mrf.mxu0
  %v7642 = vadd.f32 0.0, %v7641
  %v7643 = vpop.f32.mrf.mxu0
  %v7644 = vadd.f32 0.0, %v7643
  %7645 = vmatmul.bf16.gmra.mxu0 %v5172
  %v7646 = vpop.f32.mrf.mxu0
  %v7647 = vadd.f32 0.0, %v7646
  %v7648 = vpop.f32.mrf.mxu0
  %v7649 = vadd.f32 0.0, %v7648
  %7650 = vmatmul.bf16.gmra.mxu0 %v5175
  %v7651 = vpop.f32.mrf.mxu0
  %v7652 = vadd.f32 0.0, %v7651
  %v7653 = vpop.f32.mrf.mxu0
  %v7654 = vadd.f32 0.0, %v7653
  %7655 = vmatmul.bf16.gmra.mxu0 %v5178
  %v7656 = vpop.f32.mrf.mxu0
  %v7657 = vadd.f32 0.0, %v7656
  %v7658 = vpop.f32.mrf.mxu0
  %v7659 = vadd.f32 0.0, %v7658
  %7660 = vmatmul.bf16.gmra.mxu0 %v5181
  %v7661 = vpop.f32.mrf.mxu0
  %v7662 = vadd.f32 0.0, %v7661
  %v7663 = vpop.f32.mrf.mxu0
  %v7664 = vadd.f32 0.0, %v7663
  %7665 = vmatmul.bf16.gmra.mxu0 %v5184
  %v7666 = vpop.f32.mrf.mxu0
  %v7667 = vadd.f32 0.0, %v7666
  %v7668 = vpop.f32.mrf.mxu0
  %v7669 = vadd.f32 0.0, %v7668
  %7670 = vmatmul.bf16.gmra.mxu0 %v5187
  %v7671 = vpop.f32.mrf.mxu0
  %v7672 = vadd.f32 0.0, %v7671
  %v7673 = vpop.f32.mrf.mxu0
  %v7674 = vadd.f32 0.0, %v7673
  %7675 = vmatmul.bf16.gmra.mxu0 %v5190
  %v7676 = vpop.f32.mrf.mxu0
  %v7677 = vadd.f32 0.0, %v7676
  %v7678 = vpop.f32.mrf.mxu0
  %v7679 = vadd.f32 0.0, %v7678
  %7680 = vmatmul.bf16.gmra.mxu0 %v5193
  %v7681 = vpop.f32.mrf.mxu0
  %v7682 = vadd.f32 0.0, %v7681
  %v7683 = vpop.f32.mrf.mxu0
  %v7684 = vadd.f32 0.0, %v7683
  %7685 = vmatmul.bf16.gmra.mxu0 %v5196
  %v7686 = vpop.f32.mrf.mxu0
  %v7687 = vadd.f32 0.0, %v7686
  %v7688 = vpop.f32.mrf.mxu0
  %v7689 = vadd.f32 0.0, %v7688
  %7690 = vmatmul.bf16.gmra.mxu0 %v5199
  %v7691 = vpop.f32.mrf.mxu0
  %v7692 = vadd.f32 0.0, %v7691
  %v7693 = vpop.f32.mrf.mxu0
  %v7694 = vadd.f32 0.0, %v7693
  %7695 = vmatmul.bf16.gmra.mxu0 %v5202
  %v7696 = vpop.f32.mrf.mxu0
  %v7697 = vadd.f32 0.0, %v7696
  %v7698 = vpop.f32.mrf.mxu0
  %v7699 = vadd.f32 0.0, %v7698
  %7700 = vmatmul.bf16.gmra.mxu0 %v5205
  %v7701 = vpop.f32.mrf.mxu0
  %v7702 = vadd.f32 0.0, %v7701
  %v7703 = vpop.f32.mrf.mxu0
  %v7704 = vadd.f32 0.0, %v7703
  %7705 = vmatmul.bf16.gmra.mxu0 %v5208
  %v7706 = vpop.f32.mrf.mxu0
  %v7707 = vadd.f32 0.0, %v7706
  %v7708 = vpop.f32.mrf.mxu0
  %v7709 = vadd.f32 0.0, %v7708
  %7710 = vmatmul.bf16.gmra.mxu0 %v5211
  %v7711 = vpop.f32.mrf.mxu0
  %v7712 = vadd.f32 0.0, %v7711
  %v7713 = vpop.f32.mrf.mxu0
  %v7714 = vadd.f32 0.0, %v7713
  %7715 = vmatmul.bf16.gmra.mxu0 %v5214
  %v7716 = vpop.f32.mrf.mxu0
  %v7717 = vadd.f32 0.0, %v7716
  %v7718 = vpop.f32.mrf.mxu0
  %v7719 = vadd.f32 0.0, %v7718
  %7720 = vmatmul.bf16.gmra.mxu0 %v5217
  %v7721 = vpop.f32.mrf.mxu0
  %v7722 = vadd.f32 0.0, %v7721
  %v7723 = vpop.f32.mrf.mxu0
  %v7724 = vadd.f32 0.0, %v7723
  %7725 = vmatmul.bf16.gmra.mxu0 %v5220
  %v7726 = vpop.f32.mrf.mxu0
  %v7727 = vadd.f32 0.0, %v7726
  %v7728 = vpop.f32.mrf.mxu0
  %v7729 = vadd.f32 0.0, %v7728
  %7730 = vmatmul.bf16.gmra.mxu0 %v5223
  %v7731 = vpop.f32.mrf.mxu0
  %v7732 = vadd.f32 0.0, %v7731
  %v7733 = vpop.f32.mrf.mxu0
  %v7734 = vadd.f32 0.0, %v7733
  %7735 = vmatmul.bf16.gmra.mxu0 %v5226
  %v7736 = vpop.f32.mrf.mxu0
  %v7737 = vadd.f32 0.0, %v7736
  %v7738 = vpop.f32.mrf.mxu0
  %v7739 = vadd.f32 0.0, %v7738
  %7740 = vmatmul.bf16.gmra.mxu0 %v5229
  %v7741 = vpop.f32.mrf.mxu0
  %v7742 = vadd.f32 0.0, %v7741
  %v7743 = vpop.f32.mrf.mxu0
  %v7744 = vadd.f32 0.0, %v7743
  %7745 = vmatmul.bf16.gmra.mxu0 %v5232
  %v7746 = vpop.f32.mrf.mxu0
  %v7747 = vadd.f32 0.0, %v7746
  %v7748 = vpop.f32.mrf.mxu0
  %v7749 = vadd.f32 0.0, %v7748
  %7750 = vmatmul.bf16.gmra.mxu0 %v5235
  %v7751 = vpop.f32.mrf.mxu0
  %v7752 = vadd.f32 0.0, %v7751
  %v7753 = vpop.f32.mrf.mxu0
  %v7754 = vadd.f32 0.0, %v7753
  %7755 = vmatmul.bf16.gmra.mxu0 %v5238
  %v7756 = vpop.f32.mrf.mxu0
  %v7757 = vadd.f32 0.0, %v7756
  %v7758 = vpop.f32.mrf.mxu0
  %v7759 = vadd.f32 0.0, %v7758
  %7760 = vmatmul.bf16.gmra.mxu0 %v5241
  %v7761 = vpop.f32.mrf.mxu0
  %v7762 = vadd.f32 0.0, %v7761
  %v7763 = vpop.f32.mrf.mxu0
  %v7764 = vadd.f32 0.0, %v7763
  %7765 = vmatmul.bf16.gmra.mxu0 %v5244
  %v7766 = vpop.f32.mrf.mxu0
  %v7767 = vadd.f32 0.0, %v7766
  %v7768 = vpop.f32.mrf.mxu0
  %v7769 = vadd.f32 0.0, %v7768
  %7770 = vmatmul.bf16.gmra.mxu0 %v5247
  %v7771 = vpop.f32.mrf.mxu0
  %v7772 = vadd.f32 0.0, %v7771
  %v7773 = vpop.f32.mrf.mxu0
  %v7774 = vadd.f32 0.0, %v7773
  %7775 = vmatmul.bf16.gmra.mxu0 %v5250
  %v7776 = vpop.f32.mrf.mxu0
  %v7777 = vadd.f32 0.0, %v7776
  %v7778 = vpop.f32.mrf.mxu0
  %v7779 = vadd.f32 0.0, %v7778
  %7780 = vmatmul.bf16.gmra.mxu0 %v5253
  %v7781 = vpop.f32.mrf.mxu0
  %v7782 = vadd.f32 0.0, %v7781
  %v7783 = vpop.f32.mrf.mxu0
  %v7784 = vadd.f32 0.0, %v7783
  %7785 = vmatmul.bf16.gmra.mxu0 %v5256
  %v7786 = vpop.f32.mrf.mxu0
  %v7787 = vadd.f32 0.0, %v7786
  %v7788 = vpop.f32.mrf.mxu0
  %v7789 = vadd.f32 0.0, %v7788
  %7790 = vmatmul.bf16.gmra.mxu0 %v5259
  %v7791 = vpop.f32.mrf.mxu0
  %v7792 = vadd.f32 0.0, %v7791
  %v7793 = vpop.f32.mrf.mxu0
  %v7794 = vadd.f32 0.0, %v7793
  %7795 = vmatmul.bf16.gmra.mxu0 %v5262
  %v7796 = vpop.f32.mrf.mxu0
  %v7797 = vadd.f32 0.0, %v7796
  %v7798 = vpop.f32.mrf.mxu0
  %v7799 = vadd.f32 0.0, %v7798
  %7800 = vmatmul.bf16.gmra.mxu0 %v5265
  %v7801 = vpop.f32.mrf.mxu0
  %v7802 = vadd.f32 0.0, %v7801
  %v7803 = vpop.f32.mrf.mxu0
  %v7804 = vadd.f32 0.0, %v7803
  %7805 = vmatmul.bf16.gmra.mxu0 %v5268
  %v7806 = vpop.f32.mrf.mxu0
  %v7807 = vadd.f32 0.0, %v7806
  %v7808 = vpop.f32.mrf.mxu0
  %v7809 = vadd.f32 0.0, %v7808
  %7810 = vmatmul.bf16.gmra.mxu0 %v5271
  %v7811 = vpop.f32.mrf.mxu0
  %v7812 = vadd.f32 0.0, %v7811
  %v7813 = vpop.f32.mrf.mxu0
  %v7814 = vadd.f32 0.0, %v7813
  %7815 = vmatmul.bf16.gmra.mxu0 %v5274
  %v7816 = vpop.f32.mrf.mxu0
  %v7817 = vadd.f32 0.0, %v7816
  %v7818 = vpop.f32.mrf.mxu0
  %v7819 = vadd.f32 0.0, %v7818
  %7820 = vmatmul.bf16.gmra.mxu0 %v5277
  %v7821 = vpop.f32.mrf.mxu0
  %v7822 = vadd.f32 0.0, %v7821
  %v7823 = vpop.f32.mrf.mxu0
  %v7824 = vadd.f32 0.0, %v7823
  %7825 = vmatmul.bf16.gmra.mxu0 %v5280
  %v7826 = vpop.f32.mrf.mxu0
  %v7827 = vadd.f32 0.0, %v7826
  %v7828 = vpop.f32.mrf.mxu0
  %v7829 = vadd.f32 0.0, %v7828
  %7830 = vmatmul.bf16.gmra.mxu0 %v5283
  %v7831 = vpop.f32.mrf.mxu0
  %v7832 = vadd.f32 0.0, %v7831
  %v7833 = vpop.f32.mrf.mxu0
  %v7834 = vadd.f32 0.0, %v7833
  %7835 = vmatmul.bf16.gmra.mxu0 %v5286
  %v7836 = vpop.f32.mrf.mxu0
  %v7837 = vadd.f32 0.0, %v7836
  %v7838 = vpop.f32.mrf.mxu0
  %v7839 = vadd.f32 0.0, %v7838
  %7840 = vmatmul.bf16.gmra.mxu0 %v5289
  %v7841 = vpop.f32.mrf.mxu0
  %v7842 = vadd.f32 0.0, %v7841
  %v7843 = vpop.f32.mrf.mxu0
  %v7844 = vadd.f32 0.0, %v7843
  %7845 = vmatmul.bf16.gmra.mxu0 %v5292
  %v7846 = vpop.f32.mrf.mxu0
  %v7847 = vadd.f32 0.0, %v7846
  %v7848 = vpop.f32.mrf.mxu0
  %v7849 = vadd.f32 0.0, %v7848
  %7850 = vmatmul.bf16.gmra.mxu0 %v5295
  %v7851 = vpop.f32.mrf.mxu0
  %v7852 = vadd.f32 0.0, %v7851
  %v7853 = vpop.f32.mrf.mxu0
  %v7854 = vadd.f32 0.0, %v7853
  %7855 = vmatmul.bf16.gmra.mxu0 %v5298
  %v7856 = vpop.f32.mrf.mxu0
  %v7857 = vadd.f32 0.0, %v7856
  %v7858 = vpop.f32.mrf.mxu0
  %v7859 = vadd.f32 0.0, %v7858
  %7860 = vmatmul.bf16.gmra.mxu0 %v5301
  %v7861 = vpop.f32.mrf.mxu0
  %v7862 = vadd.f32 0.0, %v7861
  %v7863 = vpop.f32.mrf.mxu0
  %v7864 = vadd.f32 0.0, %v7863
  %7865 = vmatmul.bf16.gmra.mxu0 %v5304
  %v7866 = vpop.f32.mrf.mxu0
  %v7867 = vadd.f32 0.0, %v7866
  %v7868 = vpop.f32.mrf.mxu0
  %v7869 = vadd.f32 0.0, %v7868
  %7870 = vmatmul.bf16.gmra.mxu0 %v5307
  %v7871 = vpop.f32.mrf.mxu0
  %v7872 = vadd.f32 0.0, %v7871
  %v7873 = vpop.f32.mrf.mxu0
  %v7874 = vadd.f32 0.0, %v7873
  %7875 = vmatmul.bf16.gmra.mxu0 %v5310
  %v7876 = vpop.f32.mrf.mxu0
  %v7877 = vadd.f32 0.0, %v7876
  %v7878 = vpop.f32.mrf.mxu0
  %v7879 = vadd.f32 0.0, %v7878
  %7880 = vmatmul.bf16.gmra.mxu0 %v5313
  %v7881 = vpop.f32.mrf.mxu0
  %v7882 = vadd.f32 0.0, %v7881
  %v7883 = vpop.f32.mrf.mxu0
  %v7884 = vadd.f32 0.0, %v7883
  %7885 = vmatmul.bf16.gmra.mxu0 %v5316
  %v7886 = vpop.f32.mrf.mxu0
  %v7887 = vadd.f32 0.0, %v7886
  %v7888 = vpop.f32.mrf.mxu0
  %v7889 = vadd.f32 0.0, %v7888
  %7890 = vmatmul.bf16.gmra.mxu0 %v5319
  %v7891 = vpop.f32.mrf.mxu0
  %v7892 = vadd.f32 0.0, %v7891
  %v7893 = vpop.f32.mrf.mxu0
  %v7894 = vadd.f32 0.0, %v7893
  %7895 = vmatmul.bf16.gmra.mxu0 %v5322
  %v7896 = vpop.f32.mrf.mxu0
  %v7897 = vadd.f32 0.0, %v7896
  %v7898 = vpop.f32.mrf.mxu0
  %v7899 = vadd.f32 0.0, %v7898
  %7900 = vmatmul.bf16.gmra.mxu0 %v5325
  %v7901 = vpop.f32.mrf.mxu0
  %v7902 = vadd.f32 0.0, %v7901
  %v7903 = vpop.f32.mrf.mxu0
  %v7904 = vadd.f32 0.0, %v7903
  %7905 = vmatmul.bf16.gmra.mxu0 %v5328
  %v7906 = vpop.f32.mrf.mxu0
  %v7907 = vadd.f32 0.0, %v7906
  %v7908 = vpop.f32.mrf.mxu0
  %v7909 = vadd.f32 0.0, %v7908
  %7910 = vmatmul.bf16.gmra.mxu0 %v5331
  %v7911 = vpop.f32.mrf.mxu0
  %v7912 = vadd.f32 0.0, %v7911
  %v7913 = vpop.f32.mrf.mxu0
  %v7914 = vadd.f32 0.0, %v7913
  %7915 = vmatmul.bf16.gmra.mxu0 %v5334
  %v7916 = vpop.f32.mrf.mxu0
  %v7917 = vadd.f32 0.0, %v7916
  %v7918 = vpop.f32.mrf.mxu0
  %v7919 = vadd.f32 0.0, %v7918
  %7920 = vmatmul.bf16.gmra.mxu0 %v5337
  %v7921 = vpop.f32.mrf.mxu0
  %v7922 = vadd.f32 0.0, %v7921
  %v7923 = vpop.f32.mrf.mxu0
  %v7924 = vadd.f32 0.0, %v7923
  %7925 = vmatmul.bf16.gmra.mxu0 %v5340
  %v7926 = vpop.f32.mrf.mxu0
  %v7927 = vadd.f32 0.0, %v7926
  %v7928 = vpop.f32.mrf.mxu0
  %v7929 = vadd.f32 0.0, %v7928
  %7930 = vmatmul.bf16.gmra.mxu0 %v5343
  %v7931 = vpop.f32.mrf.mxu0
  %v7932 = vadd.f32 0.0, %v7931
  %v7933 = vpop.f32.mrf.mxu0
  %v7934 = vadd.f32 0.0, %v7933
  %7935 = vmatmul.bf16.gmra.mxu0 %v5346
  %v7936 = vpop.f32.mrf.mxu0
  %v7937 = vadd.f32 0.0, %v7936
  %v7938 = vpop.f32.mrf.mxu0
  %v7939 = vadd.f32 0.0, %v7938
  %7940 = vmatmul.bf16.gmra.mxu0 %v5349
  %v7941 = vpop.f32.mrf.mxu0
  %v7942 = vadd.f32 0.0, %v7941
  %v7943 = vpop.f32.mrf.mxu0
  %v7944 = vadd.f32 0.0, %v7943
  %7945 = vmatmul.bf16.gmra.mxu0 %v5352
  %v7946 = vpop.f32.mrf.mxu0
  %v7947 = vadd.f32 0.0, %v7946
  %v7948 = vpop.f32.mrf.mxu0
  %v7949 = vadd.f32 0.0, %v7948
  %7950 = vmatmul.bf16.gmra.mxu0 %v5355
  %v7951 = vpop.f32.mrf.mxu0
  %v7952 = vadd.f32 0.0, %v7951
  %v7953 = vpop.f32.mrf.mxu0
  %v7954 = vadd.f32 0.0, %v7953
  %7955 = vmatmul.bf16.gmra.mxu0 %v5358
  %v7956 = vpop.f32.mrf.mxu0
  %v7957 = vadd.f32 0.0, %v7956
  %v7958 = vpop.f32.mrf.mxu0
  %v7959 = vadd.f32 0.0, %v7958
  %7960 = vmatmul.bf16.gmra.mxu0 %v5361
  %v7961 = vpop.f32.mrf.mxu0
  %v7962 = vadd.f32 0.0, %v7961
  %v7963 = vpop.f32.mrf.mxu0
  %v7964 = vadd.f32 0.0, %v7963
  %7965 = vmatmul.bf16.gmra.mxu0 %v5364
  %v7966 = vpop.f32.mrf.mxu0
  %v7967 = vadd.f32 0.0, %v7966
  %v7968 = vpop.f32.mrf.mxu0
  %v7969 = vadd.f32 0.0, %v7968
  %7970 = vmatmul.bf16.gmra.mxu0 %v5367
  %v7971 = vpop.f32.mrf.mxu0
  %v7972 = vadd.f32 0.0, %v7971
  %v7973 = vpop.f32.mrf.mxu0
  %v7974 = vadd.f32 0.0, %v7973
  %7975 = vmatmul.bf16.gmra.mxu0 %v5370
  %v7976 = vpop.f32.mrf.mxu0
  %v7977 = vadd.f32 0.0, %v7976
  %v7978 = vpop.f32.mrf.mxu0
  %v7979 = vadd.f32 0.0, %v7978
  %7980 = vmatmul.bf16.gmra.mxu0 %v5373
  %v7981 = vpop.f32.mrf.mxu0
  %v7982 = vadd.f32 0.0, %v7981
  %v7983 = vpop.f32.mrf.mxu0
  %v7984 = vadd.f32 0.0, %v7983
  %7985 = vmatmul.bf16.gmra.mxu0 %v5376
  %v7986 = vpop.f32.mrf.mxu0
  %v7987 = vadd.f32 0.0, %v7986
  %v7988 = vpop.f32.mrf.mxu0
  %v7989 = vadd.f32 0.0, %v7988
  %7990 = vmatmul.bf16.gmra.mxu0 %v5379
  %v7991 = vpop.f32.mrf.mxu0
  %v7992 = vadd.f32 0.0, %v7991
  %v7993 = vpop.f32.mrf.mxu0
  %v7994 = vadd.f32 0.0, %v7993
  %7995 = vmatmul.bf16.gmra.mxu0 %v5382
  %v7996 = vpop.f32.mrf.mxu0
  %v7997 = vadd.f32 0.0, %v7996
  %v7998 = vpop.f32.mrf.mxu0
  %v7999 = vadd.f32 0.0, %v7998
  %8000 = vmatmul.bf16.gmra.mxu0 %v5385
  %v8001 = vpop.f32.mrf.mxu0
  %v8002 = vadd.f32 0.0, %v8001
  %v8003 = vpop.f32.mrf.mxu0
  %v8004 = vadd.f32 0.0, %v8003
  %8005 = vmatmul.bf16.gmra.mxu0 %v5388
  %v8006 = vpop.f32.mrf.mxu0
  %v8007 = vadd.f32 0.0, %v8006
  %v8008 = vpop.f32.mrf.mxu0
  %v8009 = vadd.f32 0.0, %v8008
  %8010 = vmatmul.bf16.gmra.mxu0 %v5391
  %v8011 = vpop.f32.mrf.mxu0
  %v8012 = vadd.f32 0.0, %v8011
  %v8013 = vpop.f32.mrf.mxu0
  %v8014 = vadd.f32 0.0, %v8013
  %8015 = vmatmul.bf16.gmra.mxu0 %v5394
  %v8016 = vpop.f32.mrf.mxu0
  %v8017 = vadd.f32 0.0, %v8016
  %v8018 = vpop.f32.mrf.mxu0
  %v8019 = vadd.f32 0.0, %v8018
  %8020 = vmatmul.bf16.gmra.mxu0 %v5397
  %v8021 = vpop.f32.mrf.mxu0
  %v8022 = vadd.f32 0.0, %v8021
  %v8023 = vpop.f32.mrf.mxu0
  %v8024 = vadd.f32 0.0, %v8023
  %8025 = vmatmul.bf16.gmra.mxu0 %v5400
  %v8026 = vpop.f32.mrf.mxu0
  %v8027 = vadd.f32 0.0, %v8026
  %v8028 = vpop.f32.mrf.mxu0
  %v8029 = vadd.f32 0.0, %v8028
  %8030 = vmatmul.bf16.gmra.mxu0 %v5403
  %v8031 = vpop.f32.mrf.mxu0
  %v8032 = vadd.f32 0.0, %v8031
  %v8033 = vpop.f32.mrf.mxu0
  %v8034 = vadd.f32 0.0, %v8033
  %8035 = vmatmul.bf16.gmra.mxu0 %v5406
  %v8036 = vpop.f32.mrf.mxu0
  %v8037 = vadd.f32 0.0, %v8036
  %v8038 = vpop.f32.mrf.mxu0
  %v8039 = vadd.f32 0.0, %v8038
  %8040 = vmatmul.bf16.gmra.mxu0 %v5409
  %v8041 = vpop.f32.mrf.mxu0
  %v8042 = vadd.f32 0.0, %v8041
  %v8043 = vpop.f32.mrf.mxu0
  %v8044 = vadd.f32 0.0, %v8043
  %8045 = vmatmul.bf16.gmra.mxu0 %v5412
  %v8046 = vpop.f32.mrf.mxu0
  %v8047 = vadd.f32 0.0, %v8046
  %v8048 = vpop.f32.mrf.mxu0
  %v8049 = vadd.f32 0.0, %v8048
  %8050 = vmatmul.bf16.gmra.mxu0 %v5415
  %v8051 = vpop.f32.mrf.mxu0
  %v8052 = vadd.f32 0.0, %v8051
  %v8053 = vpop.f32.mrf.mxu0
  %v8054 = vadd.f32 0.0, %v8053
  %8055 = vmatmul.bf16.gmra.mxu0 %v5418
  %v8056 = vpop.f32.mrf.mxu0
  %v8057 = vadd.f32 0.0, %v8056
  %v8058 = vpop.f32.mrf.mxu0
  %v8059 = vadd.f32 0.0, %v8058
  %8060 = vmatmul.bf16.gmra.mxu0 %v5421
  %v8061 = vpop.f32.mrf.mxu0
  %v8062 = vadd.f32 0.0, %v8061
  %v8063 = vpop.f32.mrf.mxu0
  %v8064 = vadd.f32 0.0, %v8063
  %8065 = vmatmul.bf16.gmra.mxu0 %v5424
  %v8066 = vpop.f32.mrf.mxu0
  %v8067 = vadd.f32 0.0, %v8066
  %v8068 = vpop.f32.mrf.mxu0
  %v8069 = vadd.f32 0.0, %v8068
  %8070 = vmatmul.bf16.gmra.mxu0 %v5427
  %v8071 = vpop.f32.mrf.mxu0
  %v8072 = vadd.f32 0.0, %v8071
  %v8073 = vpop.f32.mrf.mxu0
  %v8074 = vadd.f32 0.0, %v8073
  %8075 = vmatmul.bf16.gmra.mxu0 %v5430
  %v8076 = vpop.f32.mrf.mxu0
  %v8077 = vadd.f32 0.0, %v8076
  %v8078 = vpop.f32.mrf.mxu0
  %v8079 = vadd.f32 0.0, %v8078
  %8080 = vmatmul.bf16.gmra.mxu0 %v5433
  %v8081 = vpop.f32.mrf.mxu0
  %v8082 = vadd.f32 0.0, %v8081
  %v8083 = vpop.f32.mrf.mxu0
  %v8084 = vadd.f32 0.0, %v8083
  %8085 = vmatmul.bf16.gmra.mxu0 %v5436
  %v8086 = vpop.f32.mrf.mxu0
  %v8087 = vadd.f32 0.0, %v8086
  %v8088 = vpop.f32.mrf.mxu0
  %v8089 = vadd.f32 0.0, %v8088
  %8090 = vmatmul.bf16.gmra.mxu0 %v5439
  %v8091 = vpop.f32.mrf.mxu0
  %v8092 = vadd.f32 0.0, %v8091
  %v8093 = vpop.f32.mrf.mxu0
  %v8094 = vadd.f32 0.0, %v8093
  %8095 = vmatmul.bf16.gmra.mxu0 %v5442
  %v8096 = vpop.f32.mrf.mxu0
  %v8097 = vadd.f32 0.0, %v8096
  %v8098 = vpop.f32.mrf.mxu0
  %v8099 = vadd.f32 0.0, %v8098
  %8100 = vmatmul.bf16.gmra.mxu0 %v5445
  %v8101 = vpop.f32.mrf.mxu0
  %v8102 = vadd.f32 0.0, %v8101
  %v8103 = vpop.f32.mrf.mxu0
  %v8104 = vadd.f32 0.0, %v8103
  %8105 = vmatmul.bf16.gmra.mxu0 %v5448
  %v8106 = vpop.f32.mrf.mxu0
  %v8107 = vadd.f32 0.0, %v8106
  %v8108 = vpop.f32.mrf.mxu0
  %v8109 = vadd.f32 0.0, %v8108
  %8110 = vmatmul.bf16.gmra.mxu0 %v5451
  %v8111 = vpop.f32.mrf.mxu0
  %v8112 = vadd.f32 0.0, %v8111
  %v8113 = vpop.f32.mrf.mxu0
  %v8114 = vadd.f32 0.0, %v8113
  %8115 = vmatmul.bf16.gmra.mxu0 %v5454
  %v8116 = vpop.f32.mrf.mxu0
  %v8117 = vadd.f32 0.0, %v8116
  %v8118 = vpop.f32.mrf.mxu0
  %v8119 = vadd.f32 0.0, %v8118
  %8120 = vmatmul.bf16.gmra.mxu0 %v5457
  %v8121 = vpop.f32.mrf.mxu0
  %v8122 = vadd.f32 0.0, %v8121
  %v8123 = vpop.f32.mrf.mxu0
  %v8124 = vadd.f32 0.0, %v8123
  %8125 = vmatmul.bf16.gmra.mxu0 %v5460
  %v8126 = vpop.f32.mrf.mxu0
  %v8127 = vadd.f32 0.0, %v8126
  %v8128 = vpop.f32.mrf.mxu0
  %v8129 = vadd.f32 0.0, %v8128
  %8130 = vmatmul.bf16.gmra.mxu0 %v5463
  %v8131 = vpop.f32.mrf.mxu0
  %v8132 = vadd.f32 0.0, %v8131
  %v8133 = vpop.f32.mrf.mxu0
  %v8134 = vadd.f32 0.0, %v8133
  %8135 = vmatmul.bf16.gmra.mxu0 %v5466
  %v8136 = vpop.f32.mrf.mxu0
  %v8137 = vadd.f32 0.0, %v8136
  %v8138 = vpop.f32.mrf.mxu0
  %v8139 = vadd.f32 0.0, %v8138
  %8140 = vmatmul.bf16.gmra.mxu0 %v5469
  %v8141 = vpop.f32.mrf.mxu0
  %v8142 = vadd.f32 0.0, %v8141
  %v8143 = vpop.f32.mrf.mxu0
  %v8144 = vadd.f32 0.0, %v8143
  %8145 = vmatmul.bf16.gmra.mxu0 %v5472
  %v8146 = vpop.f32.mrf.mxu0
  %v8147 = vadd.f32 0.0, %v8146
  %v8148 = vpop.f32.mrf.mxu0
  %v8149 = vadd.f32 0.0, %v8148
  %8150 = vmatmul.bf16.gmra.mxu0 %v5475
  %v8151 = vpop.f32.mrf.mxu0
  %v8152 = vadd.f32 0.0, %v8151
  %v8153 = vpop.f32.mrf.mxu0
  %v8154 = vadd.f32 0.0, %v8153
  %8155 = vmatmul.bf16.gmra.mxu0 %v5478
  %v8156 = vpop.f32.mrf.mxu0
  %v8157 = vadd.f32 0.0, %v8156
  %v8158 = vpop.f32.mrf.mxu0
  %v8159 = vadd.f32 0.0, %v8158
  %8160 = vmatmul.bf16.gmra.mxu0 %v5481
  %v8161 = vpop.f32.mrf.mxu0
  %v8162 = vadd.f32 0.0, %v8161
  %v8163 = vpop.f32.mrf.mxu0
  %v8164 = vadd.f32 0.0, %v8163
  %8165 = vmatmul.bf16.gmra.mxu0 %v5484
  %v8166 = vpop.f32.mrf.mxu0
  %v8167 = vadd.f32 0.0, %v8166
  %v8168 = vpop.f32.mrf.mxu0
  %v8169 = vadd.f32 0.0, %v8168
  %8170 = vmatmul.bf16.gmra.mxu0 %v5487
  %v8171 = vpop.f32.mrf.mxu0
  %v8172 = vadd.f32 0.0, %v8171
  %v8173 = vpop.f32.mrf.mxu0
  %v8174 = vadd.f32 0.0, %v8173
  %8175 = vmatmul.bf16.gmra.mxu0 %v5490
  %v8176 = vpop.f32.mrf.mxu0
  %v8177 = vadd.f32 0.0, %v8176
  %v8178 = vpop.f32.mrf.mxu0
  %v8179 = vadd.f32 0.0, %v8178
  %8180 = vmatmul.bf16.gmra.mxu0 %v5493
  %v8181 = vpop.f32.mrf.mxu0
  %v8182 = vadd.f32 0.0, %v8181
  %v8183 = vpop.f32.mrf.mxu0
  %v8184 = vadd.f32 0.0, %v8183
  %8185 = vmatmul.bf16.gmra.mxu0 %v5496
  %v8186 = vpop.f32.mrf.mxu0
  %v8187 = vadd.f32 0.0, %v8186
  %v8188 = vpop.f32.mrf.mxu0
  %v8189 = vadd.f32 0.0, %v8188
  %8190 = vmatmul.bf16.gmra.mxu0 %v5499
  %v8191 = vpop.f32.mrf.mxu0
  %v8192 = vadd.f32 0.0, %v8191
  %v8193 = vpop.f32.mrf.mxu0
  %v8194 = vadd.f32 0.0, %v8193
  %8195 = vmatmul.bf16.gmra.mxu0 %v5502
  %v8196 = vpop.f32.mrf.mxu0
  %v8197 = vadd.f32 0.0, %v8196
  %v8198 = vpop.f32.mrf.mxu0
  %v8199 = vadd.f32 0.0, %v8198
  %8200 = vmatmul.bf16.gmra.mxu0 %v5505
  %v8201 = vpop.f32.mrf.mxu0
  %v8202 = vadd.f32 0.0, %v8201
  %v8203 = vpop.f32.mrf.mxu0
  %v8204 = vadd.f32 0.0, %v8203
  %8205 = vmatmul.bf16.gmra.mxu0 %v5508
  %v8206 = vpop.f32.mrf.mxu0
  %v8207 = vadd.f32 0.0, %v8206
  %v8208 = vpop.f32.mrf.mxu0
  %v8209 = vadd.f32 0.0, %v8208
  %8210 = vmatmul.bf16.gmra.mxu0 %v5511
  %v8211 = vpop.f32.mrf.mxu0
  %v8212 = vadd.f32 0.0, %v8211
  %v8213 = vpop.f32.mrf.mxu0
  %v8214 = vadd.f32 0.0, %v8213
  %8215 = vmatmul.bf16.gmra.mxu0 %v5514
  %v8216 = vpop.f32.mrf.mxu0
  %v8217 = vadd.f32 0.0, %v8216
  %v8218 = vpop.f32.mrf.mxu0
  %v8219 = vadd.f32 0.0, %v8218
  %8220 = vmatmul.bf16.gmra.mxu0 %v5517
  %v8221 = vpop.f32.mrf.mxu0
  %v8222 = vadd.f32 0.0, %v8221
  %v8223 = vpop.f32.mrf.mxu0
  %v8224 = vadd.f32 0.0, %v8223
  %8225 = vmatmul.bf16.gmra.mxu0 %v5520
  %v8226 = vpop.f32.mrf.mxu0
  %v8227 = vadd.f32 0.0, %v8226
  %v8228 = vpop.f32.mrf.mxu0
  %v8229 = vadd.f32 0.0, %v8228
  %8230 = vmatmul.bf16.gmra.mxu0 %v5523
  %v8231 = vpop.f32.mrf.mxu0
  %v8232 = vadd.f32 0.0, %v8231
  %v8233 = vpop.f32.mrf.mxu0
  %v8234 = vadd.f32 0.0, %v8233
  %8235 = vmatmul.bf16.gmra.mxu0 %v5526
  %v8236 = vpop.f32.mrf.mxu0
  %v8237 = vadd.f32 0.0, %v8236
  %v8238 = vpop.f32.mrf.mxu0
  %v8239 = vadd.f32 0.0, %v8238
  %8240 = vmatmul.bf16.gmra.mxu0 %v5529
  %v8241 = vpop.f32.mrf.mxu0
  %v8242 = vadd.f32 0.0, %v8241
  %v8243 = vpop.f32.mrf.mxu0
  %v8244 = vadd.f32 0.0, %v8243
  %8245 = vmatmul.bf16.gmra.mxu0 %v5532
  %v8246 = vpop.f32.mrf.mxu0
  %v8247 = vadd.f32 0.0, %v8246
  %v8248 = vpop.f32.mrf.mxu0
  %v8249 = vadd.f32 0.0, %v8248
  %8250 = vmatmul.bf16.gmra.mxu0 %v5535
  %v8251 = vpop.f32.mrf.mxu0
  %v8252 = vadd.f32 0.0, %v8251
  %v8253 = vpop.f32.mrf.mxu0
  %v8254 = vadd.f32 0.0, %v8253
  %8255 = vmatmul.bf16.gmra.mxu0 %v5538
  %v8256 = vpop.f32.mrf.mxu0
  %v8257 = vadd.f32 0.0, %v8256
  %v8258 = vpop.f32.mrf.mxu0
  %v8259 = vadd.f32 0.0, %v8258
  %8260 = vmatmul.bf16.gmra.mxu0 %v5541
  %v8261 = vpop.f32.mrf.mxu0
  %v8262 = vadd.f32 0.0, %v8261
  %v8263 = vpop.f32.mrf.mxu0
  %v8264 = vadd.f32 0.0, %v8263
  %8265 = vmatmul.bf16.gmra.mxu0 %v5544
  %v8266 = vpop.f32.mrf.mxu0
  %v8267 = vadd.f32 0.0, %v8266
  %v8268 = vpop.f32.mrf.mxu0
  %v8269 = vadd.f32 0.0, %v8268
  %8270 = vmatmul.bf16.gmra.mxu0 %v5547
  %v8271 = vpop.f32.mrf.mxu0
  %v8272 = vadd.f32 0.0, %v8271
  %v8273 = vpop.f32.mrf.mxu0
  %v8274 = vadd.f32 0.0, %v8273
  %8275 = vmatmul.bf16.gmra.mxu0 %v5550
  %v8276 = vpop.f32.mrf.mxu0
  %v8277 = vadd.f32 0.0, %v8276
  %v8278 = vpop.f32.mrf.mxu0
  %v8279 = vadd.f32 0.0, %v8278
  %8280 = vmatmul.bf16.gmra.mxu0 %v5553
  %v8281 = vpop.f32.mrf.mxu0
  %v8282 = vadd.f32 0.0, %v8281
  %v8283 = vpop.f32.mrf.mxu0
  %v8284 = vadd.f32 0.0, %v8283
  %8285 = vmatmul.bf16.gmra.mxu0 %v5556
  %v8286 = vpop.f32.mrf.mxu0
  %v8287 = vadd.f32 0.0, %v8286
  %v8288 = vpop.f32.mrf.mxu0
  %v8289 = vadd.f32 0.0, %v8288
  %8290 = vmatmul.bf16.gmra.mxu0 %v5559
  %v8291 = vpop.f32.mrf.mxu0
  %v8292 = vadd.f32 0.0, %v8291
  %v8293 = vpop.f32.mrf.mxu0
  %v8294 = vadd.f32 0.0, %v8293
  %8295 = vmatmul.bf16.gmra.mxu0 %v5562
  %v8296 = vpop.f32.mrf.mxu0
  %v8297 = vadd.f32 0.0, %v8296
  %v8298 = vpop.f32.mrf.mxu0
  %v8299 = vadd.f32 0.0, %v8298
  %8300 = vmatmul.bf16.gmra.mxu0 %v5565
  %v8301 = vpop.f32.mrf.mxu0
  %v8302 = vadd.f32 0.0, %v8301
  %v8303 = vpop.f32.mrf.mxu0
  %v8304 = vadd.f32 0.0, %v8303
  %8305 = vmatmul.bf16.gmra.mxu0 %v5568
  %v8306 = vpop.f32.mrf.mxu0
  %v8307 = vadd.f32 0.0, %v8306
  %v8308 = vpop.f32.mrf.mxu0
  %v8309 = vadd.f32 0.0, %v8308
  %8310 = vmatmul.bf16.gmra.mxu0 %v5571
  %v8311 = vpop.f32.mrf.mxu0
  %v8312 = vadd.f32 0.0, %v8311
  %v8313 = vpop.f32.mrf.mxu0
  %v8314 = vadd.f32 0.0, %v8313
  %8315 = vmatmul.bf16.gmra.mxu0 %v5574
  %v8316 = vpop.f32.mrf.mxu0
  %v8317 = vadd.f32 0.0, %v8316
  %v8318 = vpop.f32.mrf.mxu0
  %v8319 = vadd.f32 0.0, %v8318
  %8320 = vmatmul.bf16.gmra.mxu0 %v5577
  %v8321 = vpop.f32.mrf.mxu0
  %v8322 = vadd.f32 0.0, %v8321
  %v8323 = vpop.f32.mrf.mxu0
  %v8324 = vadd.f32 0.0, %v8323
  %8325 = vmatmul.bf16.gmra.mxu0 %v5580
  %v8326 = vpop.f32.mrf.mxu0
  %v8327 = vadd.f32 0.0, %v8326
  %v8328 = vpop.f32.mrf.mxu0
  %v8329 = vadd.f32 0.0, %v8328
  %8330 = vmatmul.bf16.gmra.mxu0 %v5583
  %v8331 = vpop.f32.mrf.mxu0
  %v8332 = vadd.f32 0.0, %v8331
  %v8333 = vpop.f32.mrf.mxu0
  %v8334 = vadd.f32 0.0, %v8333
  %8335 = vmatmul.bf16.gmra.mxu0 %v5586
  %v8336 = vpop.f32.mrf.mxu0
  %v8337 = vadd.f32 0.0, %v8336
  %v8338 = vpop.f32.mrf.mxu0
  %v8339 = vadd.f32 0.0, %v8338
  %8340 = vmatmul.bf16.gmra.mxu0 %v5589
  %v8341 = vpop.f32.mrf.mxu0
  %v8342 = vadd.f32 0.0, %v8341
  %v8343 = vpop.f32.mrf.mxu0
  %v8344 = vadd.f32 0.0, %v8343
  %8345 = vmatmul.bf16.gmra.mxu0 %v5592
  %v8346 = vpop.f32.mrf.mxu0
  %v8347 = vadd.f32 0.0, %v8346
  %v8348 = vpop.f32.mrf.mxu0
  %v8349 = vadd.f32 0.0, %v8348
  %8350 = vmatmul.bf16.gmra.mxu0 %v5595
  %v8351 = vpop.f32.mrf.mxu0
  %v8352 = vadd.f32 0.0, %v8351
  %v8353 = vpop.f32.mrf.mxu0
  %v8354 = vadd.f32 0.0, %v8353
  %8355 = vmatmul.bf16.gmra.mxu0 %v5598
  %v8356 = vpop.f32.mrf.mxu0
  %v8357 = vadd.f32 0.0, %v8356
  %v8358 = vpop.f32.mrf.mxu0
  %v8359 = vadd.f32 0.0, %v8358
  %8360 = vmatmul.bf16.gmra.mxu0 %v5601
  %v8361 = vpop.f32.mrf.mxu0
  %v8362 = vadd.f32 0.0, %v8361
  %v8363 = vpop.f32.mrf.mxu0
  %v8364 = vadd.f32 0.0, %v8363
  %8365 = vmatmul.bf16.gmra.mxu0 %v5604
  %v8366 = vpop.f32.mrf.mxu0
  %v8367 = vadd.f32 0.0, %v8366
  %v8368 = vpop.f32.mrf.mxu0
  %v8369 = vadd.f32 0.0, %v8368
  %8370 = vmatmul.bf16.gmra.mxu0 %v5607
  %v8371 = vpop.f32.mrf.mxu0
  %v8372 = vadd.f32 0.0, %v8371
  %v8373 = vpop.f32.mrf.mxu0
  %v8374 = vadd.f32 0.0, %v8373
  %8375 = vmatmul.bf16.gmra.mxu0 %v5610
  %v8376 = vpop.f32.mrf.mxu0
  %v8377 = vadd.f32 0.0, %v8376
  %v8378 = vpop.f32.mrf.mxu0
  %v8379 = vadd.f32 0.0, %v8378
  %8380 = vmatmul.bf16.gmra.mxu0 %v5613
  %v8381 = vpop.f32.mrf.mxu0
  %v8382 = vadd.f32 0.0, %v8381
  %v8383 = vpop.f32.mrf.mxu0
  %v8384 = vadd.f32 0.0, %v8383
  %8385 = vmatmul.bf16.gmra.mxu0 %v5616
  %v8386 = vpop.f32.mrf.mxu0
  %v8387 = vadd.f32 0.0, %v8386
  %v8388 = vpop.f32.mrf.mxu0
  %v8389 = vadd.f32 0.0, %v8388
  %8390 = vmatmul.bf16.gmra.mxu0 %v5619
  %v8391 = vpop.f32.mrf.mxu0
  %v8392 = vadd.f32 0.0, %v8391
  %v8393 = vpop.f32.mrf.mxu0
  %v8394 = vadd.f32 0.0, %v8393
  %8395 = vmatmul.bf16.gmra.mxu0 %v5622
  %v8396 = vpop.f32.mrf.mxu0
  %v8397 = vadd.f32 0.0, %v8396
  %v8398 = vpop.f32.mrf.mxu0
  %v8399 = vadd.f32 0.0, %v8398
  %8400 = vmatmul.bf16.gmra.mxu0 %v5625
  %v8401 = vpop.f32.mrf.mxu0
  %v8402 = vadd.f32 0.0, %v8401
  %v8403 = vpop.f32.mrf.mxu0
  %v8404 = vadd.f32 0.0, %v8403
  %8405 = vmatmul.bf16.gmra.mxu0 %v5628
  %v8406 = vpop.f32.mrf.mxu0
  %v8407 = vadd.f32 0.0, %v8406
  %v8408 = vpop.f32.mrf.mxu0
  %v8409 = vadd.f32 0.0, %v8408
  %8410 = vmatmul.bf16.gmra.mxu0 %v5631
  %v8411 = vpop.f32.mrf.mxu0
  %v8412 = vadd.f32 0.0, %v8411
  %v8413 = vpop.f32.mrf.mxu0
  %v8414 = vadd.f32 0.0, %v8413
  %8415 = vmatmul.bf16.gmra.mxu0 %v5634
  %v8416 = vpop.f32.mrf.mxu0
  %v8417 = vadd.f32 0.0, %v8416
  %v8418 = vpop.f32.mrf.mxu0
  %v8419 = vadd.f32 0.0, %v8418
  %8420 = vmatmul.bf16.gmra.mxu0 %v5637
  %v8421 = vpop.f32.mrf.mxu0
  %v8422 = vadd.f32 0.0, %v8421
  %v8423 = vpop.f32.mrf.mxu0
  %v8424 = vadd.f32 0.0, %v8423
  %8425 = vmatmul.bf16.gmra.mxu0 %v5640
  %v8426 = vpop.f32.mrf.mxu0
  %v8427 = vadd.f32 0.0, %v8426
  %v8428 = vpop.f32.mrf.mxu0
  %v8429 = vadd.f32 0.0, %v8428
  %8430 = vmatmul.bf16.gmra.mxu0 %v5643
  %v8431 = vpop.f32.mrf.mxu0
  %v8432 = vadd.f32 0.0, %v8431
  %v8433 = vpop.f32.mrf.mxu0
  %v8434 = vadd.f32 0.0, %v8433
  %8435 = vmatmul.bf16.gmra.mxu0 %v5646
  %v8436 = vpop.f32.mrf.mxu0
  %v8437 = vadd.f32 0.0, %v8436
  %v8438 = vpop.f32.mrf.mxu0
  %v8439 = vadd.f32 0.0, %v8438
  %8440 = vmatmul.bf16.gmra.mxu0 %v5649
  %v8441 = vpop.f32.mrf.mxu0
  %v8442 = vadd.f32 0.0, %v8441
  %v8443 = vpop.f32.mrf.mxu0
  %v8444 = vadd.f32 0.0, %v8443
  %8445 = vmatmul.bf16.gmra.mxu0 %v5652
  %v8446 = vpop.f32.mrf.mxu0
  %v8447 = vadd.f32 0.0, %v8446
  %v8448 = vpop.f32.mrf.mxu0
  %v8449 = vadd.f32 0.0, %v8448
  %8450 = vmatmul.bf16.gmra.mxu0 %v5655
  %v8451 = vpop.f32.mrf.mxu0
  %v8452 = vadd.f32 0.0, %v8451
  %v8453 = vpop.f32.mrf.mxu0
  %v8454 = vadd.f32 0.0, %v8453
  %8455 = vmatmul.bf16.gmra.mxu0 %v5658
  %v8456 = vpop.f32.mrf.mxu0
  %v8457 = vadd.f32 0.0, %v8456
  %v8458 = vpop.f32.mrf.mxu0
  %v8459 = vadd.f32 0.0, %v8458
  %8460 = vmatmul.bf16.gmra.mxu0 %v5661
  %v8461 = vpop.f32.mrf.mxu0
  %v8462 = vadd.f32 0.0, %v8461
  %v8463 = vpop.f32.mrf.mxu0
  %v8464 = vadd.f32 0.0, %v8463
  %8465 = vmatmul.bf16.gmra.mxu0 %v5664
  %v8466 = vpop.f32.mrf.mxu0
  %v8467 = vadd.f32 0.0, %v8466
  %v8468 = vpop.f32.mrf.mxu0
  %v8469 = vadd.f32 0.0, %v8468
  %8470 = vmatmul.bf16.gmra.mxu0 %v5667
  %v8471 = vpop.f32.mrf.mxu0
  %v8472 = vadd.f32 0.0, %v8471
  %v8473 = vpop.f32.mrf.mxu0
  %v8474 = vadd.f32 0.0, %v8473
  %8475 = vmatmul.bf16.gmra.mxu0 %v5670
  %v8476 = vpop.f32.mrf.mxu0
  %v8477 = vadd.f32 0.0, %v8476
  %v8478 = vpop.f32.mrf.mxu0
  %v8479 = vadd.f32 0.0, %v8478
  %8480 = vmatmul.bf16.gmra.mxu0 %v5673
  %v8481 = vpop.f32.mrf.mxu0
  %v8482 = vadd.f32 0.0, %v8481
  %v8483 = vpop.f32.mrf.mxu0
  %v8484 = vadd.f32 0.0, %v8483
  %8485 = vmatmul.bf16.gmra.mxu0 %v5676
  %v8486 = vpop.f32.mrf.mxu0
  %v8487 = vadd.f32 0.0, %v8486
  %v8488 = vpop.f32.mrf.mxu0
  %v8489 = vadd.f32 0.0, %v8488
  %8490 = vmatmul.bf16.gmra.mxu0 %v5679
  %v8491 = vpop.f32.mrf.mxu0
  %v8492 = vadd.f32 0.0, %v8491
  %v8493 = vpop.f32.mrf.mxu0
  %v8494 = vadd.f32 0.0, %v8493
  %8495 = vmatmul.bf16.gmra.mxu0 %v5682
  %v8496 = vpop.f32.mrf.mxu0
  %v8497 = vadd.f32 0.0, %v8496
  %v8498 = vpop.f32.mrf.mxu0
  %v8499 = vadd.f32 0.0, %v8498
  %8500 = vmatmul.bf16.gmra.mxu0 %v5685
  %v8501 = vpop.f32.mrf.mxu0
  %v8502 = vadd.f32 0.0, %v8501
  %v8503 = vpop.f32.mrf.mxu0
  %v8504 = vadd.f32 0.0, %v8503
  %8505 = vmatmul.bf16.gmra.mxu0 %v5688
  %v8506 = vpop.f32.mrf.mxu0
  %v8507 = vadd.f32 0.0, %v8506
  %v8508 = vpop.f32.mrf.mxu0
  %v8509 = vadd.f32 0.0, %v8508
  %8510 = vmatmul.bf16.gmra.mxu0 %v5691
  %v8511 = vpop.f32.mrf.mxu0
  %v8512 = vadd.f32 0.0, %v8511
  %v8513 = vpop.f32.mrf.mxu0
  %v8514 = vadd.f32 0.0, %v8513
  %8515 = vmatmul.bf16.gmra.mxu0 %v5694
  %v8516 = vpop.f32.mrf.mxu0
  %v8517 = vadd.f32 0.0, %v8516
  %v8518 = vpop.f32.mrf.mxu0
  %v8519 = vadd.f32 0.0, %v8518
  %8520 = vmatmul.bf16.gmra.mxu0 %v5697
  %v8521 = vpop.f32.mrf.mxu0
  %v8522 = vadd.f32 0.0, %v8521
  %v8523 = vpop.f32.mrf.mxu0
  %v8524 = vadd.f32 0.0, %v8523
  %8525 = vmatmul.bf16.gmra.mxu0 %v5700
  %v8526 = vpop.f32.mrf.mxu0
  %v8527 = vadd.f32 0.0, %v8526
  %v8528 = vpop.f32.mrf.mxu0
  %v8529 = vadd.f32 0.0, %v8528
  %8530 = vmatmul.bf16.gmra.mxu0 %v5703
  %v8531 = vpop.f32.mrf.mxu0
  %v8532 = vadd.f32 0.0, %v8531
  %v8533 = vpop.f32.mrf.mxu0
  %v8534 = vadd.f32 0.0, %v8533
  %8535 = vmatmul.bf16.gmra.mxu0 %v5706
  %v8536 = vpop.f32.mrf.mxu0
  %v8537 = vadd.f32 0.0, %v8536
  %v8538 = vpop.f32.mrf.mxu0
  %v8539 = vadd.f32 0.0, %v8538
  %8540 = vmatmul.bf16.gmra.mxu0 %v5709
  %v8541 = vpop.f32.mrf.mxu0
  %v8542 = vadd.f32 0.0, %v8541
  %v8543 = vpop.f32.mrf.mxu0
  %v8544 = vadd.f32 0.0, %v8543
  %8545 = vmatmul.bf16.gmra.mxu0 %v5712
  %v8546 = vpop.f32.mrf.mxu0
  %v8547 = vadd.f32 0.0, %v8546
  %v8548 = vpop.f32.mrf.mxu0
  %v8549 = vadd.f32 0.0, %v8548
  %8550 = vmatmul.bf16.gmra.mxu0 %v5715
  %v8551 = vpop.f32.mrf.mxu0
  %v8552 = vadd.f32 0.0, %v8551
  %v8553 = vpop.f32.mrf.mxu0
  %v8554 = vadd.f32 0.0, %v8553
  %8555 = vmatmul.bf16.gmra.mxu0 %v5718
  %v8556 = vpop.f32.mrf.mxu0
  %v8557 = vadd.f32 0.0, %v8556
  %v8558 = vpop.f32.mrf.mxu0
  %v8559 = vadd.f32 0.0, %v8558
  %8560 = vmatmul.bf16.gmra.mxu0 %v5721
  %v8561 = vpop.f32.mrf.mxu0
  %v8562 = vadd.f32 0.0, %v8561
  %v8563 = vpop.f32.mrf.mxu0
  %v8564 = vadd.f32 0.0, %v8563
  %8565 = vmatmul.bf16.gmra.mxu0 %v5724
  %v8566 = vpop.f32.mrf.mxu0
  %v8567 = vadd.f32 0.0, %v8566
  %v8568 = vpop.f32.mrf.mxu0
  %v8569 = vadd.f32 0.0, %v8568
  %8570 = vmatmul.bf16.gmra.mxu0 %v5727
  %v8571 = vpop.f32.mrf.mxu0
  %v8572 = vadd.f32 0.0, %v8571
  %v8573 = vpop.f32.mrf.mxu0
  %v8574 = vadd.f32 0.0, %v8573
  %8575 = vmatmul.bf16.gmra.mxu0 %v5730
  %v8576 = vpop.f32.mrf.mxu0
  %v8577 = vadd.f32 0.0, %v8576
  %v8578 = vpop.f32.mrf.mxu0
  %v8579 = vadd.f32 0.0, %v8578
  %8580 = vmatmul.bf16.gmra.mxu0 %v5733
  %v8581 = vpop.f32.mrf.mxu0
  %v8582 = vadd.f32 0.0, %v8581
  %v8583 = vpop.f32.mrf.mxu0
  %v8584 = vadd.f32 0.0, %v8583
  %8585 = vmatmul.bf16.gmra.mxu0 %v5736
  %v8586 = vpop.f32.mrf.mxu0
  %v8587 = vadd.f32 0.0, %v8586
  %v8588 = vpop.f32.mrf.mxu0
  %v8589 = vadd.f32 0.0, %v8588
  %8590 = vmatmul.bf16.gmra.mxu0 %v5739
  %v8591 = vpop.f32.mrf.mxu0
  %v8592 = vadd.f32 0.0, %v8591
  %v8593 = vpop.f32.mrf.mxu0
  %v8594 = vadd.f32 0.0, %v8593
  %8595 = vmatmul.bf16.gmra.mxu0 %v5742
  %v8596 = vpop.f32.mrf.mxu0
  %v8597 = vadd.f32 0.0, %v8596
  %v8598 = vpop.f32.mrf.mxu0
  %v8599 = vadd.f32 0.0, %v8598
  %8600 = vmatmul.bf16.gmra.mxu0 %v5745
  %v8601 = vpop.f32.mrf.mxu0
  %v8602 = vadd.f32 0.0, %v8601
  %v8603 = vpop.f32.mrf.mxu0
  %v8604 = vadd.f32 0.0, %v8603
  %8605 = vmatmul.bf16.gmra.mxu0 %v5748
  %v8606 = vpop.f32.mrf.mxu0
  %v8607 = vadd.f32 0.0, %v8606
  %v8608 = vpop.f32.mrf.mxu0
  %v8609 = vadd.f32 0.0, %v8608
  %8610 = vmatmul.bf16.gmra.mxu0 %v5751
  %v8611 = vpop.f32.mrf.mxu0
  %v8612 = vadd.f32 0.0, %v8611
  %v8613 = vpop.f32.mrf.mxu0
  %v8614 = vadd.f32 0.0, %v8613
  %8615 = vmatmul.bf16.gmra.mxu0 %v5754
  %v8616 = vpop.f32.mrf.mxu0
  %v8617 = vadd.f32 0.0, %v8616
  %v8618 = vpop.f32.mrf.mxu0
  %v8619 = vadd.f32 0.0, %v8618
  %8620 = vmatmul.bf16.gmra.mxu0 %v5757
  %v8621 = vpop.f32.mrf.mxu0
  %v8622 = vadd.f32 0.0, %v8621
  %v8623 = vpop.f32.mrf.mxu0
  %v8624 = vadd.f32 0.0, %v8623
  %8625 = vmatmul.bf16.gmra.mxu0 %v5760
  %v8626 = vpop.f32.mrf.mxu0
  %v8627 = vadd.f32 0.0, %v8626
  %v8628 = vpop.f32.mrf.mxu0
  %v8629 = vadd.f32 0.0, %v8628
  %8630 = vmatmul.bf16.gmra.mxu0 %v5763
  %v8631 = vpop.f32.mrf.mxu0
  %v8632 = vadd.f32 0.0, %v8631
  %v8633 = vpop.f32.mrf.mxu0
  %v8634 = vadd.f32 0.0, %v8633
  %8635 = vmatmul.bf16.gmra.mxu0 %v5766
  %v8636 = vpop.f32.mrf.mxu0
  %v8637 = vadd.f32 0.0, %v8636
  %v8638 = vpop.f32.mrf.mxu0
  %v8639 = vadd.f32 0.0, %v8638
  %8640 = vmatmul.bf16.gmra.mxu0 %v5769
  %v8641 = vpop.f32.mrf.mxu0
  %v8642 = vadd.f32 0.0, %v8641
  %v8643 = vpop.f32.mrf.mxu0
  %v8644 = vadd.f32 0.0, %v8643
  %8645 = vmatmul.bf16.gmra.mxu0 %v5772
  %v8646 = vpop.f32.mrf.mxu0
  %v8647 = vadd.f32 0.0, %v8646
  %v8648 = vpop.f32.mrf.mxu0
  %v8649 = vadd.f32 0.0, %v8648
  %8650 = vmatmul.bf16.gmra.mxu0 %v5775
  %v8651 = vpop.f32.mrf.mxu0
  %v8652 = vadd.f32 0.0, %v8651
  %v8653 = vpop.f32.mrf.mxu0
  %v8654 = vadd.f32 0.0, %v8653
  %8655 = vmatmul.bf16.gmra.mxu0 %v5778
  %v8656 = vpop.f32.mrf.mxu0
  %v8657 = vadd.f32 0.0, %v8656
  %v8658 = vpop.f32.mrf.mxu0
  %v8659 = vadd.f32 0.0, %v8658
  %8660 = vmatmul.bf16.gmra.mxu0 %v5781
  %v8661 = vpop.f32.mrf.mxu0
  %v8662 = vadd.f32 0.0, %v8661
  %v8663 = vpop.f32.mrf.mxu0
  %v8664 = vadd.f32 0.0, %v8663
  %8665 = vmatmul.bf16.gmra.mxu0 %v5784
  %v8666 = vpop.f32.mrf.mxu0
  %v8667 = vadd.f32 0.0, %v8666
  %v8668 = vpop.f32.mrf.mxu0
  %v8669 = vadd.f32 0.0, %v8668
  %8670 = vmatmul.bf16.gmra.mxu0 %v5787
  %v8671 = vpop.f32.mrf.mxu0
  %v8672 = vadd.f32 0.0, %v8671
  %v8673 = vpop.f32.mrf.mxu0
  %v8674 = vadd.f32 0.0, %v8673
  %8675 = vmatmul.bf16.gmra.mxu0 %v5790
  %v8676 = vpop.f32.mrf.mxu0
  %v8677 = vadd.f32 0.0, %v8676
  %v8678 = vpop.f32.mrf.mxu0
  %v8679 = vadd.f32 0.0, %v8678
  %8680 = vdwg.mxu0
  %v8681 = vmax.f32 %v5802, %v6522
  %v8682 = vmax.f32 %v5804, %v6524
  %v8683 = vmax.f32 %v5807, %v6527
  %v8684 = vmax.f32 %v5809, %v6529
  %v8685 = vmax.f32 %v5812, %v6532
  %v8686 = vmax.f32 %v5814, %v6534
  %v8687 = vmax.f32 %v5817, %v6537
  %v8688 = vmax.f32 %v5819, %v6539
  %v8689 = vmax.f32 %v5822, %v6542
  %v8690 = vmax.f32 %v5824, %v6544
  %v8691 = vmax.f32 %v5827, %v6547
  %v8692 = vmax.f32 %v5829, %v6549
  %v8693 = vmax.f32 %v5832, %v6552
  %v8694 = vmax.f32 %v5834, %v6554
  %v8695 = vmax.f32 %v5837, %v6557
  %v8696 = vmax.f32 %v5839, %v6559
  %v8697 = vmax.f32 %v5842, %v6562
  %v8698 = vmax.f32 %v5844, %v6564
  %v8699 = vmax.f32 %v5847, %v6567
  %v8700 = vmax.f32 %v5849, %v6569
  %v8701 = vmax.f32 %v5852, %v6572
  %v8702 = vmax.f32 %v5854, %v6574
  %v8703 = vmax.f32 %v5857, %v6577
  %v8704 = vmax.f32 %v5859, %v6579
  %v8705 = vmax.f32 %v5862, %v6582
  %v8706 = vmax.f32 %v5864, %v6584
  %v8707 = vmax.f32 %v5867, %v6587
  %v8708 = vmax.f32 %v5869, %v6589
  %v8709 = vmax.f32 %v5872, %v6592
  %v8710 = vmax.f32 %v5874, %v6594
  %v8711 = vmax.f32 %v5877, %v6597
  %v8712 = vmax.f32 %v5879, %v6599
  %v8713 = vmax.f32 %v5882, %v6602
  %v8714 = vmax.f32 %v5884, %v6604
  %v8715 = vmax.f32 %v5887, %v6607
  %v8716 = vmax.f32 %v5889, %v6609
  %v8717 = vmax.f32 %v5892, %v6612
  %v8718 = vmax.f32 %v5894, %v6614
  %v8719 = vmax.f32 %v5897, %v6617
  %v8720 = vmax.f32 %v5899, %v6619
  %v8721 = vmax.f32 %v5902, %v6622
  %v8722 = vmax.f32 %v5904, %v6624
  %v8723 = vmax.f32 %v5907, %v6627
  %v8724 = vmax.f32 %v5909, %v6629
  %v8725 = vmax.f32 %v5912, %v6632
  %v8726 = vmax.f32 %v5914, %v6634
  %v8727 = vmax.f32 %v5917, %v6637
  %v8728 = vmax.f32 %v5919, %v6639
  %v8729 = vmax.f32 %v5922, %v6642
  %v8730 = vmax.f32 %v5924, %v6644
  %v8731 = vmax.f32 %v5927, %v6647
  %v8732 = vmax.f32 %v5929, %v6649
  %v8733 = vmax.f32 %v5932, %v6652
  %v8734 = vmax.f32 %v5934, %v6654
  %v8735 = vmax.f32 %v5937, %v6657
  %v8736 = vmax.f32 %v5939, %v6659
  %v8737 = vmax.f32 %v5942, %v6662
  %v8738 = vmax.f32 %v5944, %v6664
  %v8739 = vmax.f32 %v5947, %v6667
  %v8740 = vmax.f32 %v5949, %v6669
  %v8741 = vmax.f32 %v5952, %v6672
  %v8742 = vmax.f32 %v5954, %v6674
  %v8743 = vmax.f32 %v5957, %v6677
  %v8744 = vmax.f32 %v5959, %v6679
  %v8745 = vmax.f32 %v5962, %v6682
  %v8746 = vmax.f32 %v5964, %v6684
  %v8747 = vmax.f32 %v5967, %v6687
  %v8748 = vmax.f32 %v5969, %v6689
  %v8749 = vmax.f32 %v5972, %v6692
  %v8750 = vmax.f32 %v5974, %v6694
  %v8751 = vmax.f32 %v5977, %v6697
  %v8752 = vmax.f32 %v5979, %v6699
  %v8753 = vmax.f32 %v5982, %v6702
  %v8754 = vmax.f32 %v5984, %v6704
  %v8755 = vmax.f32 %v5987, %v6707
  %v8756 = vmax.f32 %v5989, %v6709
  %v8757 = vmax.f32 %v5992, %v6712
  %v8758 = vmax.f32 %v5994, %v6714
  %v8759 = vmax.f32 %v5997, %v6717
  %v8760 = vmax.f32 %v5999, %v6719
  %v8761 = vmax.f32 %v6002, %v6722
  %v8762 = vmax.f32 %v6004, %v6724
  %v8763 = vmax.f32 %v6007, %v6727
  %v8764 = vmax.f32 %v6009, %v6729
  %v8765 = vmax.f32 %v6012, %v6732
  %v8766 = vmax.f32 %v6014, %v6734
  %v8767 = vmax.f32 %v6017, %v6737
  %v8768 = vmax.f32 %v6019, %v6739
  %v8769 = vmax.f32 %v6022, %v6742
  %v8770 = vmax.f32 %v6024, %v6744
  %v8771 = vmax.f32 %v6027, %v6747
  %v8772 = vmax.f32 %v6029, %v6749
  %v8773 = vmax.f32 %v6032, %v6752
  %v8774 = vmax.f32 %v6034, %v6754
  %v8775 = vmax.f32 %v6037, %v6757
  %v8776 = vmax.f32 %v6039, %v6759
  %v8777 = vmax.f32 %v6042, %v6762
  %v8778 = vmax.f32 %v6044, %v6764
  %v8779 = vmax.f32 %v6047, %v6767
  %v8780 = vmax.f32 %v6049, %v6769
  %v8781 = vmax.f32 %v6052, %v6772
  %v8782 = vmax.f32 %v6054, %v6774
  %v8783 = vmax.f32 %v6057, %v6777
  %v8784 = vmax.f32 %v6059, %v6779
  %v8785 = vmax.f32 %v6062, %v6782
  %v8786 = vmax.f32 %v6064, %v6784
  %v8787 = vmax.f32 %v6067, %v6787
  %v8788 = vmax.f32 %v6069, %v6789
  %v8789 = vmax.f32 %v6072, %v6792
  %v8790 = vmax.f32 %v6074, %v6794
  %v8791 = vmax.f32 %v6077, %v6797
  %v8792 = vmax.f32 %v6079, %v6799
  %v8793 = vmax.f32 %v6082, %v6802
  %v8794 = vmax.f32 %v6084, %v6804
  %v8795 = vmax.f32 %v6087, %v6807
  %v8796 = vmax.f32 %v6089, %v6809
  %v8797 = vmax.f32 %v6092, %v6812
  %v8798 = vmax.f32 %v6094, %v6814
  %v8799 = vmax.f32 %v6097, %v6817
  %v8800 = vmax.f32 %v6099, %v6819
  %v8801 = vmax.f32 %v6102, %v6822
  %v8802 = vmax.f32 %v6104, %v6824
  %v8803 = vmax.f32 %v6107, %v6827
  %v8804 = vmax.f32 %v6109, %v6829
  %v8805 = vmax.f32 %v6112, %v6832
  %v8806 = vmax.f32 %v6114, %v6834
  %v8807 = vmax.f32 %v6117, %v6837
  %v8808 = vmax.f32 %v6119, %v6839
  %v8809 = vmax.f32 %v6122, %v6842
  %v8810 = vmax.f32 %v6124, %v6844
  %v8811 = vmax.f32 %v6127, %v6847
  %v8812 = vmax.f32 %v6129, %v6849
  %v8813 = vmax.f32 %v6132, %v6852
  %v8814 = vmax.f32 %v6134, %v6854
  %v8815 = vmax.f32 %v6137, %v6857
  %v8816 = vmax.f32 %v6139, %v6859
  %v8817 = vmax.f32 %v6142, %v6862
  %v8818 = vmax.f32 %v6144, %v6864
  %v8819 = vmax.f32 %v6147, %v6867
  %v8820 = vmax.f32 %v6149, %v6869
  %v8821 = vmax.f32 %v6152, %v6872
  %v8822 = vmax.f32 %v6154, %v6874
  %v8823 = vmax.f32 %v6157, %v6877
  %v8824 = vmax.f32 %v6159, %v6879
  %v8825 = vmax.f32 %v6162, %v6882
  %v8826 = vmax.f32 %v6164, %v6884
  %v8827 = vmax.f32 %v6167, %v6887
  %v8828 = vmax.f32 %v6169, %v6889
  %v8829 = vmax.f32 %v6172, %v6892
  %v8830 = vmax.f32 %v6174, %v6894
  %v8831 = vmax.f32 %v6177, %v6897
  %v8832 = vmax.f32 %v6179, %v6899
  %v8833 = vmax.f32 %v6182, %v6902
  %v8834 = vmax.f32 %v6184, %v6904
  %v8835 = vmax.f32 %v6187, %v6907
  %v8836 = vmax.f32 %v6189, %v6909
  %v8837 = vmax.f32 %v6192, %v6912
  %v8838 = vmax.f32 %v6194, %v6914
  %v8839 = vmax.f32 %v6197, %v6917
  %v8840 = vmax.f32 %v6199, %v6919
  %v8841 = vmax.f32 %v6202, %v6922
  %v8842 = vmax.f32 %v6204, %v6924
  %v8843 = vmax.f32 %v6207, %v6927
  %v8844 = vmax.f32 %v6209, %v6929
  %v8845 = vmax.f32 %v6212, %v6932
  %v8846 = vmax.f32 %v6214, %v6934
  %v8847 = vmax.f32 %v6217, %v6937
  %v8848 = vmax.f32 %v6219, %v6939
  %v8849 = vmax.f32 %v6222, %v6942
  %v8850 = vmax.f32 %v6224, %v6944
  %v8851 = vmax.f32 %v6227, %v6947
  %v8852 = vmax.f32 %v6229, %v6949
  %v8853 = vmax.f32 %v6232, %v6952
  %v8854 = vmax.f32 %v6234, %v6954
  %v8855 = vmax.f32 %v6237, %v6957
  %v8856 = vmax.f32 %v6239, %v6959
  %v8857 = vmax.f32 %v6242, %v6962
  %v8858 = vmax.f32 %v6244, %v6964
  %v8859 = vmax.f32 %v6247, %v6967
  %v8860 = vmax.f32 %v6249, %v6969
  %v8861 = vmax.f32 %v6252, %v6972
  %v8862 = vmax.f32 %v6254, %v6974
  %v8863 = vmax.f32 %v6257, %v6977
  %v8864 = vmax.f32 %v6259, %v6979
  %v8865 = vmax.f32 %v6262, %v6982
  %v8866 = vmax.f32 %v6264, %v6984
  %v8867 = vmax.f32 %v6267, %v6987
  %v8868 = vmax.f32 %v6269, %v6989
  %v8869 = vmax.f32 %v6272, %v6992
  %v8870 = vmax.f32 %v6274, %v6994
  %v8871 = vmax.f32 %v6277, %v6997
  %v8872 = vmax.f32 %v6279, %v6999
  %v8873 = vmax.f32 %v6282, %v7002
  %v8874 = vmax.f32 %v6284, %v7004
  %v8875 = vmax.f32 %v6287, %v7007
  %v8876 = vmax.f32 %v6289, %v7009
  %v8877 = vmax.f32 %v6292, %v7012
  %v8878 = vmax.f32 %v6294, %v7014
  %v8879 = vmax.f32 %v6297, %v7017
  %v8880 = vmax.f32 %v6299, %v7019
  %v8881 = vmax.f32 %v6302, %v7022
  %v8882 = vmax.f32 %v6304, %v7024
  %v8883 = vmax.f32 %v6307, %v7027
  %v8884 = vmax.f32 %v6309, %v7029
  %v8885 = vmax.f32 %v6312, %v7032
  %v8886 = vmax.f32 %v6314, %v7034
  %v8887 = vmax.f32 %v6317, %v7037
  %v8888 = vmax.f32 %v6319, %v7039
  %v8889 = vmax.f32 %v6322, %v7042
  %v8890 = vmax.f32 %v6324, %v7044
  %v8891 = vmax.f32 %v6327, %v7047
  %v8892 = vmax.f32 %v6329, %v7049
  %v8893 = vmax.f32 %v6332, %v7052
  %v8894 = vmax.f32 %v6334, %v7054
  %v8895 = vmax.f32 %v6337, %v7057
  %v8896 = vmax.f32 %v6339, %v7059
  %v8897 = vmax.f32 %v6342, %v7062
  %v8898 = vmax.f32 %v6344, %v7064
  %v8899 = vmax.f32 %v6347, %v7067
  %v8900 = vmax.f32 %v6349, %v7069
  %v8901 = vmax.f32 %v6352, %v7072
  %v8902 = vmax.f32 %v6354, %v7074
  %v8903 = vmax.f32 %v6357, %v7077
  %v8904 = vmax.f32 %v6359, %v7079
  %v8905 = vmax.f32 %v6362, %v7082
  %v8906 = vmax.f32 %v6364, %v7084
  %v8907 = vmax.f32 %v6367, %v7087
  %v8908 = vmax.f32 %v6369, %v7089
  %v8909 = vmax.f32 %v6372, %v7092
  %v8910 = vmax.f32 %v6374, %v7094
  %v8911 = vmax.f32 %v6377, %v7097
  %v8912 = vmax.f32 %v6379, %v7099
  %v8913 = vmax.f32 %v6382, %v7102
  %v8914 = vmax.f32 %v6384, %v7104
  %v8915 = vmax.f32 %v6387, %v7107
  %v8916 = vmax.f32 %v6389, %v7109
  %v8917 = vmax.f32 %v6392, %v7112
  %v8918 = vmax.f32 %v6394, %v7114
  %v8919 = vmax.f32 %v6397, %v7117
  %v8920 = vmax.f32 %v6399, %v7119
  %v8921 = vmax.f32 %v6402, %v7122
  %v8922 = vmax.f32 %v6404, %v7124
  %v8923 = vmax.f32 %v6407, %v7127
  %v8924 = vmax.f32 %v6409, %v7129
  %v8925 = vmax.f32 %v6412, %v7132
  %v8926 = vmax.f32 %v6414, %v7134
  %v8927 = vmax.f32 %v6417, %v7137
  %v8928 = vmax.f32 %v6419, %v7139
  %v8929 = vmax.f32 %v6422, %v7142
  %v8930 = vmax.f32 %v6424, %v7144
  %v8931 = vmax.f32 %v6427, %v7147
  %v8932 = vmax.f32 %v6429, %v7149
  %v8933 = vmax.f32 %v6432, %v7152
  %v8934 = vmax.f32 %v6434, %v7154
  %v8935 = vmax.f32 %v6437, %v7157
  %v8936 = vmax.f32 %v6439, %v7159
  %v8937 = vmax.f32 %v6442, %v7162
  %v8938 = vmax.f32 %v6444, %v7164
  %v8939 = vmax.f32 %v6447, %v7167
  %v8940 = vmax.f32 %v6449, %v7169
  %v8941 = vmax.f32 %v6452, %v7172
  %v8942 = vmax.f32 %v6454, %v7174
  %v8943 = vmax.f32 %v6457, %v7177
  %v8944 = vmax.f32 %v6459, %v7179
  %v8945 = vmax.f32 %v6462, %v7182
  %v8946 = vmax.f32 %v6464, %v7184
  %v8947 = vmax.f32 %v6467, %v7187
  %v8948 = vmax.f32 %v6469, %v7189
  %v8949 = vmax.f32 %v6472, %v7192
  %v8950 = vmax.f32 %v6474, %v7194
  %v8951 = vmax.f32 %v6477, %v7197
  %v8952 = vmax.f32 %v6479, %v7199
  %v8953 = vmax.f32 %v6482, %v7202
  %v8954 = vmax.f32 %v6484, %v7204
  %v8955 = vmax.f32 %v6487, %v7207
  %v8956 = vmax.f32 %v6489, %v7209
  %v8957 = vmax.f32 %v6492, %v7212
  %v8958 = vmax.f32 %v6494, %v7214
  %v8959 = vmax.f32 %v6497, %v7217
  %v8960 = vmax.f32 %v6499, %v7219
  %v8961 = vmax.f32 %v6502, %v7222
  %v8962 = vmax.f32 %v6504, %v7224
  %v8963 = vmax.f32 %v6507, %v7227
  %v8964 = vmax.f32 %v6509, %v7229
  %v8965 = vmax.f32 %v6512, %v7232
  %v8966 = vmax.f32 %v6514, %v7234
  %v8967 = vmax.f32 %v6517, %v7237
  %v8968 = vmax.f32 %v6519, %v7239
  %v8969 = vmax.f32 %v7242, %v7962
  %v8970 = vmax.f32 %v7244, %v7964
  %v8971 = vmax.f32 %v7247, %v7967
  %v8972 = vmax.f32 %v7249, %v7969
  %v8973 = vmax.f32 %v7252, %v7972
  %v8974 = vmax.f32 %v7254, %v7974
  %v8975 = vmax.f32 %v7257, %v7977
  %v8976 = vmax.f32 %v7259, %v7979
  %v8977 = vmax.f32 %v7262, %v7982
  %v8978 = vmax.f32 %v7264, %v7984
  %v8979 = vmax.f32 %v7267, %v7987
  %v8980 = vmax.f32 %v7269, %v7989
  %v8981 = vmax.f32 %v7272, %v7992
  %v8982 = vmax.f32 %v7274, %v7994
  %v8983 = vmax.f32 %v7277, %v7997
  %v8984 = vmax.f32 %v7279, %v7999
  %v8985 = vmax.f32 %v7282, %v8002
  %v8986 = vmax.f32 %v7284, %v8004
  %v8987 = vmax.f32 %v7287, %v8007
  %v8988 = vmax.f32 %v7289, %v8009
  %v8989 = vmax.f32 %v7292, %v8012
  %v8990 = vmax.f32 %v7294, %v8014
  %v8991 = vmax.f32 %v7297, %v8017
  %v8992 = vmax.f32 %v7299, %v8019
  %v8993 = vmax.f32 %v7302, %v8022
  %v8994 = vmax.f32 %v7304, %v8024
  %v8995 = vmax.f32 %v7307, %v8027
  %v8996 = vmax.f32 %v7309, %v8029
  %v8997 = vmax.f32 %v7312, %v8032
  %v8998 = vmax.f32 %v7314, %v8034
  %v8999 = vmax.f32 %v7317, %v8037
  %v9000 = vmax.f32 %v7319, %v8039
  %v9001 = vmax.f32 %v7322, %v8042
  %v9002 = vmax.f32 %v7324, %v8044
  %v9003 = vmax.f32 %v7327, %v8047
  %v9004 = vmax.f32 %v7329, %v8049
  %v9005 = vmax.f32 %v7332, %v8052
  %v9006 = vmax.f32 %v7334, %v8054
  %v9007 = vmax.f32 %v7337, %v8057
  %v9008 = vmax.f32 %v7339, %v8059
  %v9009 = vmax.f32 %v7342, %v8062
  %v9010 = vmax.f32 %v7344, %v8064
  %v9011 = vmax.f32 %v7347, %v8067
  %v9012 = vmax.f32 %v7349, %v8069
  %v9013 = vmax.f32 %v7352, %v8072
  %v9014 = vmax.f32 %v7354, %v8074
  %v9015 = vmax.f32 %v7357, %v8077
  %v9016 = vmax.f32 %v7359, %v8079
  %v9017 = vmax.f32 %v7362, %v8082
  %v9018 = vmax.f32 %v7364, %v8084
  %v9019 = vmax.f32 %v7367, %v8087
  %v9020 = vmax.f32 %v7369, %v8089
  %v9021 = vmax.f32 %v7372, %v8092
  %v9022 = vmax.f32 %v7374, %v8094
  %v9023 = vmax.f32 %v7377, %v8097
  %v9024 = vmax.f32 %v7379, %v8099
  %v9025 = vmax.f32 %v7382, %v8102
  %v9026 = vmax.f32 %v7384, %v8104
  %v9027 = vmax.f32 %v7387, %v8107
  %v9028 = vmax.f32 %v7389, %v8109
  %v9029 = vmax.f32 %v7392, %v8112
  %v9030 = vmax.f32 %v7394, %v8114
  %v9031 = vmax.f32 %v7397, %v8117
  %v9032 = vmax.f32 %v7399, %v8119
  %v9033 = vmax.f32 %v7402, %v8122
  %v9034 = vmax.f32 %v7404, %v8124
  %v9035 = vmax.f32 %v7407, %v8127
  %v9036 = vmax.f32 %v7409, %v8129
  %v9037 = vmax.f32 %v7412, %v8132
  %v9038 = vmax.f32 %v7414, %v8134
  %v9039 = vmax.f32 %v7417, %v8137
  %v9040 = vmax.f32 %v7419, %v8139
  %v9041 = vmax.f32 %v7422, %v8142
  %v9042 = vmax.f32 %v7424, %v8144
  %v9043 = vmax.f32 %v7427, %v8147
  %v9044 = vmax.f32 %v7429, %v8149
  %v9045 = vmax.f32 %v7432, %v8152
  %v9046 = vmax.f32 %v7434, %v8154
  %v9047 = vmax.f32 %v7437, %v8157
  %v9048 = vmax.f32 %v7439, %v8159
  %v9049 = vmax.f32 %v7442, %v8162
  %v9050 = vmax.f32 %v7444, %v8164
  %v9051 = vmax.f32 %v7447, %v8167
  %v9052 = vmax.f32 %v7449, %v8169
  %v9053 = vmax.f32 %v7452, %v8172
  %v9054 = vmax.f32 %v7454, %v8174
  %v9055 = vmax.f32 %v7457, %v8177
  %v9056 = vmax.f32 %v7459, %v8179
  %v9057 = vmax.f32 %v7462, %v8182
  %v9058 = vmax.f32 %v7464, %v8184
  %v9059 = vmax.f32 %v7467, %v8187
  %v9060 = vmax.f32 %v7469, %v8189
  %v9061 = vmax.f32 %v7472, %v8192
  %v9062 = vmax.f32 %v7474, %v8194
  %v9063 = vmax.f32 %v7477, %v8197
  %v9064 = vmax.f32 %v7479, %v8199
  %v9065 = vmax.f32 %v7482, %v8202
  %v9066 = vmax.f32 %v7484, %v8204
  %v9067 = vmax.f32 %v7487, %v8207
  %v9068 = vmax.f32 %v7489, %v8209
  %v9069 = vmax.f32 %v7492, %v8212
  %v9070 = vmax.f32 %v7494, %v8214
  %v9071 = vmax.f32 %v7497, %v8217
  %v9072 = vmax.f32 %v7499, %v8219
  %v9073 = vmax.f32 %v7502, %v8222
  %v9074 = vmax.f32 %v7504, %v8224
  %v9075 = vmax.f32 %v7507, %v8227
  %v9076 = vmax.f32 %v7509, %v8229
  %v9077 = vmax.f32 %v7512, %v8232
  %v9078 = vmax.f32 %v7514, %v8234
  %v9079 = vmax.f32 %v7517, %v8237
  %v9080 = vmax.f32 %v7519, %v8239
  %v9081 = vmax.f32 %v7522, %v8242
  %v9082 = vmax.f32 %v7524, %v8244
  %v9083 = vmax.f32 %v7527, %v8247
  %v9084 = vmax.f32 %v7529, %v8249
  %v9085 = vmax.f32 %v7532, %v8252
  %v9086 = vmax.f32 %v7534, %v8254
  %v9087 = vmax.f32 %v7537, %v8257
  %v9088 = vmax.f32 %v7539, %v8259
  %v9089 = vmax.f32 %v7542, %v8262
  %v9090 = vmax.f32 %v7544, %v8264
  %v9091 = vmax.f32 %v7547, %v8267
  %v9092 = vmax.f32 %v7549, %v8269
  %v9093 = vmax.f32 %v7552, %v8272
  %v9094 = vmax.f32 %v7554, %v8274
  %v9095 = vmax.f32 %v7557, %v8277
  %v9096 = vmax.f32 %v7559, %v8279
  %v9097 = vmax.f32 %v7562, %v8282
  %v9098 = vmax.f32 %v7564, %v8284
  %v9099 = vmax.f32 %v7567, %v8287
  %v9100 = vmax.f32 %v7569, %v8289
  %v9101 = vmax.f32 %v7572, %v8292
  %v9102 = vmax.f32 %v7574, %v8294
  %v9103 = vmax.f32 %v7577, %v8297
  %v9104 = vmax.f32 %v7579, %v8299
  %v9105 = vmax.f32 %v7582, %v8302
  %v9106 = vmax.f32 %v7584, %v8304
  %v9107 = vmax.f32 %v7587, %v8307
  %v9108 = vmax.f32 %v7589, %v8309
  %v9109 = vmax.f32 %v7592, %v8312
  %v9110 = vmax.f32 %v7594, %v8314
  %v9111 = vmax.f32 %v7597, %v8317
  %v9112 = vmax.f32 %v7599, %v8319
  %v9113 = vmax.f32 %v7602, %v8322
  %v9114 = vmax.f32 %v7604, %v8324
  %v9115 = vmax.f32 %v7607, %v8327
  %v9116 = vmax.f32 %v7609, %v8329
  %v9117 = vmax.f32 %v7612, %v8332
  %v9118 = vmax.f32 %v7614, %v8334
  %v9119 = vmax.f32 %v7617, %v8337
  %v9120 = vmax.f32 %v7619, %v8339
  %v9121 = vmax.f32 %v7622, %v8342
  %v9122 = vmax.f32 %v7624, %v8344
  %v9123 = vmax.f32 %v7627, %v8347
  %v9124 = vmax.f32 %v7629, %v8349
  %v9125 = vmax.f32 %v7632, %v8352
  %v9126 = vmax.f32 %v7634, %v8354
  %v9127 = vmax.f32 %v7637, %v8357
  %v9128 = vmax.f32 %v7639, %v8359
  %v9129 = vmax.f32 %v7642, %v8362
  %v9130 = vmax.f32 %v7644, %v8364
  %v9131 = vmax.f32 %v7647, %v8367
  %v9132 = vmax.f32 %v7649, %v8369
  %v9133 = vmax.f32 %v7652, %v8372
  %v9134 = vmax.f32 %v7654, %v8374
  %v9135 = vmax.f32 %v7657, %v8377
  %v9136 = vmax.f32 %v7659, %v8379
  %v9137 = vmax.f32 %v7662, %v8382
  %v9138 = vmax.f32 %v7664, %v8384
  %v9139 = vmax.f32 %v7667, %v8387
  %v9140 = vmax.f32 %v7669, %v8389
  %v9141 = vmax.f32 %v7672, %v8392
  %v9142 = vmax.f32 %v7674, %v8394
  %v9143 = vmax.f32 %v7677, %v8397
  %v9144 = vmax.f32 %v7679, %v8399
  %v9145 = vmax.f32 %v7682, %v8402
  %v9146 = vmax.f32 %v7684, %v8404
  %v9147 = vmax.f32 %v7687, %v8407
  %v9148 = vmax.f32 %v7689, %v8409
  %v9149 = vmax.f32 %v7692, %v8412
  %v9150 = vmax.f32 %v7694, %v8414
  %v9151 = vmax.f32 %v7697, %v8417
  %v9152 = vmax.f32 %v7699, %v8419
  %v9153 = vmax.f32 %v7702, %v8422
  %v9154 = vmax.f32 %v7704, %v8424
  %v9155 = vmax.f32 %v7707, %v8427
  %v9156 = vmax.f32 %v7709, %v8429
  %v9157 = vmax.f32 %v7712, %v8432
  %v9158 = vmax.f32 %v7714, %v8434
  %v9159 = vmax.f32 %v7717, %v8437
  %v9160 = vmax.f32 %v7719, %v8439
  %v9161 = vmax.f32 %v7722, %v8442
  %v9162 = vmax.f32 %v7724, %v8444
  %v9163 = vmax.f32 %v7727, %v8447
  %v9164 = vmax.f32 %v7729, %v8449
  %v9165 = vmax.f32 %v7732, %v8452
  %v9166 = vmax.f32 %v7734, %v8454
  %v9167 = vmax.f32 %v7737, %v8457
  %v9168 = vmax.f32 %v7739, %v8459
  %v9169 = vmax.f32 %v7742, %v8462
  %v9170 = vmax.f32 %v7744, %v8464
  %v9171 = vmax.f32 %v7747, %v8467
  %v9172 = vmax.f32 %v7749, %v8469
  %v9173 = vmax.f32 %v7752, %v8472
  %v9174 = vmax.f32 %v7754, %v8474
  %v9175 = vmax.f32 %v7757, %v8477
  %v9176 = vmax.f32 %v7759, %v8479
  %v9177 = vmax.f32 %v7762, %v8482
  %v9178 = vmax.f32 %v7764, %v8484
  %v9179 = vmax.f32 %v7767, %v8487
  %v9180 = vmax.f32 %v7769, %v8489
  %v9181 = vmax.f32 %v7772, %v8492
  %v9182 = vmax.f32 %v7774, %v8494
  %v9183 = vmax.f32 %v7777, %v8497
  %v9184 = vmax.f32 %v7779, %v8499
  %v9185 = vmax.f32 %v7782, %v8502
  %v9186 = vmax.f32 %v7784, %v8504
  %v9187 = vmax.f32 %v7787, %v8507
  %v9188 = vmax.f32 %v7789, %v8509
  %v9189 = vmax.f32 %v7792, %v8512
  %v9190 = vmax.f32 %v7794, %v8514
  %v9191 = vmax.f32 %v7797, %v8517
  %v9192 = vmax.f32 %v7799, %v8519
  %v9193 = vmax.f32 %v7802, %v8522
  %v9194 = vmax.f32 %v7804, %v8524
  %v9195 = vmax.f32 %v7807, %v8527
  %v9196 = vmax.f32 %v7809, %v8529
  %v9197 = vmax.f32 %v7812, %v8532
  %v9198 = vmax.f32 %v7814, %v8534
  %v9199 = vmax.f32 %v7817, %v8537
  %v9200 = vmax.f32 %v7819, %v8539
  %v9201 = vmax.f32 %v7822, %v8542
  %v9202 = vmax.f32 %v7824, %v8544
  %v9203 = vmax.f32 %v7827, %v8547
  %v9204 = vmax.f32 %v7829, %v8549
  %v9205 = vmax.f32 %v7832, %v8552
  %v9206 = vmax.f32 %v7834, %v8554
  %v9207 = vmax.f32 %v7837, %v8557
  %v9208 = vmax.f32 %v7839, %v8559
  %v9209 = vmax.f32 %v7842, %v8562
  %v9210 = vmax.f32 %v7844, %v8564
  %v9211 = vmax.f32 %v7847, %v8567
  %v9212 = vmax.f32 %v7849, %v8569
  %v9213 = vmax.f32 %v7852, %v8572
  %v9214 = vmax.f32 %v7854, %v8574
  %v9215 = vmax.f32 %v7857, %v8577
  %v9216 = vmax.f32 %v7859, %v8579
  %v9217 = vmax.f32 %v7862, %v8582
  %v9218 = vmax.f32 %v7864, %v8584
  %v9219 = vmax.f32 %v7867, %v8587
  %v9220 = vmax.f32 %v7869, %v8589
  %v9221 = vmax.f32 %v7872, %v8592
  %v9222 = vmax.f32 %v7874, %v8594
  %v9223 = vmax.f32 %v7877, %v8597
  %v9224 = vmax.f32 %v7879, %v8599
  %v9225 = vmax.f32 %v7882, %v8602
  %v9226 = vmax.f32 %v7884, %v8604
  %v9227 = vmax.f32 %v7887, %v8607
  %v9228 = vmax.f32 %v7889, %v8609
  %v9229 = vmax.f32 %v7892, %v8612
  %v9230 = vmax.f32 %v7894, %v8614
  %v9231 = vmax.f32 %v7897, %v8617
  %v9232 = vmax.f32 %v7899, %v8619
  %v9233 = vmax.f32 %v7902, %v8622
  %v9234 = vmax.f32 %v7904, %v8624
  %v9235 = vmax.f32 %v7907, %v8627
  %v9236 = vmax.f32 %v7909, %v8629
  %v9237 = vmax.f32 %v7912, %v8632
  %v9238 = vmax.f32 %v7914, %v8634
  %v9239 = vmax.f32 %v7917, %v8637
  %v9240 = vmax.f32 %v7919, %v8639
  %v9241 = vmax.f32 %v7922, %v8642
  %v9242 = vmax.f32 %v7924, %v8644
  %v9243 = vmax.f32 %v7927, %v8647
  %v9244 = vmax.f32 %v7929, %v8649
  %v9245 = vmax.f32 %v7932, %v8652
  %v9246 = vmax.f32 %v7934, %v8654
  %v9247 = vmax.f32 %v7937, %v8657
  %v9248 = vmax.f32 %v7939, %v8659
  %v9249 = vmax.f32 %v7942, %v8662
  %v9250 = vmax.f32 %v7944, %v8664
  %v9251 = vmax.f32 %v7947, %v8667
  %v9252 = vmax.f32 %v7949, %v8669
  %v9253 = vmax.f32 %v7952, %v8672
  %v9254 = vmax.f32 %v7954, %v8674
  %v9255 = vmax.f32 %v7957, %v8677
  %v9256 = vmax.f32 %v7959, %v8679
  %v9257 = vmax.f32 %v8681, %v8969
  %v9258 = vmax.f32 %v8682, %v8970
  %v9259 = vmax.f32 %v8683, %v8971
  %v9260 = vmax.f32 %v8684, %v8972
  %v9261 = vmax.f32 %v8685, %v8973
  %v9262 = vmax.f32 %v8686, %v8974
  %v9263 = vmax.f32 %v8687, %v8975
  %v9264 = vmax.f32 %v8688, %v8976
  %v9265 = vmax.f32 %v8689, %v8977
  %v9266 = vmax.f32 %v8690, %v8978
  %v9267 = vmax.f32 %v8691, %v8979
  %v9268 = vmax.f32 %v8692, %v8980
  %v9269 = vmax.f32 %v8693, %v8981
  %v9270 = vmax.f32 %v8694, %v8982
  %v9271 = vmax.f32 %v8695, %v8983
  %v9272 = vmax.f32 %v8696, %v8984
  %v9273 = vmax.f32 %v8697, %v8985
  %v9274 = vmax.f32 %v8698, %v8986
  %v9275 = vmax.f32 %v8699, %v8987
  %v9276 = vmax.f32 %v8700, %v8988
  %v9277 = vmax.f32 %v8701, %v8989
  %v9278 = vmax.f32 %v8702, %v8990
  %v9279 = vmax.f32 %v8703, %v8991
  %v9280 = vmax.f32 %v8704, %v8992
  %v9281 = vmax.f32 %v8705, %v8993
  %v9282 = vmax.f32 %v8706, %v8994
  %v9283 = vmax.f32 %v8707, %v8995
  %v9284 = vmax.f32 %v8708, %v8996
  %v9285 = vmax.f32 %v8709, %v8997
  %v9286 = vmax.f32 %v8710, %v8998
  %v9287 = vmax.f32 %v8711, %v8999
  %v9288 = vmax.f32 %v8712, %v9000
  %v9289 = vmax.f32 %v8713, %v9001
  %v9290 = vmax.f32 %v8714, %v9002
  %v9291 = vmax.f32 %v8715, %v9003
  %v9292 = vmax.f32 %v8716, %v9004
  %v9293 = vmax.f32 %v8717, %v9005
  %v9294 = vmax.f32 %v8718, %v9006
  %v9295 = vmax.f32 %v8719, %v9007
  %v9296 = vmax.f32 %v8720, %v9008
  %v9297 = vmax.f32 %v8721, %v9009
  %v9298 = vmax.f32 %v8722, %v9010
  %v9299 = vmax.f32 %v8723, %v9011
  %v9300 = vmax.f32 %v8724, %v9012
  %v9301 = vmax.f32 %v8725, %v9013
  %v9302 = vmax.f32 %v8726, %v9014
  %v9303 = vmax.f32 %v8727, %v9015
  %v9304 = vmax.f32 %v8728, %v9016
  %v9305 = vmax.f32 %v8729, %v9017
  %v9306 = vmax.f32 %v8730, %v9018
  %v9307 = vmax.f32 %v8731, %v9019
  %v9308 = vmax.f32 %v8732, %v9020
  %v9309 = vmax.f32 %v8733, %v9021
  %v9310 = vmax.f32 %v8734, %v9022
  %v9311 = vmax.f32 %v8735, %v9023
  %v9312 = vmax.f32 %v8736, %v9024
  %v9313 = vmax.f32 %v8737, %v9025
  %v9314 = vmax.f32 %v8738, %v9026
  %v9315 = vmax.f32 %v8739, %v9027
  %v9316 = vmax.f32 %v8740, %v9028
  %v9317 = vmax.f32 %v8741, %v9029
  %v9318 = vmax.f32 %v8742, %v9030
  %v9319 = vmax.f32 %v8743, %v9031
  %v9320 = vmax.f32 %v8744, %v9032
  %v9321 = vmax.f32 %v8745, %v9033
  %v9322 = vmax.f32 %v8746, %v9034
  %v9323 = vmax.f32 %v8747, %v9035
  %v9324 = vmax.f32 %v8748, %v9036
  %v9325 = vmax.f32 %v8749, %v9037
  %v9326 = vmax.f32 %v8750, %v9038
  %v9327 = vmax.f32 %v8751, %v9039
  %v9328 = vmax.f32 %v8752, %v9040
  %v9329 = vmax.f32 %v8753, %v9041
  %v9330 = vmax.f32 %v8754, %v9042
  %v9331 = vmax.f32 %v8755, %v9043
  %v9332 = vmax.f32 %v8756, %v9044
  %v9333 = vmax.f32 %v8757, %v9045
  %v9334 = vmax.f32 %v8758, %v9046
  %v9335 = vmax.f32 %v8759, %v9047
  %v9336 = vmax.f32 %v8760, %v9048
  %v9337 = vmax.f32 %v8761, %v9049
  %v9338 = vmax.f32 %v8762, %v9050
  %v9339 = vmax.f32 %v8763, %v9051
  %v9340 = vmax.f32 %v8764, %v9052
  %v9341 = vmax.f32 %v8765, %v9053
  %v9342 = vmax.f32 %v8766, %v9054
  %v9343 = vmax.f32 %v8767, %v9055
  %v9344 = vmax.f32 %v8768, %v9056
  %v9345 = vmax.f32 %v8769, %v9057
  %v9346 = vmax.f32 %v8770, %v9058
  %v9347 = vmax.f32 %v8771, %v9059
  %v9348 = vmax.f32 %v8772, %v9060
  %v9349 = vmax.f32 %v8773, %v9061
  %v9350 = vmax.f32 %v8774, %v9062
  %v9351 = vmax.f32 %v8775, %v9063
  %v9352 = vmax.f32 %v8776, %v9064
  %v9353 = vmax.f32 %v8777, %v9065
  %v9354 = vmax.f32 %v8778, %v9066
  %v9355 = vmax.f32 %v8779, %v9067
  %v9356 = vmax.f32 %v8780, %v9068
  %v9357 = vmax.f32 %v8781, %v9069
  %v9358 = vmax.f32 %v8782, %v9070
  %v9359 = vmax.f32 %v8783, %v9071
  %v9360 = vmax.f32 %v8784, %v9072
  %v9361 = vmax.f32 %v8785, %v9073
  %v9362 = vmax.f32 %v8786, %v9074
  %v9363 = vmax.f32 %v8787, %v9075
  %v9364 = vmax.f32 %v8788, %v9076
  %v9365 = vmax.f32 %v8789, %v9077
  %v9366 = vmax.f32 %v8790, %v9078
  %v9367 = vmax.f32 %v8791, %v9079
  %v9368 = vmax.f32 %v8792, %v9080
  %v9369 = vmax.f32 %v8793, %v9081
  %v9370 = vmax.f32 %v8794, %v9082
  %v9371 = vmax.f32 %v8795, %v9083
  %v9372 = vmax.f32 %v8796, %v9084
  %v9373 = vmax.f32 %v8797, %v9085
  %v9374 = vmax.f32 %v8798, %v9086
  %v9375 = vmax.f32 %v8799, %v9087
  %v9376 = vmax.f32 %v8800, %v9088
  %v9377 = vmax.f32 %v8801, %v9089
  %v9378 = vmax.f32 %v8802, %v9090
  %v9379 = vmax.f32 %v8803, %v9091
  %v9380 = vmax.f32 %v8804, %v9092
  %v9381 = vmax.f32 %v8805, %v9093
  %v9382 = vmax.f32 %v8806, %v9094
  %v9383 = vmax.f32 %v8807, %v9095
  %v9384 = vmax.f32 %v8808, %v9096
  %v9385 = vmax.f32 %v8809, %v9097
  %v9386 = vmax.f32 %v8810, %v9098
  %v9387 = vmax.f32 %v8811, %v9099
  %v9388 = vmax.f32 %v8812, %v9100
  %v9389 = vmax.f32 %v8813, %v9101
  %v9390 = vmax.f32 %v8814, %v9102
  %v9391 = vmax.f32 %v8815, %v9103
  %v9392 = vmax.f32 %v8816, %v9104
  %v9393 = vmax.f32 %v8817, %v9105
  %v9394 = vmax.f32 %v8818, %v9106
  %v9395 = vmax.f32 %v8819, %v9107
  %v9396 = vmax.f32 %v8820, %v9108
  %v9397 = vmax.f32 %v8821, %v9109
  %v9398 = vmax.f32 %v8822, %v9110
  %v9399 = vmax.f32 %v8823, %v9111
  %v9400 = vmax.f32 %v8824, %v9112
  %v9401 = vmax.f32 %v8825, %v9113
  %v9402 = vmax.f32 %v8826, %v9114
  %v9403 = vmax.f32 %v8827, %v9115
  %v9404 = vmax.f32 %v8828, %v9116
  %v9405 = vmax.f32 %v8829, %v9117
  %v9406 = vmax.f32 %v8830, %v9118
  %v9407 = vmax.f32 %v8831, %v9119
  %v9408 = vmax.f32 %v8832, %v9120
  %v9409 = vmax.f32 %v8833, %v9121
  %v9410 = vmax.f32 %v8834, %v9122
  %v9411 = vmax.f32 %v8835, %v9123
  %v9412 = vmax.f32 %v8836, %v9124
  %v9413 = vmax.f32 %v8837, %v9125
  %v9414 = vmax.f32 %v8838, %v9126
  %v9415 = vmax.f32 %v8839, %v9127
  %v9416 = vmax.f32 %v8840, %v9128
  %v9417 = vmax.f32 %v8841, %v9129
  %v9418 = vmax.f32 %v8842, %v9130
  %v9419 = vmax.f32 %v8843, %v9131
  %v9420 = vmax.f32 %v8844, %v9132
  %v9421 = vmax.f32 %v8845, %v9133
  %v9422 = vmax.f32 %v8846, %v9134
  %v9423 = vmax.f32 %v8847, %v9135
  %v9424 = vmax.f32 %v8848, %v9136
  %v9425 = vmax.f32 %v8849, %v9137
  %v9426 = vmax.f32 %v8850, %v9138
  %v9427 = vmax.f32 %v8851, %v9139
  %v9428 = vmax.f32 %v8852, %v9140
  %v9429 = vmax.f32 %v8853, %v9141
  %v9430 = vmax.f32 %v8854, %v9142
  %v9431 = vmax.f32 %v8855, %v9143
  %v9432 = vmax.f32 %v8856, %v9144
  %v9433 = vmax.f32 %v8857, %v9145
  %v9434 = vmax.f32 %v8858, %v9146
  %v9435 = vmax.f32 %v8859, %v9147
  %v9436 = vmax.f32 %v8860, %v9148
  %v9437 = vmax.f32 %v8861, %v9149
  %v9438 = vmax.f32 %v8862, %v9150
  %v9439 = vmax.f32 %v8863, %v9151
  %v9440 = vmax.f32 %v8864, %v9152
  %v9441 = vmax.f32 %v8865, %v9153
  %v9442 = vmax.f32 %v8866, %v9154
  %v9443 = vmax.f32 %v8867, %v9155
  %v9444 = vmax.f32 %v8868, %v9156
  %v9445 = vmax.f32 %v8869, %v9157
  %v9446 = vmax.f32 %v8870, %v9158
  %v9447 = vmax.f32 %v8871, %v9159
  %v9448 = vmax.f32 %v8872, %v9160
  %v9449 = vmax.f32 %v8873, %v9161
  %v9450 = vmax.f32 %v8874, %v9162
  %v9451 = vmax.f32 %v8875, %v9163
  %v9452 = vmax.f32 %v8876, %v9164
  %v9453 = vmax.f32 %v8877, %v9165
  %v9454 = vmax.f32 %v8878, %v9166
  %v9455 = vmax.f32 %v8879, %v9167
  %v9456 = vmax.f32 %v8880, %v9168
  %v9457 = vmax.f32 %v8881, %v9169
  %v9458 = vmax.f32 %v8882, %v9170
  %v9459 = vmax.f32 %v8883, %v9171
  %v9460 = vmax.f32 %v8884, %v9172
  %v9461 = vmax.f32 %v8885, %v9173
  %v9462 = vmax.f32 %v8886, %v9174
  %v9463 = vmax.f32 %v8887, %v9175
  %v9464 = vmax.f32 %v8888, %v9176
  %v9465 = vmax.f32 %v8889, %v9177
  %v9466 = vmax.f32 %v8890, %v9178
  %v9467 = vmax.f32 %v8891, %v9179
  %v9468 = vmax.f32 %v8892, %v9180
  %v9469 = vmax.f32 %v8893, %v9181
  %v9470 = vmax.f32 %v8894, %v9182
  %v9471 = vmax.f32 %v8895, %v9183
  %v9472 = vmax.f32 %v8896, %v9184
  %v9473 = vmax.f32 %v8897, %v9185
  %v9474 = vmax.f32 %v8898, %v9186
  %v9475 = vmax.f32 %v8899, %v9187
  %v9476 = vmax.f32 %v8900, %v9188
  %v9477 = vmax.f32 %v8901, %v9189
  %v9478 = vmax.f32 %v8902, %v9190
  %v9479 = vmax.f32 %v8903, %v9191
  %v9480 = vmax.f32 %v8904, %v9192
  %v9481 = vmax.f32 %v8905, %v9193
  %v9482 = vmax.f32 %v8906, %v9194
  %v9483 = vmax.f32 %v8907, %v9195
  %v9484 = vmax.f32 %v8908, %v9196
  %v9485 = vmax.f32 %v8909, %v9197
  %v9486 = vmax.f32 %v8910, %v9198
  %v9487 = vmax.f32 %v8911, %v9199
  %v9488 = vmax.f32 %v8912, %v9200
  %v9489 = vmax.f32 %v8913, %v9201
  %v9490 = vmax.f32 %v8914, %v9202
  %v9491 = vmax.f32 %v8915, %v9203
  %v9492 = vmax.f32 %v8916, %v9204
  %v9493 = vmax.f32 %v8917, %v9205
  %v9494 = vmax.f32 %v8918, %v9206
  %v9495 = vmax.f32 %v8919, %v9207
  %v9496 = vmax.f32 %v8920, %v9208
  %v9497 = vmax.f32 %v8921, %v9209
  %v9498 = vmax.f32 %v8922, %v9210
  %v9499 = vmax.f32 %v8923, %v9211
  %v9500 = vmax.f32 %v8924, %v9212
  %v9501 = vmax.f32 %v8925, %v9213
  %v9502 = vmax.f32 %v8926, %v9214
  %v9503 = vmax.f32 %v8927, %v9215
  %v9504 = vmax.f32 %v8928, %v9216
  %v9505 = vmax.f32 %v8929, %v9217
  %v9506 = vmax.f32 %v8930, %v9218
  %v9507 = vmax.f32 %v8931, %v9219
  %v9508 = vmax.f32 %v8932, %v9220
  %v9509 = vmax.f32 %v8933, %v9221
  %v9510 = vmax.f32 %v8934, %v9222
  %v9511 = vmax.f32 %v8935, %v9223
  %v9512 = vmax.f32 %v8936, %v9224
  %v9513 = vmax.f32 %v8937, %v9225
  %v9514 = vmax.f32 %v8938, %v9226
  %v9515 = vmax.f32 %v8939, %v9227
  %v9516 = vmax.f32 %v8940, %v9228
  %v9517 = vmax.f32 %v8941, %v9229
  %v9518 = vmax.f32 %v8942, %v9230
  %v9519 = vmax.f32 %v8943, %v9231
  %v9520 = vmax.f32 %v8944, %v9232
  %v9521 = vmax.f32 %v8945, %v9233
  %v9522 = vmax.f32 %v8946, %v9234
  %v9523 = vmax.f32 %v8947, %v9235
  %v9524 = vmax.f32 %v8948, %v9236
  %v9525 = vmax.f32 %v8949, %v9237
  %v9526 = vmax.f32 %v8950, %v9238
  %v9527 = vmax.f32 %v8951, %v9239
  %v9528 = vmax.f32 %v8952, %v9240
  %v9529 = vmax.f32 %v8953, %v9241
  %v9530 = vmax.f32 %v8954, %v9242
  %v9531 = vmax.f32 %v8955, %v9243
  %v9532 = vmax.f32 %v8956, %v9244
  %v9533 = vmax.f32 %v8957, %v9245
  %v9534 = vmax.f32 %v8958, %v9246
  %v9535 = vmax.f32 %v8959, %v9247
  %v9536 = vmax.f32 %v8960, %v9248
  %v9537 = vmax.f32 %v8961, %v9249
  %v9538 = vmax.f32 %v8962, %v9250
  %v9539 = vmax.f32 %v8963, %v9251
  %v9540 = vmax.f32 %v8964, %v9252
  %v9541 = vmax.f32 %v8965, %v9253
  %v9542 = vmax.f32 %v8966, %v9254
  %v9543 = vmax.f32 %v8967, %v9255
  %v9544 = vmax.f32 %v8968, %v9256
  %v9545 = vld [vmem:[%s2] sm:$0x1]
  %v9547 = vperm.slane %v9545, 0
  %v9549 = vadd.f32 %v9257, %v9547
  %v9550 = vadd.f32 %v9258, %v9547
  %v9551 = vadd.f32 %v9259, %v9547
  %v9552 = vadd.f32 %v9260, %v9547
  %v9553 = vadd.f32 %v9261, %v9547
  %v9554 = vadd.f32 %v9262, %v9547
  %v9555 = vadd.f32 %v9263, %v9547
  %v9556 = vadd.f32 %v9264, %v9547
  %v9557 = vadd.f32 %v9265, %v9547
  %v9558 = vadd.f32 %v9266, %v9547
  %v9559 = vadd.f32 %v9267, %v9547
  %v9560 = vadd.f32 %v9268, %v9547
  %v9561 = vadd.f32 %v9269, %v9547
  %v9562 = vadd.f32 %v9270, %v9547
  %v9563 = vadd.f32 %v9271, %v9547
  %v9564 = vadd.f32 %v9272, %v9547
  %v9565 = vadd.f32 %v9273, %v9547
  %v9566 = vadd.f32 %v9274, %v9547
  %v9567 = vadd.f32 %v9275, %v9547
  %v9568 = vadd.f32 %v9276, %v9547
  %v9569 = vadd.f32 %v9277, %v9547
  %v9570 = vadd.f32 %v9278, %v9547
  %v9571 = vadd.f32 %v9279, %v9547
  %v9572 = vadd.f32 %v9280, %v9547
  %v9573 = vadd.f32 %v9281, %v9547
  %v9574 = vadd.f32 %v9282, %v9547
  %v9575 = vadd.f32 %v9283, %v9547
  %v9576 = vadd.f32 %v9284, %v9547
  %v9577 = vadd.f32 %v9285, %v9547
  %v9578 = vadd.f32 %v9286, %v9547
  %v9579 = vadd.f32 %v9287, %v9547
  %v9580 = vadd.f32 %v9288, %v9547
  %v9581 = vadd.f32 %v9289, %v9547
  %v9582 = vadd.f32 %v9290, %v9547
  %v9583 = vadd.f32 %v9291, %v9547
  %v9584 = vadd.f32 %v9292, %v9547
  %v9585 = vadd.f32 %v9293, %v9547
  %v9586 = vadd.f32 %v9294, %v9547
  %v9587 = vadd.f32 %v9295, %v9547
  %v9588 = vadd.f32 %v9296, %v9547
  %v9589 = vadd.f32 %v9297, %v9547
  %v9590 = vadd.f32 %v9298, %v9547
  %v9591 = vadd.f32 %v9299, %v9547
  %v9592 = vadd.f32 %v9300, %v9547
  %v9593 = vadd.f32 %v9301, %v9547
  %v9594 = vadd.f32 %v9302, %v9547
  %v9595 = vadd.f32 %v9303, %v9547
  %v9596 = vadd.f32 %v9304, %v9547
  %v9597 = vadd.f32 %v9305, %v9547
  %v9598 = vadd.f32 %v9306, %v9547
  %v9599 = vadd.f32 %v9307, %v9547
  %v9600 = vadd.f32 %v9308, %v9547
  %v9601 = vadd.f32 %v9309, %v9547
  %v9602 = vadd.f32 %v9310, %v9547
  %v9603 = vadd.f32 %v9311, %v9547
  %v9604 = vadd.f32 %v9312, %v9547
  %v9605 = vadd.f32 %v9313, %v9547
  %v9606 = vadd.f32 %v9314, %v9547
  %v9607 = vadd.f32 %v9315, %v9547
  %v9608 = vadd.f32 %v9316, %v9547
  %v9609 = vadd.f32 %v9317, %v9547
  %v9610 = vadd.f32 %v9318, %v9547
  %v9611 = vadd.f32 %v9319, %v9547
  %v9612 = vadd.f32 %v9320, %v9547
  %v9613 = vadd.f32 %v9321, %v9547
  %v9614 = vadd.f32 %v9322, %v9547
  %v9615 = vadd.f32 %v9323, %v9547
  %v9616 = vadd.f32 %v9324, %v9547
  %v9617 = vadd.f32 %v9325, %v9547
  %v9618 = vadd.f32 %v9326, %v9547
  %v9619 = vadd.f32 %v9327, %v9547
  %v9620 = vadd.f32 %v9328, %v9547
  %v9621 = vadd.f32 %v9329, %v9547
  %v9622 = vadd.f32 %v9330, %v9547
  %v9623 = vadd.f32 %v9331, %v9547
  %v9624 = vadd.f32 %v9332, %v9547
  %v9625 = vadd.f32 %v9333, %v9547
  %v9626 = vadd.f32 %v9334, %v9547
  %v9627 = vadd.f32 %v9335, %v9547
  %v9628 = vadd.f32 %v9336, %v9547
  %v9629 = vadd.f32 %v9337, %v9547
  %v9630 = vadd.f32 %v9338, %v9547
  %v9631 = vadd.f32 %v9339, %v9547
  %v9632 = vadd.f32 %v9340, %v9547
  %v9633 = vadd.f32 %v9341, %v9547
  %v9634 = vadd.f32 %v9342, %v9547
  %v9635 = vadd.f32 %v9343, %v9547
  %v9636 = vadd.f32 %v9344, %v9547
  %v9637 = vadd.f32 %v9345, %v9547
  %v9638 = vadd.f32 %v9346, %v9547
  %v9639 = vadd.f32 %v9347, %v9547
  %v9640 = vadd.f32 %v9348, %v9547
  %v9641 = vadd.f32 %v9349, %v9547
  %v9642 = vadd.f32 %v9350, %v9547
  %v9643 = vadd.f32 %v9351, %v9547
  %v9644 = vadd.f32 %v9352, %v9547
  %v9645 = vadd.f32 %v9353, %v9547
  %v9646 = vadd.f32 %v9354, %v9547
  %v9647 = vadd.f32 %v9355, %v9547
  %v9648 = vadd.f32 %v9356, %v9547
  %v9649 = vadd.f32 %v9357, %v9547
  %v9650 = vadd.f32 %v9358, %v9547
  %v9651 = vadd.f32 %v9359, %v9547
  %v9652 = vadd.f32 %v9360, %v9547
  %v9653 = vadd.f32 %v9361, %v9547
  %v9654 = vadd.f32 %v9362, %v9547
  %v9655 = vadd.f32 %v9363, %v9547
  %v9656 = vadd.f32 %v9364, %v9547
  %v9657 = vadd.f32 %v9365, %v9547
  %v9658 = vadd.f32 %v9366, %v9547
  %v9659 = vadd.f32 %v9367, %v9547
  %v9660 = vadd.f32 %v9368, %v9547
  %v9661 = vadd.f32 %v9369, %v9547
  %v9662 = vadd.f32 %v9370, %v9547
  %v9663 = vadd.f32 %v9371, %v9547
  %v9664 = vadd.f32 %v9372, %v9547
  %v9665 = vadd.f32 %v9373, %v9547
  %v9666 = vadd.f32 %v9374, %v9547
  %v9667 = vadd.f32 %v9375, %v9547
  %v9668 = vadd.f32 %v9376, %v9547
  %v9669 = vadd.f32 %v9377, %v9547
  %v9670 = vadd.f32 %v9378, %v9547
  %v9671 = vadd.f32 %v9379, %v9547
  %v9672 = vadd.f32 %v9380, %v9547
  %v9673 = vadd.f32 %v9381, %v9547
  %v9674 = vadd.f32 %v9382, %v9547
  %v9675 = vadd.f32 %v9383, %v9547
  %v9676 = vadd.f32 %v9384, %v9547
  %v9677 = vadd.f32 %v9385, %v9547
  %v9678 = vadd.f32 %v9386, %v9547
  %v9679 = vadd.f32 %v9387, %v9547
  %v9680 = vadd.f32 %v9388, %v9547
  %v9681 = vadd.f32 %v9389, %v9547
  %v9682 = vadd.f32 %v9390, %v9547
  %v9683 = vadd.f32 %v9391, %v9547
  %v9684 = vadd.f32 %v9392, %v9547
  %v9685 = vadd.f32 %v9393, %v9547
  %v9686 = vadd.f32 %v9394, %v9547
  %v9687 = vadd.f32 %v9395, %v9547
  %v9688 = vadd.f32 %v9396, %v9547
  %v9689 = vadd.f32 %v9397, %v9547
  %v9690 = vadd.f32 %v9398, %v9547
  %v9691 = vadd.f32 %v9399, %v9547
  %v9692 = vadd.f32 %v9400, %v9547
  %v9693 = vadd.f32 %v9401, %v9547
  %v9694 = vadd.f32 %v9402, %v9547
  %v9695 = vadd.f32 %v9403, %v9547
  %v9696 = vadd.f32 %v9404, %v9547
  %v9697 = vadd.f32 %v9405, %v9547
  %v9698 = vadd.f32 %v9406, %v9547
  %v9699 = vadd.f32 %v9407, %v9547
  %v9700 = vadd.f32 %v9408, %v9547
  %v9701 = vadd.f32 %v9409, %v9547
  %v9702 = vadd.f32 %v9410, %v9547
  %v9703 = vadd.f32 %v9411, %v9547
  %v9704 = vadd.f32 %v9412, %v9547
  %v9705 = vadd.f32 %v9413, %v9547
  %v9706 = vadd.f32 %v9414, %v9547
  %v9707 = vadd.f32 %v9415, %v9547
  %v9708 = vadd.f32 %v9416, %v9547
  %v9709 = vadd.f32 %v9417, %v9547
  %v9710 = vadd.f32 %v9418, %v9547
  %v9711 = vadd.f32 %v9419, %v9547
  %v9712 = vadd.f32 %v9420, %v9547
  %v9713 = vadd.f32 %v9421, %v9547
  %v9714 = vadd.f32 %v9422, %v9547
  %v9715 = vadd.f32 %v9423, %v9547
  %v9716 = vadd.f32 %v9424, %v9547
  %v9717 = vadd.f32 %v9425, %v9547
  %v9718 = vadd.f32 %v9426, %v9547
  %v9719 = vadd.f32 %v9427, %v9547
  %v9720 = vadd.f32 %v9428, %v9547
  %v9721 = vadd.f32 %v9429, %v9547
  %v9722 = vadd.f32 %v9430, %v9547
  %v9723 = vadd.f32 %v9431, %v9547
  %v9724 = vadd.f32 %v9432, %v9547
  %v9725 = vadd.f32 %v9433, %v9547
  %v9726 = vadd.f32 %v9434, %v9547
  %v9727 = vadd.f32 %v9435, %v9547
  %v9728 = vadd.f32 %v9436, %v9547
  %v9729 = vadd.f32 %v9437, %v9547
  %v9730 = vadd.f32 %v9438, %v9547
  %v9731 = vadd.f32 %v9439, %v9547
  %v9732 = vadd.f32 %v9440, %v9547
  %v9733 = vadd.f32 %v9441, %v9547
  %v9734 = vadd.f32 %v9442, %v9547
  %v9735 = vadd.f32 %v9443, %v9547
  %v9736 = vadd.f32 %v9444, %v9547
  %v9737 = vadd.f32 %v9445, %v9547
  %v9738 = vadd.f32 %v9446, %v9547
  %v9739 = vadd.f32 %v9447, %v9547
  %v9740 = vadd.f32 %v9448, %v9547
  %v9741 = vadd.f32 %v9449, %v9547
  %v9742 = vadd.f32 %v9450, %v9547
  %v9743 = vadd.f32 %v9451, %v9547
  %v9744 = vadd.f32 %v9452, %v9547
  %v9745 = vadd.f32 %v9453, %v9547
  %v9746 = vadd.f32 %v9454, %v9547
  %v9747 = vadd.f32 %v9455, %v9547
  %v9748 = vadd.f32 %v9456, %v9547
  %v9749 = vadd.f32 %v9457, %v9547
  %v9750 = vadd.f32 %v9458, %v9547
  %v9751 = vadd.f32 %v9459, %v9547
  %v9752 = vadd.f32 %v9460, %v9547
  %v9753 = vadd.f32 %v9461, %v9547
  %v9754 = vadd.f32 %v9462, %v9547
  %v9755 = vadd.f32 %v9463, %v9547
  %v9756 = vadd.f32 %v9464, %v9547
  %v9757 = vadd.f32 %v9465, %v9547
  %v9758 = vadd.f32 %v9466, %v9547
  %v9759 = vadd.f32 %v9467, %v9547
  %v9760 = vadd.f32 %v9468, %v9547
  %v9761 = vadd.f32 %v9469, %v9547
  %v9762 = vadd.f32 %v9470, %v9547
  %v9763 = vadd.f32 %v9471, %v9547
  %v9764 = vadd.f32 %v9472, %v9547
  %v9765 = vadd.f32 %v9473, %v9547
  %v9766 = vadd.f32 %v9474, %v9547
  %v9767 = vadd.f32 %v9475, %v9547
  %v9768 = vadd.f32 %v9476, %v9547
  %v9769 = vadd.f32 %v9477, %v9547
  %v9770 = vadd.f32 %v9478, %v9547
  %v9771 = vadd.f32 %v9479, %v9547
  %v9772 = vadd.f32 %v9480, %v9547
  %v9773 = vadd.f32 %v9481, %v9547
  %v9774 = vadd.f32 %v9482, %v9547
  %v9775 = vadd.f32 %v9483, %v9547
  %v9776 = vadd.f32 %v9484, %v9547
  %v9777 = vadd.f32 %v9485, %v9547
  %v9778 = vadd.f32 %v9486, %v9547
  %v9779 = vadd.f32 %v9487, %v9547
  %v9780 = vadd.f32 %v9488, %v9547
  %v9781 = vadd.f32 %v9489, %v9547
  %v9782 = vadd.f32 %v9490, %v9547
  %v9783 = vadd.f32 %v9491, %v9547
  %v9784 = vadd.f32 %v9492, %v9547
  %v9785 = vadd.f32 %v9493, %v9547
  %v9786 = vadd.f32 %v9494, %v9547
  %v9787 = vadd.f32 %v9495, %v9547
  %v9788 = vadd.f32 %v9496, %v9547
  %v9789 = vadd.f32 %v9497, %v9547
  %v9790 = vadd.f32 %v9498, %v9547
  %v9791 = vadd.f32 %v9499, %v9547
  %v9792 = vadd.f32 %v9500, %v9547
  %v9793 = vadd.f32 %v9501, %v9547
  %v9794 = vadd.f32 %v9502, %v9547
  %v9795 = vadd.f32 %v9503, %v9547
  %v9796 = vadd.f32 %v9504, %v9547
  %v9797 = vadd.f32 %v9505, %v9547
  %v9798 = vadd.f32 %v9506, %v9547
  %v9799 = vadd.f32 %v9507, %v9547
  %v9800 = vadd.f32 %v9508, %v9547
  %v9801 = vadd.f32 %v9509, %v9547
  %v9802 = vadd.f32 %v9510, %v9547
  %v9803 = vadd.f32 %v9511, %v9547
  %v9804 = vadd.f32 %v9512, %v9547
  %v9805 = vadd.f32 %v9513, %v9547
  %v9806 = vadd.f32 %v9514, %v9547
  %v9807 = vadd.f32 %v9515, %v9547
  %v9808 = vadd.f32 %v9516, %v9547
  %v9809 = vadd.f32 %v9517, %v9547
  %v9810 = vadd.f32 %v9518, %v9547
  %v9811 = vadd.f32 %v9519, %v9547
  %v9812 = vadd.f32 %v9520, %v9547
  %v9813 = vadd.f32 %v9521, %v9547
  %v9814 = vadd.f32 %v9522, %v9547
  %v9815 = vadd.f32 %v9523, %v9547
  %v9816 = vadd.f32 %v9524, %v9547
  %v9817 = vadd.f32 %v9525, %v9547
  %v9818 = vadd.f32 %v9526, %v9547
  %v9819 = vadd.f32 %v9527, %v9547
  %v9820 = vadd.f32 %v9528, %v9547
  %v9821 = vadd.f32 %v9529, %v9547
  %v9822 = vadd.f32 %v9530, %v9547
  %v9823 = vadd.f32 %v9531, %v9547
  %v9824 = vadd.f32 %v9532, %v9547
  %v9825 = vadd.f32 %v9533, %v9547
  %v9826 = vadd.f32 %v9534, %v9547
  %v9827 = vadd.f32 %v9535, %v9547
  %v9828 = vadd.f32 %v9536, %v9547
  %v9829 = vadd.f32 %v9537, %v9547
  %v9830 = vadd.f32 %v9538, %v9547
  %v9831 = vadd.f32 %v9539, %v9547
  %v9832 = vadd.f32 %v9540, %v9547
  %v9833 = vadd.f32 %v9541, %v9547
  %v9834 = vadd.f32 %v9542, %v9547
  %v9835 = vadd.f32 %v9543, %v9547
  %v9836 = vadd.f32 %v9544, %v9547
  %v9837 = vmax.f32 %v9549, 0.0
  %v9838 = vmax.f32 %v9550, 0.0
  %v9839 = vmax.f32 %v9551, 0.0
  %v9840 = vmax.f32 %v9552, 0.0
  %v9841 = vmax.f32 %v9553, 0.0
  %v9842 = vmax.f32 %v9554, 0.0
  %v9843 = vmax.f32 %v9555, 0.0
  %v9844 = vmax.f32 %v9556, 0.0
  %v9845 = vmax.f32 %v9557, 0.0
  %v9846 = vmax.f32 %v9558, 0.0
  %v9847 = vmax.f32 %v9559, 0.0
  %v9848 = vmax.f32 %v9560, 0.0
  %v9849 = vmax.f32 %v9561, 0.0
  %v9850 = vmax.f32 %v9562, 0.0
  %v9851 = vmax.f32 %v9563, 0.0
  %v9852 = vmax.f32 %v9564, 0.0
  %v9853 = vmax.f32 %v9565, 0.0
  %v9854 = vmax.f32 %v9566, 0.0
  %v9855 = vmax.f32 %v9567, 0.0
  %v9856 = vmax.f32 %v9568, 0.0
  %v9857 = vmax.f32 %v9569, 0.0
  %v9858 = vmax.f32 %v9570, 0.0
  %v9859 = vmax.f32 %v9571, 0.0
  %v9860 = vmax.f32 %v9572, 0.0
  %v9861 = vmax.f32 %v9573, 0.0
  %v9862 = vmax.f32 %v9574, 0.0
  %v9863 = vmax.f32 %v9575, 0.0
  %v9864 = vmax.f32 %v9576, 0.0
  %v9865 = vmax.f32 %v9577, 0.0
  %v9866 = vmax.f32 %v9578, 0.0
  %v9867 = vmax.f32 %v9579, 0.0
  %v9868 = vmax.f32 %v9580, 0.0
  %v9869 = vmax.f32 %v9581, 0.0
  %v9870 = vmax.f32 %v9582, 0.0
  %v9871 = vmax.f32 %v9583, 0.0
  %v9872 = vmax.f32 %v9584, 0.0
  %v9873 = vmax.f32 %v9585, 0.0
  %v9874 = vmax.f32 %v9586, 0.0
  %v9875 = vmax.f32 %v9587, 0.0
  %v9876 = vmax.f32 %v9588, 0.0
  %v9877 = vmax.f32 %v9589, 0.0
  %v9878 = vmax.f32 %v9590, 0.0
  %v9879 = vmax.f32 %v9591, 0.0
  %v9880 = vmax.f32 %v9592, 0.0
  %v9881 = vmax.f32 %v9593, 0.0
  %v9882 = vmax.f32 %v9594, 0.0
  %v9883 = vmax.f32 %v9595, 0.0
  %v9884 = vmax.f32 %v9596, 0.0
  %v9885 = vmax.f32 %v9597, 0.0
  %v9886 = vmax.f32 %v9598, 0.0
  %v9887 = vmax.f32 %v9599, 0.0
  %v9888 = vmax.f32 %v9600, 0.0
  %v9889 = vmax.f32 %v9601, 0.0
  %v9890 = vmax.f32 %v9602, 0.0
  %v9891 = vmax.f32 %v9603, 0.0
  %v9892 = vmax.f32 %v9604, 0.0
  %v9893 = vmax.f32 %v9605, 0.0
  %v9894 = vmax.f32 %v9606, 0.0
  %v9895 = vmax.f32 %v9607, 0.0
  %v9896 = vmax.f32 %v9608, 0.0
  %v9897 = vmax.f32 %v9609, 0.0
  %v9898 = vmax.f32 %v9610, 0.0
  %v9899 = vmax.f32 %v9611, 0.0
  %v9900 = vmax.f32 %v9612, 0.0
  %v9901 = vmax.f32 %v9613, 0.0
  %v9902 = vmax.f32 %v9614, 0.0
  %v9903 = vmax.f32 %v9615, 0.0
  %v9904 = vmax.f32 %v9616, 0.0
  %v9905 = vmax.f32 %v9617, 0.0
  %v9906 = vmax.f32 %v9618, 0.0
  %v9907 = vmax.f32 %v9619, 0.0
  %v9908 = vmax.f32 %v9620, 0.0
  %v9909 = vmax.f32 %v9621, 0.0
  %v9910 = vmax.f32 %v9622, 0.0
  %v9911 = vmax.f32 %v9623, 0.0
  %v9912 = vmax.f32 %v9624, 0.0
  %v9913 = vmax.f32 %v9625, 0.0
  %v9914 = vmax.f32 %v9626, 0.0
  %v9915 = vmax.f32 %v9627, 0.0
  %v9916 = vmax.f32 %v9628, 0.0
  %v9917 = vmax.f32 %v9629, 0.0
  %v9918 = vmax.f32 %v9630, 0.0
  %v9919 = vmax.f32 %v9631, 0.0
  %v9920 = vmax.f32 %v9632, 0.0
  %v9921 = vmax.f32 %v9633, 0.0
  %v9922 = vmax.f32 %v9634, 0.0
  %v9923 = vmax.f32 %v9635, 0.0
  %v9924 = vmax.f32 %v9636, 0.0
  %v9925 = vmax.f32 %v9637, 0.0
  %v9926 = vmax.f32 %v9638, 0.0
  %v9927 = vmax.f32 %v9639, 0.0
  %v9928 = vmax.f32 %v9640, 0.0
  %v9929 = vmax.f32 %v9641, 0.0
  %v9930 = vmax.f32 %v9642, 0.0
  %v9931 = vmax.f32 %v9643, 0.0
  %v9932 = vmax.f32 %v9644, 0.0
  %v9933 = vmax.f32 %v9645, 0.0
  %v9934 = vmax.f32 %v9646, 0.0
  %v9935 = vmax.f32 %v9647, 0.0
  %v9936 = vmax.f32 %v9648, 0.0
  %v9937 = vmax.f32 %v9649, 0.0
  %v9938 = vmax.f32 %v9650, 0.0
  %v9939 = vmax.f32 %v9651, 0.0
  %v9940 = vmax.f32 %v9652, 0.0
  %v9941 = vmax.f32 %v9653, 0.0
  %v9942 = vmax.f32 %v9654, 0.0
  %v9943 = vmax.f32 %v9655, 0.0
  %v9944 = vmax.f32 %v9656, 0.0
  %v9945 = vmax.f32 %v9657, 0.0
  %v9946 = vmax.f32 %v9658, 0.0
  %v9947 = vmax.f32 %v9659, 0.0
  %v9948 = vmax.f32 %v9660, 0.0
  %v9949 = vmax.f32 %v9661, 0.0
  %v9950 = vmax.f32 %v9662, 0.0
  %v9951 = vmax.f32 %v9663, 0.0
  %v9952 = vmax.f32 %v9664, 0.0
  %v9953 = vmax.f32 %v9665, 0.0
  %v9954 = vmax.f32 %v9666, 0.0
  %v9955 = vmax.f32 %v9667, 0.0
  %v9956 = vmax.f32 %v9668, 0.0
  %v9957 = vmax.f32 %v9669, 0.0
  %v9958 = vmax.f32 %v9670, 0.0
  %v9959 = vmax.f32 %v9671, 0.0
  %v9960 = vmax.f32 %v9672, 0.0
  %v9961 = vmax.f32 %v9673, 0.0
  %v9962 = vmax.f32 %v9674, 0.0
  %v9963 = vmax.f32 %v9675, 0.0
  %v9964 = vmax.f32 %v9676, 0.0
  %v9965 = vmax.f32 %v9677, 0.0
  %v9966 = vmax.f32 %v9678, 0.0
  %v9967 = vmax.f32 %v9679, 0.0
  %v9968 = vmax.f32 %v9680, 0.0
  %v9969 = vmax.f32 %v9681, 0.0
  %v9970 = vmax.f32 %v9682, 0.0
  %v9971 = vmax.f32 %v9683, 0.0
  %v9972 = vmax.f32 %v9684, 0.0
  %v9973 = vmax.f32 %v9685, 0.0
  %v9974 = vmax.f32 %v9686, 0.0
  %v9975 = vmax.f32 %v9687, 0.0
  %v9976 = vmax.f32 %v9688, 0.0
  %v9977 = vmax.f32 %v9689, 0.0
  %v9978 = vmax.f32 %v9690, 0.0
  %v9979 = vmax.f32 %v9691, 0.0
  %v9980 = vmax.f32 %v9692, 0.0
  %v9981 = vmax.f32 %v9693, 0.0
  %v9982 = vmax.f32 %v9694, 0.0
  %v9983 = vmax.f32 %v9695, 0.0
  %v9984 = vmax.f32 %v9696, 0.0
  %v9985 = vmax.f32 %v9697, 0.0
  %v9986 = vmax.f32 %v9698, 0.0
  %v9987 = vmax.f32 %v9699, 0.0
  %v9988 = vmax.f32 %v9700, 0.0
  %v9989 = vmax.f32 %v9701, 0.0
  %v9990 = vmax.f32 %v9702, 0.0
  %v9991 = vmax.f32 %v9703, 0.0
  %v9992 = vmax.f32 %v9704, 0.0
  %v9993 = vmax.f32 %v9705, 0.0
  %v9994 = vmax.f32 %v9706, 0.0
  %v9995 = vmax.f32 %v9707, 0.0
  %v9996 = vmax.f32 %v9708, 0.0
  %v9997 = vmax.f32 %v9709, 0.0
  %v9998 = vmax.f32 %v9710, 0.0
  %v9999 = vmax.f32 %v9711, 0.0
  %v10000 = vmax.f32 %v9712, 0.0
  %v10001 = vmax.f32 %v9713, 0.0
  %v10002 = vmax.f32 %v9714, 0.0
  %v10003 = vmax.f32 %v9715, 0.0
  %v10004 = vmax.f32 %v9716, 0.0
  %v10005 = vmax.f32 %v9717, 0.0
  %v10006 = vmax.f32 %v9718, 0.0
  %v10007 = vmax.f32 %v9719, 0.0
  %v10008 = vmax.f32 %v9720, 0.0
  %v10009 = vmax.f32 %v9721, 0.0
  %v10010 = vmax.f32 %v9722, 0.0
  %v10011 = vmax.f32 %v9723, 0.0
  %v10012 = vmax.f32 %v9724, 0.0
  %v10013 = vmax.f32 %v9725, 0.0
  %v10014 = vmax.f32 %v9726, 0.0
  %v10015 = vmax.f32 %v9727, 0.0
  %v10016 = vmax.f32 %v9728, 0.0
  %v10017 = vmax.f32 %v9729, 0.0
  %v10018 = vmax.f32 %v9730, 0.0
  %v10019 = vmax.f32 %v9731, 0.0
  %v10020 = vmax.f32 %v9732, 0.0
  %v10021 = vmax.f32 %v9733, 0.0
  %v10022 = vmax.f32 %v9734, 0.0
  %v10023 = vmax.f32 %v9735, 0.0
  %v10024 = vmax.f32 %v9736, 0.0
  %v10025 = vmax.f32 %v9737, 0.0
  %v10026 = vmax.f32 %v9738, 0.0
  %v10027 = vmax.f32 %v9739, 0.0
  %v10028 = vmax.f32 %v9740, 0.0
  %v10029 = vmax.f32 %v9741, 0.0
  %v10030 = vmax.f32 %v9742, 0.0
  %v10031 = vmax.f32 %v9743, 0.0
  %v10032 = vmax.f32 %v9744, 0.0
  %v10033 = vmax.f32 %v9745, 0.0
  %v10034 = vmax.f32 %v9746, 0.0
  %v10035 = vmax.f32 %v9747, 0.0
  %v10036 = vmax.f32 %v9748, 0.0
  %v10037 = vmax.f32 %v9749, 0.0
  %v10038 = vmax.f32 %v9750, 0.0
  %v10039 = vmax.f32 %v9751, 0.0
  %v10040 = vmax.f32 %v9752, 0.0
  %v10041 = vmax.f32 %v9753, 0.0
  %v10042 = vmax.f32 %v9754, 0.0
  %v10043 = vmax.f32 %v9755, 0.0
  %v10044 = vmax.f32 %v9756, 0.0
  %v10045 = vmax.f32 %v9757, 0.0
  %v10046 = vmax.f32 %v9758, 0.0
  %v10047 = vmax.f32 %v9759, 0.0
  %v10048 = vmax.f32 %v9760, 0.0
  %v10049 = vmax.f32 %v9761, 0.0
  %v10050 = vmax.f32 %v9762, 0.0
  %v10051 = vmax.f32 %v9763, 0.0
  %v10052 = vmax.f32 %v9764, 0.0
  %v10053 = vmax.f32 %v9765, 0.0
  %v10054 = vmax.f32 %v9766, 0.0
  %v10055 = vmax.f32 %v9767, 0.0
  %v10056 = vmax.f32 %v9768, 0.0
  %v10057 = vmax.f32 %v9769, 0.0
  %v10058 = vmax.f32 %v9770, 0.0
  %v10059 = vmax.f32 %v9771, 0.0
  %v10060 = vmax.f32 %v9772, 0.0
  %v10061 = vmax.f32 %v9773, 0.0
  %v10062 = vmax.f32 %v9774, 0.0
  %v10063 = vmax.f32 %v9775, 0.0
  %v10064 = vmax.f32 %v9776, 0.0
  %v10065 = vmax.f32 %v9777, 0.0
  %v10066 = vmax.f32 %v9778, 0.0
  %v10067 = vmax.f32 %v9779, 0.0
  %v10068 = vmax.f32 %v9780, 0.0
  %v10069 = vmax.f32 %v9781, 0.0
  %v10070 = vmax.f32 %v9782, 0.0
  %v10071 = vmax.f32 %v9783, 0.0
  %v10072 = vmax.f32 %v9784, 0.0
  %v10073 = vmax.f32 %v9785, 0.0
  %v10074 = vmax.f32 %v9786, 0.0
  %v10075 = vmax.f32 %v9787, 0.0
  %v10076 = vmax.f32 %v9788, 0.0
  %v10077 = vmax.f32 %v9789, 0.0
  %v10078 = vmax.f32 %v9790, 0.0
  %v10079 = vmax.f32 %v9791, 0.0
  %v10080 = vmax.f32 %v9792, 0.0
  %v10081 = vmax.f32 %v9793, 0.0
  %v10082 = vmax.f32 %v9794, 0.0
  %v10083 = vmax.f32 %v9795, 0.0
  %v10084 = vmax.f32 %v9796, 0.0
  %v10085 = vmax.f32 %v9797, 0.0
  %v10086 = vmax.f32 %v9798, 0.0
  %v10087 = vmax.f32 %v9799, 0.0
  %v10088 = vmax.f32 %v9800, 0.0
  %v10089 = vmax.f32 %v9801, 0.0
  %v10090 = vmax.f32 %v9802, 0.0
  %v10091 = vmax.f32 %v9803, 0.0
  %v10092 = vmax.f32 %v9804, 0.0
  %v10093 = vmax.f32 %v9805, 0.0
  %v10094 = vmax.f32 %v9806, 0.0
  %v10095 = vmax.f32 %v9807, 0.0
  %v10096 = vmax.f32 %v9808, 0.0
  %v10097 = vmax.f32 %v9809, 0.0
  %v10098 = vmax.f32 %v9810, 0.0
  %v10099 = vmax.f32 %v9811, 0.0
  %v10100 = vmax.f32 %v9812, 0.0
  %v10101 = vmax.f32 %v9813, 0.0
  %v10102 = vmax.f32 %v9814, 0.0
  %v10103 = vmax.f32 %v9815, 0.0
  %v10104 = vmax.f32 %v9816, 0.0
  %v10105 = vmax.f32 %v9817, 0.0
  %v10106 = vmax.f32 %v9818, 0.0
  %v10107 = vmax.f32 %v9819, 0.0
  %v10108 = vmax.f32 %v9820, 0.0
  %v10109 = vmax.f32 %v9821, 0.0
  %v10110 = vmax.f32 %v9822, 0.0
  %v10111 = vmax.f32 %v9823, 0.0
  %v10112 = vmax.f32 %v9824, 0.0
  %v10113 = vmax.f32 %v9825, 0.0
  %v10114 = vmax.f32 %v9826, 0.0
  %v10115 = vmax.f32 %v9827, 0.0
  %v10116 = vmax.f32 %v9828, 0.0
  %v10117 = vmax.f32 %v9829, 0.0
  %v10118 = vmax.f32 %v9830, 0.0
  %v10119 = vmax.f32 %v9831, 0.0
  %v10120 = vmax.f32 %v9832, 0.0
  %v10121 = vmax.f32 %v9833, 0.0
  %v10122 = vmax.f32 %v9834, 0.0
  %v10123 = vmax.f32 %v9835, 0.0
  %v10124 = vmax.f32 %v9836, 0.0
  %v10125 = vpack.c.bf16 %v9837, %v9837
  %v10126 = vpack.c.bf16 %v9838, %v9838
  %v10127 = vpack.c.bf16 %v9839, %v9839
  %v10128 = vpack.c.bf16 %v9840, %v9840
  %v10129 = vpack.c.bf16 %v9841, %v9841
  %v10130 = vpack.c.bf16 %v9842, %v9842
  %v10131 = vpack.c.bf16 %v9843, %v9843
  %v10132 = vpack.c.bf16 %v9844, %v9844
  %v10133 = vpack.c.bf16 %v9845, %v9845
  %v10134 = vpack.c.bf16 %v9846, %v9846
  %v10135 = vpack.c.bf16 %v9847, %v9847
  %v10136 = vpack.c.bf16 %v9848, %v9848
  %v10137 = vpack.c.bf16 %v9849, %v9849
  %v10138 = vpack.c.bf16 %v9850, %v9850
  %v10139 = vpack.c.bf16 %v9851, %v9851
  %v10140 = vpack.c.bf16 %v9852, %v9852
  %v10141 = vpack.c.bf16 %v9853, %v9853
  %v10142 = vpack.c.bf16 %v9854, %v9854
  %v10143 = vpack.c.bf16 %v9855, %v9855
  %v10144 = vpack.c.bf16 %v9856, %v9856
  %v10145 = vpack.c.bf16 %v9857, %v9857
  %v10146 = vpack.c.bf16 %v9858, %v9858
  %v10147 = vpack.c.bf16 %v9859, %v9859
  %v10148 = vpack.c.bf16 %v9860, %v9860
  %v10149 = vpack.c.bf16 %v9861, %v9861
  %v10150 = vpack.c.bf16 %v9862, %v9862
  %v10151 = vpack.c.bf16 %v9863, %v9863
  %v10152 = vpack.c.bf16 %v9864, %v9864
  %v10153 = vpack.c.bf16 %v9865, %v9865
  %v10154 = vpack.c.bf16 %v9866, %v9866
  %v10155 = vpack.c.bf16 %v9867, %v9867
  %v10156 = vpack.c.bf16 %v9868, %v9868
  %v10157 = vpack.c.bf16 %v9869, %v9869
  %v10158 = vpack.c.bf16 %v9870, %v9870
  %v10159 = vpack.c.bf16 %v9871, %v9871
  %v10160 = vpack.c.bf16 %v9872, %v9872
  %v10161 = vpack.c.bf16 %v9873, %v9873
  %v10162 = vpack.c.bf16 %v9874, %v9874
  %v10163 = vpack.c.bf16 %v9875, %v9875
  %v10164 = vpack.c.bf16 %v9876, %v9876
  %v10165 = vpack.c.bf16 %v9877, %v9877
  %v10166 = vpack.c.bf16 %v9878, %v9878
  %v10167 = vpack.c.bf16 %v9879, %v9879
  %v10168 = vpack.c.bf16 %v9880, %v9880
  %v10169 = vpack.c.bf16 %v9881, %v9881
  %v10170 = vpack.c.bf16 %v9882, %v9882
  %v10171 = vpack.c.bf16 %v9883, %v9883
  %v10172 = vpack.c.bf16 %v9884, %v9884
  %v10173 = vpack.c.bf16 %v9885, %v9885
  %v10174 = vpack.c.bf16 %v9886, %v9886
  %v10175 = vpack.c.bf16 %v9887, %v9887
  %v10176 = vpack.c.bf16 %v9888, %v9888
  %v10177 = vpack.c.bf16 %v9889, %v9889
  %v10178 = vpack.c.bf16 %v9890, %v9890
  %v10179 = vpack.c.bf16 %v9891, %v9891
  %v10180 = vpack.c.bf16 %v9892, %v9892
  %v10181 = vpack.c.bf16 %v9893, %v9893
  %v10182 = vpack.c.bf16 %v9894, %v9894
  %v10183 = vpack.c.bf16 %v9895, %v9895
  %v10184 = vpack.c.bf16 %v9896, %v9896
  %v10185 = vpack.c.bf16 %v9897, %v9897
  %v10186 = vpack.c.bf16 %v9898, %v9898
  %v10187 = vpack.c.bf16 %v9899, %v9899
  %v10188 = vpack.c.bf16 %v9900, %v9900
  %v10189 = vpack.c.bf16 %v9901, %v9901
  %v10190 = vpack.c.bf16 %v9902, %v9902
  %v10191 = vpack.c.bf16 %v9903, %v9903
  %v10192 = vpack.c.bf16 %v9904, %v9904
  %v10193 = vpack.c.bf16 %v9905, %v9905
  %v10194 = vpack.c.bf16 %v9906, %v9906
  %v10195 = vpack.c.bf16 %v9907, %v9907
  %v10196 = vpack.c.bf16 %v9908, %v9908
  %v10197 = vpack.c.bf16 %v9909, %v9909
  %v10198 = vpack.c.bf16 %v9910, %v9910
  %v10199 = vpack.c.bf16 %v9911, %v9911
  %v10200 = vpack.c.bf16 %v9912, %v9912
  %v10201 = vpack.c.bf16 %v9913, %v9913
  %v10202 = vpack.c.bf16 %v9914, %v9914
  %v10203 = vpack.c.bf16 %v9915, %v9915
  %v10204 = vpack.c.bf16 %v9916, %v9916
  %v10205 = vpack.c.bf16 %v9917, %v9917
  %v10206 = vpack.c.bf16 %v9918, %v9918
  %v10207 = vpack.c.bf16 %v9919, %v9919
  %v10208 = vpack.c.bf16 %v9920, %v9920
  %v10209 = vpack.c.bf16 %v9921, %v9921
  %v10210 = vpack.c.bf16 %v9922, %v9922
  %v10211 = vpack.c.bf16 %v9923, %v9923
  %v10212 = vpack.c.bf16 %v9924, %v9924
  %v10213 = vpack.c.bf16 %v9925, %v9925
  %v10214 = vpack.c.bf16 %v9926, %v9926
  %v10215 = vpack.c.bf16 %v9927, %v9927
  %v10216 = vpack.c.bf16 %v9928, %v9928
  %v10217 = vpack.c.bf16 %v9929, %v9929
  %v10218 = vpack.c.bf16 %v9930, %v9930
  %v10219 = vpack.c.bf16 %v9931, %v9931
  %v10220 = vpack.c.bf16 %v9932, %v9932
  %v10221 = vpack.c.bf16 %v9933, %v9933
  %v10222 = vpack.c.bf16 %v9934, %v9934
  %v10223 = vpack.c.bf16 %v9935, %v9935
  %v10224 = vpack.c.bf16 %v9936, %v9936
  %v10225 = vpack.c.bf16 %v9937, %v9937
  %v10226 = vpack.c.bf16 %v9938, %v9938
  %v10227 = vpack.c.bf16 %v9939, %v9939
  %v10228 = vpack.c.bf16 %v9940, %v9940
  %v10229 = vpack.c.bf16 %v9941, %v9941
  %v10230 = vpack.c.bf16 %v9942, %v9942
  %v10231 = vpack.c.bf16 %v9943, %v9943
  %v10232 = vpack.c.bf16 %v9944, %v9944
  %v10233 = vpack.c.bf16 %v9945, %v9945
  %v10234 = vpack.c.bf16 %v9946, %v9946
  %v10235 = vpack.c.bf16 %v9947, %v9947
  %v10236 = vpack.c.bf16 %v9948, %v9948
  %v10237 = vpack.c.bf16 %v9949, %v9949
  %v10238 = vpack.c.bf16 %v9950, %v9950
  %v10239 = vpack.c.bf16 %v9951, %v9951
  %v10240 = vpack.c.bf16 %v9952, %v9952
  %v10241 = vpack.c.bf16 %v9953, %v9953
  %v10242 = vpack.c.bf16 %v9954, %v9954
  %v10243 = vpack.c.bf16 %v9955, %v9955
  %v10244 = vpack.c.bf16 %v9956, %v9956
  %v10245 = vpack.c.bf16 %v9957, %v9957
  %v10246 = vpack.c.bf16 %v9958, %v9958
  %v10247 = vpack.c.bf16 %v9959, %v9959
  %v10248 = vpack.c.bf16 %v9960, %v9960
  %v10249 = vpack.c.bf16 %v9961, %v9961
  %v10250 = vpack.c.bf16 %v9962, %v9962
  %v10251 = vpack.c.bf16 %v9963, %v9963
  %v10252 = vpack.c.bf16 %v9964, %v9964
  %v10253 = vpack.c.bf16 %v9965, %v9965
  %v10254 = vpack.c.bf16 %v9966, %v9966
  %v10255 = vpack.c.bf16 %v9967, %v9967
  %v10256 = vpack.c.bf16 %v9968, %v9968
  %v10257 = vpack.c.bf16 %v9969, %v9969
  %v10258 = vpack.c.bf16 %v9970, %v9970
  %v10259 = vpack.c.bf16 %v9971, %v9971
  %v10260 = vpack.c.bf16 %v9972, %v9972
  %v10261 = vpack.c.bf16 %v9973, %v9973
  %v10262 = vpack.c.bf16 %v9974, %v9974
  %v10263 = vpack.c.bf16 %v9975, %v9975
  %v10264 = vpack.c.bf16 %v9976, %v9976
  %v10265 = vpack.c.bf16 %v9977, %v9977
  %v10266 = vpack.c.bf16 %v9978, %v9978
  %v10267 = vpack.c.bf16 %v9979, %v9979
  %v10268 = vpack.c.bf16 %v9980, %v9980
  %v10269 = vpack.c.bf16 %v9981, %v9981
  %v10270 = vpack.c.bf16 %v9982, %v9982
  %v10271 = vpack.c.bf16 %v9983, %v9983
  %v10272 = vpack.c.bf16 %v9984, %v9984
  %v10273 = vpack.c.bf16 %v9985, %v9985
  %v10274 = vpack.c.bf16 %v9986, %v9986
  %v10275 = vpack.c.bf16 %v9987, %v9987
  %v10276 = vpack.c.bf16 %v9988, %v9988
  %v10277 = vpack.c.bf16 %v9989, %v9989
  %v10278 = vpack.c.bf16 %v9990, %v9990
  %v10279 = vpack.c.bf16 %v9991, %v9991
  %v10280 = vpack.c.bf16 %v9992, %v9992
  %v10281 = vpack.c.bf16 %v9993, %v9993
  %v10282 = vpack.c.bf16 %v9994, %v9994
  %v10283 = vpack.c.bf16 %v9995, %v9995
  %v10284 = vpack.c.bf16 %v9996, %v9996
  %v10285 = vpack.c.bf16 %v9997, %v9997
  %v10286 = vpack.c.bf16 %v9998, %v9998
  %v10287 = vpack.c.bf16 %v9999, %v9999
  %v10288 = vpack.c.bf16 %v10000, %v10000
  %v10289 = vpack.c.bf16 %v10001, %v10001
  %v10290 = vpack.c.bf16 %v10002, %v10002
  %v10291 = vpack.c.bf16 %v10003, %v10003
  %v10292 = vpack.c.bf16 %v10004, %v10004
  %v10293 = vpack.c.bf16 %v10005, %v10005
  %v10294 = vpack.c.bf16 %v10006, %v10006
  %v10295 = vpack.c.bf16 %v10007, %v10007
  %v10296 = vpack.c.bf16 %v10008, %v10008
  %v10297 = vpack.c.bf16 %v10009, %v10009
  %v10298 = vpack.c.bf16 %v10010, %v10010
  %v10299 = vpack.c.bf16 %v10011, %v10011
  %v10300 = vpack.c.bf16 %v10012, %v10012
  %v10301 = vpack.c.bf16 %v10013, %v10013
  %v10302 = vpack.c.bf16 %v10014, %v10014
  %v10303 = vpack.c.bf16 %v10015, %v10015
  %v10304 = vpack.c.bf16 %v10016, %v10016
  %v10305 = vpack.c.bf16 %v10017, %v10017
  %v10306 = vpack.c.bf16 %v10018, %v10018
  %v10307 = vpack.c.bf16 %v10019, %v10019
  %v10308 = vpack.c.bf16 %v10020, %v10020
  %v10309 = vpack.c.bf16 %v10021, %v10021
  %v10310 = vpack.c.bf16 %v10022, %v10022
  %v10311 = vpack.c.bf16 %v10023, %v10023
  %v10312 = vpack.c.bf16 %v10024, %v10024
  %v10313 = vpack.c.bf16 %v10025, %v10025
  %v10314 = vpack.c.bf16 %v10026, %v10026
  %v10315 = vpack.c.bf16 %v10027, %v10027
  %v10316 = vpack.c.bf16 %v10028, %v10028
  %v10317 = vpack.c.bf16 %v10029, %v10029
  %v10318 = vpack.c.bf16 %v10030, %v10030
  %v10319 = vpack.c.bf16 %v10031, %v10031
  %v10320 = vpack.c.bf16 %v10032, %v10032
  %v10321 = vpack.c.bf16 %v10033, %v10033
  %v10322 = vpack.c.bf16 %v10034, %v10034
  %v10323 = vpack.c.bf16 %v10035, %v10035
  %v10324 = vpack.c.bf16 %v10036, %v10036
  %v10325 = vpack.c.bf16 %v10037, %v10037
  %v10326 = vpack.c.bf16 %v10038, %v10038
  %v10327 = vpack.c.bf16 %v10039, %v10039
  %v10328 = vpack.c.bf16 %v10040, %v10040
  %v10329 = vpack.c.bf16 %v10041, %v10041
  %v10330 = vpack.c.bf16 %v10042, %v10042
  %v10331 = vpack.c.bf16 %v10043, %v10043
  %v10332 = vpack.c.bf16 %v10044, %v10044
  %v10333 = vpack.c.bf16 %v10045, %v10045
  %v10334 = vpack.c.bf16 %v10046, %v10046
  %v10335 = vpack.c.bf16 %v10047, %v10047
  %v10336 = vpack.c.bf16 %v10048, %v10048
  %v10337 = vpack.c.bf16 %v10049, %v10049
  %v10338 = vpack.c.bf16 %v10050, %v10050
  %v10339 = vpack.c.bf16 %v10051, %v10051
  %v10340 = vpack.c.bf16 %v10052, %v10052
  %v10341 = vpack.c.bf16 %v10053, %v10053
  %v10342 = vpack.c.bf16 %v10054, %v10054
  %v10343 = vpack.c.bf16 %v10055, %v10055
  %v10344 = vpack.c.bf16 %v10056, %v10056
  %v10345 = vpack.c.bf16 %v10057, %v10057
  %v10346 = vpack.c.bf16 %v10058, %v10058
  %v10347 = vpack.c.bf16 %v10059, %v10059
  %v10348 = vpack.c.bf16 %v10060, %v10060
  %v10349 = vpack.c.bf16 %v10061, %v10061
  %v10350 = vpack.c.bf16 %v10062, %v10062
  %v10351 = vpack.c.bf16 %v10063, %v10063
  %v10352 = vpack.c.bf16 %v10064, %v10064
  %v10353 = vpack.c.bf16 %v10065, %v10065
  %v10354 = vpack.c.bf16 %v10066, %v10066
  %v10355 = vpack.c.bf16 %v10067, %v10067
  %v10356 = vpack.c.bf16 %v10068, %v10068
  %v10357 = vpack.c.bf16 %v10069, %v10069
  %v10358 = vpack.c.bf16 %v10070, %v10070
  %v10359 = vpack.c.bf16 %v10071, %v10071
  %v10360 = vpack.c.bf16 %v10072, %v10072
  %v10361 = vpack.c.bf16 %v10073, %v10073
  %v10362 = vpack.c.bf16 %v10074, %v10074
  %v10363 = vpack.c.bf16 %v10075, %v10075
  %v10364 = vpack.c.bf16 %v10076, %v10076
  %v10365 = vpack.c.bf16 %v10077, %v10077
  %v10366 = vpack.c.bf16 %v10078, %v10078
  %v10367 = vpack.c.bf16 %v10079, %v10079
  %v10368 = vpack.c.bf16 %v10080, %v10080
  %v10369 = vpack.c.bf16 %v10081, %v10081
  %v10370 = vpack.c.bf16 %v10082, %v10082
  %v10371 = vpack.c.bf16 %v10083, %v10083
  %v10372 = vpack.c.bf16 %v10084, %v10084
  %v10373 = vpack.c.bf16 %v10085, %v10085
  %v10374 = vpack.c.bf16 %v10086, %v10086
  %v10375 = vpack.c.bf16 %v10087, %v10087
  %v10376 = vpack.c.bf16 %v10088, %v10088
  %v10377 = vpack.c.bf16 %v10089, %v10089
  %v10378 = vpack.c.bf16 %v10090, %v10090
  %v10379 = vpack.c.bf16 %v10091, %v10091
  %v10380 = vpack.c.bf16 %v10092, %v10092
  %v10381 = vpack.c.bf16 %v10093, %v10093
  %v10382 = vpack.c.bf16 %v10094, %v10094
  %v10383 = vpack.c.bf16 %v10095, %v10095
  %v10384 = vpack.c.bf16 %v10096, %v10096
  %v10385 = vpack.c.bf16 %v10097, %v10097
  %v10386 = vpack.c.bf16 %v10098, %v10098
  %v10387 = vpack.c.bf16 %v10099, %v10099
  %v10388 = vpack.c.bf16 %v10100, %v10100
  %v10389 = vpack.c.bf16 %v10101, %v10101
  %v10390 = vpack.c.bf16 %v10102, %v10102
  %v10391 = vpack.c.bf16 %v10103, %v10103
  %v10392 = vpack.c.bf16 %v10104, %v10104
  %v10393 = vpack.c.bf16 %v10105, %v10105
  %v10394 = vpack.c.bf16 %v10106, %v10106
  %v10395 = vpack.c.bf16 %v10107, %v10107
  %v10396 = vpack.c.bf16 %v10108, %v10108
  %v10397 = vpack.c.bf16 %v10109, %v10109
  %v10398 = vpack.c.bf16 %v10110, %v10110
  %v10399 = vpack.c.bf16 %v10111, %v10111
  %v10400 = vpack.c.bf16 %v10112, %v10112
  %v10401 = vpack.c.bf16 %v10113, %v10113
  %v10402 = vpack.c.bf16 %v10114, %v10114
  %v10403 = vpack.c.bf16 %v10115, %v10115
  %v10404 = vpack.c.bf16 %v10116, %v10116
  %v10405 = vpack.c.bf16 %v10117, %v10117
  %v10406 = vpack.c.bf16 %v10118, %v10118
  %v10407 = vpack.c.bf16 %v10119, %v10119
  %v10408 = vpack.c.bf16 %v10120, %v10120
  %v10409 = vpack.c.bf16 %v10121, %v10121
  %v10410 = vpack.c.bf16 %v10122, %v10122
  %v10411 = vpack.c.bf16 %v10123, %v10123
  %v10412 = vpack.c.bf16 %v10124, %v10124
  %vm10413 = vcmask 76800
  %10414 = vst.msk [vmem:[%s3] sm:$0xf] %vm10413, %v10125
  %10415 = vst.msk [vmem:[%s3 + $0x4] sm:$0xf] %vm10413, %v10126
  %10416 = vst.msk [vmem:[%s3 + $0x8] sm:$0xf] %vm10413, %v10127
  %10417 = vst.msk [vmem:[%s3 + $0xc] sm:$0xf] %vm10413, %v10128
  %10418 = vst.msk [vmem:[%s3 + $0x10] sm:$0xf] %vm10413, %v10129
  %10419 = vst.msk [vmem:[%s3 + $0x14] sm:$0xf] %vm10413, %v10130
  %10420 = vst.msk [vmem:[%s3 + $0x18] sm:$0xf] %vm10413, %v10131
  %10421 = vst.msk [vmem:[%s3 + $0x1c] sm:$0xf] %vm10413, %v10132
  %10422 = vst.msk [vmem:[%s3 + $0x20] sm:$0xf] %vm10413, %v10133
  %10423 = vst.msk [vmem:[%s3 + $0x24] sm:$0xf] %vm10413, %v10134
  %10424 = vst.msk [vmem:[%s3 + $0x28] sm:$0xf] %vm10413, %v10135
  %10425 = vst.msk [vmem:[%s3 + $0x2c] sm:$0xf] %vm10413, %v10136
  %10426 = vst.msk [vmem:[%s3 + $0x30] sm:$0xf] %vm10413, %v10137
  %10427 = vst.msk [vmem:[%s3 + $0x34] sm:$0xf] %vm10413, %v10138
  %10428 = vst.msk [vmem:[%s3 + $0x38] sm:$0xf] %vm10413, %v10139
  %10429 = vst.msk [vmem:[%s3 + $0x3c] sm:$0xf] %vm10413, %v10140
  %10430 = vst.msk [vmem:[%s3 + $0x40] sm:$0xf] %vm10413, %v10141
  %10431 = vst.msk [vmem:[%s3 + $0x44] sm:$0xf] %vm10413, %v10142
  %10432 = vst.msk [vmem:[%s3 + $0x48] sm:$0xf] %vm10413, %v10143
  %10433 = vst.msk [vmem:[%s3 + $0x4c] sm:$0xf] %vm10413, %v10144
  %10434 = vst.msk [vmem:[%s3 + $0x50] sm:$0xf] %vm10413, %v10145
  %10435 = vst.msk [vmem:[%s3 + $0x54] sm:$0xf] %vm10413, %v10146
  %10436 = vst.msk [vmem:[%s3 + $0x58] sm:$0xf] %vm10413, %v10147
  %10437 = vst.msk [vmem:[%s3 + $0x5c] sm:$0xf] %vm10413, %v10148
  %10438 = vst.msk [vmem:[%s3 + $0x60] sm:$0xf] %vm10413, %v10149
  %10439 = vst.msk [vmem:[%s3 + $0x64] sm:$0xf] %vm10413, %v10150
  %10440 = vst.msk [vmem:[%s3 + $0x68] sm:$0xf] %vm10413, %v10151
  %10441 = vst.msk [vmem:[%s3 + $0x6c] sm:$0xf] %vm10413, %v10152
  %10442 = vst.msk [vmem:[%s3 + $0x70] sm:$0xf] %vm10413, %v10153
  %10443 = vst.msk [vmem:[%s3 + $0x74] sm:$0xf] %vm10413, %v10154
  %10444 = vst.msk [vmem:[%s3 + $0x78] sm:$0xf] %vm10413, %v10155
  %10445 = vst.msk [vmem:[%s3 + $0x7c] sm:$0xf] %vm10413, %v10156
  %10446 = vst.msk [vmem:[%s3 + $0x80] sm:$0xf] %vm10413, %v10157
  %10447 = vst.msk [vmem:[%s3 + $0x84] sm:$0xf] %vm10413, %v10158
  %10448 = vst.msk [vmem:[%s3 + $0x88] sm:$0xf] %vm10413, %v10159
  %10449 = vst.msk [vmem:[%s3 + $0x8c] sm:$0xf] %vm10413, %v10160
  %10450 = vst.msk [vmem:[%s3 + $0x90] sm:$0xf] %vm10413, %v10161
  %10451 = vst.msk [vmem:[%s3 + $0x94] sm:$0xf] %vm10413, %v10162
  %10452 = vst.msk [vmem:[%s3 + $0x98] sm:$0xf] %vm10413, %v10163
  %10453 = vst.msk [vmem:[%s3 + $0x9c] sm:$0xf] %vm10413, %v10164
  %10454 = vst.msk [vmem:[%s3 + $0xa0] sm:$0xf] %vm10413, %v10165
  %10455 = vst.msk [vmem:[%s3 + $0xa4] sm:$0xf] %vm10413, %v10166
  %10456 = vst.msk [vmem:[%s3 + $0xa8] sm:$0xf] %vm10413, %v10167
  %10457 = vst.msk [vmem:[%s3 + $0xac] sm:$0xf] %vm10413, %v10168
  %10458 = vst.msk [vmem:[%s3 + $0xb0] sm:$0xf] %vm10413, %v10169
  %10459 = vst.msk [vmem:[%s3 + $0xb4] sm:$0xf] %vm10413, %v10170
  %10460 = vst.msk [vmem:[%s3 + $0xb8] sm:$0xf] %vm10413, %v10171
  %10461 = vst.msk [vmem:[%s3 + $0xbc] sm:$0xf] %vm10413, %v10172
  %10462 = vst.msk [vmem:[%s3 + $0xc0] sm:$0xf] %vm10413, %v10173
  %10463 = vst.msk [vmem:[%s3 + $0xc4] sm:$0xf] %vm10413, %v10174
  %10464 = vst.msk [vmem:[%s3 + $0xc8] sm:$0xf] %vm10413, %v10175
  %10465 = vst.msk [vmem:[%s3 + $0xcc] sm:$0xf] %vm10413, %v10176
  %10466 = vst.msk [vmem:[%s3 + $0xd0] sm:$0xf] %vm10413, %v10177
  %10467 = vst.msk [vmem:[%s3 + $0xd4] sm:$0xf] %vm10413, %v10178
  %10468 = vst.msk [vmem:[%s3 + $0xd8] sm:$0xf] %vm10413, %v10179
  %10469 = vst.msk [vmem:[%s3 + $0xdc] sm:$0xf] %vm10413, %v10180
  %10470 = vst.msk [vmem:[%s3 + $0xe0] sm:$0xf] %vm10413, %v10181
  %10471 = vst.msk [vmem:[%s3 + $0xe4] sm:$0xf] %vm10413, %v10182
  %10472 = vst.msk [vmem:[%s3 + $0xe8] sm:$0xf] %vm10413, %v10183
  %10473 = vst.msk [vmem:[%s3 + $0xec] sm:$0xf] %vm10413, %v10184
  %10474 = vst.msk [vmem:[%s3 + $0xf0] sm:$0xf] %vm10413, %v10185
  %10475 = vst.msk [vmem:[%s3 + $0xf4] sm:$0xf] %vm10413, %v10186
  %10476 = vst.msk [vmem:[%s3 + $0xf8] sm:$0xf] %vm10413, %v10187
  %10477 = vst.msk [vmem:[%s3 + $0xfc] sm:$0xf] %vm10413, %v10188
  %10478 = vst.msk [vmem:[%s3 + $0x100] sm:$0xf] %vm10413, %v10189
  %10479 = vst.msk [vmem:[%s3 + $0x104] sm:$0xf] %vm10413, %v10190
  %10480 = vst.msk [vmem:[%s3 + $0x108] sm:$0xf] %vm10413, %v10191
  %10481 = vst.msk [vmem:[%s3 + $0x10c] sm:$0xf] %vm10413, %v10192
  %10482 = vst.msk [vmem:[%s3 + $0x110] sm:$0xf] %vm10413, %v10193
  %10483 = vst.msk [vmem:[%s3 + $0x114] sm:$0xf] %vm10413, %v10194
  %10484 = vst.msk [vmem:[%s3 + $0x118] sm:$0xf] %vm10413, %v10195
  %10485 = vst.msk [vmem:[%s3 + $0x11c] sm:$0xf] %vm10413, %v10196
  %10486 = vst.msk [vmem:[%s3 + $0x120] sm:$0xf] %vm10413, %v10197
  %10487 = vst.msk [vmem:[%s3 + $0x124] sm:$0xf] %vm10413, %v10198
  %10488 = vst.msk [vmem:[%s3 + $0x128] sm:$0xf] %vm10413, %v10199
  %10489 = vst.msk [vmem:[%s3 + $0x12c] sm:$0xf] %vm10413, %v10200
  %10490 = vst.msk [vmem:[%s3 + $0x130] sm:$0xf] %vm10413, %v10201
  %10491 = vst.msk [vmem:[%s3 + $0x134] sm:$0xf] %vm10413, %v10202
  %10492 = vst.msk [vmem:[%s3 + $0x138] sm:$0xf] %vm10413, %v10203
  %10493 = vst.msk [vmem:[%s3 + $0x13c] sm:$0xf] %vm10413, %v10204
  %10494 = vst.msk [vmem:[%s3 + $0x140] sm:$0xf] %vm10413, %v10205
  %10495 = vst.msk [vmem:[%s3 + $0x144] sm:$0xf] %vm10413, %v10206
  %10496 = vst.msk [vmem:[%s3 + $0x148] sm:$0xf] %vm10413, %v10207
  %10497 = vst.msk [vmem:[%s3 + $0x14c] sm:$0xf] %vm10413, %v10208
  %10498 = vst.msk [vmem:[%s3 + $0x150] sm:$0xf] %vm10413, %v10209
  %10499 = vst.msk [vmem:[%s3 + $0x154] sm:$0xf] %vm10413, %v10210
  %10500 = vst.msk [vmem:[%s3 + $0x158] sm:$0xf] %vm10413, %v10211
  %10501 = vst.msk [vmem:[%s3 + $0x15c] sm:$0xf] %vm10413, %v10212
  %10502 = vst.msk [vmem:[%s3 + $0x160] sm:$0xf] %vm10413, %v10213
  %10503 = vst.msk [vmem:[%s3 + $0x164] sm:$0xf] %vm10413, %v10214
  %10504 = vst.msk [vmem:[%s3 + $0x168] sm:$0xf] %vm10413, %v10215
  %10505 = vst.msk [vmem:[%s3 + $0x16c] sm:$0xf] %vm10413, %v10216
  %10506 = vst.msk [vmem:[%s3 + $0x170] sm:$0xf] %vm10413, %v10217
  %10507 = vst.msk [vmem:[%s3 + $0x174] sm:$0xf] %vm10413, %v10218
  %10508 = vst.msk [vmem:[%s3 + $0x178] sm:$0xf] %vm10413, %v10219
  %10509 = vst.msk [vmem:[%s3 + $0x17c] sm:$0xf] %vm10413, %v10220
  %10510 = vst.msk [vmem:[%s3 + $0x180] sm:$0xf] %vm10413, %v10221
  %10511 = vst.msk [vmem:[%s3 + $0x184] sm:$0xf] %vm10413, %v10222
  %10512 = vst.msk [vmem:[%s3 + $0x188] sm:$0xf] %vm10413, %v10223
  %10513 = vst.msk [vmem:[%s3 + $0x18c] sm:$0xf] %vm10413, %v10224
  %10514 = vst.msk [vmem:[%s3 + $0x190] sm:$0xf] %vm10413, %v10225
  %10515 = vst.msk [vmem:[%s3 + $0x194] sm:$0xf] %vm10413, %v10226
  %10516 = vst.msk [vmem:[%s3 + $0x198] sm:$0xf] %vm10413, %v10227
  %10517 = vst.msk [vmem:[%s3 + $0x19c] sm:$0xf] %vm10413, %v10228
  %10518 = vst.msk [vmem:[%s3 + $0x1a0] sm:$0xf] %vm10413, %v10229
  %10519 = vst.msk [vmem:[%s3 + $0x1a4] sm:$0xf] %vm10413, %v10230
  %10520 = vst.msk [vmem:[%s3 + $0x1a8] sm:$0xf] %vm10413, %v10231
  %10521 = vst.msk [vmem:[%s3 + $0x1ac] sm:$0xf] %vm10413, %v10232
  %10522 = vst.msk [vmem:[%s3 + $0x1b0] sm:$0xf] %vm10413, %v10233
  %10523 = vst.msk [vmem:[%s3 + $0x1b4] sm:$0xf] %vm10413, %v10234
  %10524 = vst.msk [vmem:[%s3 + $0x1b8] sm:$0xf] %vm10413, %v10235
  %10525 = vst.msk [vmem:[%s3 + $0x1bc] sm:$0xf] %vm10413, %v10236
  %10526 = vst.msk [vmem:[%s3 + $0x1c0] sm:$0xf] %vm10413, %v10237
  %10527 = vst.msk [vmem:[%s3 + $0x1c4] sm:$0xf] %vm10413, %v10238
  %10528 = vst.msk [vmem:[%s3 + $0x1c8] sm:$0xf] %vm10413, %v10239
  %10529 = vst.msk [vmem:[%s3 + $0x1cc] sm:$0xf] %vm10413, %v10240
  %10530 = vst.msk [vmem:[%s3 + $0x1d0] sm:$0xf] %vm10413, %v10241
  %10531 = vst.msk [vmem:[%s3 + $0x1d4] sm:$0xf] %vm10413, %v10242
  %10532 = vst.msk [vmem:[%s3 + $0x1d8] sm:$0xf] %vm10413, %v10243
  %10533 = vst.msk [vmem:[%s3 + $0x1dc] sm:$0xf] %vm10413, %v10244
  %10534 = vst.msk [vmem:[%s3 + $0x1e0] sm:$0xf] %vm10413, %v10245
  %10535 = vst.msk [vmem:[%s3 + $0x1e4] sm:$0xf] %vm10413, %v10246
  %10536 = vst.msk [vmem:[%s3 + $0x1e8] sm:$0xf] %vm10413, %v10247
  %10537 = vst.msk [vmem:[%s3 + $0x1ec] sm:$0xf] %vm10413, %v10248
  %10538 = vst.msk [vmem:[%s3 + $0x1f0] sm:$0xf] %vm10413, %v10249
  %10539 = vst.msk [vmem:[%s3 + $0x1f4] sm:$0xf] %vm10413, %v10250
  %10540 = vst.msk [vmem:[%s3 + $0x1f8] sm:$0xf] %vm10413, %v10251
  %10541 = vst.msk [vmem:[%s3 + $0x1fc] sm:$0xf] %vm10413, %v10252
  %10542 = vst.msk [vmem:[%s3 + $0x200] sm:$0xf] %vm10413, %v10253
  %10543 = vst.msk [vmem:[%s3 + $0x204] sm:$0xf] %vm10413, %v10254
  %10544 = vst.msk [vmem:[%s3 + $0x208] sm:$0xf] %vm10413, %v10255
  %10545 = vst.msk [vmem:[%s3 + $0x20c] sm:$0xf] %vm10413, %v10256
  %10546 = vst.msk [vmem:[%s3 + $0x210] sm:$0xf] %vm10413, %v10257
  %10547 = vst.msk [vmem:[%s3 + $0x214] sm:$0xf] %vm10413, %v10258
  %10548 = vst.msk [vmem:[%s3 + $0x218] sm:$0xf] %vm10413, %v10259
  %10549 = vst.msk [vmem:[%s3 + $0x21c] sm:$0xf] %vm10413, %v10260
  %10550 = vst.msk [vmem:[%s3 + $0x220] sm:$0xf] %vm10413, %v10261
  %10551 = vst.msk [vmem:[%s3 + $0x224] sm:$0xf] %vm10413, %v10262
  %10552 = vst.msk [vmem:[%s3 + $0x228] sm:$0xf] %vm10413, %v10263
  %10553 = vst.msk [vmem:[%s3 + $0x22c] sm:$0xf] %vm10413, %v10264
  %10554 = vst.msk [vmem:[%s3 + $0x230] sm:$0xf] %vm10413, %v10265
  %10555 = vst.msk [vmem:[%s3 + $0x234] sm:$0xf] %vm10413, %v10266
  %10556 = vst.msk [vmem:[%s3 + $0x238] sm:$0xf] %vm10413, %v10267
  %10557 = vst.msk [vmem:[%s3 + $0x23c] sm:$0xf] %vm10413, %v10268
  %10558 = vst.msk [vmem:[%s3 + $0x240] sm:$0xf] %vm10413, %v10269
  %10559 = vst.msk [vmem:[%s3 + $0x244] sm:$0xf] %vm10413, %v10270
  %10560 = vst.msk [vmem:[%s3 + $0x248] sm:$0xf] %vm10413, %v10271
  %10561 = vst.msk [vmem:[%s3 + $0x24c] sm:$0xf] %vm10413, %v10272
  %10562 = vst.msk [vmem:[%s3 + $0x250] sm:$0xf] %vm10413, %v10273
  %10563 = vst.msk [vmem:[%s3 + $0x254] sm:$0xf] %vm10413, %v10274
  %10564 = vst.msk [vmem:[%s3 + $0x258] sm:$0xf] %vm10413, %v10275
  %10565 = vst.msk [vmem:[%s3 + $0x25c] sm:$0xf] %vm10413, %v10276
  %10566 = vst.msk [vmem:[%s3 + $0x260] sm:$0xf] %vm10413, %v10277
  %10567 = vst.msk [vmem:[%s3 + $0x264] sm:$0xf] %vm10413, %v10278
  %10568 = vst.msk [vmem:[%s3 + $0x268] sm:$0xf] %vm10413, %v10279
  %10569 = vst.msk [vmem:[%s3 + $0x26c] sm:$0xf] %vm10413, %v10280
  %10570 = vst.msk [vmem:[%s3 + $0x270] sm:$0xf] %vm10413, %v10281
  %10571 = vst.msk [vmem:[%s3 + $0x274] sm:$0xf] %vm10413, %v10282
  %10572 = vst.msk [vmem:[%s3 + $0x278] sm:$0xf] %vm10413, %v10283
  %10573 = vst.msk [vmem:[%s3 + $0x27c] sm:$0xf] %vm10413, %v10284
  %10574 = vst.msk [vmem:[%s3 + $0x280] sm:$0xf] %vm10413, %v10285
  %10575 = vst.msk [vmem:[%s3 + $0x284] sm:$0xf] %vm10413, %v10286
  %10576 = vst.msk [vmem:[%s3 + $0x288] sm:$0xf] %vm10413, %v10287
  %10577 = vst.msk [vmem:[%s3 + $0x28c] sm:$0xf] %vm10413, %v10288
  %10578 = vst.msk [vmem:[%s3 + $0x290] sm:$0xf] %vm10413, %v10289
  %10579 = vst.msk [vmem:[%s3 + $0x294] sm:$0xf] %vm10413, %v10290
  %10580 = vst.msk [vmem:[%s3 + $0x298] sm:$0xf] %vm10413, %v10291
  %10581 = vst.msk [vmem:[%s3 + $0x29c] sm:$0xf] %vm10413, %v10292
  %10582 = vst.msk [vmem:[%s3 + $0x2a0] sm:$0xf] %vm10413, %v10293
  %10583 = vst.msk [vmem:[%s3 + $0x2a4] sm:$0xf] %vm10413, %v10294
  %10584 = vst.msk [vmem:[%s3 + $0x2a8] sm:$0xf] %vm10413, %v10295
  %10585 = vst.msk [vmem:[%s3 + $0x2ac] sm:$0xf] %vm10413, %v10296
  %10586 = vst.msk [vmem:[%s3 + $0x2b0] sm:$0xf] %vm10413, %v10297
  %10587 = vst.msk [vmem:[%s3 + $0x2b4] sm:$0xf] %vm10413, %v10298
  %10588 = vst.msk [vmem:[%s3 + $0x2b8] sm:$0xf] %vm10413, %v10299
  %10589 = vst.msk [vmem:[%s3 + $0x2bc] sm:$0xf] %vm10413, %v10300
  %10590 = vst.msk [vmem:[%s3 + $0x2c0] sm:$0xf] %vm10413, %v10301
  %10591 = vst.msk [vmem:[%s3 + $0x2c4] sm:$0xf] %vm10413, %v10302
  %10592 = vst.msk [vmem:[%s3 + $0x2c8] sm:$0xf] %vm10413, %v10303
  %10593 = vst.msk [vmem:[%s3 + $0x2cc] sm:$0xf] %vm10413, %v10304
  %10594 = vst.msk [vmem:[%s3 + $0x2d0] sm:$0xf] %vm10413, %v10305
  %10595 = vst.msk [vmem:[%s3 + $0x2d4] sm:$0xf] %vm10413, %v10306
  %10596 = vst.msk [vmem:[%s3 + $0x2d8] sm:$0xf] %vm10413, %v10307
  %10597 = vst.msk [vmem:[%s3 + $0x2dc] sm:$0xf] %vm10413, %v10308
  %10598 = vst.msk [vmem:[%s3 + $0x2e0] sm:$0xf] %vm10413, %v10309
  %10599 = vst.msk [vmem:[%s3 + $0x2e4] sm:$0xf] %vm10413, %v10310
  %10600 = vst.msk [vmem:[%s3 + $0x2e8] sm:$0xf] %vm10413, %v10311
  %10601 = vst.msk [vmem:[%s3 + $0x2ec] sm:$0xf] %vm10413, %v10312
  %10602 = vst.msk [vmem:[%s3 + $0x2f0] sm:$0xf] %vm10413, %v10313
  %10603 = vst.msk [vmem:[%s3 + $0x2f4] sm:$0xf] %vm10413, %v10314
  %10604 = vst.msk [vmem:[%s3 + $0x2f8] sm:$0xf] %vm10413, %v10315
  %10605 = vst.msk [vmem:[%s3 + $0x2fc] sm:$0xf] %vm10413, %v10316
  %10606 = vst.msk [vmem:[%s3 + $0x300] sm:$0xf] %vm10413, %v10317
  %10607 = vst.msk [vmem:[%s3 + $0x304] sm:$0xf] %vm10413, %v10318
  %10608 = vst.msk [vmem:[%s3 + $0x308] sm:$0xf] %vm10413, %v10319
  %10609 = vst.msk [vmem:[%s3 + $0x30c] sm:$0xf] %vm10413, %v10320
  %10610 = vst.msk [vmem:[%s3 + $0x310] sm:$0xf] %vm10413, %v10321
  %10611 = vst.msk [vmem:[%s3 + $0x314] sm:$0xf] %vm10413, %v10322
  %10612 = vst.msk [vmem:[%s3 + $0x318] sm:$0xf] %vm10413, %v10323
  %10613 = vst.msk [vmem:[%s3 + $0x31c] sm:$0xf] %vm10413, %v10324
  %10614 = vst.msk [vmem:[%s3 + $0x320] sm:$0xf] %vm10413, %v10325
  %10615 = vst.msk [vmem:[%s3 + $0x324] sm:$0xf] %vm10413, %v10326
  %10616 = vst.msk [vmem:[%s3 + $0x328] sm:$0xf] %vm10413, %v10327
  %10617 = vst.msk [vmem:[%s3 + $0x32c] sm:$0xf] %vm10413, %v10328
  %10618 = vst.msk [vmem:[%s3 + $0x330] sm:$0xf] %vm10413, %v10329
  %10619 = vst.msk [vmem:[%s3 + $0x334] sm:$0xf] %vm10413, %v10330
  %10620 = vst.msk [vmem:[%s3 + $0x338] sm:$0xf] %vm10413, %v10331
  %10621 = vst.msk [vmem:[%s3 + $0x33c] sm:$0xf] %vm10413, %v10332
  %10622 = vst.msk [vmem:[%s3 + $0x340] sm:$0xf] %vm10413, %v10333
  %10623 = vst.msk [vmem:[%s3 + $0x344] sm:$0xf] %vm10413, %v10334
  %10624 = vst.msk [vmem:[%s3 + $0x348] sm:$0xf] %vm10413, %v10335
  %10625 = vst.msk [vmem:[%s3 + $0x34c] sm:$0xf] %vm10413, %v10336
  %10626 = vst.msk [vmem:[%s3 + $0x350] sm:$0xf] %vm10413, %v10337
  %10627 = vst.msk [vmem:[%s3 + $0x354] sm:$0xf] %vm10413, %v10338
  %10628 = vst.msk [vmem:[%s3 + $0x358] sm:$0xf] %vm10413, %v10339
  %10629 = vst.msk [vmem:[%s3 + $0x35c] sm:$0xf] %vm10413, %v10340
  %10630 = vst.msk [vmem:[%s3 + $0x360] sm:$0xf] %vm10413, %v10341
  %10631 = vst.msk [vmem:[%s3 + $0x364] sm:$0xf] %vm10413, %v10342
  %10632 = vst.msk [vmem:[%s3 + $0x368] sm:$0xf] %vm10413, %v10343
  %10633 = vst.msk [vmem:[%s3 + $0x36c] sm:$0xf] %vm10413, %v10344
  %10634 = vst.msk [vmem:[%s3 + $0x370] sm:$0xf] %vm10413, %v10345
  %10635 = vst.msk [vmem:[%s3 + $0x374] sm:$0xf] %vm10413, %v10346
  %10636 = vst.msk [vmem:[%s3 + $0x378] sm:$0xf] %vm10413, %v10347
  %10637 = vst.msk [vmem:[%s3 + $0x37c] sm:$0xf] %vm10413, %v10348
  %10638 = vst.msk [vmem:[%s3 + $0x380] sm:$0xf] %vm10413, %v10349
  %10639 = vst.msk [vmem:[%s3 + $0x384] sm:$0xf] %vm10413, %v10350
  %10640 = vst.msk [vmem:[%s3 + $0x388] sm:$0xf] %vm10413, %v10351
  %10641 = vst.msk [vmem:[%s3 + $0x38c] sm:$0xf] %vm10413, %v10352
  %10642 = vst.msk [vmem:[%s3 + $0x390] sm:$0xf] %vm10413, %v10353
  %10643 = vst.msk [vmem:[%s3 + $0x394] sm:$0xf] %vm10413, %v10354
  %10644 = vst.msk [vmem:[%s3 + $0x398] sm:$0xf] %vm10413, %v10355
  %10645 = vst.msk [vmem:[%s3 + $0x39c] sm:$0xf] %vm10413, %v10356
  %10646 = vst.msk [vmem:[%s3 + $0x3a0] sm:$0xf] %vm10413, %v10357
  %10647 = vst.msk [vmem:[%s3 + $0x3a4] sm:$0xf] %vm10413, %v10358
  %10648 = vst.msk [vmem:[%s3 + $0x3a8] sm:$0xf] %vm10413, %v10359
  %10649 = vst.msk [vmem:[%s3 + $0x3ac] sm:$0xf] %vm10413, %v10360
  %10650 = vst.msk [vmem:[%s3 + $0x3b0] sm:$0xf] %vm10413, %v10361
  %10651 = vst.msk [vmem:[%s3 + $0x3b4] sm:$0xf] %vm10413, %v10362
  %10652 = vst.msk [vmem:[%s3 + $0x3b8] sm:$0xf] %vm10413, %v10363
  %10653 = vst.msk [vmem:[%s3 + $0x3bc] sm:$0xf] %vm10413, %v10364
  %10654 = vst.msk [vmem:[%s3 + $0x3c0] sm:$0xf] %vm10413, %v10365
  %10655 = vst.msk [vmem:[%s3 + $0x3c4] sm:$0xf] %vm10413, %v10366
  %10656 = vst.msk [vmem:[%s3 + $0x3c8] sm:$0xf] %vm10413, %v10367
  %10657 = vst.msk [vmem:[%s3 + $0x3cc] sm:$0xf] %vm10413, %v10368
  %10658 = vst.msk [vmem:[%s3 + $0x3d0] sm:$0xf] %vm10413, %v10369
  %10659 = vst.msk [vmem:[%s3 + $0x3d4] sm:$0xf] %vm10413, %v10370
  %10660 = vst.msk [vmem:[%s3 + $0x3d8] sm:$0xf] %vm10413, %v10371
  %10661 = vst.msk [vmem:[%s3 + $0x3dc] sm:$0xf] %vm10413, %v10372
  %10662 = vst.msk [vmem:[%s3 + $0x3e0] sm:$0xf] %vm10413, %v10373
  %10663 = vst.msk [vmem:[%s3 + $0x3e4] sm:$0xf] %vm10413, %v10374
  %10664 = vst.msk [vmem:[%s3 + $0x3e8] sm:$0xf] %vm10413, %v10375
  %10665 = vst.msk [vmem:[%s3 + $0x3ec] sm:$0xf] %vm10413, %v10376
  %10666 = vst.msk [vmem:[%s3 + $0x3f0] sm:$0xf] %vm10413, %v10377
  %10667 = vst.msk [vmem:[%s3 + $0x3f4] sm:$0xf] %vm10413, %v10378
  %10668 = vst.msk [vmem:[%s3 + $0x3f8] sm:$0xf] %vm10413, %v10379
  %10669 = vst.msk [vmem:[%s3 + $0x3fc] sm:$0xf] %vm10413, %v10380
  %10670 = vst.msk [vmem:[%s3 + $0x400] sm:$0xf] %vm10413, %v10381
  %10671 = vst.msk [vmem:[%s3 + $0x404] sm:$0xf] %vm10413, %v10382
  %10672 = vst.msk [vmem:[%s3 + $0x408] sm:$0xf] %vm10413, %v10383
  %10673 = vst.msk [vmem:[%s3 + $0x40c] sm:$0xf] %vm10413, %v10384
  %10674 = vst.msk [vmem:[%s3 + $0x410] sm:$0xf] %vm10413, %v10385
  %10675 = vst.msk [vmem:[%s3 + $0x414] sm:$0xf] %vm10413, %v10386
  %10676 = vst.msk [vmem:[%s3 + $0x418] sm:$0xf] %vm10413, %v10387
  %10677 = vst.msk [vmem:[%s3 + $0x41c] sm:$0xf] %vm10413, %v10388
  %10678 = vst.msk [vmem:[%s3 + $0x420] sm:$0xf] %vm10413, %v10389
  %10679 = vst.msk [vmem:[%s3 + $0x424] sm:$0xf] %vm10413, %v10390
  %10680 = vst.msk [vmem:[%s3 + $0x428] sm:$0xf] %vm10413, %v10391
  %10681 = vst.msk [vmem:[%s3 + $0x42c] sm:$0xf] %vm10413, %v10392
  %10682 = vst.msk [vmem:[%s3 + $0x430] sm:$0xf] %vm10413, %v10393
  %10683 = vst.msk [vmem:[%s3 + $0x434] sm:$0xf] %vm10413, %v10394
  %10684 = vst.msk [vmem:[%s3 + $0x438] sm:$0xf] %vm10413, %v10395
  %10685 = vst.msk [vmem:[%s3 + $0x43c] sm:$0xf] %vm10413, %v10396
  %10686 = vst.msk [vmem:[%s3 + $0x440] sm:$0xf] %vm10413, %v10397
  %10687 = vst.msk [vmem:[%s3 + $0x444] sm:$0xf] %vm10413, %v10398
  %10688 = vst.msk [vmem:[%s3 + $0x448] sm:$0xf] %vm10413, %v10399
  %10689 = vst.msk [vmem:[%s3 + $0x44c] sm:$0xf] %vm10413, %v10400
  %10690 = vst.msk [vmem:[%s3 + $0x450] sm:$0xf] %vm10413, %v10401
  %10691 = vst.msk [vmem:[%s3 + $0x454] sm:$0xf] %vm10413, %v10402
  %10692 = vst.msk [vmem:[%s3 + $0x458] sm:$0xf] %vm10413, %v10403
  %10693 = vst.msk [vmem:[%s3 + $0x45c] sm:$0xf] %vm10413, %v10404
  %10694 = vst.msk [vmem:[%s3 + $0x460] sm:$0xf] %vm10413, %v10405
  %10695 = vst.msk [vmem:[%s3 + $0x464] sm:$0xf] %vm10413, %v10406
  %10696 = vst.msk [vmem:[%s3 + $0x468] sm:$0xf] %vm10413, %v10407
  %10697 = vst.msk [vmem:[%s3 + $0x46c] sm:$0xf] %vm10413, %v10408
  %10698 = vst.msk [vmem:[%s3 + $0x470] sm:$0xf] %vm10413, %v10409
  %10699 = vst.msk [vmem:[%s3 + $0x474] sm:$0xf] %vm10413, %v10410
  %10700 = vst.msk [vmem:[%s3 + $0x478] sm:$0xf] %vm10413, %v10411
  %10701 = vst.msk [vmem:[%s3 + $0x47c] sm:$0xf] %vm10413, %v10412
  // Predicated region
  $region14: #{quant_lenet_forward.2} parent=0 // pred_check
    _
  $region15: #{quant_lenet_forward.2} parent=0 // pred_check_branch
    %10703 = sbr.rel (0) target = $region17
  $region16: #{quant_lenet_forward.2} parent=0 // pred_region
    _
  $region17: #{quant_lenet_forward.2} parent=0 // pred_fallthru
    _
  // Predicated region
  $region18: #{quant_lenet_forward.2} parent=0 // pred_check
    _
  $region19: #{quant_lenet_forward.2} parent=0 // pred_check_branch
    %10705 = sbr.rel (0) target = $region21
  $region20: #{quant_lenet_forward.2} parent=0 // pred_region
    _
  $region21: #{quant_lenet_forward.2} parent=0 // pred_fallthru
    _

// kernel: quant_lenet_forward.3
$region0: #{quant_lenet_forward.3}
  #allocation0 [shape = 'u32[]', space=smem, size = 0x4, offset = 0x4, fixed_abs, tag = 'smem constant byte address 0x4 - core index']
  #allocation1 [shape = 'u32[72,128]{1,0:T(1,128)}', space=vmem, size = 0x9000, scoped, tag = 'internal scratch']
  %s0 = inlined_call_operand.vmem [shape: bf16[4,16,16,250], index: 0, kind: input, shape index: {}]
  %s1 = inlined_call_operand.vmem [shape: bf16[250,20], index: 1, kind: input, shape index: {}]
  %s2 = inlined_call_operand.vmem [shape: f32[1,20], index: 2, kind: input, shape index: {}]
  %s3 = inlined_call_operand.vmem [shape: bf16[16,20,50], index: 3, kind: input, shape index: {}]
  %s4 = inlined_call_operand.vmem [shape: f32[1,50], index: 4, kind: input, shape index: {}]
  %s5 = inlined_call_operand.vmem [shape: bf16[50,10], index: 5, kind: input, shape index: {}]
  %s6 = inlined_call_operand.vmem [shape: f32[1,10], index: 6, kind: input, shape index: {}]
  %s7 = inlined_call_operand.vmem [shape: f32[16,10], index: 7, kind: output, shape index: {}]
  %s8 = sld [smem:[#allocation0]]
  $region38: #{quant_lenet_forward.3} parent=0
    _
  %s10 = ssub.s32 1, %s8
  %s11 = scalar_select 0, %s10, %s8
  // Predicated region
  $region2: #{quant_lenet_forward.3} parent=0 // pred_check
    _
  $region3: #{quant_lenet_forward.3} parent=0 // pred_check_branch
    %13 = sbr.rel (0) target = $region5
  $region4: #{quant_lenet_forward.3} parent=0 // pred_region
    _
  $region5: #{quant_lenet_forward.3} parent=0 // pred_fallthru
    _
  // Predicated region
  $region6: #{quant_lenet_forward.3} parent=0 // pred_check
    _
  $region7: #{quant_lenet_forward.3} parent=0 // pred_check_branch
    %15 = sbr.rel (0) target = $region9
  $region8: #{quant_lenet_forward.3} parent=0 // pred_region
    _
  $region9: #{quant_lenet_forward.3} parent=0 // pred_fallthru
    _
  // Predicated region
  $region10: #{quant_lenet_forward.3} parent=0 // pred_check
    _
  $region11: #{quant_lenet_forward.3} parent=0 // pred_check_branch
    %17 = sbr.rel (0) target = $region13
  $region12: #{quant_lenet_forward.3} parent=0 // pred_region
    _
  $region13: #{quant_lenet_forward.3} parent=0 // pred_fallthru
    _
  // Predicated region
  $region14: #{quant_lenet_forward.3} parent=0 // pred_check
    _
  $region15: #{quant_lenet_forward.3} parent=0 // pred_check_branch
    %19 = sbr.rel (0) target = $region17
  $region16: #{quant_lenet_forward.3} parent=0 // pred_region
    _
  $region17: #{quant_lenet_forward.3} parent=0 // pred_fallthru
    _
  // Predicated region
  $region18: #{quant_lenet_forward.3} parent=0 // pred_check
    _
  $region19: #{quant_lenet_forward.3} parent=0 // pred_check_branch
    %21 = sbr.rel (0) target = $region21
  $region20: #{quant_lenet_forward.3} parent=0 // pred_region
    _
  $region21: #{quant_lenet_forward.3} parent=0 // pred_fallthru
    _
  // Predicated region
  $region22: #{quant_lenet_forward.3} parent=0 // pred_check
    _
  $region23: #{quant_lenet_forward.3} parent=0 // pred_check_branch
    %23 = sbr.rel (0) target = $region25
  $region24: #{quant_lenet_forward.3} parent=0 // pred_region
    _
  $region25: #{quant_lenet_forward.3} parent=0 // pred_fallthru
    _
  // Predicated region
  $region26: #{quant_lenet_forward.3} parent=0 // pred_check
    _
  $region27: #{quant_lenet_forward.3} parent=0 // pred_check_branch
    %25 = sbr.rel (0) target = $region29
  $region28: #{quant_lenet_forward.3} parent=0 // pred_region
    _
  $region29: #{quant_lenet_forward.3} parent=0 // pred_fallthru
    _
  %v27 = vld [vmem:[%s0] sm:$0xff]
  %v28 = vld [vmem:[%s0 + $0x8] sm:$0xff]
  %v29 = vld [vmem:[%s0 + $0x10] sm:$0xff]
  %v30 = vld [vmem:[%s0 + $0x18] sm:$0xff]
  %v31 = vld [vmem:[%s0 + $0x20] sm:$0xff]
  %v32 = vld [vmem:[%s0 + $0x28] sm:$0xff]
  %v33 = vld [vmem:[%s0 + $0x30] sm:$0xff]
  %v34 = vld [vmem:[%s0 + $0x38] sm:$0xff]
  %v35 = vld [vmem:[%s0 + $0x40] sm:$0xff]
  %v36 = vld [vmem:[%s0 + $0x48] sm:$0xff]
  %v37 = vld [vmem:[%s0 + $0x50] sm:$0xff]
  %v38 = vld [vmem:[%s0 + $0x58] sm:$0xff]
  %v39 = vld [vmem:[%s0 + $0x60] sm:$0xff]
  %v40 = vld [vmem:[%s0 + $0x68] sm:$0xff]
  %v41 = vld [vmem:[%s0 + $0x70] sm:$0xff]
  %v42 = vld [vmem:[%s0 + $0x78] sm:$0xff]
  %v43 = vld [vmem:[%s0 + $0x80] sm:$0xff]
  %v44 = vld [vmem:[%s0 + $0x88] sm:$0xff]
  %v45 = vld [vmem:[%s0 + $0x90] sm:$0xff]
  %v46 = vld [vmem:[%s0 + $0x98] sm:$0xff]
  %v47 = vld [vmem:[%s0 + $0xa0] sm:$0xff]
  %v48 = vld [vmem:[%s0 + $0xa8] sm:$0xff]
  %v49 = vld [vmem:[%s0 + $0xb0] sm:$0xff]
  %v50 = vld [vmem:[%s0 + $0xb8] sm:$0xff]
  %v51 = vld [vmem:[%s0 + $0xc0] sm:$0xff]
  %v52 = vld [vmem:[%s0 + $0xc8] sm:$0xff]
  %v53 = vld [vmem:[%s0 + $0xd0] sm:$0xff]
  %v54 = vld [vmem:[%s0 + $0xd8] sm:$0xff]
  %v55 = vld [vmem:[%s0 + $0xe0] sm:$0xff]
  %v56 = vld [vmem:[%s0 + $0xe8] sm:$0xff]
  %v57 = vld [vmem:[%s0 + $0xf0] sm:$0xff]
  %v58 = vld [vmem:[%s0 + $0xf8] sm:$0xff]
  %v59 = vld [vmem:[%s0 + $0x100] sm:$0xff]
  %v60 = vld [vmem:[%s0 + $0x108] sm:$0xff]
  %v61 = vld [vmem:[%s0 + $0x110] sm:$0xff]
  %v62 = vld [vmem:[%s0 + $0x118] sm:$0xff]
  %v63 = vld [vmem:[%s0 + $0x120] sm:$0xff]
  %v64 = vld [vmem:[%s0 + $0x128] sm:$0xff]
  %v65 = vld [vmem:[%s0 + $0x130] sm:$0xff]
  %v66 = vld [vmem:[%s0 + $0x138] sm:$0xff]
  %v67 = vld [vmem:[%s0 + $0x140] sm:$0xff]
  %v68 = vld [vmem:[%s0 + $0x148] sm:$0xff]
  %v69 = vld [vmem:[%s0 + $0x150] sm:$0xff]
  %v70 = vld [vmem:[%s0 + $0x158] sm:$0xff]
  %v71 = vld [vmem:[%s0 + $0x160] sm:$0xff]
  %v72 = vld [vmem:[%s0 + $0x168] sm:$0xff]
  %v73 = vld [vmem:[%s0 + $0x170] sm:$0xff]
  %v74 = vld [vmem:[%s0 + $0x178] sm:$0xff]
  %v75 = vld [vmem:[%s0 + $0x180] sm:$0xff]
  %v76 = vld [vmem:[%s0 + $0x188] sm:$0xff]
  %v77 = vld [vmem:[%s0 + $0x190] sm:$0xff]
  %v78 = vld [vmem:[%s0 + $0x198] sm:$0xff]
  %v79 = vld [vmem:[%s0 + $0x1a0] sm:$0xff]
  %v80 = vld [vmem:[%s0 + $0x1a8] sm:$0xff]
  %v81 = vld [vmem:[%s0 + $0x1b0] sm:$0xff]
  %v82 = vld [vmem:[%s0 + $0x1b8] sm:$0xff]
  %v83 = vld [vmem:[%s0 + $0x1c0] sm:$0xff]
  %v84 = vld [vmem:[%s0 + $0x1c8] sm:$0xff]
  %v85 = vld [vmem:[%s0 + $0x1d0] sm:$0xff]
  %v86 = vld [vmem:[%s0 + $0x1d8] sm:$0xff]
  %v87 = vld [vmem:[%s0 + $0x1e0] sm:$0xff]
  %v88 = vld [vmem:[%s0 + $0x1e8] sm:$0xff]
  %v89 = vld [vmem:[%s0 + $0x1f0] sm:$0xff]
  %v90 = vld [vmem:[%s0 + $0x1f8] sm:$0xff]
  %v91 = vld [vmem:[%s0 + $0x200] sm:$0xff]
  %v92 = vld [vmem:[%s0 + $0x208] sm:$0xff]
  %v93 = vld [vmem:[%s0 + $0x210] sm:$0xff]
  %v94 = vld [vmem:[%s0 + $0x218] sm:$0xff]
  %v95 = vld [vmem:[%s0 + $0x220] sm:$0xff]
  %v96 = vld [vmem:[%s0 + $0x228] sm:$0xff]
  %v97 = vld [vmem:[%s0 + $0x230] sm:$0xff]
  %v98 = vld [vmem:[%s0 + $0x238] sm:$0xff]
  %v99 = vld [vmem:[%s0 + $0x240] sm:$0xff]
  %v100 = vld [vmem:[%s0 + $0x248] sm:$0xff]
  %v101 = vld [vmem:[%s0 + $0x250] sm:$0xff]
  %v102 = vld [vmem:[%s0 + $0x258] sm:$0xff]
  %v103 = vld [vmem:[%s0 + $0x260] sm:$0xff]
  %v104 = vld [vmem:[%s0 + $0x268] sm:$0xff]
  %v105 = vld [vmem:[%s0 + $0x270] sm:$0xff]
  %v106 = vld [vmem:[%s0 + $0x278] sm:$0xff]
  %v107 = vld [vmem:[%s0 + $0x280] sm:$0xff]
  %v108 = vld [vmem:[%s0 + $0x288] sm:$0xff]
  %v109 = vld [vmem:[%s0 + $0x290] sm:$0xff]
  %v110 = vld [vmem:[%s0 + $0x298] sm:$0xff]
  %v111 = vld [vmem:[%s0 + $0x2a0] sm:$0xff]
  %v112 = vld [vmem:[%s0 + $0x2a8] sm:$0xff]
  %v113 = vld [vmem:[%s0 + $0x2b0] sm:$0xff]
  %v114 = vld [vmem:[%s0 + $0x2b8] sm:$0xff]
  %v115 = vld [vmem:[%s0 + $0x2c0] sm:$0xff]
  %v116 = vld [vmem:[%s0 + $0x2c8] sm:$0xff]
  %v117 = vld [vmem:[%s0 + $0x2d0] sm:$0xff]
  %v118 = vld [vmem:[%s0 + $0x2d8] sm:$0xff]
  %v119 = vld [vmem:[%s0 + $0x2e0] sm:$0xff]
  %v120 = vld [vmem:[%s0 + $0x2e8] sm:$0xff]
  %v121 = vld [vmem:[%s0 + $0x2f0] sm:$0xff]
  %v122 = vld [vmem:[%s0 + $0x2f8] sm:$0xff]
  %v123 = vld [vmem:[%s0 + $0x300] sm:$0xff]
  %v124 = vld [vmem:[%s0 + $0x308] sm:$0xff]
  %v125 = vld [vmem:[%s0 + $0x310] sm:$0xff]
  %v126 = vld [vmem:[%s0 + $0x318] sm:$0xff]
  %v127 = vld [vmem:[%s0 + $0x320] sm:$0xff]
  %v128 = vld [vmem:[%s0 + $0x328] sm:$0xff]
  %v129 = vld [vmem:[%s0 + $0x330] sm:$0xff]
  %v130 = vld [vmem:[%s0 + $0x338] sm:$0xff]
  %v131 = vld [vmem:[%s0 + $0x340] sm:$0xff]
  %v132 = vld [vmem:[%s0 + $0x348] sm:$0xff]
  %v133 = vld [vmem:[%s0 + $0x350] sm:$0xff]
  %v134 = vld [vmem:[%s0 + $0x358] sm:$0xff]
  %v135 = vld [vmem:[%s0 + $0x360] sm:$0xff]
  %v136 = vld [vmem:[%s0 + $0x368] sm:$0xff]
  %v137 = vld [vmem:[%s0 + $0x370] sm:$0xff]
  %v138 = vld [vmem:[%s0 + $0x378] sm:$0xff]
  %v139 = vld [vmem:[%s0 + $0x380] sm:$0xff]
  %v140 = vld [vmem:[%s0 + $0x388] sm:$0xff]
  %v141 = vld [vmem:[%s0 + $0x390] sm:$0xff]
  %v142 = vld [vmem:[%s0 + $0x398] sm:$0xff]
  %v143 = vld [vmem:[%s0 + $0x3a0] sm:$0xff]
  %v144 = vld [vmem:[%s0 + $0x3a8] sm:$0xff]
  %v145 = vld [vmem:[%s0 + $0x3b0] sm:$0xff]
  %v146 = vld [vmem:[%s0 + $0x3b8] sm:$0xff]
  %v147 = vld [vmem:[%s0 + $0x3c0] sm:$0xff]
  %v148 = vld [vmem:[%s0 + $0x3c8] sm:$0xff]
  %v149 = vld [vmem:[%s0 + $0x3d0] sm:$0xff]
  %v150 = vld [vmem:[%s0 + $0x3d8] sm:$0xff]
  %v151 = vld [vmem:[%s0 + $0x3e0] sm:$0xff]
  %v152 = vld [vmem:[%s0 + $0x3e8] sm:$0xff]
  %v153 = vld [vmem:[%s0 + $0x3f0] sm:$0xff]
  %v154 = vld [vmem:[%s0 + $0x3f8] sm:$0xff]
  %v155 = vld [vmem:[%s1] sm:$0xf]
  %v156 = vld [vmem:[%s1 + $0x4] sm:$0xf]
  %v157 = vld [vmem:[%s1 + $0x8] sm:$0xf]
  %v158 = vld [vmem:[%s1 + $0xc] sm:$0xf]
  %v159 = vld [vmem:[%s1 + $0x10] sm:$0xf]
  %v160 = vld [vmem:[%s1 + $0x14] sm:$0xf]
  %v161 = vld [vmem:[%s1 + $0x18] sm:$0xf]
  %v162 = vld [vmem:[%s1 + $0x1c] sm:$0xf]
  %v163 = vld [vmem:[%s1 + $0x20] sm:$0xf]
  %v164 = vld [vmem:[%s1 + $0x24] sm:$0xf]
  %v165 = vld [vmem:[%s1 + $0x28] sm:$0xf]
  %v166 = vld [vmem:[%s1 + $0x2c] sm:$0xf]
  %v167 = vld [vmem:[%s1 + $0x30] sm:$0xf]
  %v168 = vld [vmem:[%s1 + $0x34] sm:$0xf]
  %v169 = vld [vmem:[%s1 + $0x38] sm:$0xf]
  %v170 = vld [vmem:[%s1 + $0x3c] sm:$0xf]
  %v171 = vld [vmem:[%s1 + $0x40] sm:$0xf]
  %v172 = vld [vmem:[%s1 + $0x44] sm:$0xf]
  %v173 = vld [vmem:[%s1 + $0x48] sm:$0xf]
  %v174 = vld [vmem:[%s1 + $0x4c] sm:$0xf]
  %v175 = vld [vmem:[%s1 + $0x50] sm:$0xf]
  %v176 = vld [vmem:[%s1 + $0x54] sm:$0xf]
  %v177 = vld [vmem:[%s1 + $0x58] sm:$0xf]
  %v178 = vld [vmem:[%s1 + $0x5c] sm:$0xf]
  %v179 = vld [vmem:[%s1 + $0x60] sm:$0xf]
  %v180 = vld [vmem:[%s1 + $0x64] sm:$0xf]
  %v181 = vld [vmem:[%s1 + $0x68] sm:$0xf]
  %v182 = vld [vmem:[%s1 + $0x6c] sm:$0xf]
  %v183 = vld [vmem:[%s1 + $0x70] sm:$0xf]
  %v184 = vld [vmem:[%s1 + $0x74] sm:$0xf]
  %v185 = vld [vmem:[%s1 + $0x78] sm:$0xf]
  %v186 = vld [vmem:[%s1 + $0x7c] sm:$0x1]
  %v315 = vunpack.c.l.b16 %v27
  %v316 = vunpack.c.h.b16 %v27
  %v317 = vunpack.c.l.b16 %v28
  %v318 = vunpack.c.h.b16 %v28
  %v319 = vunpack.c.l.b16 %v29
  %v320 = vunpack.c.h.b16 %v29
  %v321 = vunpack.c.l.b16 %v30
  %v322 = vunpack.c.h.b16 %v30
  %v323 = vunpack.c.l.b16 %v31
  %v324 = vunpack.c.h.b16 %v31
  %v325 = vunpack.c.l.b16 %v32
  %v326 = vunpack.c.h.b16 %v32
  %v327 = vunpack.c.l.b16 %v33
  %v328 = vunpack.c.h.b16 %v33
  %v329 = vunpack.c.l.b16 %v34
  %v330 = vunpack.c.h.b16 %v34
  %v331 = vunpack.c.l.b16 %v35
  %v332 = vunpack.c.h.b16 %v35
  %v333 = vunpack.c.l.b16 %v36
  %v334 = vunpack.c.h.b16 %v36
  %v335 = vunpack.c.l.b16 %v37
  %v336 = vunpack.c.h.b16 %v37
  %v337 = vunpack.c.l.b16 %v38
  %v338 = vunpack.c.h.b16 %v38
  %v339 = vunpack.c.l.b16 %v39
  %v340 = vunpack.c.h.b16 %v39
  %v341 = vunpack.c.l.b16 %v40
  %v342 = vunpack.c.h.b16 %v40
  %v343 = vunpack.c.l.b16 %v41
  %v344 = vunpack.c.h.b16 %v41
  %v345 = vunpack.c.l.b16 %v42
  %v346 = vunpack.c.h.b16 %v42
  %v347 = vunpack.c.l.b16 %v43
  %v348 = vunpack.c.h.b16 %v43
  %v349 = vunpack.c.l.b16 %v44
  %v350 = vunpack.c.h.b16 %v44
  %v351 = vunpack.c.l.b16 %v45
  %v352 = vunpack.c.h.b16 %v45
  %v353 = vunpack.c.l.b16 %v46
  %v354 = vunpack.c.h.b16 %v46
  %v355 = vunpack.c.l.b16 %v47
  %v356 = vunpack.c.h.b16 %v47
  %v357 = vunpack.c.l.b16 %v48
  %v358 = vunpack.c.h.b16 %v48
  %v359 = vunpack.c.l.b16 %v49
  %v360 = vunpack.c.h.b16 %v49
  %v361 = vunpack.c.l.b16 %v50
  %v362 = vunpack.c.h.b16 %v50
  %v363 = vunpack.c.l.b16 %v51
  %v364 = vunpack.c.h.b16 %v51
  %v365 = vunpack.c.l.b16 %v52
  %v366 = vunpack.c.h.b16 %v52
  %v367 = vunpack.c.l.b16 %v53
  %v368 = vunpack.c.h.b16 %v53
  %v369 = vunpack.c.l.b16 %v54
  %v370 = vunpack.c.h.b16 %v54
  %v371 = vunpack.c.l.b16 %v55
  %v372 = vunpack.c.h.b16 %v55
  %v373 = vunpack.c.l.b16 %v56
  %v374 = vunpack.c.h.b16 %v56
  %v375 = vunpack.c.l.b16 %v57
  %v376 = vunpack.c.h.b16 %v57
  %v377 = vunpack.c.l.b16 %v58
  %v378 = vunpack.c.h.b16 %v58
  %v379 = vunpack.c.l.b16 %v59
  %v380 = vunpack.c.h.b16 %v59
  %v381 = vunpack.c.l.b16 %v60
  %v382 = vunpack.c.h.b16 %v60
  %v383 = vunpack.c.l.b16 %v61
  %v384 = vunpack.c.h.b16 %v61
  %v385 = vunpack.c.l.b16 %v62
  %v386 = vunpack.c.h.b16 %v62
  %v387 = vunpack.c.l.b16 %v63
  %v388 = vunpack.c.h.b16 %v63
  %v389 = vunpack.c.l.b16 %v64
  %v390 = vunpack.c.h.b16 %v64
  %v391 = vunpack.c.l.b16 %v65
  %v392 = vunpack.c.h.b16 %v65
  %v393 = vunpack.c.l.b16 %v66
  %v394 = vunpack.c.h.b16 %v66
  %v395 = vunpack.c.l.b16 %v67
  %v396 = vunpack.c.h.b16 %v67
  %v397 = vunpack.c.l.b16 %v68
  %v398 = vunpack.c.h.b16 %v68
  %v399 = vunpack.c.l.b16 %v69
  %v400 = vunpack.c.h.b16 %v69
  %v401 = vunpack.c.l.b16 %v70
  %v402 = vunpack.c.h.b16 %v70
  %v403 = vunpack.c.l.b16 %v71
  %v404 = vunpack.c.h.b16 %v71
  %v405 = vunpack.c.l.b16 %v72
  %v406 = vunpack.c.h.b16 %v72
  %v407 = vunpack.c.l.b16 %v73
  %v408 = vunpack.c.h.b16 %v73
  %v409 = vunpack.c.l.b16 %v74
  %v410 = vunpack.c.h.b16 %v74
  %v411 = vunpack.c.l.b16 %v75
  %v412 = vunpack.c.h.b16 %v75
  %v413 = vunpack.c.l.b16 %v76
  %v414 = vunpack.c.h.b16 %v76
  %v415 = vunpack.c.l.b16 %v77
  %v416 = vunpack.c.h.b16 %v77
  %v417 = vunpack.c.l.b16 %v78
  %v418 = vunpack.c.h.b16 %v78
  %v419 = vunpack.c.l.b16 %v79
  %v420 = vunpack.c.h.b16 %v79
  %v421 = vunpack.c.l.b16 %v80
  %v422 = vunpack.c.h.b16 %v80
  %v423 = vunpack.c.l.b16 %v81
  %v424 = vunpack.c.h.b16 %v81
  %v425 = vunpack.c.l.b16 %v82
  %v426 = vunpack.c.h.b16 %v82
  %v427 = vunpack.c.l.b16 %v83
  %v428 = vunpack.c.h.b16 %v83
  %v429 = vunpack.c.l.b16 %v84
  %v430 = vunpack.c.h.b16 %v84
  %v431 = vunpack.c.l.b16 %v85
  %v432 = vunpack.c.h.b16 %v85
  %v433 = vunpack.c.l.b16 %v86
  %v434 = vunpack.c.h.b16 %v86
  %v435 = vunpack.c.l.b16 %v87
  %v436 = vunpack.c.h.b16 %v87
  %v437 = vunpack.c.l.b16 %v88
  %v438 = vunpack.c.h.b16 %v88
  %v439 = vunpack.c.l.b16 %v89
  %v440 = vunpack.c.h.b16 %v89
  %v441 = vunpack.c.l.b16 %v90
  %v442 = vunpack.c.h.b16 %v90
  %v443 = vunpack.c.l.b16 %v91
  %v444 = vunpack.c.h.b16 %v91
  %v445 = vunpack.c.l.b16 %v92
  %v446 = vunpack.c.h.b16 %v92
  %v447 = vunpack.c.l.b16 %v93
  %v448 = vunpack.c.h.b16 %v93
  %v449 = vunpack.c.l.b16 %v94
  %v450 = vunpack.c.h.b16 %v94
  %v451 = vunpack.c.l.b16 %v95
  %v452 = vunpack.c.h.b16 %v95
  %v453 = vunpack.c.l.b16 %v96
  %v454 = vunpack.c.h.b16 %v96
  %v455 = vunpack.c.l.b16 %v97
  %v456 = vunpack.c.h.b16 %v97
  %v457 = vunpack.c.l.b16 %v98
  %v458 = vunpack.c.h.b16 %v98
  %v459 = vunpack.c.l.b16 %v99
  %v460 = vunpack.c.h.b16 %v99
  %v461 = vunpack.c.l.b16 %v100
  %v462 = vunpack.c.h.b16 %v100
  %v463 = vunpack.c.l.b16 %v101
  %v464 = vunpack.c.h.b16 %v101
  %v465 = vunpack.c.l.b16 %v102
  %v466 = vunpack.c.h.b16 %v102
  %v467 = vunpack.c.l.b16 %v103
  %v468 = vunpack.c.h.b16 %v103
  %v469 = vunpack.c.l.b16 %v104
  %v470 = vunpack.c.h.b16 %v104
  %v471 = vunpack.c.l.b16 %v105
  %v472 = vunpack.c.h.b16 %v105
  %v473 = vunpack.c.l.b16 %v106
  %v474 = vunpack.c.h.b16 %v106
  %v475 = vunpack.c.l.b16 %v107
  %v476 = vunpack.c.h.b16 %v107
  %v477 = vunpack.c.l.b16 %v108
  %v478 = vunpack.c.h.b16 %v108
  %v479 = vunpack.c.l.b16 %v109
  %v480 = vunpack.c.h.b16 %v109
  %v481 = vunpack.c.l.b16 %v110
  %v482 = vunpack.c.h.b16 %v110
  %v483 = vunpack.c.l.b16 %v111
  %v484 = vunpack.c.h.b16 %v111
  %v485 = vunpack.c.l.b16 %v112
  %v486 = vunpack.c.h.b16 %v112
  %v487 = vunpack.c.l.b16 %v113
  %v488 = vunpack.c.h.b16 %v113
  %v489 = vunpack.c.l.b16 %v114
  %v490 = vunpack.c.h.b16 %v114
  %v491 = vunpack.c.l.b16 %v115
  %v492 = vunpack.c.h.b16 %v115
  %v493 = vunpack.c.l.b16 %v116
  %v494 = vunpack.c.h.b16 %v116
  %v495 = vunpack.c.l.b16 %v117
  %v496 = vunpack.c.h.b16 %v117
  %v497 = vunpack.c.l.b16 %v118
  %v498 = vunpack.c.h.b16 %v118
  %v499 = vunpack.c.l.b16 %v119
  %v500 = vunpack.c.h.b16 %v119
  %v501 = vunpack.c.l.b16 %v120
  %v502 = vunpack.c.h.b16 %v120
  %v503 = vunpack.c.l.b16 %v121
  %v504 = vunpack.c.h.b16 %v121
  %v505 = vunpack.c.l.b16 %v122
  %v506 = vunpack.c.h.b16 %v122
  %v507 = vunpack.c.l.b16 %v123
  %v508 = vunpack.c.h.b16 %v123
  %v509 = vunpack.c.l.b16 %v124
  %v510 = vunpack.c.h.b16 %v124
  %v511 = vunpack.c.l.b16 %v125
  %v512 = vunpack.c.h.b16 %v125
  %v513 = vunpack.c.l.b16 %v126
  %v514 = vunpack.c.h.b16 %v126
  %v515 = vunpack.c.l.b16 %v127
  %v516 = vunpack.c.h.b16 %v127
  %v517 = vunpack.c.l.b16 %v128
  %v518 = vunpack.c.h.b16 %v128
  %v519 = vunpack.c.l.b16 %v129
  %v520 = vunpack.c.h.b16 %v129
  %v521 = vunpack.c.l.b16 %v130
  %v522 = vunpack.c.h.b16 %v130
  %v523 = vunpack.c.l.b16 %v131
  %v524 = vunpack.c.h.b16 %v131
  %v525 = vunpack.c.l.b16 %v132
  %v526 = vunpack.c.h.b16 %v132
  %v527 = vunpack.c.l.b16 %v133
  %v528 = vunpack.c.h.b16 %v133
  %v529 = vunpack.c.l.b16 %v134
  %v530 = vunpack.c.h.b16 %v134
  %v531 = vunpack.c.l.b16 %v135
  %v532 = vunpack.c.h.b16 %v135
  %v533 = vunpack.c.l.b16 %v136
  %v534 = vunpack.c.h.b16 %v136
  %v535 = vunpack.c.l.b16 %v137
  %v536 = vunpack.c.h.b16 %v137
  %v537 = vunpack.c.l.b16 %v138
  %v538 = vunpack.c.h.b16 %v138
  %v539 = vunpack.c.l.b16 %v139
  %v540 = vunpack.c.h.b16 %v139
  %v541 = vunpack.c.l.b16 %v140
  %v542 = vunpack.c.h.b16 %v140
  %v543 = vunpack.c.l.b16 %v141
  %v544 = vunpack.c.h.b16 %v141
  %v545 = vunpack.c.l.b16 %v142
  %v546 = vunpack.c.h.b16 %v142
  %v547 = vunpack.c.l.b16 %v143
  %v548 = vunpack.c.h.b16 %v143
  %v549 = vunpack.c.l.b16 %v144
  %v550 = vunpack.c.h.b16 %v144
  %v551 = vunpack.c.l.b16 %v145
  %v552 = vunpack.c.h.b16 %v145
  %v553 = vunpack.c.l.b16 %v146
  %v554 = vunpack.c.h.b16 %v146
  %v555 = vunpack.c.l.b16 %v147
  %v556 = vunpack.c.h.b16 %v147
  %v557 = vunpack.c.l.b16 %v148
  %v558 = vunpack.c.h.b16 %v148
  %v559 = vunpack.c.l.b16 %v149
  %v560 = vunpack.c.h.b16 %v149
  %v561 = vunpack.c.l.b16 %v150
  %v562 = vunpack.c.h.b16 %v150
  %v563 = vunpack.c.l.b16 %v151
  %v564 = vunpack.c.h.b16 %v151
  %v565 = vunpack.c.l.b16 %v152
  %v566 = vunpack.c.h.b16 %v152
  %v567 = vunpack.c.l.b16 %v153
  %v568 = vunpack.c.h.b16 %v153
  %v569 = vunpack.c.l.b16 %v154
  %v570 = vunpack.c.h.b16 %v154
  %v571 = vpack.c.b16 %v317, %v315
  %v572 = vpack.c.b16 %v318, %v316
  %v573 = vpack.c.b16 %v321, %v319
  %v574 = vpack.c.b16 %v322, %v320
  %v575 = vpack.c.b16 %v325, %v323
  %v576 = vpack.c.b16 %v326, %v324
  %v577 = vpack.c.b16 %v329, %v327
  %v578 = vpack.c.b16 %v330, %v328
  %v579 = vpack.c.b16 %v333, %v331
  %v580 = vpack.c.b16 %v334, %v332
  %v581 = vpack.c.b16 %v337, %v335
  %v582 = vpack.c.b16 %v338, %v336
  %v583 = vpack.c.b16 %v341, %v339
  %v584 = vpack.c.b16 %v342, %v340
  %v585 = vpack.c.b16 %v345, %v343
  %v586 = vpack.c.b16 %v346, %v344
  %v587 = vpack.c.b16 %v349, %v347
  %v588 = vpack.c.b16 %v350, %v348
  %v589 = vpack.c.b16 %v353, %v351
  %v590 = vpack.c.b16 %v354, %v352
  %v591 = vpack.c.b16 %v357, %v355
  %v592 = vpack.c.b16 %v358, %v356
  %v593 = vpack.c.b16 %v361, %v359
  %v594 = vpack.c.b16 %v362, %v360
  %v595 = vpack.c.b16 %v365, %v363
  %v596 = vpack.c.b16 %v366, %v364
  %v597 = vpack.c.b16 %v369, %v367
  %v598 = vpack.c.b16 %v370, %v368
  %v599 = vpack.c.b16 %v373, %v371
  %v600 = vpack.c.b16 %v374, %v372
  %v601 = vpack.c.b16 %v377, %v375
  %v602 = vpack.c.b16 %v378, %v376
  %v603 = vpack.c.b16 %v381, %v379
  %v604 = vpack.c.b16 %v382, %v380
  %v605 = vpack.c.b16 %v385, %v383
  %v606 = vpack.c.b16 %v386, %v384
  %v607 = vpack.c.b16 %v389, %v387
  %v608 = vpack.c.b16 %v390, %v388
  %v609 = vpack.c.b16 %v393, %v391
  %v610 = vpack.c.b16 %v394, %v392
  %v611 = vpack.c.b16 %v397, %v395
  %v612 = vpack.c.b16 %v398, %v396
  %v613 = vpack.c.b16 %v401, %v399
  %v614 = vpack.c.b16 %v402, %v400
  %v615 = vpack.c.b16 %v405, %v403
  %v616 = vpack.c.b16 %v406, %v404
  %v617 = vpack.c.b16 %v409, %v407
  %v618 = vpack.c.b16 %v410, %v408
  %v619 = vpack.c.b16 %v413, %v411
  %v620 = vpack.c.b16 %v414, %v412
  %v621 = vpack.c.b16 %v417, %v415
  %v622 = vpack.c.b16 %v418, %v416
  %v623 = vpack.c.b16 %v421, %v419
  %v624 = vpack.c.b16 %v422, %v420
  %v625 = vpack.c.b16 %v425, %v423
  %v626 = vpack.c.b16 %v426, %v424
  %v627 = vpack.c.b16 %v429, %v427
  %v628 = vpack.c.b16 %v430, %v428
  %v629 = vpack.c.b16 %v433, %v431
  %v630 = vpack.c.b16 %v434, %v432
  %v631 = vpack.c.b16 %v437, %v435
  %v632 = vpack.c.b16 %v438, %v436
  %v633 = vpack.c.b16 %v441, %v439
  %v634 = vpack.c.b16 %v442, %v440
  %v635 = vpack.c.b16 %v445, %v443
  %v636 = vpack.c.b16 %v446, %v444
  %v637 = vpack.c.b16 %v449, %v447
  %v638 = vpack.c.b16 %v450, %v448
  %v639 = vpack.c.b16 %v453, %v451
  %v640 = vpack.c.b16 %v454, %v452
  %v641 = vpack.c.b16 %v457, %v455
  %v642 = vpack.c.b16 %v458, %v456
  %v643 = vpack.c.b16 %v461, %v459
  %v644 = vpack.c.b16 %v462, %v460
  %v645 = vpack.c.b16 %v465, %v463
  %v646 = vpack.c.b16 %v466, %v464
  %v647 = vpack.c.b16 %v469, %v467
  %v648 = vpack.c.b16 %v470, %v468
  %v649 = vpack.c.b16 %v473, %v471
  %v650 = vpack.c.b16 %v474, %v472
  %v651 = vpack.c.b16 %v477, %v475
  %v652 = vpack.c.b16 %v478, %v476
  %v653 = vpack.c.b16 %v481, %v479
  %v654 = vpack.c.b16 %v482, %v480
  %v655 = vpack.c.b16 %v485, %v483
  %v656 = vpack.c.b16 %v486, %v484
  %v657 = vpack.c.b16 %v489, %v487
  %v658 = vpack.c.b16 %v490, %v488
  %v659 = vpack.c.b16 %v493, %v491
  %v660 = vpack.c.b16 %v494, %v492
  %v661 = vpack.c.b16 %v497, %v495
  %v662 = vpack.c.b16 %v498, %v496
  %v663 = vpack.c.b16 %v501, %v499
  %v664 = vpack.c.b16 %v502, %v500
  %v665 = vpack.c.b16 %v505, %v503
  %v666 = vpack.c.b16 %v506, %v504
  %v667 = vpack.c.b16 %v509, %v507
  %v668 = vpack.c.b16 %v510, %v508
  %v669 = vpack.c.b16 %v513, %v511
  %v670 = vpack.c.b16 %v514, %v512
  %v671 = vpack.c.b16 %v517, %v515
  %v672 = vpack.c.b16 %v518, %v516
  %v673 = vpack.c.b16 %v521, %v519
  %v674 = vpack.c.b16 %v522, %v520
  %v675 = vpack.c.b16 %v525, %v523
  %v676 = vpack.c.b16 %v526, %v524
  %v677 = vpack.c.b16 %v529, %v527
  %v678 = vpack.c.b16 %v530, %v528
  %v679 = vpack.c.b16 %v533, %v531
  %v680 = vpack.c.b16 %v534, %v532
  %v681 = vpack.c.b16 %v537, %v535
  %v682 = vpack.c.b16 %v538, %v536
  %v683 = vpack.c.b16 %v541, %v539
  %v684 = vpack.c.b16 %v542, %v540
  %v685 = vpack.c.b16 %v545, %v543
  %v686 = vpack.c.b16 %v546, %v544
  %v687 = vpack.c.b16 %v549, %v547
  %v688 = vpack.c.b16 %v550, %v548
  %v689 = vpack.c.b16 %v553, %v551
  %v690 = vpack.c.b16 %v554, %v552
  %v691 = vpack.c.b16 %v557, %v555
  %v692 = vpack.c.b16 %v558, %v556
  %v693 = vpack.c.b16 %v561, %v559
  %v694 = vpack.c.b16 %v562, %v560
  %v695 = vpack.c.b16 %v565, %v563
  %v696 = vpack.c.b16 %v566, %v564
  %v697 = vpack.c.b16 %v569, %v567
  %v698 = vpack.c.b16 %v570, %v568
  %v795 = vunpack.c.l.b16 %v155
  %v796 = vunpack.c.l.b16 %v156
  %v797 = vunpack.c.l.b16 %v157
  %v798 = vunpack.c.l.b16 %v158
  %v799 = vunpack.c.l.b16 %v159
  %v800 = vunpack.c.l.b16 %v160
  %v801 = vunpack.c.l.b16 %v161
  %v802 = vunpack.c.l.b16 %v162
  %v803 = vunpack.c.l.b16 %v163
  %v804 = vunpack.c.l.b16 %v164
  %v805 = vunpack.c.l.b16 %v165
  %v806 = vunpack.c.l.b16 %v166
  %v807 = vunpack.c.l.b16 %v167
  %v808 = vunpack.c.l.b16 %v168
  %v809 = vunpack.c.l.b16 %v169
  %v810 = vunpack.c.l.b16 %v170
  %v811 = vunpack.c.l.b16 %v171
  %v812 = vunpack.c.l.b16 %v172
  %v813 = vunpack.c.l.b16 %v173
  %v814 = vunpack.c.l.b16 %v174
  %v815 = vunpack.c.l.b16 %v175
  %v816 = vunpack.c.l.b16 %v176
  %v817 = vunpack.c.l.b16 %v177
  %v818 = vunpack.c.l.b16 %v178
  %v819 = vunpack.c.l.b16 %v179
  %v820 = vunpack.c.l.b16 %v180
  %v821 = vunpack.c.l.b16 %v181
  %v822 = vunpack.c.l.b16 %v182
  %v823 = vunpack.c.l.b16 %v183
  %v824 = vunpack.c.l.b16 %v184
  %v825 = vunpack.c.l.b16 %v185
  %v826 = vunpack.c.l.b16 %v186
  %v827 = vpack.c.b16 %v796, %v795
  %v828 = vpack.c.b16 %v798, %v797
  %v829 = vpack.c.b16 %v800, %v799
  %v830 = vpack.c.b16 %v802, %v801
  %v831 = vpack.c.b16 %v804, %v803
  %v832 = vpack.c.b16 %v806, %v805
  %v833 = vpack.c.b16 %v808, %v807
  %v834 = vpack.c.b16 %v810, %v809
  %v835 = vpack.c.b16 %v812, %v811
  %v836 = vpack.c.b16 %v814, %v813
  %v837 = vpack.c.b16 %v816, %v815
  %v838 = vpack.c.b16 %v818, %v817
  %v839 = vpack.c.b16 %v820, %v819
  %v840 = vpack.c.b16 %v822, %v821
  %v841 = vpack.c.b16 %v824, %v823
  %v842 = vpack.c.b16 %v826, %v825
  %vm858 = vcmask 998400
  %v860 = vsel %vm858, %v572, 0
  %v863 = vsel %vm858, %v574, 0
  %v866 = vsel %vm858, %v576, 0
  %v869 = vsel %vm858, %v578, 0
  %v872 = vsel %vm858, %v580, 0
  %v875 = vsel %vm858, %v582, 0
  %v878 = vsel %vm858, %v584, 0
  %v881 = vsel %vm858, %v586, 0
  %v884 = vsel %vm858, %v588, 0
  %v887 = vsel %vm858, %v590, 0
  %v890 = vsel %vm858, %v592, 0
  %v893 = vsel %vm858, %v594, 0
  %v896 = vsel %vm858, %v596, 0
  %v899 = vsel %vm858, %v598, 0
  %v902 = vsel %vm858, %v600, 0
  %v905 = vsel %vm858, %v602, 0
  %v908 = vsel %vm858, %v604, 0
  %v911 = vsel %vm858, %v606, 0
  %v914 = vsel %vm858, %v608, 0
  %v917 = vsel %vm858, %v610, 0
  %v920 = vsel %vm858, %v612, 0
  %v923 = vsel %vm858, %v614, 0
  %v926 = vsel %vm858, %v616, 0
  %v929 = vsel %vm858, %v618, 0
  %v932 = vsel %vm858, %v620, 0
  %v935 = vsel %vm858, %v622, 0
  %v938 = vsel %vm858, %v624, 0
  %v941 = vsel %vm858, %v626, 0
  %v944 = vsel %vm858, %v628, 0
  %v947 = vsel %vm858, %v630, 0
  %v950 = vsel %vm858, %v632, 0
  %v953 = vsel %vm858, %v634, 0
  %v956 = vsel %vm858, %v636, 0
  %v959 = vsel %vm858, %v638, 0
  %v962 = vsel %vm858, %v640, 0
  %v965 = vsel %vm858, %v642, 0
  %v968 = vsel %vm858, %v644, 0
  %v971 = vsel %vm858, %v646, 0
  %v974 = vsel %vm858, %v648, 0
  %v977 = vsel %vm858, %v650, 0
  %v980 = vsel %vm858, %v652, 0
  %v983 = vsel %vm858, %v654, 0
  %v986 = vsel %vm858, %v656, 0
  %v989 = vsel %vm858, %v658, 0
  %v992 = vsel %vm858, %v660, 0
  %v995 = vsel %vm858, %v662, 0
  %v998 = vsel %vm858, %v664, 0
  %v1001 = vsel %vm858, %v666, 0
  %v1004 = vsel %vm858, %v668, 0
  %v1007 = vsel %vm858, %v670, 0
  %v1010 = vsel %vm858, %v672, 0
  %v1013 = vsel %vm858, %v674, 0
  %v1016 = vsel %vm858, %v676, 0
  %v1019 = vsel %vm858, %v678, 0
  %v1022 = vsel %vm858, %v680, 0
  %v1025 = vsel %vm858, %v682, 0
  %v1028 = vsel %vm858, %v684, 0
  %v1031 = vsel %vm858, %v686, 0
  %v1034 = vsel %vm858, %v688, 0
  %v1037 = vsel %vm858, %v690, 0
  %v1040 = vsel %vm858, %v692, 0
  %v1043 = vsel %vm858, %v694, 0
  %v1046 = vsel %vm858, %v696, 0
  %v1049 = vsel %vm858, %v698, 0
  %vm1051 = vcmask 1044480
  %v1053 = vsel %vm1051, %v842, 0
  %1055 = vmatpush.bf16.msra.mxu0 %v834
  %1056 = vmatpush.bf16.msra.mxu0 %v833
  %1057 = vmatpush.bf16.msra.mxu0 %v832
  %1058 = vmatpush.bf16.msra.mxu0 %v831
  %1059 = vmatpush.bf16.msra.mxu0 %v830
  %1060 = vmatpush.bf16.msra.mxu0 %v829
  %1061 = vmatpush.bf16.msra.mxu0 %v828
  %1062 = vmatpush.bf16.msra.mxu0 %v827
  %1063 = vmatmul.bf16.gmra.mxu0 %v571
  %v1064 = vpop.f32.mrf.mxu0
  %v1065 = vadd.f32 0.0, %v1064
  %v1066 = vpop.f32.mrf.mxu0
  %v1067 = vadd.f32 0.0, %v1066
  %1068 = vmatmul.bf16.gmra.mxu0 %v573
  %v1069 = vpop.f32.mrf.mxu0
  %v1070 = vadd.f32 0.0, %v1069
  %v1071 = vpop.f32.mrf.mxu0
  %v1072 = vadd.f32 0.0, %v1071
  %1073 = vmatmul.bf16.gmra.mxu0 %v575
  %v1074 = vpop.f32.mrf.mxu0
  %v1075 = vadd.f32 0.0, %v1074
  %v1076 = vpop.f32.mrf.mxu0
  %v1077 = vadd.f32 0.0, %v1076
  %1078 = vmatmul.bf16.gmra.mxu0 %v577
  %v1079 = vpop.f32.mrf.mxu0
  %v1080 = vadd.f32 0.0, %v1079
  %v1081 = vpop.f32.mrf.mxu0
  %v1082 = vadd.f32 0.0, %v1081
  %1083 = vmatmul.bf16.gmra.mxu0 %v579
  %v1084 = vpop.f32.mrf.mxu0
  %v1085 = vadd.f32 0.0, %v1084
  %v1086 = vpop.f32.mrf.mxu0
  %v1087 = vadd.f32 0.0, %v1086
  %1088 = vmatmul.bf16.gmra.mxu0 %v581
  %v1089 = vpop.f32.mrf.mxu0
  %v1090 = vadd.f32 0.0, %v1089
  %v1091 = vpop.f32.mrf.mxu0
  %v1092 = vadd.f32 0.0, %v1091
  %1093 = vmatmul.bf16.gmra.mxu0 %v583
  %v1094 = vpop.f32.mrf.mxu0
  %v1095 = vadd.f32 0.0, %v1094
  %v1096 = vpop.f32.mrf.mxu0
  %v1097 = vadd.f32 0.0, %v1096
  %1098 = vmatmul.bf16.gmra.mxu0 %v585
  %v1099 = vpop.f32.mrf.mxu0
  %v1100 = vadd.f32 0.0, %v1099
  %v1101 = vpop.f32.mrf.mxu0
  %v1102 = vadd.f32 0.0, %v1101
  %1103 = vmatmul.bf16.gmra.mxu0 %v587
  %v1104 = vpop.f32.mrf.mxu0
  %v1105 = vadd.f32 0.0, %v1104
  %v1106 = vpop.f32.mrf.mxu0
  %v1107 = vadd.f32 0.0, %v1106
  %1108 = vmatmul.bf16.gmra.mxu0 %v589
  %v1109 = vpop.f32.mrf.mxu0
  %v1110 = vadd.f32 0.0, %v1109
  %v1111 = vpop.f32.mrf.mxu0
  %v1112 = vadd.f32 0.0, %v1111
  %1113 = vmatmul.bf16.gmra.mxu0 %v591
  %v1114 = vpop.f32.mrf.mxu0
  %v1115 = vadd.f32 0.0, %v1114
  %v1116 = vpop.f32.mrf.mxu0
  %v1117 = vadd.f32 0.0, %v1116
  %1118 = vmatmul.bf16.gmra.mxu0 %v593
  %v1119 = vpop.f32.mrf.mxu0
  %v1120 = vadd.f32 0.0, %v1119
  %v1121 = vpop.f32.mrf.mxu0
  %v1122 = vadd.f32 0.0, %v1121
  %1123 = vmatmul.bf16.gmra.mxu0 %v595
  %v1124 = vpop.f32.mrf.mxu0
  %v1125 = vadd.f32 0.0, %v1124
  %v1126 = vpop.f32.mrf.mxu0
  %v1127 = vadd.f32 0.0, %v1126
  %1128 = vmatmul.bf16.gmra.mxu0 %v597
  %v1129 = vpop.f32.mrf.mxu0
  %v1130 = vadd.f32 0.0, %v1129
  %v1131 = vpop.f32.mrf.mxu0
  %v1132 = vadd.f32 0.0, %v1131
  %1133 = vmatmul.bf16.gmra.mxu0 %v599
  %v1134 = vpop.f32.mrf.mxu0
  %v1135 = vadd.f32 0.0, %v1134
  %v1136 = vpop.f32.mrf.mxu0
  %v1137 = vadd.f32 0.0, %v1136
  %1138 = vmatmul.bf16.gmra.mxu0 %v601
  %v1139 = vpop.f32.mrf.mxu0
  %v1140 = vadd.f32 0.0, %v1139
  %v1141 = vpop.f32.mrf.mxu0
  %v1142 = vadd.f32 0.0, %v1141
  %1143 = vmatmul.bf16.gmra.mxu0 %v603
  %v1144 = vpop.f32.mrf.mxu0
  %v1145 = vadd.f32 0.0, %v1144
  %v1146 = vpop.f32.mrf.mxu0
  %v1147 = vadd.f32 0.0, %v1146
  %1148 = vmatmul.bf16.gmra.mxu0 %v605
  %v1149 = vpop.f32.mrf.mxu0
  %v1150 = vadd.f32 0.0, %v1149
  %v1151 = vpop.f32.mrf.mxu0
  %v1152 = vadd.f32 0.0, %v1151
  %1153 = vmatmul.bf16.gmra.mxu0 %v607
  %v1154 = vpop.f32.mrf.mxu0
  %v1155 = vadd.f32 0.0, %v1154
  %v1156 = vpop.f32.mrf.mxu0
  %v1157 = vadd.f32 0.0, %v1156
  %1158 = vmatmul.bf16.gmra.mxu0 %v609
  %v1159 = vpop.f32.mrf.mxu0
  %v1160 = vadd.f32 0.0, %v1159
  %v1161 = vpop.f32.mrf.mxu0
  %v1162 = vadd.f32 0.0, %v1161
  %1163 = vmatmul.bf16.gmra.mxu0 %v611
  %v1164 = vpop.f32.mrf.mxu0
  %v1165 = vadd.f32 0.0, %v1164
  %v1166 = vpop.f32.mrf.mxu0
  %v1167 = vadd.f32 0.0, %v1166
  %1168 = vmatmul.bf16.gmra.mxu0 %v613
  %v1169 = vpop.f32.mrf.mxu0
  %v1170 = vadd.f32 0.0, %v1169
  %v1171 = vpop.f32.mrf.mxu0
  %v1172 = vadd.f32 0.0, %v1171
  %1173 = vmatmul.bf16.gmra.mxu0 %v615
  %v1174 = vpop.f32.mrf.mxu0
  %v1175 = vadd.f32 0.0, %v1174
  %v1176 = vpop.f32.mrf.mxu0
  %v1177 = vadd.f32 0.0, %v1176
  %1178 = vmatmul.bf16.gmra.mxu0 %v617
  %v1179 = vpop.f32.mrf.mxu0
  %v1180 = vadd.f32 0.0, %v1179
  %v1181 = vpop.f32.mrf.mxu0
  %v1182 = vadd.f32 0.0, %v1181
  %1183 = vmatmul.bf16.gmra.mxu0 %v619
  %v1184 = vpop.f32.mrf.mxu0
  %v1185 = vadd.f32 0.0, %v1184
  %v1186 = vpop.f32.mrf.mxu0
  %v1187 = vadd.f32 0.0, %v1186
  %1188 = vmatmul.bf16.gmra.mxu0 %v621
  %v1189 = vpop.f32.mrf.mxu0
  %v1190 = vadd.f32 0.0, %v1189
  %v1191 = vpop.f32.mrf.mxu0
  %v1192 = vadd.f32 0.0, %v1191
  %1193 = vmatmul.bf16.gmra.mxu0 %v623
  %v1194 = vpop.f32.mrf.mxu0
  %v1195 = vadd.f32 0.0, %v1194
  %v1196 = vpop.f32.mrf.mxu0
  %v1197 = vadd.f32 0.0, %v1196
  %1198 = vmatmul.bf16.gmra.mxu0 %v625
  %v1199 = vpop.f32.mrf.mxu0
  %v1200 = vadd.f32 0.0, %v1199
  %v1201 = vpop.f32.mrf.mxu0
  %v1202 = vadd.f32 0.0, %v1201
  %1203 = vmatmul.bf16.gmra.mxu0 %v627
  %v1204 = vpop.f32.mrf.mxu0
  %v1205 = vadd.f32 0.0, %v1204
  %v1206 = vpop.f32.mrf.mxu0
  %v1207 = vadd.f32 0.0, %v1206
  %1208 = vmatmul.bf16.gmra.mxu0 %v629
  %v1209 = vpop.f32.mrf.mxu0
  %v1210 = vadd.f32 0.0, %v1209
  %v1211 = vpop.f32.mrf.mxu0
  %v1212 = vadd.f32 0.0, %v1211
  %1213 = vmatmul.bf16.gmra.mxu0 %v631
  %v1214 = vpop.f32.mrf.mxu0
  %v1215 = vadd.f32 0.0, %v1214
  %v1216 = vpop.f32.mrf.mxu0
  %v1217 = vadd.f32 0.0, %v1216
  %1218 = vmatmul.bf16.gmra.mxu0 %v633
  %v1219 = vpop.f32.mrf.mxu0
  %v1220 = vadd.f32 0.0, %v1219
  %v1221 = vpop.f32.mrf.mxu0
  %v1222 = vadd.f32 0.0, %v1221
  %1223 = vmatmul.bf16.gmra.mxu0 %v635
  %v1224 = vpop.f32.mrf.mxu0
  %v1225 = vadd.f32 0.0, %v1224
  %v1226 = vpop.f32.mrf.mxu0
  %v1227 = vadd.f32 0.0, %v1226
  %1228 = vmatmul.bf16.gmra.mxu0 %v637
  %v1229 = vpop.f32.mrf.mxu0
  %v1230 = vadd.f32 0.0, %v1229
  %v1231 = vpop.f32.mrf.mxu0
  %v1232 = vadd.f32 0.0, %v1231
  %1233 = vmatmul.bf16.gmra.mxu0 %v639
  %v1234 = vpop.f32.mrf.mxu0
  %v1235 = vadd.f32 0.0, %v1234
  %v1236 = vpop.f32.mrf.mxu0
  %v1237 = vadd.f32 0.0, %v1236
  %1238 = vmatmul.bf16.gmra.mxu0 %v641
  %v1239 = vpop.f32.mrf.mxu0
  %v1240 = vadd.f32 0.0, %v1239
  %v1241 = vpop.f32.mrf.mxu0
  %v1242 = vadd.f32 0.0, %v1241
  %1243 = vmatmul.bf16.gmra.mxu0 %v643
  %v1244 = vpop.f32.mrf.mxu0
  %v1245 = vadd.f32 0.0, %v1244
  %v1246 = vpop.f32.mrf.mxu0
  %v1247 = vadd.f32 0.0, %v1246
  %1248 = vmatmul.bf16.gmra.mxu0 %v645
  %v1249 = vpop.f32.mrf.mxu0
  %v1250 = vadd.f32 0.0, %v1249
  %v1251 = vpop.f32.mrf.mxu0
  %v1252 = vadd.f32 0.0, %v1251
  %1253 = vmatmul.bf16.gmra.mxu0 %v647
  %v1254 = vpop.f32.mrf.mxu0
  %v1255 = vadd.f32 0.0, %v1254
  %v1256 = vpop.f32.mrf.mxu0
  %v1257 = vadd.f32 0.0, %v1256
  %1258 = vmatmul.bf16.gmra.mxu0 %v649
  %v1259 = vpop.f32.mrf.mxu0
  %v1260 = vadd.f32 0.0, %v1259
  %v1261 = vpop.f32.mrf.mxu0
  %v1262 = vadd.f32 0.0, %v1261
  %1263 = vmatmul.bf16.gmra.mxu0 %v651
  %v1264 = vpop.f32.mrf.mxu0
  %v1265 = vadd.f32 0.0, %v1264
  %v1266 = vpop.f32.mrf.mxu0
  %v1267 = vadd.f32 0.0, %v1266
  %1268 = vmatmul.bf16.gmra.mxu0 %v653
  %v1269 = vpop.f32.mrf.mxu0
  %v1270 = vadd.f32 0.0, %v1269
  %v1271 = vpop.f32.mrf.mxu0
  %v1272 = vadd.f32 0.0, %v1271
  %1273 = vmatmul.bf16.gmra.mxu0 %v655
  %v1274 = vpop.f32.mrf.mxu0
  %v1275 = vadd.f32 0.0, %v1274
  %v1276 = vpop.f32.mrf.mxu0
  %v1277 = vadd.f32 0.0, %v1276
  %1278 = vmatmul.bf16.gmra.mxu0 %v657
  %v1279 = vpop.f32.mrf.mxu0
  %v1280 = vadd.f32 0.0, %v1279
  %v1281 = vpop.f32.mrf.mxu0
  %v1282 = vadd.f32 0.0, %v1281
  %1283 = vmatmul.bf16.gmra.mxu0 %v659
  %v1284 = vpop.f32.mrf.mxu0
  %v1285 = vadd.f32 0.0, %v1284
  %v1286 = vpop.f32.mrf.mxu0
  %v1287 = vadd.f32 0.0, %v1286
  %1288 = vmatmul.bf16.gmra.mxu0 %v661
  %v1289 = vpop.f32.mrf.mxu0
  %v1290 = vadd.f32 0.0, %v1289
  %v1291 = vpop.f32.mrf.mxu0
  %v1292 = vadd.f32 0.0, %v1291
  %1293 = vmatmul.bf16.gmra.mxu0 %v663
  %v1294 = vpop.f32.mrf.mxu0
  %v1295 = vadd.f32 0.0, %v1294
  %v1296 = vpop.f32.mrf.mxu0
  %v1297 = vadd.f32 0.0, %v1296
  %1298 = vmatmul.bf16.gmra.mxu0 %v665
  %v1299 = vpop.f32.mrf.mxu0
  %v1300 = vadd.f32 0.0, %v1299
  %v1301 = vpop.f32.mrf.mxu0
  %v1302 = vadd.f32 0.0, %v1301
  %1303 = vmatmul.bf16.gmra.mxu0 %v667
  %v1304 = vpop.f32.mrf.mxu0
  %v1305 = vadd.f32 0.0, %v1304
  %v1306 = vpop.f32.mrf.mxu0
  %v1307 = vadd.f32 0.0, %v1306
  %1308 = vmatmul.bf16.gmra.mxu0 %v669
  %v1309 = vpop.f32.mrf.mxu0
  %v1310 = vadd.f32 0.0, %v1309
  %v1311 = vpop.f32.mrf.mxu0
  %v1312 = vadd.f32 0.0, %v1311
  %1313 = vmatmul.bf16.gmra.mxu0 %v671
  %v1314 = vpop.f32.mrf.mxu0
  %v1315 = vadd.f32 0.0, %v1314
  %v1316 = vpop.f32.mrf.mxu0
  %v1317 = vadd.f32 0.0, %v1316
  %1318 = vmatmul.bf16.gmra.mxu0 %v673
  %v1319 = vpop.f32.mrf.mxu0
  %v1320 = vadd.f32 0.0, %v1319
  %v1321 = vpop.f32.mrf.mxu0
  %v1322 = vadd.f32 0.0, %v1321
  %1323 = vmatmul.bf16.gmra.mxu0 %v675
  %v1324 = vpop.f32.mrf.mxu0
  %v1325 = vadd.f32 0.0, %v1324
  %v1326 = vpop.f32.mrf.mxu0
  %v1327 = vadd.f32 0.0, %v1326
  %1328 = vmatmul.bf16.gmra.mxu0 %v677
  %v1329 = vpop.f32.mrf.mxu0
  %v1330 = vadd.f32 0.0, %v1329
  %v1331 = vpop.f32.mrf.mxu0
  %v1332 = vadd.f32 0.0, %v1331
  %1333 = vmatmul.bf16.gmra.mxu0 %v679
  %v1334 = vpop.f32.mrf.mxu0
  %v1335 = vadd.f32 0.0, %v1334
  %v1336 = vpop.f32.mrf.mxu0
  %v1337 = vadd.f32 0.0, %v1336
  %1338 = vmatmul.bf16.gmra.mxu0 %v681
  %v1339 = vpop.f32.mrf.mxu0
  %v1340 = vadd.f32 0.0, %v1339
  %v1341 = vpop.f32.mrf.mxu0
  %v1342 = vadd.f32 0.0, %v1341
  %1343 = vmatmul.bf16.gmra.mxu0 %v683
  %v1344 = vpop.f32.mrf.mxu0
  %v1345 = vadd.f32 0.0, %v1344
  %v1346 = vpop.f32.mrf.mxu0
  %v1347 = vadd.f32 0.0, %v1346
  %1348 = vmatmul.bf16.gmra.mxu0 %v685
  %v1349 = vpop.f32.mrf.mxu0
  %v1350 = vadd.f32 0.0, %v1349
  %v1351 = vpop.f32.mrf.mxu0
  %v1352 = vadd.f32 0.0, %v1351
  %1353 = vmatmul.bf16.gmra.mxu0 %v687
  %v1354 = vpop.f32.mrf.mxu0
  %v1355 = vadd.f32 0.0, %v1354
  %v1356 = vpop.f32.mrf.mxu0
  %v1357 = vadd.f32 0.0, %v1356
  %1358 = vmatmul.bf16.gmra.mxu0 %v689
  %v1359 = vpop.f32.mrf.mxu0
  %v1360 = vadd.f32 0.0, %v1359
  %v1361 = vpop.f32.mrf.mxu0
  %v1362 = vadd.f32 0.0, %v1361
  %1363 = vmatmul.bf16.gmra.mxu0 %v691
  %v1364 = vpop.f32.mrf.mxu0
  %v1365 = vadd.f32 0.0, %v1364
  %v1366 = vpop.f32.mrf.mxu0
  %v1367 = vadd.f32 0.0, %v1366
  %1368 = vmatmul.bf16.gmra.mxu0 %v693
  %v1369 = vpop.f32.mrf.mxu0
  %v1370 = vadd.f32 0.0, %v1369
  %v1371 = vpop.f32.mrf.mxu0
  %v1372 = vadd.f32 0.0, %v1371
  %1373 = vmatmul.bf16.gmra.mxu0 %v695
  %v1374 = vpop.f32.mrf.mxu0
  %v1375 = vadd.f32 0.0, %v1374
  %v1376 = vpop.f32.mrf.mxu0
  %v1377 = vadd.f32 0.0, %v1376
  %1378 = vmatmul.bf16.gmra.mxu0 %v697
  %v1379 = vpop.f32.mrf.mxu0
  %v1380 = vadd.f32 0.0, %v1379
  %v1381 = vpop.f32.mrf.mxu0
  %v1382 = vadd.f32 0.0, %v1381
  %1383 = vdwg.mxu0
  %1384 = vmatpush.bf16.msra.mxu0 %v1053
  %1385 = vmatpush.bf16.msra.mxu0 %v841
  %1386 = vmatpush.bf16.msra.mxu0 %v840
  %1387 = vmatpush.bf16.msra.mxu0 %v839
  %1388 = vmatpush.bf16.msra.mxu0 %v838
  %1389 = vmatpush.bf16.msra.mxu0 %v837
  %1390 = vmatpush.bf16.msra.mxu0 %v836
  %1391 = vmatpush.bf16.msra.mxu0 %v835
  %1392 = vmatmul.bf16.gmra.mxu0 %v860
  %v1393 = vpop.f32.mrf.mxu0
  %v1394 = vadd.f32 %v1065, %v1393
  %v1395 = vpop.f32.mrf.mxu0
  %v1396 = vadd.f32 %v1067, %v1395
  %1397 = vmatmul.bf16.gmra.mxu0 %v863
  %v1398 = vpop.f32.mrf.mxu0
  %v1399 = vadd.f32 %v1070, %v1398
  %v1400 = vpop.f32.mrf.mxu0
  %v1401 = vadd.f32 %v1072, %v1400
  %1402 = vmatmul.bf16.gmra.mxu0 %v866
  %v1403 = vpop.f32.mrf.mxu0
  %v1404 = vadd.f32 %v1075, %v1403
  %v1405 = vpop.f32.mrf.mxu0
  %v1406 = vadd.f32 %v1077, %v1405
  %1407 = vmatmul.bf16.gmra.mxu0 %v869
  %v1408 = vpop.f32.mrf.mxu0
  %v1409 = vadd.f32 %v1080, %v1408
  %v1410 = vpop.f32.mrf.mxu0
  %v1411 = vadd.f32 %v1082, %v1410
  %1412 = vmatmul.bf16.gmra.mxu0 %v872
  %v1413 = vpop.f32.mrf.mxu0
  %v1414 = vadd.f32 %v1085, %v1413
  %v1415 = vpop.f32.mrf.mxu0
  %v1416 = vadd.f32 %v1087, %v1415
  %1417 = vmatmul.bf16.gmra.mxu0 %v875
  %v1418 = vpop.f32.mrf.mxu0
  %v1419 = vadd.f32 %v1090, %v1418
  %v1420 = vpop.f32.mrf.mxu0
  %v1421 = vadd.f32 %v1092, %v1420
  %1422 = vmatmul.bf16.gmra.mxu0 %v878
  %v1423 = vpop.f32.mrf.mxu0
  %v1424 = vadd.f32 %v1095, %v1423
  %v1425 = vpop.f32.mrf.mxu0
  %v1426 = vadd.f32 %v1097, %v1425
  %1427 = vmatmul.bf16.gmra.mxu0 %v881
  %v1428 = vpop.f32.mrf.mxu0
  %v1429 = vadd.f32 %v1100, %v1428
  %v1430 = vpop.f32.mrf.mxu0
  %v1431 = vadd.f32 %v1102, %v1430
  %1432 = vmatmul.bf16.gmra.mxu0 %v884
  %v1433 = vpop.f32.mrf.mxu0
  %v1434 = vadd.f32 %v1105, %v1433
  %v1435 = vpop.f32.mrf.mxu0
  %v1436 = vadd.f32 %v1107, %v1435
  %1437 = vmatmul.bf16.gmra.mxu0 %v887
  %v1438 = vpop.f32.mrf.mxu0
  %v1439 = vadd.f32 %v1110, %v1438
  %v1440 = vpop.f32.mrf.mxu0
  %v1441 = vadd.f32 %v1112, %v1440
  %1442 = vmatmul.bf16.gmra.mxu0 %v890
  %v1443 = vpop.f32.mrf.mxu0
  %v1444 = vadd.f32 %v1115, %v1443
  %v1445 = vpop.f32.mrf.mxu0
  %v1446 = vadd.f32 %v1117, %v1445
  %1447 = vmatmul.bf16.gmra.mxu0 %v893
  %v1448 = vpop.f32.mrf.mxu0
  %v1449 = vadd.f32 %v1120, %v1448
  %v1450 = vpop.f32.mrf.mxu0
  %v1451 = vadd.f32 %v1122, %v1450
  %1452 = vmatmul.bf16.gmra.mxu0 %v896
  %v1453 = vpop.f32.mrf.mxu0
  %v1454 = vadd.f32 %v1125, %v1453
  %v1455 = vpop.f32.mrf.mxu0
  %v1456 = vadd.f32 %v1127, %v1455
  %1457 = vmatmul.bf16.gmra.mxu0 %v899
  %v1458 = vpop.f32.mrf.mxu0
  %v1459 = vadd.f32 %v1130, %v1458
  %v1460 = vpop.f32.mrf.mxu0
  %v1461 = vadd.f32 %v1132, %v1460
  %1462 = vmatmul.bf16.gmra.mxu0 %v902
  %v1463 = vpop.f32.mrf.mxu0
  %v1464 = vadd.f32 %v1135, %v1463
  %v1465 = vpop.f32.mrf.mxu0
  %v1466 = vadd.f32 %v1137, %v1465
  %1467 = vmatmul.bf16.gmra.mxu0 %v905
  %v1468 = vpop.f32.mrf.mxu0
  %v1469 = vadd.f32 %v1140, %v1468
  %v1470 = vpop.f32.mrf.mxu0
  %v1471 = vadd.f32 %v1142, %v1470
  %1472 = vmatmul.bf16.gmra.mxu0 %v908
  %v1473 = vpop.f32.mrf.mxu0
  %v1474 = vadd.f32 %v1145, %v1473
  %v1475 = vpop.f32.mrf.mxu0
  %v1476 = vadd.f32 %v1147, %v1475
  %1477 = vmatmul.bf16.gmra.mxu0 %v911
  %v1478 = vpop.f32.mrf.mxu0
  %v1479 = vadd.f32 %v1150, %v1478
  %v1480 = vpop.f32.mrf.mxu0
  %v1481 = vadd.f32 %v1152, %v1480
  %1482 = vmatmul.bf16.gmra.mxu0 %v914
  %v1483 = vpop.f32.mrf.mxu0
  %v1484 = vadd.f32 %v1155, %v1483
  %v1485 = vpop.f32.mrf.mxu0
  %v1486 = vadd.f32 %v1157, %v1485
  %1487 = vmatmul.bf16.gmra.mxu0 %v917
  %v1488 = vpop.f32.mrf.mxu0
  %v1489 = vadd.f32 %v1160, %v1488
  %v1490 = vpop.f32.mrf.mxu0
  %v1491 = vadd.f32 %v1162, %v1490
  %1492 = vmatmul.bf16.gmra.mxu0 %v920
  %v1493 = vpop.f32.mrf.mxu0
  %v1494 = vadd.f32 %v1165, %v1493
  %v1495 = vpop.f32.mrf.mxu0
  %v1496 = vadd.f32 %v1167, %v1495
  %1497 = vmatmul.bf16.gmra.mxu0 %v923
  %v1498 = vpop.f32.mrf.mxu0
  %v1499 = vadd.f32 %v1170, %v1498
  %v1500 = vpop.f32.mrf.mxu0
  %v1501 = vadd.f32 %v1172, %v1500
  %1502 = vmatmul.bf16.gmra.mxu0 %v926
  %v1503 = vpop.f32.mrf.mxu0
  %v1504 = vadd.f32 %v1175, %v1503
  %v1505 = vpop.f32.mrf.mxu0
  %v1506 = vadd.f32 %v1177, %v1505
  %1507 = vmatmul.bf16.gmra.mxu0 %v929
  %v1508 = vpop.f32.mrf.mxu0
  %v1509 = vadd.f32 %v1180, %v1508
  %v1510 = vpop.f32.mrf.mxu0
  %v1511 = vadd.f32 %v1182, %v1510
  %1512 = vmatmul.bf16.gmra.mxu0 %v932
  %v1513 = vpop.f32.mrf.mxu0
  %v1514 = vadd.f32 %v1185, %v1513
  %v1515 = vpop.f32.mrf.mxu0
  %v1516 = vadd.f32 %v1187, %v1515
  %1517 = vmatmul.bf16.gmra.mxu0 %v935
  %v1518 = vpop.f32.mrf.mxu0
  %v1519 = vadd.f32 %v1190, %v1518
  %v1520 = vpop.f32.mrf.mxu0
  %v1521 = vadd.f32 %v1192, %v1520
  %1522 = vmatmul.bf16.gmra.mxu0 %v938
  %v1523 = vpop.f32.mrf.mxu0
  %v1524 = vadd.f32 %v1195, %v1523
  %v1525 = vpop.f32.mrf.mxu0
  %v1526 = vadd.f32 %v1197, %v1525
  %1527 = vmatmul.bf16.gmra.mxu0 %v941
  %v1528 = vpop.f32.mrf.mxu0
  %v1529 = vadd.f32 %v1200, %v1528
  %v1530 = vpop.f32.mrf.mxu0
  %v1531 = vadd.f32 %v1202, %v1530
  %1532 = vmatmul.bf16.gmra.mxu0 %v944
  %v1533 = vpop.f32.mrf.mxu0
  %v1534 = vadd.f32 %v1205, %v1533
  %v1535 = vpop.f32.mrf.mxu0
  %v1536 = vadd.f32 %v1207, %v1535
  %1537 = vmatmul.bf16.gmra.mxu0 %v947
  %v1538 = vpop.f32.mrf.mxu0
  %v1539 = vadd.f32 %v1210, %v1538
  %v1540 = vpop.f32.mrf.mxu0
  %v1541 = vadd.f32 %v1212, %v1540
  %1542 = vmatmul.bf16.gmra.mxu0 %v950
  %v1543 = vpop.f32.mrf.mxu0
  %v1544 = vadd.f32 %v1215, %v1543
  %v1545 = vpop.f32.mrf.mxu0
  %v1546 = vadd.f32 %v1217, %v1545
  %1547 = vmatmul.bf16.gmra.mxu0 %v953
  %v1548 = vpop.f32.mrf.mxu0
  %v1549 = vadd.f32 %v1220, %v1548
  %v1550 = vpop.f32.mrf.mxu0
  %v1551 = vadd.f32 %v1222, %v1550
  %1552 = vmatmul.bf16.gmra.mxu0 %v956
  %v1553 = vpop.f32.mrf.mxu0
  %v1554 = vadd.f32 %v1225, %v1553
  %v1555 = vpop.f32.mrf.mxu0
  %v1556 = vadd.f32 %v1227, %v1555
  %1557 = vmatmul.bf16.gmra.mxu0 %v959
  %v1558 = vpop.f32.mrf.mxu0
  %v1559 = vadd.f32 %v1230, %v1558
  %v1560 = vpop.f32.mrf.mxu0
  %v1561 = vadd.f32 %v1232, %v1560
  %1562 = vmatmul.bf16.gmra.mxu0 %v962
  %v1563 = vpop.f32.mrf.mxu0
  %v1564 = vadd.f32 %v1235, %v1563
  %v1565 = vpop.f32.mrf.mxu0
  %v1566 = vadd.f32 %v1237, %v1565
  %1567 = vmatmul.bf16.gmra.mxu0 %v965
  %v1568 = vpop.f32.mrf.mxu0
  %v1569 = vadd.f32 %v1240, %v1568
  %v1570 = vpop.f32.mrf.mxu0
  %v1571 = vadd.f32 %v1242, %v1570
  %1572 = vmatmul.bf16.gmra.mxu0 %v968
  %v1573 = vpop.f32.mrf.mxu0
  %v1574 = vadd.f32 %v1245, %v1573
  %v1575 = vpop.f32.mrf.mxu0
  %v1576 = vadd.f32 %v1247, %v1575
  %1577 = vmatmul.bf16.gmra.mxu0 %v971
  %v1578 = vpop.f32.mrf.mxu0
  %v1579 = vadd.f32 %v1250, %v1578
  %v1580 = vpop.f32.mrf.mxu0
  %v1581 = vadd.f32 %v1252, %v1580
  %1582 = vmatmul.bf16.gmra.mxu0 %v974
  %v1583 = vpop.f32.mrf.mxu0
  %v1584 = vadd.f32 %v1255, %v1583
  %v1585 = vpop.f32.mrf.mxu0
  %v1586 = vadd.f32 %v1257, %v1585
  %1587 = vmatmul.bf16.gmra.mxu0 %v977
  %v1588 = vpop.f32.mrf.mxu0
  %v1589 = vadd.f32 %v1260, %v1588
  %v1590 = vpop.f32.mrf.mxu0
  %v1591 = vadd.f32 %v1262, %v1590
  %1592 = vmatmul.bf16.gmra.mxu0 %v980
  %v1593 = vpop.f32.mrf.mxu0
  %v1594 = vadd.f32 %v1265, %v1593
  %v1595 = vpop.f32.mrf.mxu0
  %v1596 = vadd.f32 %v1267, %v1595
  %1597 = vmatmul.bf16.gmra.mxu0 %v983
  %v1598 = vpop.f32.mrf.mxu0
  %v1599 = vadd.f32 %v1270, %v1598
  %v1600 = vpop.f32.mrf.mxu0
  %v1601 = vadd.f32 %v1272, %v1600
  %1602 = vmatmul.bf16.gmra.mxu0 %v986
  %v1603 = vpop.f32.mrf.mxu0
  %v1604 = vadd.f32 %v1275, %v1603
  %v1605 = vpop.f32.mrf.mxu0
  %v1606 = vadd.f32 %v1277, %v1605
  %1607 = vmatmul.bf16.gmra.mxu0 %v989
  %v1608 = vpop.f32.mrf.mxu0
  %v1609 = vadd.f32 %v1280, %v1608
  %v1610 = vpop.f32.mrf.mxu0
  %v1611 = vadd.f32 %v1282, %v1610
  %1612 = vmatmul.bf16.gmra.mxu0 %v992
  %v1613 = vpop.f32.mrf.mxu0
  %v1614 = vadd.f32 %v1285, %v1613
  %v1615 = vpop.f32.mrf.mxu0
  %v1616 = vadd.f32 %v1287, %v1615
  %1617 = vmatmul.bf16.gmra.mxu0 %v995
  %v1618 = vpop.f32.mrf.mxu0
  %v1619 = vadd.f32 %v1290, %v1618
  %v1620 = vpop.f32.mrf.mxu0
  %v1621 = vadd.f32 %v1292, %v1620
  %1622 = vmatmul.bf16.gmra.mxu0 %v998
  %v1623 = vpop.f32.mrf.mxu0
  %v1624 = vadd.f32 %v1295, %v1623
  %v1625 = vpop.f32.mrf.mxu0
  %v1626 = vadd.f32 %v1297, %v1625
  %1627 = vmatmul.bf16.gmra.mxu0 %v1001
  %v1628 = vpop.f32.mrf.mxu0
  %v1629 = vadd.f32 %v1300, %v1628
  %v1630 = vpop.f32.mrf.mxu0
  %v1631 = vadd.f32 %v1302, %v1630
  %1632 = vmatmul.bf16.gmra.mxu0 %v1004
  %v1633 = vpop.f32.mrf.mxu0
  %v1634 = vadd.f32 %v1305, %v1633
  %v1635 = vpop.f32.mrf.mxu0
  %v1636 = vadd.f32 %v1307, %v1635
  %1637 = vmatmul.bf16.gmra.mxu0 %v1007
  %v1638 = vpop.f32.mrf.mxu0
  %v1639 = vadd.f32 %v1310, %v1638
  %v1640 = vpop.f32.mrf.mxu0
  %v1641 = vadd.f32 %v1312, %v1640
  %1642 = vmatmul.bf16.gmra.mxu0 %v1010
  %v1643 = vpop.f32.mrf.mxu0
  %v1644 = vadd.f32 %v1315, %v1643
  %v1645 = vpop.f32.mrf.mxu0
  %v1646 = vadd.f32 %v1317, %v1645
  %1647 = vmatmul.bf16.gmra.mxu0 %v1013
  %v1648 = vpop.f32.mrf.mxu0
  %v1649 = vadd.f32 %v1320, %v1648
  %v1650 = vpop.f32.mrf.mxu0
  %v1651 = vadd.f32 %v1322, %v1650
  %1652 = vmatmul.bf16.gmra.mxu0 %v1016
  %v1653 = vpop.f32.mrf.mxu0
  %v1654 = vadd.f32 %v1325, %v1653
  %v1655 = vpop.f32.mrf.mxu0
  %v1656 = vadd.f32 %v1327, %v1655
  %1657 = vmatmul.bf16.gmra.mxu0 %v1019
  %v1658 = vpop.f32.mrf.mxu0
  %v1659 = vadd.f32 %v1330, %v1658
  %v1660 = vpop.f32.mrf.mxu0
  %v1661 = vadd.f32 %v1332, %v1660
  %1662 = vmatmul.bf16.gmra.mxu0 %v1022
  %v1663 = vpop.f32.mrf.mxu0
  %v1664 = vadd.f32 %v1335, %v1663
  %v1665 = vpop.f32.mrf.mxu0
  %v1666 = vadd.f32 %v1337, %v1665
  %1667 = vmatmul.bf16.gmra.mxu0 %v1025
  %v1668 = vpop.f32.mrf.mxu0
  %v1669 = vadd.f32 %v1340, %v1668
  %v1670 = vpop.f32.mrf.mxu0
  %v1671 = vadd.f32 %v1342, %v1670
  %1672 = vmatmul.bf16.gmra.mxu0 %v1028
  %v1673 = vpop.f32.mrf.mxu0
  %v1674 = vadd.f32 %v1345, %v1673
  %v1675 = vpop.f32.mrf.mxu0
  %v1676 = vadd.f32 %v1347, %v1675
  %1677 = vmatmul.bf16.gmra.mxu0 %v1031
  %v1678 = vpop.f32.mrf.mxu0
  %v1679 = vadd.f32 %v1350, %v1678
  %v1680 = vpop.f32.mrf.mxu0
  %v1681 = vadd.f32 %v1352, %v1680
  %1682 = vmatmul.bf16.gmra.mxu0 %v1034
  %v1683 = vpop.f32.mrf.mxu0
  %v1684 = vadd.f32 %v1355, %v1683
  %v1685 = vpop.f32.mrf.mxu0
  %v1686 = vadd.f32 %v1357, %v1685
  %1687 = vmatmul.bf16.gmra.mxu0 %v1037
  %v1688 = vpop.f32.mrf.mxu0
  %v1689 = vadd.f32 %v1360, %v1688
  %v1690 = vpop.f32.mrf.mxu0
  %v1691 = vadd.f32 %v1362, %v1690
  %1692 = vmatmul.bf16.gmra.mxu0 %v1040
  %v1693 = vpop.f32.mrf.mxu0
  %v1694 = vadd.f32 %v1365, %v1693
  %v1695 = vpop.f32.mrf.mxu0
  %v1696 = vadd.f32 %v1367, %v1695
  %1697 = vmatmul.bf16.gmra.mxu0 %v1043
  %v1698 = vpop.f32.mrf.mxu0
  %v1699 = vadd.f32 %v1370, %v1698
  %v1700 = vpop.f32.mrf.mxu0
  %v1701 = vadd.f32 %v1372, %v1700
  %1702 = vmatmul.bf16.gmra.mxu0 %v1046
  %v1703 = vpop.f32.mrf.mxu0
  %v1704 = vadd.f32 %v1375, %v1703
  %v1705 = vpop.f32.mrf.mxu0
  %v1706 = vadd.f32 %v1377, %v1705
  %1707 = vmatmul.bf16.gmra.mxu0 %v1049
  %v1708 = vpop.f32.mrf.mxu0
  %v1709 = vadd.f32 %v1380, %v1708
  %v1710 = vpop.f32.mrf.mxu0
  %v1711 = vadd.f32 %v1382, %v1710
  %1712 = vdwg.mxu0
  %v1713 = vmax.f32 %v1394, %v1474
  %v1714 = vmax.f32 %v1396, %v1476
  %v1715 = vmax.f32 %v1399, %v1479
  %v1716 = vmax.f32 %v1401, %v1481
  %v1717 = vmax.f32 %v1404, %v1484
  %v1718 = vmax.f32 %v1406, %v1486
  %v1719 = vmax.f32 %v1409, %v1489
  %v1720 = vmax.f32 %v1411, %v1491
  %v1721 = vmax.f32 %v1414, %v1494
  %v1722 = vmax.f32 %v1416, %v1496
  %v1723 = vmax.f32 %v1419, %v1499
  %v1724 = vmax.f32 %v1421, %v1501
  %v1725 = vmax.f32 %v1424, %v1504
  %v1726 = vmax.f32 %v1426, %v1506
  %v1727 = vmax.f32 %v1429, %v1509
  %v1728 = vmax.f32 %v1431, %v1511
  %v1729 = vmax.f32 %v1434, %v1514
  %v1730 = vmax.f32 %v1436, %v1516
  %v1731 = vmax.f32 %v1439, %v1519
  %v1732 = vmax.f32 %v1441, %v1521
  %v1733 = vmax.f32 %v1444, %v1524
  %v1734 = vmax.f32 %v1446, %v1526
  %v1735 = vmax.f32 %v1449, %v1529
  %v1736 = vmax.f32 %v1451, %v1531
  %v1737 = vmax.f32 %v1454, %v1534
  %v1738 = vmax.f32 %v1456, %v1536
  %v1739 = vmax.f32 %v1459, %v1539
  %v1740 = vmax.f32 %v1461, %v1541
  %v1741 = vmax.f32 %v1464, %v1544
  %v1742 = vmax.f32 %v1466, %v1546
  %v1743 = vmax.f32 %v1469, %v1549
  %v1744 = vmax.f32 %v1471, %v1551
  %v1745 = vmax.f32 %v1554, %v1634
  %v1746 = vmax.f32 %v1556, %v1636
  %v1747 = vmax.f32 %v1559, %v1639
  %v1748 = vmax.f32 %v1561, %v1641
  %v1749 = vmax.f32 %v1564, %v1644
  %v1750 = vmax.f32 %v1566, %v1646
  %v1751 = vmax.f32 %v1569, %v1649
  %v1752 = vmax.f32 %v1571, %v1651
  %v1753 = vmax.f32 %v1574, %v1654
  %v1754 = vmax.f32 %v1576, %v1656
  %v1755 = vmax.f32 %v1579, %v1659
  %v1756 = vmax.f32 %v1581, %v1661
  %v1757 = vmax.f32 %v1584, %v1664
  %v1758 = vmax.f32 %v1586, %v1666
  %v1759 = vmax.f32 %v1589, %v1669
  %v1760 = vmax.f32 %v1591, %v1671
  %v1761 = vmax.f32 %v1594, %v1674
  %v1762 = vmax.f32 %v1596, %v1676
  %v1763 = vmax.f32 %v1599, %v1679
  %v1764 = vmax.f32 %v1601, %v1681
  %v1765 = vmax.f32 %v1604, %v1684
  %v1766 = vmax.f32 %v1606, %v1686
  %v1767 = vmax.f32 %v1609, %v1689
  %v1768 = vmax.f32 %v1611, %v1691
  %v1769 = vmax.f32 %v1614, %v1694
  %v1770 = vmax.f32 %v1616, %v1696
  %v1771 = vmax.f32 %v1619, %v1699
  %v1772 = vmax.f32 %v1621, %v1701
  %v1773 = vmax.f32 %v1624, %v1704
  %v1774 = vmax.f32 %v1626, %v1706
  %v1775 = vmax.f32 %v1629, %v1709
  %v1776 = vmax.f32 %v1631, %v1711
  %v1777 = vmax.f32 %v1713, %v1745
  %v1778 = vmax.f32 %v1714, %v1746
  %v1779 = vmax.f32 %v1715, %v1747
  %v1780 = vmax.f32 %v1716, %v1748
  %v1781 = vmax.f32 %v1717, %v1749
  %v1782 = vmax.f32 %v1718, %v1750
  %v1783 = vmax.f32 %v1719, %v1751
  %v1784 = vmax.f32 %v1720, %v1752
  %v1785 = vmax.f32 %v1721, %v1753
  %v1786 = vmax.f32 %v1722, %v1754
  %v1787 = vmax.f32 %v1723, %v1755
  %v1788 = vmax.f32 %v1724, %v1756
  %v1789 = vmax.f32 %v1725, %v1757
  %v1790 = vmax.f32 %v1726, %v1758
  %v1791 = vmax.f32 %v1727, %v1759
  %v1792 = vmax.f32 %v1728, %v1760
  %v1793 = vmax.f32 %v1729, %v1761
  %v1794 = vmax.f32 %v1730, %v1762
  %v1795 = vmax.f32 %v1731, %v1763
  %v1796 = vmax.f32 %v1732, %v1764
  %v1797 = vmax.f32 %v1733, %v1765
  %v1798 = vmax.f32 %v1734, %v1766
  %v1799 = vmax.f32 %v1735, %v1767
  %v1800 = vmax.f32 %v1736, %v1768
  %v1801 = vmax.f32 %v1737, %v1769
  %v1802 = vmax.f32 %v1738, %v1770
  %v1803 = vmax.f32 %v1739, %v1771
  %v1804 = vmax.f32 %v1740, %v1772
  %v1805 = vmax.f32 %v1741, %v1773
  %v1806 = vmax.f32 %v1742, %v1774
  %v1807 = vmax.f32 %v1743, %v1775
  %v1808 = vmax.f32 %v1744, %v1776
  %v1809 = vld [vmem:[%s2] sm:$0x1]
  %v1811 = vperm.slane %v1809, 0
  %v1813 = vadd.f32 %v1777, %v1811
  %v1814 = vadd.f32 %v1778, %v1811
  %v1815 = vadd.f32 %v1779, %v1811
  %v1816 = vadd.f32 %v1780, %v1811
  %v1817 = vadd.f32 %v1781, %v1811
  %v1818 = vadd.f32 %v1782, %v1811
  %v1819 = vadd.f32 %v1783, %v1811
  %v1820 = vadd.f32 %v1784, %v1811
  %v1821 = vadd.f32 %v1785, %v1811
  %v1822 = vadd.f32 %v1786, %v1811
  %v1823 = vadd.f32 %v1787, %v1811
  %v1824 = vadd.f32 %v1788, %v1811
  %v1825 = vadd.f32 %v1789, %v1811
  %v1826 = vadd.f32 %v1790, %v1811
  %v1827 = vadd.f32 %v1791, %v1811
  %v1828 = vadd.f32 %v1792, %v1811
  %v1829 = vadd.f32 %v1793, %v1811
  %v1830 = vadd.f32 %v1794, %v1811
  %v1831 = vadd.f32 %v1795, %v1811
  %v1832 = vadd.f32 %v1796, %v1811
  %v1833 = vadd.f32 %v1797, %v1811
  %v1834 = vadd.f32 %v1798, %v1811
  %v1835 = vadd.f32 %v1799, %v1811
  %v1836 = vadd.f32 %v1800, %v1811
  %v1837 = vadd.f32 %v1801, %v1811
  %v1838 = vadd.f32 %v1802, %v1811
  %v1839 = vadd.f32 %v1803, %v1811
  %v1840 = vadd.f32 %v1804, %v1811
  %v1841 = vadd.f32 %v1805, %v1811
  %v1842 = vadd.f32 %v1806, %v1811
  %v1843 = vadd.f32 %v1807, %v1811
  %v1844 = vadd.f32 %v1808, %v1811
  %v1845 = vmax.f32 %v1813, 0.0
  %v1846 = vmax.f32 %v1814, 0.0
  %v1847 = vmax.f32 %v1815, 0.0
  %v1848 = vmax.f32 %v1816, 0.0
  %v1849 = vmax.f32 %v1817, 0.0
  %v1850 = vmax.f32 %v1818, 0.0
  %v1851 = vmax.f32 %v1819, 0.0
  %v1852 = vmax.f32 %v1820, 0.0
  %v1853 = vmax.f32 %v1821, 0.0
  %v1854 = vmax.f32 %v1822, 0.0
  %v1855 = vmax.f32 %v1823, 0.0
  %v1856 = vmax.f32 %v1824, 0.0
  %v1857 = vmax.f32 %v1825, 0.0
  %v1858 = vmax.f32 %v1826, 0.0
  %v1859 = vmax.f32 %v1827, 0.0
  %v1860 = vmax.f32 %v1828, 0.0
  %v1861 = vmax.f32 %v1829, 0.0
  %v1862 = vmax.f32 %v1830, 0.0
  %v1863 = vmax.f32 %v1831, 0.0
  %v1864 = vmax.f32 %v1832, 0.0
  %v1865 = vmax.f32 %v1833, 0.0
  %v1866 = vmax.f32 %v1834, 0.0
  %v1867 = vmax.f32 %v1835, 0.0
  %v1868 = vmax.f32 %v1836, 0.0
  %v1869 = vmax.f32 %v1837, 0.0
  %v1870 = vmax.f32 %v1838, 0.0
  %v1871 = vmax.f32 %v1839, 0.0
  %v1872 = vmax.f32 %v1840, 0.0
  %v1873 = vmax.f32 %v1841, 0.0
  %v1874 = vmax.f32 %v1842, 0.0
  %v1875 = vmax.f32 %v1843, 0.0
  %v1876 = vmax.f32 %v1844, 0.0
  %v1877 = vpack.c.bf16 %v1845, %v1845
  %v1878 = vpack.c.bf16 %v1846, %v1846
  %v1879 = vpack.c.bf16 %v1847, %v1847
  %v1880 = vpack.c.bf16 %v1848, %v1848
  %v1881 = vpack.c.bf16 %v1849, %v1849
  %v1882 = vpack.c.bf16 %v1850, %v1850
  %v1883 = vpack.c.bf16 %v1851, %v1851
  %v1884 = vpack.c.bf16 %v1852, %v1852
  %v1885 = vpack.c.bf16 %v1853, %v1853
  %v1886 = vpack.c.bf16 %v1854, %v1854
  %v1887 = vpack.c.bf16 %v1855, %v1855
  %v1888 = vpack.c.bf16 %v1856, %v1856
  %v1889 = vpack.c.bf16 %v1857, %v1857
  %v1890 = vpack.c.bf16 %v1858, %v1858
  %v1891 = vpack.c.bf16 %v1859, %v1859
  %v1892 = vpack.c.bf16 %v1860, %v1860
  %v1893 = vpack.c.bf16 %v1861, %v1861
  %v1894 = vpack.c.bf16 %v1862, %v1862
  %v1895 = vpack.c.bf16 %v1863, %v1863
  %v1896 = vpack.c.bf16 %v1864, %v1864
  %v1897 = vpack.c.bf16 %v1865, %v1865
  %v1898 = vpack.c.bf16 %v1866, %v1866
  %v1899 = vpack.c.bf16 %v1867, %v1867
  %v1900 = vpack.c.bf16 %v1868, %v1868
  %v1901 = vpack.c.bf16 %v1869, %v1869
  %v1902 = vpack.c.bf16 %v1870, %v1870
  %v1903 = vpack.c.bf16 %v1871, %v1871
  %v1904 = vpack.c.bf16 %v1872, %v1872
  %v1905 = vpack.c.bf16 %v1873, %v1873
  %v1906 = vpack.c.bf16 %v1874, %v1874
  %v1907 = vpack.c.bf16 %v1875, %v1875
  %v1908 = vpack.c.bf16 %v1876, %v1876
  %v1909 = vld [vmem:[%s3] sm:$0xf]
  %v1910 = vld [vmem:[%s3 + $0x4] sm:$0xf]
  %v1911 = vld [vmem:[%s3 + $0x8] sm:$0x3]
  %s1912 = scalar_lea.vmem %s3, 12
  %v1913 = vld [vmem:[%s1912] sm:$0xf]
  %v1914 = vld [vmem:[%s1912 + $0x4] sm:$0xf]
  %v1915 = vld [vmem:[%s1912 + $0x8] sm:$0x3]
  %v1918 = vunpack.c.l.b16 %v1879
  %v1919 = vunpack.c.l.b16 %v1880
  %v1920 = vpack.c.b16 %v1919, %v1918
  %v1924 = vunpack.c.l.b16 %v1913
  %v1925 = vunpack.c.l.b16 %v1914
  %v1926 = vunpack.c.l.b16 %v1915
  %v1927 = vpack.c.b16 %v1925, %v1924
  %v1928 = vpack.c.b16 %v1926, %v1926
  %vm1930 = vcmask 162816
  %v1932 = vsel %vm1930, %v1920, 0
  %vm1934 = vcmask 1041408
  %v1936 = vsel %vm1934, %v1928, 0
  %1938 = vmatpush.bf16.msra.mxu0 0
  %1939 = vmatpush.bf16.msra.mxu0 0
  %1940 = vmatpush.bf16.msra.mxu0 0
  %1941 = vmatpush.bf16.msra.mxu0 0
  %1942 = vmatpush.bf16.msra.mxu0 0
  %1943 = vmatpush.bf16.msra.mxu0 0
  %1944 = vmatpush.bf16.msra.mxu0 %v1936
  %1945 = vmatpush.bf16.msra.mxu0 %v1927
  %1946 = vmatmul.bf16.gmra.mxu0 %v1932
  %v1947 = vpop.f32.mrf.mxu0
  %v1948 = vadd.f32 0.0, %v1947
  %v1949 = vpop.f32.mrf.mxu0
  %v1950 = vadd.f32 0.0, %v1949
  %1951 = vdwg.mxu0
  %v1954 = vunpack.c.l.b16 %v1877
  %v1955 = vunpack.c.l.b16 %v1878
  %v1956 = vpack.c.b16 %v1955, %v1954
  %v1960 = vunpack.c.l.b16 %v1909
  %v1961 = vunpack.c.l.b16 %v1910
  %v1962 = vunpack.c.l.b16 %v1911
  %v1963 = vpack.c.b16 %v1961, %v1960
  %v1964 = vpack.c.b16 %v1962, %v1962
  %v1967 = vsel %vm1930, %v1956, 0
  %v1970 = vsel %vm1934, %v1964, 0
  %1972 = vmatpush.bf16.msra.mxu0 0
  %1973 = vmatpush.bf16.msra.mxu0 0
  %1974 = vmatpush.bf16.msra.mxu0 0
  %1975 = vmatpush.bf16.msra.mxu0 0
  %1976 = vmatpush.bf16.msra.mxu0 0
  %1977 = vmatpush.bf16.msra.mxu0 0
  %1978 = vmatpush.bf16.msra.mxu0 %v1970
  %1979 = vmatpush.bf16.msra.mxu0 %v1963
  %1980 = vmatmul.bf16.gmra.mxu0 %v1967
  %v1981 = vpop.f32.mrf.mxu0
  %v1982 = vadd.f32 %v1948, %v1981
  %v1983 = vpop.f32.mrf.mxu0
  %v1984 = vadd.f32 %v1950, %v1983
  %1985 = vdwg.mxu0
  %s1986 = scalar_lea.vmem %s3, 24
  %v1987 = vld [vmem:[%s1986] sm:$0xf]
  %v1988 = vld [vmem:[%s1986 + $0x4] sm:$0xf]
  %v1989 = vld [vmem:[%s1986 + $0x8] sm:$0x3]
  %v1992 = vunpack.c.l.b16 %v1881
  %v1993 = vunpack.c.l.b16 %v1882
  %v1994 = vpack.c.b16 %v1993, %v1992
  %v1998 = vunpack.c.l.b16 %v1987
  %v1999 = vunpack.c.l.b16 %v1988
  %v2000 = vunpack.c.l.b16 %v1989
  %v2001 = vpack.c.b16 %v1999, %v1998
  %v2002 = vpack.c.b16 %v2000, %v2000
  %v2005 = vsel %vm1930, %v1994, 0
  %v2008 = vsel %vm1934, %v2002, 0
  %2010 = vmatpush.bf16.msra.mxu0 0
  %2011 = vmatpush.bf16.msra.mxu0 0
  %2012 = vmatpush.bf16.msra.mxu0 0
  %2013 = vmatpush.bf16.msra.mxu0 0
  %2014 = vmatpush.bf16.msra.mxu0 0
  %2015 = vmatpush.bf16.msra.mxu0 0
  %2016 = vmatpush.bf16.msra.mxu0 %v2008
  %2017 = vmatpush.bf16.msra.mxu0 %v2001
  %2018 = vmatmul.bf16.gmra.mxu0 %v2005
  %v2019 = vpop.f32.mrf.mxu0
  %v2020 = vadd.f32 0.0, %v2019
  %v2021 = vpop.f32.mrf.mxu0
  %v2022 = vadd.f32 0.0, %v2021
  %2023 = vdwg.mxu0
  %v2024 = vadd.f32 %v1982, %v2020
  %v2025 = vadd.f32 %v1984, %v2022
  %s2026 = scalar_lea.vmem %s3, 36
  %v2027 = vld [vmem:[%s2026] sm:$0xf]
  %v2028 = vld [vmem:[%s2026 + $0x4] sm:$0xf]
  %v2029 = vld [vmem:[%s2026 + $0x8] sm:$0x3]
  %v2032 = vunpack.c.l.b16 %v1883
  %v2033 = vunpack.c.l.b16 %v1884
  %v2034 = vpack.c.b16 %v2033, %v2032
  %v2038 = vunpack.c.l.b16 %v2027
  %v2039 = vunpack.c.l.b16 %v2028
  %v2040 = vunpack.c.l.b16 %v2029
  %v2041 = vpack.c.b16 %v2039, %v2038
  %v2042 = vpack.c.b16 %v2040, %v2040
  %v2045 = vsel %vm1930, %v2034, 0
  %v2048 = vsel %vm1934, %v2042, 0
  %2050 = vmatpush.bf16.msra.mxu0 0
  %2051 = vmatpush.bf16.msra.mxu0 0
  %2052 = vmatpush.bf16.msra.mxu0 0
  %2053 = vmatpush.bf16.msra.mxu0 0
  %2054 = vmatpush.bf16.msra.mxu0 0
  %2055 = vmatpush.bf16.msra.mxu0 0
  %2056 = vmatpush.bf16.msra.mxu0 %v2048
  %2057 = vmatpush.bf16.msra.mxu0 %v2041
  %2058 = vmatmul.bf16.gmra.mxu0 %v2045
  %v2059 = vpop.f32.mrf.mxu0
  %v2060 = vadd.f32 0.0, %v2059
  %v2061 = vpop.f32.mrf.mxu0
  %v2062 = vadd.f32 0.0, %v2061
  %2063 = vdwg.mxu0
  %v2064 = vadd.f32 %v2024, %v2060
  %v2065 = vadd.f32 %v2025, %v2062
  %s2066 = scalar_lea.vmem %s3, 48
  %v2067 = vld [vmem:[%s2066] sm:$0xf]
  %v2068 = vld [vmem:[%s2066 + $0x4] sm:$0xf]
  %v2069 = vld [vmem:[%s2066 + $0x8] sm:$0x3]
  %v2072 = vunpack.c.l.b16 %v1885
  %v2073 = vunpack.c.l.b16 %v1886
  %v2074 = vpack.c.b16 %v2073, %v2072
  %v2078 = vunpack.c.l.b16 %v2067
  %v2079 = vunpack.c.l.b16 %v2068
  %v2080 = vunpack.c.l.b16 %v2069
  %v2081 = vpack.c.b16 %v2079, %v2078
  %v2082 = vpack.c.b16 %v2080, %v2080
  %v2085 = vsel %vm1930, %v2074, 0
  %v2088 = vsel %vm1934, %v2082, 0
  %2090 = vmatpush.bf16.msra.mxu0 0
  %2091 = vmatpush.bf16.msra.mxu0 0
  %2092 = vmatpush.bf16.msra.mxu0 0
  %2093 = vmatpush.bf16.msra.mxu0 0
  %2094 = vmatpush.bf16.msra.mxu0 0
  %2095 = vmatpush.bf16.msra.mxu0 0
  %2096 = vmatpush.bf16.msra.mxu0 %v2088
  %2097 = vmatpush.bf16.msra.mxu0 %v2081
  %2098 = vmatmul.bf16.gmra.mxu0 %v2085
  %v2099 = vpop.f32.mrf.mxu0
  %v2100 = vadd.f32 0.0, %v2099
  %v2101 = vpop.f32.mrf.mxu0
  %v2102 = vadd.f32 0.0, %v2101
  %2103 = vdwg.mxu0
  %v2104 = vadd.f32 %v2064, %v2100
  %v2105 = vadd.f32 %v2065, %v2102
  %s2106 = scalar_lea.vmem %s3, 60
  %v2107 = vld [vmem:[%s2106] sm:$0xf]
  %v2108 = vld [vmem:[%s2106 + $0x4] sm:$0xf]
  %v2109 = vld [vmem:[%s2106 + $0x8] sm:$0x3]
  %v2112 = vunpack.c.l.b16 %v1887
  %v2113 = vunpack.c.l.b16 %v1888
  %v2114 = vpack.c.b16 %v2113, %v2112
  %v2118 = vunpack.c.l.b16 %v2107
  %v2119 = vunpack.c.l.b16 %v2108
  %v2120 = vunpack.c.l.b16 %v2109
  %v2121 = vpack.c.b16 %v2119, %v2118
  %v2122 = vpack.c.b16 %v2120, %v2120
  %v2125 = vsel %vm1930, %v2114, 0
  %v2128 = vsel %vm1934, %v2122, 0
  %2130 = vmatpush.bf16.msra.mxu0 0
  %2131 = vmatpush.bf16.msra.mxu0 0
  %2132 = vmatpush.bf16.msra.mxu0 0
  %2133 = vmatpush.bf16.msra.mxu0 0
  %2134 = vmatpush.bf16.msra.mxu0 0
  %2135 = vmatpush.bf16.msra.mxu0 0
  %2136 = vmatpush.bf16.msra.mxu0 %v2128
  %2137 = vmatpush.bf16.msra.mxu0 %v2121
  %2138 = vmatmul.bf16.gmra.mxu0 %v2125
  %v2139 = vpop.f32.mrf.mxu0
  %v2140 = vadd.f32 0.0, %v2139
  %v2141 = vpop.f32.mrf.mxu0
  %v2142 = vadd.f32 0.0, %v2141
  %2143 = vdwg.mxu0
  %v2144 = vadd.f32 %v2104, %v2140
  %v2145 = vadd.f32 %v2105, %v2142
  %s2146 = scalar_lea.vmem %s3, 72
  %v2147 = vld [vmem:[%s2146] sm:$0xf]
  %v2148 = vld [vmem:[%s2146 + $0x4] sm:$0xf]
  %v2149 = vld [vmem:[%s2146 + $0x8] sm:$0x3]
  %v2152 = vunpack.c.l.b16 %v1889
  %v2153 = vunpack.c.l.b16 %v1890
  %v2154 = vpack.c.b16 %v2153, %v2152
  %v2158 = vunpack.c.l.b16 %v2147
  %v2159 = vunpack.c.l.b16 %v2148
  %v2160 = vunpack.c.l.b16 %v2149
  %v2161 = vpack.c.b16 %v2159, %v2158
  %v2162 = vpack.c.b16 %v2160, %v2160
  %v2165 = vsel %vm1930, %v2154, 0
  %v2168 = vsel %vm1934, %v2162, 0
  %2170 = vmatpush.bf16.msra.mxu0 0
  %2171 = vmatpush.bf16.msra.mxu0 0
  %2172 = vmatpush.bf16.msra.mxu0 0
  %2173 = vmatpush.bf16.msra.mxu0 0
  %2174 = vmatpush.bf16.msra.mxu0 0
  %2175 = vmatpush.bf16.msra.mxu0 0
  %2176 = vmatpush.bf16.msra.mxu0 %v2168
  %2177 = vmatpush.bf16.msra.mxu0 %v2161
  %2178 = vmatmul.bf16.gmra.mxu0 %v2165
  %v2179 = vpop.f32.mrf.mxu0
  %v2180 = vadd.f32 0.0, %v2179
  %v2181 = vpop.f32.mrf.mxu0
  %v2182 = vadd.f32 0.0, %v2181
  %2183 = vdwg.mxu0
  %v2184 = vadd.f32 %v2144, %v2180
  %v2185 = vadd.f32 %v2145, %v2182
  %s2186 = scalar_lea.vmem %s3, 84
  %v2187 = vld [vmem:[%s2186] sm:$0xf]
  %v2188 = vld [vmem:[%s2186 + $0x4] sm:$0xf]
  %v2189 = vld [vmem:[%s2186 + $0x8] sm:$0x3]
  %v2192 = vunpack.c.l.b16 %v1891
  %v2193 = vunpack.c.l.b16 %v1892
  %v2194 = vpack.c.b16 %v2193, %v2192
  %v2198 = vunpack.c.l.b16 %v2187
  %v2199 = vunpack.c.l.b16 %v2188
  %v2200 = vunpack.c.l.b16 %v2189
  %v2201 = vpack.c.b16 %v2199, %v2198
  %v2202 = vpack.c.b16 %v2200, %v2200
  %v2205 = vsel %vm1930, %v2194, 0
  %v2208 = vsel %vm1934, %v2202, 0
  %2210 = vmatpush.bf16.msra.mxu0 0
  %2211 = vmatpush.bf16.msra.mxu0 0
  %2212 = vmatpush.bf16.msra.mxu0 0
  %2213 = vmatpush.bf16.msra.mxu0 0
  %2214 = vmatpush.bf16.msra.mxu0 0
  %2215 = vmatpush.bf16.msra.mxu0 0
  %2216 = vmatpush.bf16.msra.mxu0 %v2208
  %2217 = vmatpush.bf16.msra.mxu0 %v2201
  %2218 = vmatmul.bf16.gmra.mxu0 %v2205
  %v2219 = vpop.f32.mrf.mxu0
  %v2220 = vadd.f32 0.0, %v2219
  %v2221 = vpop.f32.mrf.mxu0
  %v2222 = vadd.f32 0.0, %v2221
  %2223 = vdwg.mxu0
  %v2224 = vadd.f32 %v2184, %v2220
  %v2225 = vadd.f32 %v2185, %v2222
  %s2226 = scalar_lea.vmem %s3, 96
  %v2227 = vld [vmem:[%s2226] sm:$0xf]
  %v2228 = vld [vmem:[%s2226 + $0x4] sm:$0xf]
  %v2229 = vld [vmem:[%s2226 + $0x8] sm:$0x3]
  %v2232 = vunpack.c.l.b16 %v1893
  %v2233 = vunpack.c.l.b16 %v1894
  %v2234 = vpack.c.b16 %v2233, %v2232
  %v2238 = vunpack.c.l.b16 %v2227
  %v2239 = vunpack.c.l.b16 %v2228
  %v2240 = vunpack.c.l.b16 %v2229
  %v2241 = vpack.c.b16 %v2239, %v2238
  %v2242 = vpack.c.b16 %v2240, %v2240
  %v2245 = vsel %vm1930, %v2234, 0
  %v2248 = vsel %vm1934, %v2242, 0
  %2250 = vmatpush.bf16.msra.mxu0 0
  %2251 = vmatpush.bf16.msra.mxu0 0
  %2252 = vmatpush.bf16.msra.mxu0 0
  %2253 = vmatpush.bf16.msra.mxu0 0
  %2254 = vmatpush.bf16.msra.mxu0 0
  %2255 = vmatpush.bf16.msra.mxu0 0
  %2256 = vmatpush.bf16.msra.mxu0 %v2248
  %2257 = vmatpush.bf16.msra.mxu0 %v2241
  %2258 = vmatmul.bf16.gmra.mxu0 %v2245
  %v2259 = vpop.f32.mrf.mxu0
  %v2260 = vadd.f32 0.0, %v2259
  %v2261 = vpop.f32.mrf.mxu0
  %v2262 = vadd.f32 0.0, %v2261
  %2263 = vdwg.mxu0
  %v2264 = vadd.f32 %v2224, %v2260
  %v2265 = vadd.f32 %v2225, %v2262
  %s2266 = scalar_lea.vmem %s3, 108
  %v2267 = vld [vmem:[%s2266] sm:$0xf]
  %v2268 = vld [vmem:[%s2266 + $0x4] sm:$0xf]
  %v2269 = vld [vmem:[%s2266 + $0x8] sm:$0x3]
  %v2272 = vunpack.c.l.b16 %v1895
  %v2273 = vunpack.c.l.b16 %v1896
  %v2274 = vpack.c.b16 %v2273, %v2272
  %v2278 = vunpack.c.l.b16 %v2267
  %v2279 = vunpack.c.l.b16 %v2268
  %v2280 = vunpack.c.l.b16 %v2269
  %v2281 = vpack.c.b16 %v2279, %v2278
  %v2282 = vpack.c.b16 %v2280, %v2280
  %v2285 = vsel %vm1930, %v2274, 0
  %v2288 = vsel %vm1934, %v2282, 0
  %2290 = vmatpush.bf16.msra.mxu0 0
  %2291 = vmatpush.bf16.msra.mxu0 0
  %2292 = vmatpush.bf16.msra.mxu0 0
  %2293 = vmatpush.bf16.msra.mxu0 0
  %2294 = vmatpush.bf16.msra.mxu0 0
  %2295 = vmatpush.bf16.msra.mxu0 0
  %2296 = vmatpush.bf16.msra.mxu0 %v2288
  %2297 = vmatpush.bf16.msra.mxu0 %v2281
  %2298 = vmatmul.bf16.gmra.mxu0 %v2285
  %v2299 = vpop.f32.mrf.mxu0
  %v2300 = vadd.f32 0.0, %v2299
  %v2301 = vpop.f32.mrf.mxu0
  %v2302 = vadd.f32 0.0, %v2301
  %2303 = vdwg.mxu0
  %v2304 = vadd.f32 %v2264, %v2300
  %v2305 = vadd.f32 %v2265, %v2302
  %s2306 = scalar_lea.vmem %s3, 120
  %v2307 = vld [vmem:[%s2306] sm:$0xf]
  %v2308 = vld [vmem:[%s2306 + $0x4] sm:$0xf]
  %v2309 = vld [vmem:[%s2306 + $0x8] sm:$0x3]
  %v2312 = vunpack.c.l.b16 %v1897
  %v2313 = vunpack.c.l.b16 %v1898
  %v2314 = vpack.c.b16 %v2313, %v2312
  %v2318 = vunpack.c.l.b16 %v2307
  %v2319 = vunpack.c.l.b16 %v2308
  %v2320 = vunpack.c.l.b16 %v2309
  %v2321 = vpack.c.b16 %v2319, %v2318
  %v2322 = vpack.c.b16 %v2320, %v2320
  %v2325 = vsel %vm1930, %v2314, 0
  %v2328 = vsel %vm1934, %v2322, 0
  %2330 = vmatpush.bf16.msra.mxu0 0
  %2331 = vmatpush.bf16.msra.mxu0 0
  %2332 = vmatpush.bf16.msra.mxu0 0
  %2333 = vmatpush.bf16.msra.mxu0 0
  %2334 = vmatpush.bf16.msra.mxu0 0
  %2335 = vmatpush.bf16.msra.mxu0 0
  %2336 = vmatpush.bf16.msra.mxu0 %v2328
  %2337 = vmatpush.bf16.msra.mxu0 %v2321
  %2338 = vmatmul.bf16.gmra.mxu0 %v2325
  %v2339 = vpop.f32.mrf.mxu0
  %v2340 = vadd.f32 0.0, %v2339
  %v2341 = vpop.f32.mrf.mxu0
  %v2342 = vadd.f32 0.0, %v2341
  %2343 = vdwg.mxu0
  %v2344 = vadd.f32 %v2304, %v2340
  %v2345 = vadd.f32 %v2305, %v2342
  %s2346 = scalar_lea.vmem %s3, 132
  %v2347 = vld [vmem:[%s2346] sm:$0xf]
  %v2348 = vld [vmem:[%s2346 + $0x4] sm:$0xf]
  %v2349 = vld [vmem:[%s2346 + $0x8] sm:$0x3]
  %v2352 = vunpack.c.l.b16 %v1899
  %v2353 = vunpack.c.l.b16 %v1900
  %v2354 = vpack.c.b16 %v2353, %v2352
  %v2358 = vunpack.c.l.b16 %v2347
  %v2359 = vunpack.c.l.b16 %v2348
  %v2360 = vunpack.c.l.b16 %v2349
  %v2361 = vpack.c.b16 %v2359, %v2358
  %v2362 = vpack.c.b16 %v2360, %v2360
  %v2365 = vsel %vm1930, %v2354, 0
  %v2368 = vsel %vm1934, %v2362, 0
  %2370 = vmatpush.bf16.msra.mxu0 0
  %2371 = vmatpush.bf16.msra.mxu0 0
  %2372 = vmatpush.bf16.msra.mxu0 0
  %2373 = vmatpush.bf16.msra.mxu0 0
  %2374 = vmatpush.bf16.msra.mxu0 0
  %2375 = vmatpush.bf16.msra.mxu0 0
  %2376 = vmatpush.bf16.msra.mxu0 %v2368
  %2377 = vmatpush.bf16.msra.mxu0 %v2361
  %2378 = vmatmul.bf16.gmra.mxu0 %v2365
  %v2379 = vpop.f32.mrf.mxu0
  %v2380 = vadd.f32 0.0, %v2379
  %v2381 = vpop.f32.mrf.mxu0
  %v2382 = vadd.f32 0.0, %v2381
  %2383 = vdwg.mxu0
  %v2384 = vadd.f32 %v2344, %v2380
  %v2385 = vadd.f32 %v2345, %v2382
  %s2386 = scalar_lea.vmem %s3, 144
  %v2387 = vld [vmem:[%s2386] sm:$0xf]
  %v2388 = vld [vmem:[%s2386 + $0x4] sm:$0xf]
  %v2389 = vld [vmem:[%s2386 + $0x8] sm:$0x3]
  %v2392 = vunpack.c.l.b16 %v1901
  %v2393 = vunpack.c.l.b16 %v1902
  %v2394 = vpack.c.b16 %v2393, %v2392
  %v2398 = vunpack.c.l.b16 %v2387
  %v2399 = vunpack.c.l.b16 %v2388
  %v2400 = vunpack.c.l.b16 %v2389
  %v2401 = vpack.c.b16 %v2399, %v2398
  %v2402 = vpack.c.b16 %v2400, %v2400
  %v2405 = vsel %vm1930, %v2394, 0
  %v2408 = vsel %vm1934, %v2402, 0
  %2410 = vmatpush.bf16.msra.mxu0 0
  %2411 = vmatpush.bf16.msra.mxu0 0
  %2412 = vmatpush.bf16.msra.mxu0 0
  %2413 = vmatpush.bf16.msra.mxu0 0
  %2414 = vmatpush.bf16.msra.mxu0 0
  %2415 = vmatpush.bf16.msra.mxu0 0
  %2416 = vmatpush.bf16.msra.mxu0 %v2408
  %2417 = vmatpush.bf16.msra.mxu0 %v2401
  %2418 = vmatmul.bf16.gmra.mxu0 %v2405
  %v2419 = vpop.f32.mrf.mxu0
  %v2420 = vadd.f32 0.0, %v2419
  %v2421 = vpop.f32.mrf.mxu0
  %v2422 = vadd.f32 0.0, %v2421
  %2423 = vdwg.mxu0
  %v2424 = vadd.f32 %v2384, %v2420
  %v2425 = vadd.f32 %v2385, %v2422
  %s2426 = scalar_lea.vmem %s3, 156
  %v2427 = vld [vmem:[%s2426] sm:$0xf]
  %v2428 = vld [vmem:[%s2426 + $0x4] sm:$0xf]
  %v2429 = vld [vmem:[%s2426 + $0x8] sm:$0x3]
  %v2432 = vunpack.c.l.b16 %v1903
  %v2433 = vunpack.c.l.b16 %v1904
  %v2434 = vpack.c.b16 %v2433, %v2432
  %v2438 = vunpack.c.l.b16 %v2427
  %v2439 = vunpack.c.l.b16 %v2428
  %v2440 = vunpack.c.l.b16 %v2429
  %v2441 = vpack.c.b16 %v2439, %v2438
  %v2442 = vpack.c.b16 %v2440, %v2440
  %v2445 = vsel %vm1930, %v2434, 0
  %v2448 = vsel %vm1934, %v2442, 0
  %2450 = vmatpush.bf16.msra.mxu0 0
  %2451 = vmatpush.bf16.msra.mxu0 0
  %2452 = vmatpush.bf16.msra.mxu0 0
  %2453 = vmatpush.bf16.msra.mxu0 0
  %2454 = vmatpush.bf16.msra.mxu0 0
  %2455 = vmatpush.bf16.msra.mxu0 0
  %2456 = vmatpush.bf16.msra.mxu0 %v2448
  %2457 = vmatpush.bf16.msra.mxu0 %v2441
  %2458 = vmatmul.bf16.gmra.mxu0 %v2445
  %v2459 = vpop.f32.mrf.mxu0
  %v2460 = vadd.f32 0.0, %v2459
  %v2461 = vpop.f32.mrf.mxu0
  %v2462 = vadd.f32 0.0, %v2461
  %2463 = vdwg.mxu0
  %v2464 = vadd.f32 %v2424, %v2460
  %v2465 = vadd.f32 %v2425, %v2462
  %s2466 = scalar_lea.vmem %s3, 168
  %v2467 = vld [vmem:[%s2466] sm:$0xf]
  %v2468 = vld [vmem:[%s2466 + $0x4] sm:$0xf]
  %v2469 = vld [vmem:[%s2466 + $0x8] sm:$0x3]
  %v2472 = vunpack.c.l.b16 %v1905
  %v2473 = vunpack.c.l.b16 %v1906
  %v2474 = vpack.c.b16 %v2473, %v2472
  %v2478 = vunpack.c.l.b16 %v2467
  %v2479 = vunpack.c.l.b16 %v2468
  %v2480 = vunpack.c.l.b16 %v2469
  %v2481 = vpack.c.b16 %v2479, %v2478
  %v2482 = vpack.c.b16 %v2480, %v2480
  %v2485 = vsel %vm1930, %v2474, 0
  %v2488 = vsel %vm1934, %v2482, 0
  %2490 = vmatpush.bf16.msra.mxu0 0
  %2491 = vmatpush.bf16.msra.mxu0 0
  %2492 = vmatpush.bf16.msra.mxu0 0
  %2493 = vmatpush.bf16.msra.mxu0 0
  %2494 = vmatpush.bf16.msra.mxu0 0
  %2495 = vmatpush.bf16.msra.mxu0 0
  %2496 = vmatpush.bf16.msra.mxu0 %v2488
  %2497 = vmatpush.bf16.msra.mxu0 %v2481
  %2498 = vmatmul.bf16.gmra.mxu0 %v2485
  %v2499 = vpop.f32.mrf.mxu0
  %v2500 = vadd.f32 0.0, %v2499
  %v2501 = vpop.f32.mrf.mxu0
  %v2502 = vadd.f32 0.0, %v2501
  %2503 = vdwg.mxu0
  %v2504 = vadd.f32 %v2464, %v2500
  %v2505 = vadd.f32 %v2465, %v2502
  %s2506 = scalar_lea.vmem %s3, 180
  %v2507 = vld [vmem:[%s2506] sm:$0xf]
  %v2508 = vld [vmem:[%s2506 + $0x4] sm:$0xf]
  %v2509 = vld [vmem:[%s2506 + $0x8] sm:$0x3]
  %v2512 = vunpack.c.l.b16 %v1907
  %v2513 = vunpack.c.l.b16 %v1908
  %v2514 = vpack.c.b16 %v2513, %v2512
  %v2518 = vunpack.c.l.b16 %v2507
  %v2519 = vunpack.c.l.b16 %v2508
  %v2520 = vunpack.c.l.b16 %v2509
  %v2521 = vpack.c.b16 %v2519, %v2518
  %v2522 = vpack.c.b16 %v2520, %v2520
  %v2525 = vsel %vm1930, %v2514, 0
  %v2528 = vsel %vm1934, %v2522, 0
  %2530 = vmatpush.bf16.msra.mxu0 0
  %2531 = vmatpush.bf16.msra.mxu0 0
  %2532 = vmatpush.bf16.msra.mxu0 0
  %2533 = vmatpush.bf16.msra.mxu0 0
  %2534 = vmatpush.bf16.msra.mxu0 0
  %2535 = vmatpush.bf16.msra.mxu0 0
  %2536 = vmatpush.bf16.msra.mxu0 %v2528
  %2537 = vmatpush.bf16.msra.mxu0 %v2521
  %2538 = vmatmul.bf16.gmra.mxu0 %v2525
  %v2539 = vpop.f32.mrf.mxu0
  %v2540 = vadd.f32 0.0, %v2539
  %v2541 = vpop.f32.mrf.mxu0
  %v2542 = vadd.f32 0.0, %v2541
  %2543 = vdwg.mxu0
  %v2544 = vadd.f32 %v2504, %v2540
  %v2545 = vadd.f32 %v2505, %v2542
  %v2546 = vld [vmem:[%s4] sm:$0x1]
  %v2548 = vperm.slane %v2546, 0
  %v2550 = vadd.f32 %v2544, %v2548
  %v2551 = vadd.f32 %v2545, %v2548
  %v2552 = vmax.f32 %v2550, 0.0
  %v2553 = vmax.f32 %v2551, 0.0
  %v2554 = vpack.c.bf16 %v2553, %v2552
  %v2555 = vld [vmem:[%s5] sm:$0xf]
  %v2556 = vld [vmem:[%s5 + $0x4] sm:$0xf]
  %v2557 = vld [vmem:[%s5 + $0x8] sm:$0xf]
  %v2558 = vld [vmem:[%s5 + $0xc] sm:$0xf]
  %v2559 = vld [vmem:[%s5 + $0x10] sm:$0xf]
  %v2560 = vld [vmem:[%s5 + $0x14] sm:$0xf]
  %v2561 = vld [vmem:[%s5 + $0x18] sm:$0x1]
  %v2562 = vld [vmem:[%s6] sm:$0x1]
  %v2564 = vperm.slane %v2562, 0
  %v2573 = vunpack.c.l.b16 %v2555
  %v2574 = vunpack.c.l.b16 %v2556
  %v2575 = vunpack.c.l.b16 %v2557
  %v2576 = vunpack.c.l.b16 %v2558
  %v2577 = vunpack.c.l.b16 %v2559
  %v2578 = vunpack.c.l.b16 %v2560
  %v2579 = vunpack.c.l.b16 %v2561
  %v2580 = vpack.c.b16 %v2574, %v2573
  %v2581 = vpack.c.b16 %v2576, %v2575
  %v2582 = vpack.c.b16 %v2578, %v2577
  %v2583 = vpack.c.b16 %v2579, %v2579
  %vm2587 = vcmask 408576
  %v2589 = vsel %vm2587, %v2554, 0
  %vm2591 = vcmask 1040384
  %v2593 = vsel %vm2591, %v2583, 0
  %2595 = vmatpush.bf16.msra.mxu0 0
  %2596 = vmatpush.bf16.msra.mxu0 0
  %2597 = vmatpush.bf16.msra.mxu0 0
  %2598 = vmatpush.bf16.msra.mxu0 0
  %2599 = vmatpush.bf16.msra.mxu0 %v2593
  %2600 = vmatpush.bf16.msra.mxu0 %v2582
  %2601 = vmatpush.bf16.msra.mxu0 %v2581
  %2602 = vmatpush.bf16.msra.mxu0 %v2580
  %2603 = vmatmul.bf16.gmra.mxu0 %v2589
  %v2604 = vpop.f32.mrf.mxu0
  %v2605 = vadd.f32 %v2564, %v2604
  %v2606 = vpop.f32.mrf.mxu0
  %v2607 = vadd.f32 %v2564, %v2606
  %2608 = vdwg.mxu0
  %vm2609 = vcmask 80896
  %v2610 = vsel %vm2609, %v2605, -inf
  %2611 = vmax.xlane.f32.xlu0 %v2610
  %v2612 = vpop.xlane.xlu0 %2611
  %v2613 = vsel %vm2609, %v2607, -inf
  %2614 = vmax.xlane.f32.xlu0 %v2613
  %v2615 = vpop.xlane.xlu0 %2614
  %v2616 = vsub.f32 %v2605, %v2612
  %v2617 = vsub.f32 %v2607, %v2615
  %v2618 = vmul.f32 %v2616, 1.442695
  %v2619 = vpow.pop %v2618
  %v2620 = vmul.f32 %v2617, 1.442695
  %v2621 = vpow.pop %v2620
  %v2622 = vsel %vm2609, %v2619, 0.0
  %2623 = vadd.xlane.f32.xlu0 %v2622
  %v2624 = vpop.xlane.xlu0 %2623
  %v2625 = vsel %vm2609, %v2621, 0.0
  %2626 = vadd.xlane.f32.xlu0 %v2625
  %v2627 = vpop.xlane.xlu0 %2626
  %v2628 = vlog2.pop %v2624
  %v2629 = vmul.f32 %v2628, 0.6931472
  %v2630 = vlog2.pop %v2627
  %v2631 = vmul.f32 %v2630, 0.6931472
  %v2632 = vsub.f32 %v2616, %v2629
  %v2633 = vsub.f32 %v2617, %v2631
  %2634 = vst.msk [vmem:[%s7] sm:$0xff] %vm2609, %v2632
  %2635 = vst.msk [vmem:[%s7 + $0x8] sm:$0xff] %vm2609, %v2633
  // Predicated region
  $region30: #{quant_lenet_forward.3} parent=0 // pred_check
    _
  $region31: #{quant_lenet_forward.3} parent=0 // pred_check_branch
    %2637 = sbr.rel (0) target = $region33
  $region32: #{quant_lenet_forward.3} parent=0 // pred_region
    _
  $region33: #{quant_lenet_forward.3} parent=0 // pred_fallthru
    _
  // Predicated region
  $region34: #{quant_lenet_forward.3} parent=0 // pred_check
    _
  $region35: #{quant_lenet_forward.3} parent=0 // pred_check_branch
    %2639 = sbr.rel (0) target = $region37
  $region36: #{quant_lenet_forward.3} parent=0 // pred_region
    _
  $region37: #{quant_lenet_forward.3} parent=0 // pred_fallthru
    _

</llo_original>
